<compile_context>
chip_gen: v7x
topology: tpu7x:2x2x1
jax: 0.10.0
libtpu: 0.0.40
codegen_flags: <defaults>
</compile_context>

<pallas_src>
import jax
import jax.numpy as jnp
from jax.experimental import pallas as pl
from jax.experimental.pallas import tpu as pltpu
import numpy as np

FEAT_IN = 8192              # oscc "middle" feature dim
FC1_IN = 2 * FEAT_IN        # 16384  (cat(oscc_feat, oscc_feat))
HIDDEN = 512                # fc1 out_features
NUM_CLASSES = 2
UNSQUEEZE_DIM = 2
KT = 4096                   # fc1 K-reduction tile

# TODO(synk): oscc_model is an external checkpoint-loaded StateChangeClsResNet;
# its 8192-d "middle" feature is taken as a kernel input instead of being
# recomputed here.


# ------------------------------- fused kernel --------------------------------
def _fused_kernel(x_ref, w1_ref, b1_ref, w2_ref, b2_ref, o_ref, acc_ref):
    k = pl.program_id(0)

    @pl.when(k == 0)
    def _():
        acc_ref[...] = jnp.zeros_like(acc_ref)

    # fc1 partial product: (B, KT) @ (KT, HIDDEN), bf16 MXU, f32 accumulation.
    acc_ref[...] += jnp.dot(x_ref[...].astype(jnp.bfloat16), w1_ref[...],
                            preferred_element_type=jnp.float32)

    @pl.when(k == pl.num_programs(0) - 1)
    def _():
        h = jnp.maximum(acc_ref[...] + b1_ref[...], 0.0)            # ReLU(fc1)
        o_ref[...] = (jnp.dot(h, w2_ref[...],
                              preferred_element_type=jnp.float32)
                      + b2_ref[...])                                 # fc2


@jax.jit
def finetune_state_forward(oscc_feat, params):
    """oscc_feat: (B, 8192) f32 -> logits (B, 2, 1)."""
    B = oscc_feat.shape[0]
    n_k = FC1_IN // KT                 # grid steps over the fc1 reduction (4)
    n_k_x = FEAT_IN // KT              # x blocks per cat-half (2)

    logits = pl.pallas_call(
        _fused_kernel,
        out_shape=jax.ShapeDtypeStruct((B, NUM_CLASSES), jnp.float32),
        grid=(n_k,),
        in_specs=[
            # cat(x, x) folded into the index_map: reuse x blocks modulo n_k_x.
            pl.BlockSpec((B, KT), lambda k: (0, k % n_k_x)),            # x
            pl.BlockSpec((KT, HIDDEN), lambda k: (k, 0)),               # fc1 W
            pl.BlockSpec((1, HIDDEN), lambda k: (0, 0)),                # fc1 b
            pl.BlockSpec((HIDDEN, NUM_CLASSES), lambda k: (0, 0)),      # fc2 W
            pl.BlockSpec((1, NUM_CLASSES), lambda k: (0, 0)),           # fc2 b
        ],
        out_specs=pl.BlockSpec((B, NUM_CLASSES), lambda k: (0, 0)),
        scratch_shapes=[pltpu.VMEM((B, HIDDEN), jnp.float32)],
        compiler_params=pltpu.CompilerParams(
            dimension_semantics=("arbitrary",)),
    )(oscc_feat, params["w_fc1"], params["b_fc1"],
      params["w_fc2"], params["b_fc2"])

    return jnp.expand_dims(logits, UNSQUEEZE_DIM)                    # (B, 2, 1)


# ------------------------------ parameter init --------------------------------
def init_params(key):
    k1, k2 = jax.random.split(key)
    f32 = jnp.float32
    return {
        # nn.Linear stores (out, in); the kernel uses the (in, out) transpose.
        # fc1 weight stored bf16 to halve its HBM traffic (f32 accumulation).
        "w_fc1": (0.02 * jax.random.normal(k1, (FC1_IN, HIDDEN))
                  ).astype(jnp.bfloat16),
        "b_fc1": jnp.zeros((1, HIDDEN), f32),
        "w_fc2": (0.02 * jax.random.normal(k2, (HIDDEN, NUM_CLASSES))
                  ).astype(f32),
        "b_fc2": jnp.zeros((1, NUM_CLASSES), f32),
    }


# ---------------------------------- main ---------------------------------------
if __name__ == "__main__":
    key = jax.random.PRNGKey(0)
    k_feat, k_par = jax.random.split(key)

    B = 2
    # Stand-in for the oscc_model(x, middle=True).squeeze(1) backbone feature.
    oscc_feat = jax.random.normal(k_feat, (B, FEAT_IN), jnp.float32)
    params = init_params(k_par)

    out = finetune_state_forward(oscc_feat, params)
    out = jax.block_until_ready(out)

    # Pure-JAX reference (f32) for a sanity check; bf16 weight streaming is
    # expected to deviate only slightly (generous tolerance).
    feat = jnp.concatenate([oscc_feat, oscc_feat], axis=1)
    ref = jnp.maximum(feat @ params["w_fc1"].astype(jnp.float32)
                      + params["b_fc1"], 0.0)
    ref = ref @ params["w_fc2"] + params["b_fc2"]
    ref = jnp.expand_dims(ref, UNSQUEEZE_DIM)

    assert out.shape == (B, NUM_CLASSES, 1), out.shape
    assert bool(jnp.all(jnp.isfinite(out)))
    np.testing.assert_allclose(np.asarray(out), np.asarray(ref),
                               rtol=5e-2, atol=5e-2)
    print("KERNEL_OK")
</pallas_src>

<mosaic_0001>
module attributes {stable_mosaic.version = 11 : i64} {
  func.func @_fused_kernel(%arg0: i32, %arg1: memref<2x4096xf32, #tpu.memory_space<vmem>>, %arg2: memref<4096x512xbf16, #tpu.memory_space<vmem>>, %arg3: memref<1x512xf32, #tpu.memory_space<vmem>>, %arg4: memref<512x2xf32, #tpu.memory_space<vmem>>, %arg5: memref<1x2xf32, #tpu.memory_space<vmem>>, %arg6: memref<2x2xf32, #tpu.memory_space<vmem>>, %arg7: memref<2x512xf32, #tpu.memory_space<vmem>>) attributes {dimension_semantics = [#tpu.dimension_semantics<arbitrary>], iteration_bounds = array<i64: 4>, scalar_prefetch = 0 : i64, scratch_operands = 1 : i64, tpu.core_type = #tpu.core_type<tc>, window_params = [{transform_indices = @transform_0, window_bounds = array<i64: 2, 4096>}, {transform_indices = @transform_1, window_bounds = array<i64: 4096, 512>}, {pipeline_mode = #tpu.pipeline_mode<synchronous>, transform_indices = @transform_2, window_bounds = array<i64: 1, 512>}, {pipeline_mode = #tpu.pipeline_mode<synchronous>, transform_indices = @transform_3, window_bounds = array<i64: 512, 2>}, {pipeline_mode = #tpu.pipeline_mode<synchronous>, transform_indices = @transform_4, window_bounds = array<i64: 1, 2>}, {pipeline_mode = #tpu.pipeline_mode<synchronous>, transform_indices = @transform_5, window_bounds = array<i64: 2, 2>}]} {
    %c0_i32 = arith.constant 0 : i32
    %0 = arith.cmpi eq, %arg0, %c0_i32 : i32
    %1 = arith.extui %0 : i1 to i32
    %c0_i32_0 = arith.constant 0 : i32
    %2 = arith.cmpi ne, %1, %c0_i32_0 : i32
    scf.if %2 {
      %cst_9 = arith.constant 0.000000e+00 : f32
      %13 = vector.broadcast %cst_9 : f32 to vector<2x512xf32>
      %c0_10 = arith.constant 0 : index
      %c0_11 = arith.constant 0 : index
      %14 = vector.load %arg7[%c0_10, %c0_11] : memref<2x512xf32, #tpu.memory_space<vmem>>, vector<2x512xf32>
      tpu.vector_store %arg7[%c0_10, %c0_11], %13 {strides = array<i32>} : memref<2x512xf32, #tpu.memory_space<vmem>>, vector<2x512xf32>,
    } else {
    }
    %c0 = arith.constant 0 : index
    %c0_1 = arith.constant 0 : index
    %3 = vector.load %arg7[%c0, %c0_1] : memref<2x512xf32, #tpu.memory_space<vmem>>, vector<2x512xf32>
    %c0_2 = arith.constant 0 : index
    %c0_3 = arith.constant 0 : index
    %4 = vector.load %arg1[%c0_2, %c0_3] : memref<2x4096xf32, #tpu.memory_space<vmem>>, vector<2x4096xf32>
    %5 = arith.truncf %4 : vector<2x4096xf32> to vector<2x4096xbf16>
    %c0_4 = arith.constant 0 : index
    %c0_5 = arith.constant 0 : index
    %6 = vector.load %arg2[%c0_4, %c0_5] : memref<4096x512xbf16, #tpu.memory_space<vmem>>, vector<4096x512xbf16>
    %cst = arith.constant dense<0.000000e+00> : vector<2x512xf32>
    %7 = tpu.matmul %5, %6, %cst {dimension_numbers = #tpu.dot_dimension_numbers<[1], [0], [0], [1], [0, 0, 1, 1], [], []>} : vector<2x4096xbf16>, vector<4096x512xbf16>, vector<2x512xf32> -> vector<2x512xf32>
    %8 = arith.addf %3, %7 : vector<2x512xf32>
    %c0_6 = arith.constant 0 : index
    %c0_7 = arith.constant 0 : index
    %9 = vector.load %arg7[%c0_6, %c0_7] : memref<2x512xf32, #tpu.memory_space<vmem>>, vector<2x512xf32>
    tpu.vector_store %arg7[%c0_6, %c0_7], %8 {strides = array<i32>} : memref<2x512xf32, #tpu.memory_space<vmem>>, vector<2x512xf32>,
    %c3_i32 = arith.constant 3 : i32
    %10 = arith.cmpi eq, %arg0, %c3_i32 : i32
    %11 = arith.extui %10 : i1 to i32
    %c0_i32_8 = arith.constant 0 : i32
    %12 = arith.cmpi ne, %11, %c0_i32_8 : i32
    scf.if %12 {
      %c0_9 = arith.constant 0 : index
      %c0_10 = arith.constant 0 : index
      %13 = vector.load %arg7[%c0_9, %c0_10] : memref<2x512xf32, #tpu.memory_space<vmem>>, vector<2x512xf32>
      %c0_11 = arith.constant 0 : index
      %c0_12 = arith.constant 0 : index
      %14 = vector.load %arg3[%c0_11, %c0_12] : memref<1x512xf32, #tpu.memory_space<vmem>>, vector<1x512xf32>
      %15 = vector.broadcast %14 : vector<1x512xf32> to vector<2x512xf32>
      %16 = arith.addf %13, %15 : vector<2x512xf32>
      %cst_13 = arith.constant 0.000000e+00 : f32
      %17 = vector.broadcast %cst_13 : f32 to vector<2x512xf32>
      %18 = arith.maximumf %16, %17 : vector<2x512xf32>
      %c0_14 = arith.constant 0 : index
      %c0_15 = arith.constant 0 : index
      %19 = vector.load %arg4[%c0_14, %c0_15] : memref<512x2xf32, #tpu.memory_space<vmem>>, vector<512x2xf32>
      %cst_16 = arith.constant dense<0.000000e+00> : vector<2x2xf32>
      %20 = tpu.matmul %18, %19, %cst_16 {dimension_numbers = #tpu.dot_dimension_numbers<[1], [0], [0], [1], [0, 0, 1, 1], [], []>} : vector<2x512xf32>, vector<512x2xf32>, vector<2x2xf32> -> vector<2x2xf32>
      %c0_17 = arith.constant 0 : index
      %c0_18 = arith.constant 0 : index
      %21 = vector.load %arg5[%c0_17, %c0_18] : memref<1x2xf32, #tpu.memory_space<vmem>>, vector<1x2xf32>
      %22 = vector.broadcast %21 : vector<1x2xf32> to vector<2x2xf32>
      %23 = arith.addf %20, %22 : vector<2x2xf32>
      %c0_19 = arith.constant 0 : index
      %c0_20 = arith.constant 0 : index
      %24 = vector.load %arg6[%c0_19, %c0_20] : memref<2x2xf32, #tpu.memory_space<vmem>>, vector<2x2xf32>
      tpu.vector_store %arg6[%c0_19, %c0_20], %23 {strides = array<i32>} : memref<2x2xf32, #tpu.memory_space<vmem>>, vector<2x2xf32>,
    } else {
    }
    return
  }
  func.func @transform_0(%arg0: i32) -> (i32, i32) {
    %c2_i32 = arith.constant 2 : i32
    %c0_i32 = arith.constant 0 : i32
    %0 = arith.cmpi eq, %c2_i32, %c0_i32 : i32
    %c1_i32 = arith.constant 1 : i32
    %1 = arith.select %0, %c1_i32, %c2_i32 : i32
    %2 = arith.remsi %arg0, %1 : i32
    %c0_i32_0 = arith.constant 0 : i32
    %3 = arith.cmpi ne, %2, %c0_i32_0 : i32
    %c0_i32_1 = arith.constant 0 : i32
    %4 = arith.cmpi slt, %2, %c0_i32_1 : i32
    %c0_i32_2 = arith.constant 0 : i32
    %5 = arith.cmpi slt, %1, %c0_i32_2 : i32
    %6 = arith.xori %4, %5 : i1
    %7 = arith.andi %6, %3 : i1
    %8 = arith.addi %2, %1 : i32
    %9 = arith.select %7, %8, %2 : i32
    %c0_i32_3 = arith.constant 0 : i32
    %c0_i32_4 = arith.constant 0 : i32
    return %c0_i32_3, %9 : i32, i32
  }
  func.func @transform_1(%arg0: i32) -> (i32, i32) {
    %c0_i32 = arith.constant 0 : i32
    %c0_i32_0 = arith.constant 0 : i32
    return %arg0, %c0_i32 : i32, i32
  }
  func.func @transform_2(%arg0: i32) -> (i32, i32) {
    %c0_i32 = arith.constant 0 : i32
    %c0_i32_0 = arith.constant 0 : i32
    %c0_i32_1 = arith.constant 0 : i32
    return %c0_i32, %c0_i32_0 : i32, i32
  }
  func.func @transform_3(%arg0: i32) -> (i32, i32) {
    %c0_i32 = arith.constant 0 : i32
    %c0_i32_0 = arith.constant 0 : i32
    %c0_i32_1 = arith.constant 0 : i32
    return %c0_i32, %c0_i32_0 : i32, i32
  }
  func.func @transform_4(%arg0: i32) -> (i32, i32) {
    %c0_i32 = arith.constant 0 : i32
    %c0_i32_0 = arith.constant 0 : i32
    %c0_i32_1 = arith.constant 0 : i32
    return %c0_i32, %c0_i32_0 : i32, i32
  }
  func.func @transform_5(%arg0: i32) -> (i32, i32) {
    %c0_i32 = arith.constant 0 : i32
    %c0_i32_0 = arith.constant 0 : i32
    %c0_i32_1 = arith.constant 0 : i32
    return %c0_i32, %c0_i32_0 : i32, i32
  }
}

</mosaic_0001>

<llo_original>
// kernel: finetune_state_forward.1
$region0: #{finetune_state_forward.1}
  #allocation0 [shape = 'u32[]', space=smem, size = 0x4, offset = 0x4, fixed_abs, tag = 'smem constant byte address 0x4 - core index']
  #allocation1 [shape = 'u32[144,128]{1,0:T(1,128)}', space=vmem, size = 0x12000, scoped, tag = 'internal scratch']
  #allocation2 [shape = 'f32[2,512]{1,0:T(2,128)}', space=vmem, size = 0x1000, scoped, tag = 'scratch operand']
  %s0 = inlined_call_operand.hbm [shape: f32[2,8192], index: 0, kind: input, shape index: {}]
  %s1 = inlined_call_operand.hbm [shape: bf16[16384,512], index: 1, kind: input, shape index: {}]
  %s2 = inlined_call_operand.hbm [shape: f32[1,512], index: 2, kind: input, shape index: {}]
  %s3 = inlined_call_operand.vmem [shape: f32[512,2], index: 3, kind: input, shape index: {}]
  %s4 = inlined_call_operand.hbm [shape: f32[1,2], index: 4, kind: input, shape index: {}]
  %s5 = inlined_call_operand.hbm [shape: f32[2,2], index: 5, kind: output, shape index: {}]
  %s6 = sld [smem:[#allocation0]]
  $region77: #{finetune_state_forward.1} parent=0
    _
  %s8 = ssub.s32 1, %s6
  %s9 = scalar_select 0, %s8, %s6
  $region1: #{finetune_state_forward.1} parent=0
    #allocation3 [shape = 'u8[65536]{0}', space=vmem, size = 0x10000, scoped, tag = 'input window, operand 0']
    #allocation4 [shape = 's32[2]{0}', space=sflag, size = 0x8, scoped, tag = 'scoped memory for finetune_state_forward.1']
    #allocation5 [shape = 's32[2]{0}', space=sflag, size = 0x8, scoped, tag = 'scoped memory for finetune_state_forward.1']
    #allocation6 [shape = 'u8[8388608]{0}', space=vmem, size = 0x800000, scoped, tag = 'input window, operand 1']
    #allocation7 [shape = 's32[2]{0}', space=sflag, size = 0x8, scoped, tag = 'scoped memory for finetune_state_forward.1']
    #allocation8 [shape = 'u8[2048]{0}', space=vmem, size = 0x800, scoped, tag = 'input window, operand 2, single buffered']
    #allocation9 [shape = 'u8[512]{0}', space=vmem, size = 0x400, scoped, tag = 'input window, operand 4, single buffered']
    #allocation10 [shape = 's32[1]{0}', space=sflag, size = 0x4, scoped, tag = 'scoped memory for finetune_state_forward.1']
    #allocation11 [shape = 'u8[1024]{0}', space=vmem, size = 0x400, scoped, tag = 'output window, operand 0, single buffered']
    %10 = vsyncpa [#allocation4], 0
    %s11 = scalar_lea.sflag [#allocation4], 1
    %12 = vsyncpa %s11, 0
    %13 = vsyncpa [#allocation7], 0
    %s14 = scalar_lea.sflag [#allocation7], 1
    %15 = vsyncpa %s14, 0
    %16 = vsyncpa [#allocation10], 0
    %17 = vsyncpa [#allocation5], 0
    loop: start=0, step=1, limit=6
    $region2: #{finetune_state_forward.1} parent=1 // loop_pre_header
      _
    $region3: #{finetune_state_forward.1} parent=1 // loop_header
      %s19 = sphi 0, %s23
      %p20 = scmp.ge.s32.totalorder %s19, 6
      %s53 = sphi 0, %s55
      %s56 = sphi 0, %s53
      %s57 = sphi 0, %s56
      %s73 = sphi 0, %s57
      %s79 = sphi 0, %s81
      %s82 = sphi 0, %s79
      %s83 = sphi 0, %s82
      %s99 = sphi 0, %s83
      %s103 = sphi 0, %s103
      %s105 = sphi 0, %s103
      %s106 = sphi 0, %s105
      %s120 = sphi 0, %s106
      %s124 = sphi 0, %s124
      %s126 = sphi 0, %s124
      %s127 = sphi 0, %s126
      %s141 = sphi 0, %s127
      %s145 = sphi 0, %s145
      %s147 = sphi 0, %s145
      %s148 = sphi 0, %s147
      %s162 = sphi 0, %s148
      %s166 = sphi 0, %s166
      %s168 = sphi 0, %s166
      %s169 = sphi 0, %s168
      %s183 = sphi 0, %s169
    $region4: #{finetune_state_forward.1} parent=1 // loop_header_branch
      %22 = sbr.rel (%p20) target = $region8
    $region5: #{finetune_state_forward.1} parent=1 // loop_body
      %s24 = ssub.s32 %s19, 1
      %s25 = ssub.s32 %s19, 2
      %s26 = sadd.s32 %s19, 1
      %p27 = scmp.lt.s32.totalorder %s19, 0
      %s28 = ssub.s32 0, %s19
      %s29 = scalar_select %p27, %s28, %s19
      %s30 = sand.u32 %s29, 1
      %s31 = ssub.s32 0, %s30
      %s32 = scalar_select %p27, %s31, %s30
      %p33 = scmp.ne.s32.totalorder %s32, 0
      %p34 = scmp.lt.s32.totalorder %s32, 0
      %p35 = pnand %p34, %p33
      %p36 = pneg %p35
      %s37 = sadd.s32 %s32, 2
      %s38 = scalar_select %p36, %s37, %s32
      %p39 = scmp.lt.s32.totalorder %s26, 0
      %s40 = ssub.s32 0, %s26
      %s41 = scalar_select %p39, %s40, %s26
      %s42 = sand.u32 %s41, 1
      %s43 = ssub.s32 0, %s42
      %s44 = scalar_select %p39, %s43, %s42
      %p45 = scmp.ne.s32.totalorder %s44, 0
      %p46 = scmp.lt.s32.totalorder %s44, 0
      %p47 = pnand %p46, %p45
      %p48 = pneg %p47
      %s49 = sadd.s32 %s44, 2
      %s50 = scalar_select %p48, %s49, %s44
      %s51 = ssub.s32 %s38, %s50
      %p52 = scmp.eq.s32.totalorder %s51, 0
      %s54 = sadd.s32 %s53, 1
      %s55 = scalar_select %p52, %s53, %s54
      %p58 = pneg %p52
      %p59 = scmp.eq.s32.totalorder %s19, 3
      %p60 = por %p58, %p59
      %p61 = scmp.ne.s32.totalorder %s53, %s56
      %p62 = scmp.eq.s32.totalorder %s19, 0
      %p63 = por %p61, %p62
      %p64 = scmp.ne.s32.totalorder %s53, %s56
      %p65 = scmp.eq.s32.totalorder %s24, 3
      %p66 = por %p64, %p65
      %p67 = scmp.ne.s32.totalorder %s56, %s57
      %p68 = scmp.eq.s32.totalorder %s24, 0
      %p69 = por %p67, %p68
      %p70 = scmp.ne.s32.totalorder %s56, %s57
      %p71 = scmp.eq.s32.totalorder %s25, 3
      %p72 = por %p70, %p71
      %p74 = scmp.ne.s32.totalorder %s57, %s73
      %p75 = scmp.eq.s32.totalorder %s25, 0
      %p76 = por %p74, %p75
      %s77 = ssub.s32 %s19, %s26
      %p78 = scmp.eq.s32.totalorder %s77, 0
      %s80 = sadd.s32 %s79, 1
      %s81 = scalar_select %p78, %s79, %s80
      %p84 = pneg %p78
      %p85 = scmp.eq.s32.totalorder %s19, 3
      %p86 = por %p84, %p85
      %p87 = scmp.ne.s32.totalorder %s79, %s82
      %p88 = scmp.eq.s32.totalorder %s19, 0
      %p89 = por %p87, %p88
      %p90 = scmp.ne.s32.totalorder %s79, %s82
      %p91 = scmp.eq.s32.totalorder %s24, 3
      %p92 = por %p90, %p91
      %p93 = scmp.ne.s32.totalorder %s82, %s83
      %p94 = scmp.eq.s32.totalorder %s24, 0
      %p95 = por %p93, %p94
      %p96 = scmp.ne.s32.totalorder %s82, %s83
      %p97 = scmp.eq.s32.totalorder %s25, 3
      %p98 = por %p96, %p97
      %p100 = scmp.ne.s32.totalorder %s83, %s99
      %p101 = scmp.eq.s32.totalorder %s25, 0
      %p102 = por %p100, %p101
      %s104 = sadd.s32 %s103, 1
      %p107 = scmp.eq.s32.totalorder %s19, 3
      %p108 = scmp.ne.s32.totalorder %s103, %s105
      %p109 = scmp.eq.s32.totalorder %s19, 0
      %p110 = por %p108, %p109
      %p111 = scmp.ne.s32.totalorder %s103, %s105
      %p112 = scmp.eq.s32.totalorder %s24, 3
      %p113 = por %p111, %p112
      %p114 = scmp.ne.s32.totalorder %s105, %s106
      %p115 = scmp.eq.s32.totalorder %s24, 0
      %p116 = por %p114, %p115
      %p117 = scmp.ne.s32.totalorder %s105, %s106
      %p118 = scmp.eq.s32.totalorder %s25, 3
      %p119 = por %p117, %p118
      %p121 = scmp.ne.s32.totalorder %s106, %s120
      %p122 = scmp.eq.s32.totalorder %s25, 0
      %p123 = por %p121, %p122
      %s125 = sadd.s32 %s124, 1
      %p128 = scmp.eq.s32.totalorder %s19, 3
      %p129 = scmp.ne.s32.totalorder %s124, %s126
      %p130 = scmp.eq.s32.totalorder %s19, 0
      %p131 = por %p129, %p130
      %p132 = scmp.ne.s32.totalorder %s124, %s126
      %p133 = scmp.eq.s32.totalorder %s24, 3
      %p134 = por %p132, %p133
      %p135 = scmp.ne.s32.totalorder %s126, %s127
      %p136 = scmp.eq.s32.totalorder %s24, 0
      %p137 = por %p135, %p136
      %p138 = scmp.ne.s32.totalorder %s126, %s127
      %p139 = scmp.eq.s32.totalorder %s25, 3
      %p140 = por %p138, %p139
      %p142 = scmp.ne.s32.totalorder %s127, %s141
      %p143 = scmp.eq.s32.totalorder %s25, 0
      %p144 = por %p142, %p143
      %s146 = sadd.s32 %s145, 1
      %p149 = scmp.eq.s32.totalorder %s19, 3
      %p150 = scmp.ne.s32.totalorder %s145, %s147
      %p151 = scmp.eq.s32.totalorder %s19, 0
      %p152 = por %p150, %p151
      %p153 = scmp.ne.s32.totalorder %s145, %s147
      %p154 = scmp.eq.s32.totalorder %s24, 3
      %p155 = por %p153, %p154
      %p156 = scmp.ne.s32.totalorder %s147, %s148
      %p157 = scmp.eq.s32.totalorder %s24, 0
      %p158 = por %p156, %p157
      %p159 = scmp.ne.s32.totalorder %s147, %s148
      %p160 = scmp.eq.s32.totalorder %s25, 3
      %p161 = por %p159, %p160
      %p163 = scmp.ne.s32.totalorder %s148, %s162
      %p164 = scmp.eq.s32.totalorder %s25, 0
      %p165 = por %p163, %p164
      %s167 = sadd.s32 %s166, 1
      %p170 = scmp.eq.s32.totalorder %s19, 3
      %p171 = scmp.ne.s32.totalorder %s166, %s168
      %p172 = scmp.eq.s32.totalorder %s19, 0
      %p173 = por %p171, %p172
      %p174 = scmp.ne.s32.totalorder %s166, %s168
      %p175 = scmp.eq.s32.totalorder %s24, 3
      %p176 = por %p174, %p175
      %p177 = scmp.ne.s32.totalorder %s168, %s169
      %p178 = scmp.eq.s32.totalorder %s24, 0
      %p179 = por %p177, %p178
      %p180 = scmp.ne.s32.totalorder %s168, %s169
      %p181 = scmp.eq.s32.totalorder %s25, 3
      %p182 = por %p180, %p181
      %p184 = scmp.ne.s32.totalorder %s169, %s183
      %p185 = scmp.eq.s32.totalorder %s25, 0
      %p186 = por %p184, %p185
      %p187 = scmp.le.s32.totalorder 1, %s19
      %p188 = scmp.lt.s32.totalorder %s19, 5
      %p189 = pnand %p187, %p188
      %p190 = pneg %p189
      // Predicated region
      $region9: #{finetune_state_forward.1} parent=5 // pred_check
        _
      $region10: #{finetune_state_forward.1} parent=5 // pred_check_branch
        %192 = sbr.rel (%p189) target = $region12
      $region11: #{finetune_state_forward.1} parent=5 // pred_region
        %s193 = ssub.s32 %s19, 1
        // Predicated region
        $region13: #{finetune_state_forward.1} parent=11 // pred_check
          %p194 = pneg %p116
        $region14: #{finetune_state_forward.1} parent=11 // pred_check_branch
          %196 = sbr.rel (%p194) target = $region16
        $region15: #{finetune_state_forward.1} parent=11 // pred_region
          %s198 = ssub.s32 64, 64
          %199 = vsyncadd [#allocation7], %s198
          %s201 = sshll.u32 [#allocation8], 4
          %s202 = int_to_ptr.vmem [resolvable:$true] %s201
          %204 = dma.hbm_to_vmem [thread:$0]  %s2, 64, %s202, [#allocation7]
        $region16: #{finetune_state_forward.1} parent=11 // pred_fallthru
          _
        // Predicated region
        $region17: #{finetune_state_forward.1} parent=11 // pred_check
          %p205 = pneg %p137
        $region18: #{finetune_state_forward.1} parent=11 // pred_check_branch
          %207 = sbr.rel (%p205) target = $region20
        $region19: #{finetune_state_forward.1} parent=11 // pred_region
          _
        $region20: #{finetune_state_forward.1} parent=11 // pred_fallthru
          _
        // Predicated region
        $region21: #{finetune_state_forward.1} parent=11 // pred_check
          %p208 = pneg %p158
        $region22: #{finetune_state_forward.1} parent=11 // pred_check_branch
          %210 = sbr.rel (%p208) target = $region24
        $region23: #{finetune_state_forward.1} parent=11 // pred_region
          %s212 = ssub.s32 16, 16
          %213 = vsyncadd [#allocation10], %s212
          %s215 = sshll.u32 [#allocation9], 4
          %s216 = int_to_ptr.vmem [resolvable:$true] %s215
          %218 = dma.hbm_to_vmem [thread:$0]  %s4, 16, %s216, [#allocation10]
        $region24: #{finetune_state_forward.1} parent=11 // pred_fallthru
          _
      $region12: #{finetune_state_forward.1} parent=5 // pred_fallthru
        _
      %p219 = scmp.lt.s32.totalorder %s19, 4
      // Predicated region
      $region25: #{finetune_state_forward.1} parent=5 // pred_check
        %p220 = pneg %p219
      $region26: #{finetune_state_forward.1} parent=5 // pred_check_branch
        %222 = sbr.rel (%p220) target = $region28
      $region27: #{finetune_state_forward.1} parent=5 // pred_region
        // Predicated region
        $region29: #{finetune_state_forward.1} parent=27 // pred_check
          %p223 = pneg %p63
        $region30: #{finetune_state_forward.1} parent=27 // pred_check_branch
          %225 = sbr.rel (%p223) target = $region32
        $region31: #{finetune_state_forward.1} parent=27 // pred_region
          %s226 = sand.u32 %s53, 1
          %s227 = scalar_lea.sflag [#allocation4], %s226
          %s228 = sand.u32 %s53, 1
          %s229 = smul.addr %s228, 64
          %s230 = scalar_lea.vmem [#allocation3], %s229
          %p231 = scmp.lt.s32.totalorder %s19, 0
          %s232 = ssub.s32 0, %s19
          %s233 = scalar_select %p231, %s232, %s19
          %s234 = sand.u32 %s233, 1
          %s235 = ssub.s32 0, %s234
          %s236 = scalar_select %p231, %s235, %s234
          %p237 = scmp.ne.s32.totalorder %s236, 0
          %p238 = scmp.lt.s32.totalorder %s236, 0
          %p239 = pnand %p238, %p237
          %p240 = pneg %p239
          %s241 = sadd.s32 %s236, 2
          %s242 = scalar_select %p240, %s241, %s236
          %s243 = smul.u32 32, %s242
          %s245 = ssub.s32 1024, 1024
          %246 = vsyncadd %s227, %s245
          %s247 = smul.addr %s243, 32
          %s248 = scalar_lea.hbm %s0, %s247
          %s250 = sshll.u32 %s230, 4
          %s251 = int_to_ptr.vmem [resolvable:$true] %s250
          %253 = dma.hbm_to_vmem [thread:$0]  %s248, 1024, %s251, %s227
        $region32: #{finetune_state_forward.1} parent=27 // pred_fallthru
          _
        // Predicated region
        $region33: #{finetune_state_forward.1} parent=27 // pred_check
          %p254 = pneg %p89
        $region34: #{finetune_state_forward.1} parent=27 // pred_check_branch
          %256 = sbr.rel (%p254) target = $region36
        $region35: #{finetune_state_forward.1} parent=27 // pred_region
          %s257 = sand.u32 %s19, 1
          %s258 = scalar_lea.sflag [#allocation7], %s257
          %s259 = sand.u32 %s79, 1
          %s260 = smul.addr %s259, 8192
          %s261 = scalar_lea.vmem [#allocation6], %s260
          %s262 = smul.u32 512, %s19
          %s264 = ssub.s32 131072, 131072
          %265 = vsyncadd %s258, %s264
          %s266 = smul.addr %s262, 4
          %s267 = smul.addr %s266, 64
          %s268 = scalar_lea.hbm %s1, %s267
          %s269 = sshll.u32 %s261, 4
          %s270 = int_to_ptr.vmem [resolvable:$true] %s269
          %275 = dma.hbm_to_vmem [thread:$0]  %s268, 131072, %s270, %s258, 256, 256, 16
        $region36: #{finetune_state_forward.1} parent=27 // pred_fallthru
          _
      $region28: #{finetune_state_forward.1} parent=5 // pred_fallthru
        _
      %p276 = scmp.le.s32.totalorder 1, %s19
      %p277 = scmp.lt.s32.totalorder %s19, 5
      %p278 = pnand %p276, %p277
      %p279 = pneg %p278
      // Predicated region
      $region37: #{finetune_state_forward.1} parent=5 // pred_check
        _
      $region38: #{finetune_state_forward.1} parent=5 // pred_check_branch
        %281 = sbr.rel (%p278) target = $region40
      $region39: #{finetune_state_forward.1} parent=5 // pred_region
        %s282 = ssub.s32 %s19, 1
        %s283 = sand.u32 %s56, 1
        %s284 = scalar_lea.sflag [#allocation4], %s283
        %s285 = sand.u32 %s56, 1
        %s286 = smul.addr %s285, 64
        %s287 = scalar_lea.vmem [#allocation3], %s286
        // Predicated region
        $region41: #{finetune_state_forward.1} parent=39 // pred_check
          %p288 = pneg %p69
        $region42: #{finetune_state_forward.1} parent=39 // pred_check_branch
          %290 = sbr.rel (%p288) target = $region44
        $region43: #{finetune_state_forward.1} parent=39 // pred_region
          %291 = dma.done %s284, 1024
        $region44: #{finetune_state_forward.1} parent=39 // pred_fallthru
          _
        %s292 = sand.u32 %s24, 1
        %s293 = scalar_lea.sflag [#allocation7], %s292
        %s294 = sand.u32 %s82, 1
        %s295 = smul.addr %s294, 8192
        %s296 = scalar_lea.vmem [#allocation6], %s295
        // Predicated region
        $region45: #{finetune_state_forward.1} parent=39 // pred_check
          %p297 = pneg %p95
        $region46: #{finetune_state_forward.1} parent=39 // pred_check_branch
          %299 = sbr.rel (%p297) target = $region48
        $region47: #{finetune_state_forward.1} parent=39 // pred_region
          %300 = dma.done %s293, 131072
        $region48: #{finetune_state_forward.1} parent=39 // pred_fallthru
          _
        // Predicated region
        $region49: #{finetune_state_forward.1} parent=39 // pred_check
          %p301 = pneg %p116
        $region50: #{finetune_state_forward.1} parent=39 // pred_check_branch
          %303 = sbr.rel (%p301) target = $region52
        $region51: #{finetune_state_forward.1} parent=39 // pred_region
          %304 = dma.done [#allocation7], 64
        $region52: #{finetune_state_forward.1} parent=39 // pred_fallthru
          _
        // Predicated region
        $region53: #{finetune_state_forward.1} parent=39 // pred_check
          %p305 = pneg %p158
        $region54: #{finetune_state_forward.1} parent=39 // pred_check_branch
          %307 = sbr.rel (%p305) target = $region56
        $region55: #{finetune_state_forward.1} parent=39 // pred_region
          %308 = dma.done [#allocation10], 16
        $region56: #{finetune_state_forward.1} parent=39 // pred_fallthru
          _
        %s309 = sand.u32 %s56, 1
        %s310 = scalar_lea.sflag [#allocation4], %s309
        %s311 = sand.u32 %s56, 1
        %s312 = smul.addr %s311, 64
        %s313 = scalar_lea.vmem [#allocation3], %s312
        %p314 = pneg %p69
        %p315 = pneg %p66
        %s316 = sand.u32 %s24, 1
        %s317 = scalar_lea.sflag [#allocation7], %s316
        %s318 = sand.u32 %s82, 1
        %s319 = smul.addr %s318, 8192
        %s320 = scalar_lea.vmem [#allocation6], %s319
        %p321 = pneg %p95
        %p322 = pneg %p92
        %p323 = pneg %p116
        %p324 = pneg %p113
        %p325 = pneg %p137
        %p326 = pneg %p134
        %p327 = pneg %p158
        %p328 = pneg %p155
        %p329 = pneg %p179
        %p330 = pneg %p176
        %p331 = scmp.lt.s32.totalorder %s24, 0
        %s332 = ssub.s32 0, %s24
        %s333 = scalar_select %p331, %s332, %s24
        %s334 = sand.u32 %s333, 1
        %s335 = ssub.s32 0, %s334
        %s336 = scalar_select %p331, %s335, %s334
        %p337 = scmp.ne.s32.totalorder %s336, 0
        %p338 = scmp.lt.s32.totalorder %s336, 0
        %p339 = pnand %p338, %p337
        %p340 = pneg %p339
        %s341 = sadd.s32 %s336, 2
        %s342 = scalar_select %p340, %s341, %s336
        %s343 = smul.u32 32, %s342
        %s344 = smul.u32 512, %s24
        %p345 = scmp.eq.s32.totalorder %s24, 0
        // Predicated region
        $region57: #{finetune_state_forward.1} parent=39 // pred_check
          %p346 = pneg %p345
        $region58: #{finetune_state_forward.1} parent=39 // pred_check_branch
          %348 = sbr.rel (%p346) target = $region60
        $region59: #{finetune_state_forward.1} parent=39 // pred_region
          %349 = vst [vmem:[#allocation2] sm:$0xff] 0.0
        $region60: #{finetune_state_forward.1} parent=39 // pred_fallthru
          _
        %v350 = vld [vmem:[#allocation2] sm:$0xff]
        %v351 = vld [vmem:[%s287] sm:$0xff]
        %v352 = vld [vmem:[%s287 + $0x8] sm:$0xff]
        %v353 = vld [vmem:[%s287 + $0x10] sm:$0xff]
        %v354 = vld [vmem:[%s287 + $0x18] sm:$0xff]
        %v355 = vld [vmem:[%s287 + $0x20] sm:$0xff]
        %v356 = vld [vmem:[%s287 + $0x28] sm:$0xff]
        %v357 = vld [vmem:[%s287 + $0x30] sm:$0xff]
        %v358 = vld [vmem:[%s287 + $0x38] sm:$0xff]
        %v367 = vcombine.high %v351, %v351
        %v369 = vunpack.c.l.s4 1983009808
        %v370 = vunpack.c.0.s8 %v369
        %v371 = vlaneseq
        %v372 = vshrl.u32 %v371, 7
        %v373 = vsub.s32 %v370, %v372
        %v374 = vrot.slane %v351, %v373
        %v376 = vunpack.c.l.s4 1983009808
        %v377 = vunpack.c.0.s8 %v376
        %v378 = vlaneseq
        %v379 = vshrl.u32 %v378, 7
        %v380 = vsub.s32 %v377, %v379
        %v381 = vrot.slane %v367, %v380
        %v382 = vcombine.high %v374, %v374
        %v383 = vcombine.high %v381, %v381
        %v384 = vcombine.high %v352, %v352
        %v386 = vunpack.c.l.s4 1983009808
        %v387 = vunpack.c.0.s8 %v386
        %v388 = vlaneseq
        %v389 = vshrl.u32 %v388, 7
        %v390 = vsub.s32 %v387, %v389
        %v391 = vrot.slane %v352, %v390
        %v393 = vunpack.c.l.s4 1983009808
        %v394 = vunpack.c.0.s8 %v393
        %v395 = vlaneseq
        %v396 = vshrl.u32 %v395, 7
        %v397 = vsub.s32 %v394, %v396
        %v398 = vrot.slane %v384, %v397
        %v399 = vcombine.high %v391, %v391
        %v400 = vcombine.high %v398, %v398
        %v401 = vcombine.high %v353, %v353
        %v403 = vunpack.c.l.s4 1983009808
        %v404 = vunpack.c.0.s8 %v403
        %v405 = vlaneseq
        %v406 = vshrl.u32 %v405, 7
        %v407 = vsub.s32 %v404, %v406
        %v408 = vrot.slane %v353, %v407
        %v410 = vunpack.c.l.s4 1983009808
        %v411 = vunpack.c.0.s8 %v410
        %v412 = vlaneseq
        %v413 = vshrl.u32 %v412, 7
        %v414 = vsub.s32 %v411, %v413
        %v415 = vrot.slane %v401, %v414
        %v416 = vcombine.high %v408, %v408
        %v417 = vcombine.high %v415, %v415
        %v418 = vcombine.high %v354, %v354
        %v420 = vunpack.c.l.s4 1983009808
        %v421 = vunpack.c.0.s8 %v420
        %v422 = vlaneseq
        %v423 = vshrl.u32 %v422, 7
        %v424 = vsub.s32 %v421, %v423
        %v425 = vrot.slane %v354, %v424
        %v427 = vunpack.c.l.s4 1983009808
        %v428 = vunpack.c.0.s8 %v427
        %v429 = vlaneseq
        %v430 = vshrl.u32 %v429, 7
        %v431 = vsub.s32 %v428, %v430
        %v432 = vrot.slane %v418, %v431
        %v433 = vcombine.high %v425, %v425
        %v434 = vcombine.high %v432, %v432
        %v435 = vcombine.high %v355, %v355
        %v437 = vunpack.c.l.s4 1983009808
        %v438 = vunpack.c.0.s8 %v437
        %v439 = vlaneseq
        %v440 = vshrl.u32 %v439, 7
        %v441 = vsub.s32 %v438, %v440
        %v442 = vrot.slane %v355, %v441
        %v444 = vunpack.c.l.s4 1983009808
        %v445 = vunpack.c.0.s8 %v444
        %v446 = vlaneseq
        %v447 = vshrl.u32 %v446, 7
        %v448 = vsub.s32 %v445, %v447
        %v449 = vrot.slane %v435, %v448
        %v450 = vcombine.high %v442, %v442
        %v451 = vcombine.high %v449, %v449
        %v452 = vcombine.high %v356, %v356
        %v454 = vunpack.c.l.s4 1983009808
        %v455 = vunpack.c.0.s8 %v454
        %v456 = vlaneseq
        %v457 = vshrl.u32 %v456, 7
        %v458 = vsub.s32 %v455, %v457
        %v459 = vrot.slane %v356, %v458
        %v461 = vunpack.c.l.s4 1983009808
        %v462 = vunpack.c.0.s8 %v461
        %v463 = vlaneseq
        %v464 = vshrl.u32 %v463, 7
        %v465 = vsub.s32 %v462, %v464
        %v466 = vrot.slane %v452, %v465
        %v467 = vcombine.high %v459, %v459
        %v468 = vcombine.high %v466, %v466
        %v469 = vcombine.high %v357, %v357
        %v471 = vunpack.c.l.s4 1983009808
        %v472 = vunpack.c.0.s8 %v471
        %v473 = vlaneseq
        %v474 = vshrl.u32 %v473, 7
        %v475 = vsub.s32 %v472, %v474
        %v476 = vrot.slane %v357, %v475
        %v478 = vunpack.c.l.s4 1983009808
        %v479 = vunpack.c.0.s8 %v478
        %v480 = vlaneseq
        %v481 = vshrl.u32 %v480, 7
        %v482 = vsub.s32 %v479, %v481
        %v483 = vrot.slane %v469, %v482
        %v484 = vcombine.high %v476, %v476
        %v485 = vcombine.high %v483, %v483
        %v486 = vcombine.high %v358, %v358
        %v488 = vunpack.c.l.s4 1983009808
        %v489 = vunpack.c.0.s8 %v488
        %v490 = vlaneseq
        %v491 = vshrl.u32 %v490, 7
        %v492 = vsub.s32 %v489, %v491
        %v493 = vrot.slane %v358, %v492
        %v495 = vunpack.c.l.s4 1983009808
        %v496 = vunpack.c.0.s8 %v495
        %v497 = vlaneseq
        %v498 = vshrl.u32 %v497, 7
        %v499 = vsub.s32 %v496, %v498
        %v500 = vrot.slane %v486, %v499
        %v501 = vcombine.high %v493, %v493
        %v502 = vcombine.high %v500, %v500
        %v535 = vpack.c.bf16 %v374, %v374
        %v536 = vpack.c.bf16 %v382, %v382
        %v537 = vpack.c.bf16 %v381, %v381
        %v538 = vpack.c.bf16 %v383, %v383
        %v539 = vpack.c.bf16 %v391, %v391
        %v540 = vpack.c.bf16 %v399, %v399
        %v541 = vpack.c.bf16 %v398, %v398
        %v542 = vpack.c.bf16 %v400, %v400
        %v543 = vpack.c.bf16 %v408, %v408
        %v544 = vpack.c.bf16 %v416, %v416
        %v545 = vpack.c.bf16 %v415, %v415
        %v546 = vpack.c.bf16 %v417, %v417
        %v547 = vpack.c.bf16 %v425, %v425
        %v548 = vpack.c.bf16 %v433, %v433
        %v549 = vpack.c.bf16 %v432, %v432
        %v550 = vpack.c.bf16 %v434, %v434
        %v551 = vpack.c.bf16 %v442, %v442
        %v552 = vpack.c.bf16 %v450, %v450
        %v553 = vpack.c.bf16 %v449, %v449
        %v554 = vpack.c.bf16 %v451, %v451
        %v555 = vpack.c.bf16 %v459, %v459
        %v556 = vpack.c.bf16 %v467, %v467
        %v557 = vpack.c.bf16 %v466, %v466
        %v558 = vpack.c.bf16 %v468, %v468
        %v559 = vpack.c.bf16 %v476, %v476
        %v560 = vpack.c.bf16 %v484, %v484
        %v561 = vpack.c.bf16 %v483, %v483
        %v562 = vpack.c.bf16 %v485, %v485
        %v563 = vpack.c.bf16 %v493, %v493
        %v564 = vpack.c.bf16 %v501, %v501
        %v565 = vpack.c.bf16 %v500, %v500
        %v566 = vpack.c.bf16 %v502, %v502
        %v567 = vld [vmem:[%s296] sm:$0xff]
        %v568 = vld [vmem:[%s296 + $0x8] sm:$0xff]
        %v569 = vld [vmem:[%s296 + $0x10] sm:$0xff]
        %v570 = vld [vmem:[%s296 + $0x18] sm:$0xff]
        %v571 = vld [vmem:[%s296 + $0x20] sm:$0xff]
        %v572 = vld [vmem:[%s296 + $0x28] sm:$0xff]
        %v573 = vld [vmem:[%s296 + $0x30] sm:$0xff]
        %v574 = vld [vmem:[%s296 + $0x38] sm:$0xff]
        %v575 = vld [vmem:[%s296 + $0x40] sm:$0xff]
        %v576 = vld [vmem:[%s296 + $0x48] sm:$0xff]
        %v577 = vld [vmem:[%s296 + $0x50] sm:$0xff]
        %v578 = vld [vmem:[%s296 + $0x58] sm:$0xff]
        %v579 = vld [vmem:[%s296 + $0x60] sm:$0xff]
        %v580 = vld [vmem:[%s296 + $0x68] sm:$0xff]
        %v581 = vld [vmem:[%s296 + $0x70] sm:$0xff]
        %v582 = vld [vmem:[%s296 + $0x78] sm:$0xff]
        %v583 = vld [vmem:[%s296 + $0x80] sm:$0xff]
        %v584 = vld [vmem:[%s296 + $0x88] sm:$0xff]
        %v585 = vld [vmem:[%s296 + $0x90] sm:$0xff]
        %v586 = vld [vmem:[%s296 + $0x98] sm:$0xff]
        %v587 = vld [vmem:[%s296 + $0xa0] sm:$0xff]
        %v588 = vld [vmem:[%s296 + $0xa8] sm:$0xff]
        %v589 = vld [vmem:[%s296 + $0xb0] sm:$0xff]
        %v590 = vld [vmem:[%s296 + $0xb8] sm:$0xff]
        %v591 = vld [vmem:[%s296 + $0xc0] sm:$0xff]
        %v592 = vld [vmem:[%s296 + $0xc8] sm:$0xff]
        %v593 = vld [vmem:[%s296 + $0xd0] sm:$0xff]
        %v594 = vld [vmem:[%s296 + $0xd8] sm:$0xff]
        %v595 = vld [vmem:[%s296 + $0xe0] sm:$0xff]
        %v596 = vld [vmem:[%s296 + $0xe8] sm:$0xff]
        %v597 = vld [vmem:[%s296 + $0xf0] sm:$0xff]
        %v598 = vld [vmem:[%s296 + $0xf8] sm:$0xff]
        %v599 = vld [vmem:[%s296 + $0x100] sm:$0xff]
        %v600 = vld [vmem:[%s296 + $0x108] sm:$0xff]
        %v601 = vld [vmem:[%s296 + $0x110] sm:$0xff]
        %v602 = vld [vmem:[%s296 + $0x118] sm:$0xff]
        %v603 = vld [vmem:[%s296 + $0x120] sm:$0xff]
        %v604 = vld [vmem:[%s296 + $0x128] sm:$0xff]
        %v605 = vld [vmem:[%s296 + $0x130] sm:$0xff]
        %v606 = vld [vmem:[%s296 + $0x138] sm:$0xff]
        %v607 = vld [vmem:[%s296 + $0x140] sm:$0xff]
        %v608 = vld [vmem:[%s296 + $0x148] sm:$0xff]
        %v609 = vld [vmem:[%s296 + $0x150] sm:$0xff]
        %v610 = vld [vmem:[%s296 + $0x158] sm:$0xff]
        %v611 = vld [vmem:[%s296 + $0x160] sm:$0xff]
        %v612 = vld [vmem:[%s296 + $0x168] sm:$0xff]
        %v613 = vld [vmem:[%s296 + $0x170] sm:$0xff]
        %v614 = vld [vmem:[%s296 + $0x178] sm:$0xff]
        %v615 = vld [vmem:[%s296 + $0x180] sm:$0xff]
        %v616 = vld [vmem:[%s296 + $0x188] sm:$0xff]
        %v617 = vld [vmem:[%s296 + $0x190] sm:$0xff]
        %v618 = vld [vmem:[%s296 + $0x198] sm:$0xff]
        %v619 = vld [vmem:[%s296 + $0x1a0] sm:$0xff]
        %v620 = vld [vmem:[%s296 + $0x1a8] sm:$0xff]
        %v621 = vld [vmem:[%s296 + $0x1b0] sm:$0xff]
        %v622 = vld [vmem:[%s296 + $0x1b8] sm:$0xff]
        %v623 = vld [vmem:[%s296 + $0x1c0] sm:$0xff]
        %v624 = vld [vmem:[%s296 + $0x1c8] sm:$0xff]
        %v625 = vld [vmem:[%s296 + $0x1d0] sm:$0xff]
        %v626 = vld [vmem:[%s296 + $0x1d8] sm:$0xff]
        %v627 = vld [vmem:[%s296 + $0x1e0] sm:$0xff]
        %v628 = vld [vmem:[%s296 + $0x1e8] sm:$0xff]
        %v629 = vld [vmem:[%s296 + $0x1f0] sm:$0xff]
        %v630 = vld [vmem:[%s296 + $0x1f8] sm:$0xff]
        %v631 = vld [vmem:[%s296 + $0x200] sm:$0xff]
        %v632 = vld [vmem:[%s296 + $0x208] sm:$0xff]
        %v633 = vld [vmem:[%s296 + $0x210] sm:$0xff]
        %v634 = vld [vmem:[%s296 + $0x218] sm:$0xff]
        %v635 = vld [vmem:[%s296 + $0x220] sm:$0xff]
        %v636 = vld [vmem:[%s296 + $0x228] sm:$0xff]
        %v637 = vld [vmem:[%s296 + $0x230] sm:$0xff]
        %v638 = vld [vmem:[%s296 + $0x238] sm:$0xff]
        %v639 = vld [vmem:[%s296 + $0x240] sm:$0xff]
        %v640 = vld [vmem:[%s296 + $0x248] sm:$0xff]
        %v641 = vld [vmem:[%s296 + $0x250] sm:$0xff]
        %v642 = vld [vmem:[%s296 + $0x258] sm:$0xff]
        %v643 = vld [vmem:[%s296 + $0x260] sm:$0xff]
        %v644 = vld [vmem:[%s296 + $0x268] sm:$0xff]
        %v645 = vld [vmem:[%s296 + $0x270] sm:$0xff]
        %v646 = vld [vmem:[%s296 + $0x278] sm:$0xff]
        %v647 = vld [vmem:[%s296 + $0x280] sm:$0xff]
        %v648 = vld [vmem:[%s296 + $0x288] sm:$0xff]
        %v649 = vld [vmem:[%s296 + $0x290] sm:$0xff]
        %v650 = vld [vmem:[%s296 + $0x298] sm:$0xff]
        %v651 = vld [vmem:[%s296 + $0x2a0] sm:$0xff]
        %v652 = vld [vmem:[%s296 + $0x2a8] sm:$0xff]
        %v653 = vld [vmem:[%s296 + $0x2b0] sm:$0xff]
        %v654 = vld [vmem:[%s296 + $0x2b8] sm:$0xff]
        %v655 = vld [vmem:[%s296 + $0x2c0] sm:$0xff]
        %v656 = vld [vmem:[%s296 + $0x2c8] sm:$0xff]
        %v657 = vld [vmem:[%s296 + $0x2d0] sm:$0xff]
        %v658 = vld [vmem:[%s296 + $0x2d8] sm:$0xff]
        %v659 = vld [vmem:[%s296 + $0x2e0] sm:$0xff]
        %v660 = vld [vmem:[%s296 + $0x2e8] sm:$0xff]
        %v661 = vld [vmem:[%s296 + $0x2f0] sm:$0xff]
        %v662 = vld [vmem:[%s296 + $0x2f8] sm:$0xff]
        %v663 = vld [vmem:[%s296 + $0x300] sm:$0xff]
        %v664 = vld [vmem:[%s296 + $0x308] sm:$0xff]
        %v665 = vld [vmem:[%s296 + $0x310] sm:$0xff]
        %v666 = vld [vmem:[%s296 + $0x318] sm:$0xff]
        %v667 = vld [vmem:[%s296 + $0x320] sm:$0xff]
        %v668 = vld [vmem:[%s296 + $0x328] sm:$0xff]
        %v669 = vld [vmem:[%s296 + $0x330] sm:$0xff]
        %v670 = vld [vmem:[%s296 + $0x338] sm:$0xff]
        %v671 = vld [vmem:[%s296 + $0x340] sm:$0xff]
        %v672 = vld [vmem:[%s296 + $0x348] sm:$0xff]
        %v673 = vld [vmem:[%s296 + $0x350] sm:$0xff]
        %v674 = vld [vmem:[%s296 + $0x358] sm:$0xff]
        %v675 = vld [vmem:[%s296 + $0x360] sm:$0xff]
        %v676 = vld [vmem:[%s296 + $0x368] sm:$0xff]
        %v677 = vld [vmem:[%s296 + $0x370] sm:$0xff]
        %v678 = vld [vmem:[%s296 + $0x378] sm:$0xff]
        %v679 = vld [vmem:[%s296 + $0x380] sm:$0xff]
        %v680 = vld [vmem:[%s296 + $0x388] sm:$0xff]
        %v681 = vld [vmem:[%s296 + $0x390] sm:$0xff]
        %v682 = vld [vmem:[%s296 + $0x398] sm:$0xff]
        %v683 = vld [vmem:[%s296 + $0x3a0] sm:$0xff]
        %v684 = vld [vmem:[%s296 + $0x3a8] sm:$0xff]
        %v685 = vld [vmem:[%s296 + $0x3b0] sm:$0xff]
        %v686 = vld [vmem:[%s296 + $0x3b8] sm:$0xff]
        %v687 = vld [vmem:[%s296 + $0x3c0] sm:$0xff]
        %v688 = vld [vmem:[%s296 + $0x3c8] sm:$0xff]
        %v689 = vld [vmem:[%s296 + $0x3d0] sm:$0xff]
        %v690 = vld [vmem:[%s296 + $0x3d8] sm:$0xff]
        %v691 = vld [vmem:[%s296 + $0x3e0] sm:$0xff]
        %v692 = vld [vmem:[%s296 + $0x3e8] sm:$0xff]
        %v693 = vld [vmem:[%s296 + $0x3f0] sm:$0xff]
        %v694 = vld [vmem:[%s296 + $0x3f8] sm:$0xff]
        %v695 = vld [vmem:[%s296 + $0x400] sm:$0xff]
        %v696 = vld [vmem:[%s296 + $0x408] sm:$0xff]
        %v697 = vld [vmem:[%s296 + $0x410] sm:$0xff]
        %v698 = vld [vmem:[%s296 + $0x418] sm:$0xff]
        %v699 = vld [vmem:[%s296 + $0x420] sm:$0xff]
        %v700 = vld [vmem:[%s296 + $0x428] sm:$0xff]
        %v701 = vld [vmem:[%s296 + $0x430] sm:$0xff]
        %v702 = vld [vmem:[%s296 + $0x438] sm:$0xff]
        %v703 = vld [vmem:[%s296 + $0x440] sm:$0xff]
        %v704 = vld [vmem:[%s296 + $0x448] sm:$0xff]
        %v705 = vld [vmem:[%s296 + $0x450] sm:$0xff]
        %v706 = vld [vmem:[%s296 + $0x458] sm:$0xff]
        %v707 = vld [vmem:[%s296 + $0x460] sm:$0xff]
        %v708 = vld [vmem:[%s296 + $0x468] sm:$0xff]
        %v709 = vld [vmem:[%s296 + $0x470] sm:$0xff]
        %v710 = vld [vmem:[%s296 + $0x478] sm:$0xff]
        %v711 = vld [vmem:[%s296 + $0x480] sm:$0xff]
        %v712 = vld [vmem:[%s296 + $0x488] sm:$0xff]
        %v713 = vld [vmem:[%s296 + $0x490] sm:$0xff]
        %v714 = vld [vmem:[%s296 + $0x498] sm:$0xff]
        %v715 = vld [vmem:[%s296 + $0x4a0] sm:$0xff]
        %v716 = vld [vmem:[%s296 + $0x4a8] sm:$0xff]
        %v717 = vld [vmem:[%s296 + $0x4b0] sm:$0xff]
        %v718 = vld [vmem:[%s296 + $0x4b8] sm:$0xff]
        %v719 = vld [vmem:[%s296 + $0x4c0] sm:$0xff]
        %v720 = vld [vmem:[%s296 + $0x4c8] sm:$0xff]
        %v721 = vld [vmem:[%s296 + $0x4d0] sm:$0xff]
        %v722 = vld [vmem:[%s296 + $0x4d8] sm:$0xff]
        %v723 = vld [vmem:[%s296 + $0x4e0] sm:$0xff]
        %v724 = vld [vmem:[%s296 + $0x4e8] sm:$0xff]
        %v725 = vld [vmem:[%s296 + $0x4f0] sm:$0xff]
        %v726 = vld [vmem:[%s296 + $0x4f8] sm:$0xff]
        %v727 = vld [vmem:[%s296 + $0x500] sm:$0xff]
        %v728 = vld [vmem:[%s296 + $0x508] sm:$0xff]
        %v729 = vld [vmem:[%s296 + $0x510] sm:$0xff]
        %v730 = vld [vmem:[%s296 + $0x518] sm:$0xff]
        %v731 = vld [vmem:[%s296 + $0x520] sm:$0xff]
        %v732 = vld [vmem:[%s296 + $0x528] sm:$0xff]
        %v733 = vld [vmem:[%s296 + $0x530] sm:$0xff]
        %v734 = vld [vmem:[%s296 + $0x538] sm:$0xff]
        %v735 = vld [vmem:[%s296 + $0x540] sm:$0xff]
        %v736 = vld [vmem:[%s296 + $0x548] sm:$0xff]
        %v737 = vld [vmem:[%s296 + $0x550] sm:$0xff]
        %v738 = vld [vmem:[%s296 + $0x558] sm:$0xff]
        %v739 = vld [vmem:[%s296 + $0x560] sm:$0xff]
        %v740 = vld [vmem:[%s296 + $0x568] sm:$0xff]
        %v741 = vld [vmem:[%s296 + $0x570] sm:$0xff]
        %v742 = vld [vmem:[%s296 + $0x578] sm:$0xff]
        %v743 = vld [vmem:[%s296 + $0x580] sm:$0xff]
        %v744 = vld [vmem:[%s296 + $0x588] sm:$0xff]
        %v745 = vld [vmem:[%s296 + $0x590] sm:$0xff]
        %v746 = vld [vmem:[%s296 + $0x598] sm:$0xff]
        %v747 = vld [vmem:[%s296 + $0x5a0] sm:$0xff]
        %v748 = vld [vmem:[%s296 + $0x5a8] sm:$0xff]
        %v749 = vld [vmem:[%s296 + $0x5b0] sm:$0xff]
        %v750 = vld [vmem:[%s296 + $0x5b8] sm:$0xff]
        %v751 = vld [vmem:[%s296 + $0x5c0] sm:$0xff]
        %v752 = vld [vmem:[%s296 + $0x5c8] sm:$0xff]
        %v753 = vld [vmem:[%s296 + $0x5d0] sm:$0xff]
        %v754 = vld [vmem:[%s296 + $0x5d8] sm:$0xff]
        %v755 = vld [vmem:[%s296 + $0x5e0] sm:$0xff]
        %v756 = vld [vmem:[%s296 + $0x5e8] sm:$0xff]
        %v757 = vld [vmem:[%s296 + $0x5f0] sm:$0xff]
        %v758 = vld [vmem:[%s296 + $0x5f8] sm:$0xff]
        %v759 = vld [vmem:[%s296 + $0x600] sm:$0xff]
        %v760 = vld [vmem:[%s296 + $0x608] sm:$0xff]
        %v761 = vld [vmem:[%s296 + $0x610] sm:$0xff]
        %v762 = vld [vmem:[%s296 + $0x618] sm:$0xff]
        %v763 = vld [vmem:[%s296 + $0x620] sm:$0xff]
        %v764 = vld [vmem:[%s296 + $0x628] sm:$0xff]
        %v765 = vld [vmem:[%s296 + $0x630] sm:$0xff]
        %v766 = vld [vmem:[%s296 + $0x638] sm:$0xff]
        %v767 = vld [vmem:[%s296 + $0x640] sm:$0xff]
        %v768 = vld [vmem:[%s296 + $0x648] sm:$0xff]
        %v769 = vld [vmem:[%s296 + $0x650] sm:$0xff]
        %v770 = vld [vmem:[%s296 + $0x658] sm:$0xff]
        %v771 = vld [vmem:[%s296 + $0x660] sm:$0xff]
        %v772 = vld [vmem:[%s296 + $0x668] sm:$0xff]
        %v773 = vld [vmem:[%s296 + $0x670] sm:$0xff]
        %v774 = vld [vmem:[%s296 + $0x678] sm:$0xff]
        %v775 = vld [vmem:[%s296 + $0x680] sm:$0xff]
        %v776 = vld [vmem:[%s296 + $0x688] sm:$0xff]
        %v777 = vld [vmem:[%s296 + $0x690] sm:$0xff]
        %v778 = vld [vmem:[%s296 + $0x698] sm:$0xff]
        %v779 = vld [vmem:[%s296 + $0x6a0] sm:$0xff]
        %v780 = vld [vmem:[%s296 + $0x6a8] sm:$0xff]
        %v781 = vld [vmem:[%s296 + $0x6b0] sm:$0xff]
        %v782 = vld [vmem:[%s296 + $0x6b8] sm:$0xff]
        %v783 = vld [vmem:[%s296 + $0x6c0] sm:$0xff]
        %v784 = vld [vmem:[%s296 + $0x6c8] sm:$0xff]
        %v785 = vld [vmem:[%s296 + $0x6d0] sm:$0xff]
        %v786 = vld [vmem:[%s296 + $0x6d8] sm:$0xff]
        %v787 = vld [vmem:[%s296 + $0x6e0] sm:$0xff]
        %v788 = vld [vmem:[%s296 + $0x6e8] sm:$0xff]
        %v789 = vld [vmem:[%s296 + $0x6f0] sm:$0xff]
        %v790 = vld [vmem:[%s296 + $0x6f8] sm:$0xff]
        %v791 = vld [vmem:[%s296 + $0x700] sm:$0xff]
        %v792 = vld [vmem:[%s296 + $0x708] sm:$0xff]
        %v793 = vld [vmem:[%s296 + $0x710] sm:$0xff]
        %v794 = vld [vmem:[%s296 + $0x718] sm:$0xff]
        %v795 = vld [vmem:[%s296 + $0x720] sm:$0xff]
        %v796 = vld [vmem:[%s296 + $0x728] sm:$0xff]
        %v797 = vld [vmem:[%s296 + $0x730] sm:$0xff]
        %v798 = vld [vmem:[%s296 + $0x738] sm:$0xff]
        %v799 = vld [vmem:[%s296 + $0x740] sm:$0xff]
        %v800 = vld [vmem:[%s296 + $0x748] sm:$0xff]
        %v801 = vld [vmem:[%s296 + $0x750] sm:$0xff]
        %v802 = vld [vmem:[%s296 + $0x758] sm:$0xff]
        %v803 = vld [vmem:[%s296 + $0x760] sm:$0xff]
        %v804 = vld [vmem:[%s296 + $0x768] sm:$0xff]
        %v805 = vld [vmem:[%s296 + $0x770] sm:$0xff]
        %v806 = vld [vmem:[%s296 + $0x778] sm:$0xff]
        %v807 = vld [vmem:[%s296 + $0x780] sm:$0xff]
        %v808 = vld [vmem:[%s296 + $0x788] sm:$0xff]
        %v809 = vld [vmem:[%s296 + $0x790] sm:$0xff]
        %v810 = vld [vmem:[%s296 + $0x798] sm:$0xff]
        %v811 = vld [vmem:[%s296 + $0x7a0] sm:$0xff]
        %v812 = vld [vmem:[%s296 + $0x7a8] sm:$0xff]
        %v813 = vld [vmem:[%s296 + $0x7b0] sm:$0xff]
        %v814 = vld [vmem:[%s296 + $0x7b8] sm:$0xff]
        %v815 = vld [vmem:[%s296 + $0x7c0] sm:$0xff]
        %v816 = vld [vmem:[%s296 + $0x7c8] sm:$0xff]
        %v817 = vld [vmem:[%s296 + $0x7d0] sm:$0xff]
        %v818 = vld [vmem:[%s296 + $0x7d8] sm:$0xff]
        %v819 = vld [vmem:[%s296 + $0x7e0] sm:$0xff]
        %v820 = vld [vmem:[%s296 + $0x7e8] sm:$0xff]
        %v821 = vld [vmem:[%s296 + $0x7f0] sm:$0xff]
        %v822 = vld [vmem:[%s296 + $0x7f8] sm:$0xff]
        %v823 = vld [vmem:[%s296 + $0x800] sm:$0xff]
        %v824 = vld [vmem:[%s296 + $0x808] sm:$0xff]
        %v825 = vld [vmem:[%s296 + $0x810] sm:$0xff]
        %v826 = vld [vmem:[%s296 + $0x818] sm:$0xff]
        %v827 = vld [vmem:[%s296 + $0x820] sm:$0xff]
        %v828 = vld [vmem:[%s296 + $0x828] sm:$0xff]
        %v829 = vld [vmem:[%s296 + $0x830] sm:$0xff]
        %v830 = vld [vmem:[%s296 + $0x838] sm:$0xff]
        %v831 = vld [vmem:[%s296 + $0x840] sm:$0xff]
        %v832 = vld [vmem:[%s296 + $0x848] sm:$0xff]
        %v833 = vld [vmem:[%s296 + $0x850] sm:$0xff]
        %v834 = vld [vmem:[%s296 + $0x858] sm:$0xff]
        %v835 = vld [vmem:[%s296 + $0x860] sm:$0xff]
        %v836 = vld [vmem:[%s296 + $0x868] sm:$0xff]
        %v837 = vld [vmem:[%s296 + $0x870] sm:$0xff]
        %v838 = vld [vmem:[%s296 + $0x878] sm:$0xff]
        %v839 = vld [vmem:[%s296 + $0x880] sm:$0xff]
        %v840 = vld [vmem:[%s296 + $0x888] sm:$0xff]
        %v841 = vld [vmem:[%s296 + $0x890] sm:$0xff]
        %v842 = vld [vmem:[%s296 + $0x898] sm:$0xff]
        %v843 = vld [vmem:[%s296 + $0x8a0] sm:$0xff]
        %v844 = vld [vmem:[%s296 + $0x8a8] sm:$0xff]
        %v845 = vld [vmem:[%s296 + $0x8b0] sm:$0xff]
        %v846 = vld [vmem:[%s296 + $0x8b8] sm:$0xff]
        %v847 = vld [vmem:[%s296 + $0x8c0] sm:$0xff]
        %v848 = vld [vmem:[%s296 + $0x8c8] sm:$0xff]
        %v849 = vld [vmem:[%s296 + $0x8d0] sm:$0xff]
        %v850 = vld [vmem:[%s296 + $0x8d8] sm:$0xff]
        %v851 = vld [vmem:[%s296 + $0x8e0] sm:$0xff]
        %v852 = vld [vmem:[%s296 + $0x8e8] sm:$0xff]
        %v853 = vld [vmem:[%s296 + $0x8f0] sm:$0xff]
        %v854 = vld [vmem:[%s296 + $0x8f8] sm:$0xff]
        %v855 = vld [vmem:[%s296 + $0x900] sm:$0xff]
        %v856 = vld [vmem:[%s296 + $0x908] sm:$0xff]
        %v857 = vld [vmem:[%s296 + $0x910] sm:$0xff]
        %v858 = vld [vmem:[%s296 + $0x918] sm:$0xff]
        %v859 = vld [vmem:[%s296 + $0x920] sm:$0xff]
        %v860 = vld [vmem:[%s296 + $0x928] sm:$0xff]
        %v861 = vld [vmem:[%s296 + $0x930] sm:$0xff]
        %v862 = vld [vmem:[%s296 + $0x938] sm:$0xff]
        %v863 = vld [vmem:[%s296 + $0x940] sm:$0xff]
        %v864 = vld [vmem:[%s296 + $0x948] sm:$0xff]
        %v865 = vld [vmem:[%s296 + $0x950] sm:$0xff]
        %v866 = vld [vmem:[%s296 + $0x958] sm:$0xff]
        %v867 = vld [vmem:[%s296 + $0x960] sm:$0xff]
        %v868 = vld [vmem:[%s296 + $0x968] sm:$0xff]
        %v869 = vld [vmem:[%s296 + $0x970] sm:$0xff]
        %v870 = vld [vmem:[%s296 + $0x978] sm:$0xff]
        %v871 = vld [vmem:[%s296 + $0x980] sm:$0xff]
        %v872 = vld [vmem:[%s296 + $0x988] sm:$0xff]
        %v873 = vld [vmem:[%s296 + $0x990] sm:$0xff]
        %v874 = vld [vmem:[%s296 + $0x998] sm:$0xff]
        %v875 = vld [vmem:[%s296 + $0x9a0] sm:$0xff]
        %v876 = vld [vmem:[%s296 + $0x9a8] sm:$0xff]
        %v877 = vld [vmem:[%s296 + $0x9b0] sm:$0xff]
        %v878 = vld [vmem:[%s296 + $0x9b8] sm:$0xff]
        %v879 = vld [vmem:[%s296 + $0x9c0] sm:$0xff]
        %v880 = vld [vmem:[%s296 + $0x9c8] sm:$0xff]
        %v881 = vld [vmem:[%s296 + $0x9d0] sm:$0xff]
        %v882 = vld [vmem:[%s296 + $0x9d8] sm:$0xff]
        %v883 = vld [vmem:[%s296 + $0x9e0] sm:$0xff]
        %v884 = vld [vmem:[%s296 + $0x9e8] sm:$0xff]
        %v885 = vld [vmem:[%s296 + $0x9f0] sm:$0xff]
        %v886 = vld [vmem:[%s296 + $0x9f8] sm:$0xff]
        %v887 = vld [vmem:[%s296 + $0xa00] sm:$0xff]
        %v888 = vld [vmem:[%s296 + $0xa08] sm:$0xff]
        %v889 = vld [vmem:[%s296 + $0xa10] sm:$0xff]
        %v890 = vld [vmem:[%s296 + $0xa18] sm:$0xff]
        %v891 = vld [vmem:[%s296 + $0xa20] sm:$0xff]
        %v892 = vld [vmem:[%s296 + $0xa28] sm:$0xff]
        %v893 = vld [vmem:[%s296 + $0xa30] sm:$0xff]
        %v894 = vld [vmem:[%s296 + $0xa38] sm:$0xff]
        %v895 = vld [vmem:[%s296 + $0xa40] sm:$0xff]
        %v896 = vld [vmem:[%s296 + $0xa48] sm:$0xff]
        %v897 = vld [vmem:[%s296 + $0xa50] sm:$0xff]
        %v898 = vld [vmem:[%s296 + $0xa58] sm:$0xff]
        %v899 = vld [vmem:[%s296 + $0xa60] sm:$0xff]
        %v900 = vld [vmem:[%s296 + $0xa68] sm:$0xff]
        %v901 = vld [vmem:[%s296 + $0xa70] sm:$0xff]
        %v902 = vld [vmem:[%s296 + $0xa78] sm:$0xff]
        %v903 = vld [vmem:[%s296 + $0xa80] sm:$0xff]
        %v904 = vld [vmem:[%s296 + $0xa88] sm:$0xff]
        %v905 = vld [vmem:[%s296 + $0xa90] sm:$0xff]
        %v906 = vld [vmem:[%s296 + $0xa98] sm:$0xff]
        %v907 = vld [vmem:[%s296 + $0xaa0] sm:$0xff]
        %v908 = vld [vmem:[%s296 + $0xaa8] sm:$0xff]
        %v909 = vld [vmem:[%s296 + $0xab0] sm:$0xff]
        %v910 = vld [vmem:[%s296 + $0xab8] sm:$0xff]
        %v911 = vld [vmem:[%s296 + $0xac0] sm:$0xff]
        %v912 = vld [vmem:[%s296 + $0xac8] sm:$0xff]
        %v913 = vld [vmem:[%s296 + $0xad0] sm:$0xff]
        %v914 = vld [vmem:[%s296 + $0xad8] sm:$0xff]
        %v915 = vld [vmem:[%s296 + $0xae0] sm:$0xff]
        %v916 = vld [vmem:[%s296 + $0xae8] sm:$0xff]
        %v917 = vld [vmem:[%s296 + $0xaf0] sm:$0xff]
        %v918 = vld [vmem:[%s296 + $0xaf8] sm:$0xff]
        %v919 = vld [vmem:[%s296 + $0xb00] sm:$0xff]
        %v920 = vld [vmem:[%s296 + $0xb08] sm:$0xff]
        %v921 = vld [vmem:[%s296 + $0xb10] sm:$0xff]
        %v922 = vld [vmem:[%s296 + $0xb18] sm:$0xff]
        %v923 = vld [vmem:[%s296 + $0xb20] sm:$0xff]
        %v924 = vld [vmem:[%s296 + $0xb28] sm:$0xff]
        %v925 = vld [vmem:[%s296 + $0xb30] sm:$0xff]
        %v926 = vld [vmem:[%s296 + $0xb38] sm:$0xff]
        %v927 = vld [vmem:[%s296 + $0xb40] sm:$0xff]
        %v928 = vld [vmem:[%s296 + $0xb48] sm:$0xff]
        %v929 = vld [vmem:[%s296 + $0xb50] sm:$0xff]
        %v930 = vld [vmem:[%s296 + $0xb58] sm:$0xff]
        %v931 = vld [vmem:[%s296 + $0xb60] sm:$0xff]
        %v932 = vld [vmem:[%s296 + $0xb68] sm:$0xff]
        %v933 = vld [vmem:[%s296 + $0xb70] sm:$0xff]
        %v934 = vld [vmem:[%s296 + $0xb78] sm:$0xff]
        %v935 = vld [vmem:[%s296 + $0xb80] sm:$0xff]
        %v936 = vld [vmem:[%s296 + $0xb88] sm:$0xff]
        %v937 = vld [vmem:[%s296 + $0xb90] sm:$0xff]
        %v938 = vld [vmem:[%s296 + $0xb98] sm:$0xff]
        %v939 = vld [vmem:[%s296 + $0xba0] sm:$0xff]
        %v940 = vld [vmem:[%s296 + $0xba8] sm:$0xff]
        %v941 = vld [vmem:[%s296 + $0xbb0] sm:$0xff]
        %v942 = vld [vmem:[%s296 + $0xbb8] sm:$0xff]
        %v943 = vld [vmem:[%s296 + $0xbc0] sm:$0xff]
        %v944 = vld [vmem:[%s296 + $0xbc8] sm:$0xff]
        %v945 = vld [vmem:[%s296 + $0xbd0] sm:$0xff]
        %v946 = vld [vmem:[%s296 + $0xbd8] sm:$0xff]
        %v947 = vld [vmem:[%s296 + $0xbe0] sm:$0xff]
        %v948 = vld [vmem:[%s296 + $0xbe8] sm:$0xff]
        %v949 = vld [vmem:[%s296 + $0xbf0] sm:$0xff]
        %v950 = vld [vmem:[%s296 + $0xbf8] sm:$0xff]
        %v951 = vld [vmem:[%s296 + $0xc00] sm:$0xff]
        %v952 = vld [vmem:[%s296 + $0xc08] sm:$0xff]
        %v953 = vld [vmem:[%s296 + $0xc10] sm:$0xff]
        %v954 = vld [vmem:[%s296 + $0xc18] sm:$0xff]
        %v955 = vld [vmem:[%s296 + $0xc20] sm:$0xff]
        %v956 = vld [vmem:[%s296 + $0xc28] sm:$0xff]
        %v957 = vld [vmem:[%s296 + $0xc30] sm:$0xff]
        %v958 = vld [vmem:[%s296 + $0xc38] sm:$0xff]
        %v959 = vld [vmem:[%s296 + $0xc40] sm:$0xff]
        %v960 = vld [vmem:[%s296 + $0xc48] sm:$0xff]
        %v961 = vld [vmem:[%s296 + $0xc50] sm:$0xff]
        %v962 = vld [vmem:[%s296 + $0xc58] sm:$0xff]
        %v963 = vld [vmem:[%s296 + $0xc60] sm:$0xff]
        %v964 = vld [vmem:[%s296 + $0xc68] sm:$0xff]
        %v965 = vld [vmem:[%s296 + $0xc70] sm:$0xff]
        %v966 = vld [vmem:[%s296 + $0xc78] sm:$0xff]
        %v967 = vld [vmem:[%s296 + $0xc80] sm:$0xff]
        %v968 = vld [vmem:[%s296 + $0xc88] sm:$0xff]
        %v969 = vld [vmem:[%s296 + $0xc90] sm:$0xff]
        %v970 = vld [vmem:[%s296 + $0xc98] sm:$0xff]
        %v971 = vld [vmem:[%s296 + $0xca0] sm:$0xff]
        %v972 = vld [vmem:[%s296 + $0xca8] sm:$0xff]
        %v973 = vld [vmem:[%s296 + $0xcb0] sm:$0xff]
        %v974 = vld [vmem:[%s296 + $0xcb8] sm:$0xff]
        %v975 = vld [vmem:[%s296 + $0xcc0] sm:$0xff]
        %v976 = vld [vmem:[%s296 + $0xcc8] sm:$0xff]
        %v977 = vld [vmem:[%s296 + $0xcd0] sm:$0xff]
        %v978 = vld [vmem:[%s296 + $0xcd8] sm:$0xff]
        %v979 = vld [vmem:[%s296 + $0xce0] sm:$0xff]
        %v980 = vld [vmem:[%s296 + $0xce8] sm:$0xff]
        %v981 = vld [vmem:[%s296 + $0xcf0] sm:$0xff]
        %v982 = vld [vmem:[%s296 + $0xcf8] sm:$0xff]
        %v983 = vld [vmem:[%s296 + $0xd00] sm:$0xff]
        %v984 = vld [vmem:[%s296 + $0xd08] sm:$0xff]
        %v985 = vld [vmem:[%s296 + $0xd10] sm:$0xff]
        %v986 = vld [vmem:[%s296 + $0xd18] sm:$0xff]
        %v987 = vld [vmem:[%s296 + $0xd20] sm:$0xff]
        %v988 = vld [vmem:[%s296 + $0xd28] sm:$0xff]
        %v989 = vld [vmem:[%s296 + $0xd30] sm:$0xff]
        %v990 = vld [vmem:[%s296 + $0xd38] sm:$0xff]
        %v991 = vld [vmem:[%s296 + $0xd40] sm:$0xff]
        %v992 = vld [vmem:[%s296 + $0xd48] sm:$0xff]
        %v993 = vld [vmem:[%s296 + $0xd50] sm:$0xff]
        %v994 = vld [vmem:[%s296 + $0xd58] sm:$0xff]
        %v995 = vld [vmem:[%s296 + $0xd60] sm:$0xff]
        %v996 = vld [vmem:[%s296 + $0xd68] sm:$0xff]
        %v997 = vld [vmem:[%s296 + $0xd70] sm:$0xff]
        %v998 = vld [vmem:[%s296 + $0xd78] sm:$0xff]
        %v999 = vld [vmem:[%s296 + $0xd80] sm:$0xff]
        %v1000 = vld [vmem:[%s296 + $0xd88] sm:$0xff]
        %v1001 = vld [vmem:[%s296 + $0xd90] sm:$0xff]
        %v1002 = vld [vmem:[%s296 + $0xd98] sm:$0xff]
        %v1003 = vld [vmem:[%s296 + $0xda0] sm:$0xff]
        %v1004 = vld [vmem:[%s296 + $0xda8] sm:$0xff]
        %v1005 = vld [vmem:[%s296 + $0xdb0] sm:$0xff]
        %v1006 = vld [vmem:[%s296 + $0xdb8] sm:$0xff]
        %v1007 = vld [vmem:[%s296 + $0xdc0] sm:$0xff]
        %v1008 = vld [vmem:[%s296 + $0xdc8] sm:$0xff]
        %v1009 = vld [vmem:[%s296 + $0xdd0] sm:$0xff]
        %v1010 = vld [vmem:[%s296 + $0xdd8] sm:$0xff]
        %v1011 = vld [vmem:[%s296 + $0xde0] sm:$0xff]
        %v1012 = vld [vmem:[%s296 + $0xde8] sm:$0xff]
        %v1013 = vld [vmem:[%s296 + $0xdf0] sm:$0xff]
        %v1014 = vld [vmem:[%s296 + $0xdf8] sm:$0xff]
        %v1015 = vld [vmem:[%s296 + $0xe00] sm:$0xff]
        %v1016 = vld [vmem:[%s296 + $0xe08] sm:$0xff]
        %v1017 = vld [vmem:[%s296 + $0xe10] sm:$0xff]
        %v1018 = vld [vmem:[%s296 + $0xe18] sm:$0xff]
        %v1019 = vld [vmem:[%s296 + $0xe20] sm:$0xff]
        %v1020 = vld [vmem:[%s296 + $0xe28] sm:$0xff]
        %v1021 = vld [vmem:[%s296 + $0xe30] sm:$0xff]
        %v1022 = vld [vmem:[%s296 + $0xe38] sm:$0xff]
        %v1023 = vld [vmem:[%s296 + $0xe40] sm:$0xff]
        %v1024 = vld [vmem:[%s296 + $0xe48] sm:$0xff]
        %v1025 = vld [vmem:[%s296 + $0xe50] sm:$0xff]
        %v1026 = vld [vmem:[%s296 + $0xe58] sm:$0xff]
        %v1027 = vld [vmem:[%s296 + $0xe60] sm:$0xff]
        %v1028 = vld [vmem:[%s296 + $0xe68] sm:$0xff]
        %v1029 = vld [vmem:[%s296 + $0xe70] sm:$0xff]
        %v1030 = vld [vmem:[%s296 + $0xe78] sm:$0xff]
        %v1031 = vld [vmem:[%s296 + $0xe80] sm:$0xff]
        %v1032 = vld [vmem:[%s296 + $0xe88] sm:$0xff]
        %v1033 = vld [vmem:[%s296 + $0xe90] sm:$0xff]
        %v1034 = vld [vmem:[%s296 + $0xe98] sm:$0xff]
        %v1035 = vld [vmem:[%s296 + $0xea0] sm:$0xff]
        %v1036 = vld [vmem:[%s296 + $0xea8] sm:$0xff]
        %v1037 = vld [vmem:[%s296 + $0xeb0] sm:$0xff]
        %v1038 = vld [vmem:[%s296 + $0xeb8] sm:$0xff]
        %v1039 = vld [vmem:[%s296 + $0xec0] sm:$0xff]
        %v1040 = vld [vmem:[%s296 + $0xec8] sm:$0xff]
        %v1041 = vld [vmem:[%s296 + $0xed0] sm:$0xff]
        %v1042 = vld [vmem:[%s296 + $0xed8] sm:$0xff]
        %v1043 = vld [vmem:[%s296 + $0xee0] sm:$0xff]
        %v1044 = vld [vmem:[%s296 + $0xee8] sm:$0xff]
        %v1045 = vld [vmem:[%s296 + $0xef0] sm:$0xff]
        %v1046 = vld [vmem:[%s296 + $0xef8] sm:$0xff]
        %v1047 = vld [vmem:[%s296 + $0xf00] sm:$0xff]
        %v1048 = vld [vmem:[%s296 + $0xf08] sm:$0xff]
        %v1049 = vld [vmem:[%s296 + $0xf10] sm:$0xff]
        %v1050 = vld [vmem:[%s296 + $0xf18] sm:$0xff]
        %v1051 = vld [vmem:[%s296 + $0xf20] sm:$0xff]
        %v1052 = vld [vmem:[%s296 + $0xf28] sm:$0xff]
        %v1053 = vld [vmem:[%s296 + $0xf30] sm:$0xff]
        %v1054 = vld [vmem:[%s296 + $0xf38] sm:$0xff]
        %v1055 = vld [vmem:[%s296 + $0xf40] sm:$0xff]
        %v1056 = vld [vmem:[%s296 + $0xf48] sm:$0xff]
        %v1057 = vld [vmem:[%s296 + $0xf50] sm:$0xff]
        %v1058 = vld [vmem:[%s296 + $0xf58] sm:$0xff]
        %v1059 = vld [vmem:[%s296 + $0xf60] sm:$0xff]
        %v1060 = vld [vmem:[%s296 + $0xf68] sm:$0xff]
        %v1061 = vld [vmem:[%s296 + $0xf70] sm:$0xff]
        %v1062 = vld [vmem:[%s296 + $0xf78] sm:$0xff]
        %v1063 = vld [vmem:[%s296 + $0xf80] sm:$0xff]
        %v1064 = vld [vmem:[%s296 + $0xf88] sm:$0xff]
        %v1065 = vld [vmem:[%s296 + $0xf90] sm:$0xff]
        %v1066 = vld [vmem:[%s296 + $0xf98] sm:$0xff]
        %v1067 = vld [vmem:[%s296 + $0xfa0] sm:$0xff]
        %v1068 = vld [vmem:[%s296 + $0xfa8] sm:$0xff]
        %v1069 = vld [vmem:[%s296 + $0xfb0] sm:$0xff]
        %v1070 = vld [vmem:[%s296 + $0xfb8] sm:$0xff]
        %v1071 = vld [vmem:[%s296 + $0xfc0] sm:$0xff]
        %v1072 = vld [vmem:[%s296 + $0xfc8] sm:$0xff]
        %v1073 = vld [vmem:[%s296 + $0xfd0] sm:$0xff]
        %v1074 = vld [vmem:[%s296 + $0xfd8] sm:$0xff]
        %v1075 = vld [vmem:[%s296 + $0xfe0] sm:$0xff]
        %v1076 = vld [vmem:[%s296 + $0xfe8] sm:$0xff]
        %v1077 = vld [vmem:[%s296 + $0xff0] sm:$0xff]
        %v1078 = vld [vmem:[%s296 + $0xff8] sm:$0xff]
        %v1079 = vld [vmem:[%s296 + $0x1000] sm:$0xff]
        %v1080 = vld [vmem:[%s296 + $0x1008] sm:$0xff]
        %v1081 = vld [vmem:[%s296 + $0x1010] sm:$0xff]
        %v1082 = vld [vmem:[%s296 + $0x1018] sm:$0xff]
        %v1083 = vld [vmem:[%s296 + $0x1020] sm:$0xff]
        %v1084 = vld [vmem:[%s296 + $0x1028] sm:$0xff]
        %v1085 = vld [vmem:[%s296 + $0x1030] sm:$0xff]
        %v1086 = vld [vmem:[%s296 + $0x1038] sm:$0xff]
        %v1087 = vld [vmem:[%s296 + $0x1040] sm:$0xff]
        %v1088 = vld [vmem:[%s296 + $0x1048] sm:$0xff]
        %v1089 = vld [vmem:[%s296 + $0x1050] sm:$0xff]
        %v1090 = vld [vmem:[%s296 + $0x1058] sm:$0xff]
        %v1091 = vld [vmem:[%s296 + $0x1060] sm:$0xff]
        %v1092 = vld [vmem:[%s296 + $0x1068] sm:$0xff]
        %v1093 = vld [vmem:[%s296 + $0x1070] sm:$0xff]
        %v1094 = vld [vmem:[%s296 + $0x1078] sm:$0xff]
        %v1095 = vld [vmem:[%s296 + $0x1080] sm:$0xff]
        %v1096 = vld [vmem:[%s296 + $0x1088] sm:$0xff]
        %v1097 = vld [vmem:[%s296 + $0x1090] sm:$0xff]
        %v1098 = vld [vmem:[%s296 + $0x1098] sm:$0xff]
        %v1099 = vld [vmem:[%s296 + $0x10a0] sm:$0xff]
        %v1100 = vld [vmem:[%s296 + $0x10a8] sm:$0xff]
        %v1101 = vld [vmem:[%s296 + $0x10b0] sm:$0xff]
        %v1102 = vld [vmem:[%s296 + $0x10b8] sm:$0xff]
        %v1103 = vld [vmem:[%s296 + $0x10c0] sm:$0xff]
        %v1104 = vld [vmem:[%s296 + $0x10c8] sm:$0xff]
        %v1105 = vld [vmem:[%s296 + $0x10d0] sm:$0xff]
        %v1106 = vld [vmem:[%s296 + $0x10d8] sm:$0xff]
        %v1107 = vld [vmem:[%s296 + $0x10e0] sm:$0xff]
        %v1108 = vld [vmem:[%s296 + $0x10e8] sm:$0xff]
        %v1109 = vld [vmem:[%s296 + $0x10f0] sm:$0xff]
        %v1110 = vld [vmem:[%s296 + $0x10f8] sm:$0xff]
        %v1111 = vld [vmem:[%s296 + $0x1100] sm:$0xff]
        %v1112 = vld [vmem:[%s296 + $0x1108] sm:$0xff]
        %v1113 = vld [vmem:[%s296 + $0x1110] sm:$0xff]
        %v1114 = vld [vmem:[%s296 + $0x1118] sm:$0xff]
        %v1115 = vld [vmem:[%s296 + $0x1120] sm:$0xff]
        %v1116 = vld [vmem:[%s296 + $0x1128] sm:$0xff]
        %v1117 = vld [vmem:[%s296 + $0x1130] sm:$0xff]
        %v1118 = vld [vmem:[%s296 + $0x1138] sm:$0xff]
        %v1119 = vld [vmem:[%s296 + $0x1140] sm:$0xff]
        %v1120 = vld [vmem:[%s296 + $0x1148] sm:$0xff]
        %v1121 = vld [vmem:[%s296 + $0x1150] sm:$0xff]
        %v1122 = vld [vmem:[%s296 + $0x1158] sm:$0xff]
        %v1123 = vld [vmem:[%s296 + $0x1160] sm:$0xff]
        %v1124 = vld [vmem:[%s296 + $0x1168] sm:$0xff]
        %v1125 = vld [vmem:[%s296 + $0x1170] sm:$0xff]
        %v1126 = vld [vmem:[%s296 + $0x1178] sm:$0xff]
        %v1127 = vld [vmem:[%s296 + $0x1180] sm:$0xff]
        %v1128 = vld [vmem:[%s296 + $0x1188] sm:$0xff]
        %v1129 = vld [vmem:[%s296 + $0x1190] sm:$0xff]
        %v1130 = vld [vmem:[%s296 + $0x1198] sm:$0xff]
        %v1131 = vld [vmem:[%s296 + $0x11a0] sm:$0xff]
        %v1132 = vld [vmem:[%s296 + $0x11a8] sm:$0xff]
        %v1133 = vld [vmem:[%s296 + $0x11b0] sm:$0xff]
        %v1134 = vld [vmem:[%s296 + $0x11b8] sm:$0xff]
        %v1135 = vld [vmem:[%s296 + $0x11c0] sm:$0xff]
        %v1136 = vld [vmem:[%s296 + $0x11c8] sm:$0xff]
        %v1137 = vld [vmem:[%s296 + $0x11d0] sm:$0xff]
        %v1138 = vld [vmem:[%s296 + $0x11d8] sm:$0xff]
        %v1139 = vld [vmem:[%s296 + $0x11e0] sm:$0xff]
        %v1140 = vld [vmem:[%s296 + $0x11e8] sm:$0xff]
        %v1141 = vld [vmem:[%s296 + $0x11f0] sm:$0xff]
        %v1142 = vld [vmem:[%s296 + $0x11f8] sm:$0xff]
        %v1143 = vld [vmem:[%s296 + $0x1200] sm:$0xff]
        %v1144 = vld [vmem:[%s296 + $0x1208] sm:$0xff]
        %v1145 = vld [vmem:[%s296 + $0x1210] sm:$0xff]
        %v1146 = vld [vmem:[%s296 + $0x1218] sm:$0xff]
        %v1147 = vld [vmem:[%s296 + $0x1220] sm:$0xff]
        %v1148 = vld [vmem:[%s296 + $0x1228] sm:$0xff]
        %v1149 = vld [vmem:[%s296 + $0x1230] sm:$0xff]
        %v1150 = vld [vmem:[%s296 + $0x1238] sm:$0xff]
        %v1151 = vld [vmem:[%s296 + $0x1240] sm:$0xff]
        %v1152 = vld [vmem:[%s296 + $0x1248] sm:$0xff]
        %v1153 = vld [vmem:[%s296 + $0x1250] sm:$0xff]
        %v1154 = vld [vmem:[%s296 + $0x1258] sm:$0xff]
        %v1155 = vld [vmem:[%s296 + $0x1260] sm:$0xff]
        %v1156 = vld [vmem:[%s296 + $0x1268] sm:$0xff]
        %v1157 = vld [vmem:[%s296 + $0x1270] sm:$0xff]
        %v1158 = vld [vmem:[%s296 + $0x1278] sm:$0xff]
        %v1159 = vld [vmem:[%s296 + $0x1280] sm:$0xff]
        %v1160 = vld [vmem:[%s296 + $0x1288] sm:$0xff]
        %v1161 = vld [vmem:[%s296 + $0x1290] sm:$0xff]
        %v1162 = vld [vmem:[%s296 + $0x1298] sm:$0xff]
        %v1163 = vld [vmem:[%s296 + $0x12a0] sm:$0xff]
        %v1164 = vld [vmem:[%s296 + $0x12a8] sm:$0xff]
        %v1165 = vld [vmem:[%s296 + $0x12b0] sm:$0xff]
        %v1166 = vld [vmem:[%s296 + $0x12b8] sm:$0xff]
        %v1167 = vld [vmem:[%s296 + $0x12c0] sm:$0xff]
        %v1168 = vld [vmem:[%s296 + $0x12c8] sm:$0xff]
        %v1169 = vld [vmem:[%s296 + $0x12d0] sm:$0xff]
        %v1170 = vld [vmem:[%s296 + $0x12d8] sm:$0xff]
        %v1171 = vld [vmem:[%s296 + $0x12e0] sm:$0xff]
        %v1172 = vld [vmem:[%s296 + $0x12e8] sm:$0xff]
        %v1173 = vld [vmem:[%s296 + $0x12f0] sm:$0xff]
        %v1174 = vld [vmem:[%s296 + $0x12f8] sm:$0xff]
        %v1175 = vld [vmem:[%s296 + $0x1300] sm:$0xff]
        %v1176 = vld [vmem:[%s296 + $0x1308] sm:$0xff]
        %v1177 = vld [vmem:[%s296 + $0x1310] sm:$0xff]
        %v1178 = vld [vmem:[%s296 + $0x1318] sm:$0xff]
        %v1179 = vld [vmem:[%s296 + $0x1320] sm:$0xff]
        %v1180 = vld [vmem:[%s296 + $0x1328] sm:$0xff]
        %v1181 = vld [vmem:[%s296 + $0x1330] sm:$0xff]
        %v1182 = vld [vmem:[%s296 + $0x1338] sm:$0xff]
        %v1183 = vld [vmem:[%s296 + $0x1340] sm:$0xff]
        %v1184 = vld [vmem:[%s296 + $0x1348] sm:$0xff]
        %v1185 = vld [vmem:[%s296 + $0x1350] sm:$0xff]
        %v1186 = vld [vmem:[%s296 + $0x1358] sm:$0xff]
        %v1187 = vld [vmem:[%s296 + $0x1360] sm:$0xff]
        %v1188 = vld [vmem:[%s296 + $0x1368] sm:$0xff]
        %v1189 = vld [vmem:[%s296 + $0x1370] sm:$0xff]
        %v1190 = vld [vmem:[%s296 + $0x1378] sm:$0xff]
        %v1191 = vld [vmem:[%s296 + $0x1380] sm:$0xff]
        %v1192 = vld [vmem:[%s296 + $0x1388] sm:$0xff]
        %v1193 = vld [vmem:[%s296 + $0x1390] sm:$0xff]
        %v1194 = vld [vmem:[%s296 + $0x1398] sm:$0xff]
        %v1195 = vld [vmem:[%s296 + $0x13a0] sm:$0xff]
        %v1196 = vld [vmem:[%s296 + $0x13a8] sm:$0xff]
        %v1197 = vld [vmem:[%s296 + $0x13b0] sm:$0xff]
        %v1198 = vld [vmem:[%s296 + $0x13b8] sm:$0xff]
        %v1199 = vld [vmem:[%s296 + $0x13c0] sm:$0xff]
        %v1200 = vld [vmem:[%s296 + $0x13c8] sm:$0xff]
        %v1201 = vld [vmem:[%s296 + $0x13d0] sm:$0xff]
        %v1202 = vld [vmem:[%s296 + $0x13d8] sm:$0xff]
        %v1203 = vld [vmem:[%s296 + $0x13e0] sm:$0xff]
        %v1204 = vld [vmem:[%s296 + $0x13e8] sm:$0xff]
        %v1205 = vld [vmem:[%s296 + $0x13f0] sm:$0xff]
        %v1206 = vld [vmem:[%s296 + $0x13f8] sm:$0xff]
        %v1207 = vld [vmem:[%s296 + $0x1400] sm:$0xff]
        %v1208 = vld [vmem:[%s296 + $0x1408] sm:$0xff]
        %v1209 = vld [vmem:[%s296 + $0x1410] sm:$0xff]
        %v1210 = vld [vmem:[%s296 + $0x1418] sm:$0xff]
        %v1211 = vld [vmem:[%s296 + $0x1420] sm:$0xff]
        %v1212 = vld [vmem:[%s296 + $0x1428] sm:$0xff]
        %v1213 = vld [vmem:[%s296 + $0x1430] sm:$0xff]
        %v1214 = vld [vmem:[%s296 + $0x1438] sm:$0xff]
        %v1215 = vld [vmem:[%s296 + $0x1440] sm:$0xff]
        %v1216 = vld [vmem:[%s296 + $0x1448] sm:$0xff]
        %v1217 = vld [vmem:[%s296 + $0x1450] sm:$0xff]
        %v1218 = vld [vmem:[%s296 + $0x1458] sm:$0xff]
        %v1219 = vld [vmem:[%s296 + $0x1460] sm:$0xff]
        %v1220 = vld [vmem:[%s296 + $0x1468] sm:$0xff]
        %v1221 = vld [vmem:[%s296 + $0x1470] sm:$0xff]
        %v1222 = vld [vmem:[%s296 + $0x1478] sm:$0xff]
        %v1223 = vld [vmem:[%s296 + $0x1480] sm:$0xff]
        %v1224 = vld [vmem:[%s296 + $0x1488] sm:$0xff]
        %v1225 = vld [vmem:[%s296 + $0x1490] sm:$0xff]
        %v1226 = vld [vmem:[%s296 + $0x1498] sm:$0xff]
        %v1227 = vld [vmem:[%s296 + $0x14a0] sm:$0xff]
        %v1228 = vld [vmem:[%s296 + $0x14a8] sm:$0xff]
        %v1229 = vld [vmem:[%s296 + $0x14b0] sm:$0xff]
        %v1230 = vld [vmem:[%s296 + $0x14b8] sm:$0xff]
        %v1231 = vld [vmem:[%s296 + $0x14c0] sm:$0xff]
        %v1232 = vld [vmem:[%s296 + $0x14c8] sm:$0xff]
        %v1233 = vld [vmem:[%s296 + $0x14d0] sm:$0xff]
        %v1234 = vld [vmem:[%s296 + $0x14d8] sm:$0xff]
        %v1235 = vld [vmem:[%s296 + $0x14e0] sm:$0xff]
        %v1236 = vld [vmem:[%s296 + $0x14e8] sm:$0xff]
        %v1237 = vld [vmem:[%s296 + $0x14f0] sm:$0xff]
        %v1238 = vld [vmem:[%s296 + $0x14f8] sm:$0xff]
        %v1239 = vld [vmem:[%s296 + $0x1500] sm:$0xff]
        %v1240 = vld [vmem:[%s296 + $0x1508] sm:$0xff]
        %v1241 = vld [vmem:[%s296 + $0x1510] sm:$0xff]
        %v1242 = vld [vmem:[%s296 + $0x1518] sm:$0xff]
        %v1243 = vld [vmem:[%s296 + $0x1520] sm:$0xff]
        %v1244 = vld [vmem:[%s296 + $0x1528] sm:$0xff]
        %v1245 = vld [vmem:[%s296 + $0x1530] sm:$0xff]
        %v1246 = vld [vmem:[%s296 + $0x1538] sm:$0xff]
        %v1247 = vld [vmem:[%s296 + $0x1540] sm:$0xff]
        %v1248 = vld [vmem:[%s296 + $0x1548] sm:$0xff]
        %v1249 = vld [vmem:[%s296 + $0x1550] sm:$0xff]
        %v1250 = vld [vmem:[%s296 + $0x1558] sm:$0xff]
        %v1251 = vld [vmem:[%s296 + $0x1560] sm:$0xff]
        %v1252 = vld [vmem:[%s296 + $0x1568] sm:$0xff]
        %v1253 = vld [vmem:[%s296 + $0x1570] sm:$0xff]
        %v1254 = vld [vmem:[%s296 + $0x1578] sm:$0xff]
        %v1255 = vld [vmem:[%s296 + $0x1580] sm:$0xff]
        %v1256 = vld [vmem:[%s296 + $0x1588] sm:$0xff]
        %v1257 = vld [vmem:[%s296 + $0x1590] sm:$0xff]
        %v1258 = vld [vmem:[%s296 + $0x1598] sm:$0xff]
        %v1259 = vld [vmem:[%s296 + $0x15a0] sm:$0xff]
        %v1260 = vld [vmem:[%s296 + $0x15a8] sm:$0xff]
        %v1261 = vld [vmem:[%s296 + $0x15b0] sm:$0xff]
        %v1262 = vld [vmem:[%s296 + $0x15b8] sm:$0xff]
        %v1263 = vld [vmem:[%s296 + $0x15c0] sm:$0xff]
        %v1264 = vld [vmem:[%s296 + $0x15c8] sm:$0xff]
        %v1265 = vld [vmem:[%s296 + $0x15d0] sm:$0xff]
        %v1266 = vld [vmem:[%s296 + $0x15d8] sm:$0xff]
        %v1267 = vld [vmem:[%s296 + $0x15e0] sm:$0xff]
        %v1268 = vld [vmem:[%s296 + $0x15e8] sm:$0xff]
        %v1269 = vld [vmem:[%s296 + $0x15f0] sm:$0xff]
        %v1270 = vld [vmem:[%s296 + $0x15f8] sm:$0xff]
        %v1271 = vld [vmem:[%s296 + $0x1600] sm:$0xff]
        %v1272 = vld [vmem:[%s296 + $0x1608] sm:$0xff]
        %v1273 = vld [vmem:[%s296 + $0x1610] sm:$0xff]
        %v1274 = vld [vmem:[%s296 + $0x1618] sm:$0xff]
        %v1275 = vld [vmem:[%s296 + $0x1620] sm:$0xff]
        %v1276 = vld [vmem:[%s296 + $0x1628] sm:$0xff]
        %v1277 = vld [vmem:[%s296 + $0x1630] sm:$0xff]
        %v1278 = vld [vmem:[%s296 + $0x1638] sm:$0xff]
        %v1279 = vld [vmem:[%s296 + $0x1640] sm:$0xff]
        %v1280 = vld [vmem:[%s296 + $0x1648] sm:$0xff]
        %v1281 = vld [vmem:[%s296 + $0x1650] sm:$0xff]
        %v1282 = vld [vmem:[%s296 + $0x1658] sm:$0xff]
        %v1283 = vld [vmem:[%s296 + $0x1660] sm:$0xff]
        %v1284 = vld [vmem:[%s296 + $0x1668] sm:$0xff]
        %v1285 = vld [vmem:[%s296 + $0x1670] sm:$0xff]
        %v1286 = vld [vmem:[%s296 + $0x1678] sm:$0xff]
        %v1287 = vld [vmem:[%s296 + $0x1680] sm:$0xff]
        %v1288 = vld [vmem:[%s296 + $0x1688] sm:$0xff]
        %v1289 = vld [vmem:[%s296 + $0x1690] sm:$0xff]
        %v1290 = vld [vmem:[%s296 + $0x1698] sm:$0xff]
        %v1291 = vld [vmem:[%s296 + $0x16a0] sm:$0xff]
        %v1292 = vld [vmem:[%s296 + $0x16a8] sm:$0xff]
        %v1293 = vld [vmem:[%s296 + $0x16b0] sm:$0xff]
        %v1294 = vld [vmem:[%s296 + $0x16b8] sm:$0xff]
        %v1295 = vld [vmem:[%s296 + $0x16c0] sm:$0xff]
        %v1296 = vld [vmem:[%s296 + $0x16c8] sm:$0xff]
        %v1297 = vld [vmem:[%s296 + $0x16d0] sm:$0xff]
        %v1298 = vld [vmem:[%s296 + $0x16d8] sm:$0xff]
        %v1299 = vld [vmem:[%s296 + $0x16e0] sm:$0xff]
        %v1300 = vld [vmem:[%s296 + $0x16e8] sm:$0xff]
        %v1301 = vld [vmem:[%s296 + $0x16f0] sm:$0xff]
        %v1302 = vld [vmem:[%s296 + $0x16f8] sm:$0xff]
        %v1303 = vld [vmem:[%s296 + $0x1700] sm:$0xff]
        %v1304 = vld [vmem:[%s296 + $0x1708] sm:$0xff]
        %v1305 = vld [vmem:[%s296 + $0x1710] sm:$0xff]
        %v1306 = vld [vmem:[%s296 + $0x1718] sm:$0xff]
        %v1307 = vld [vmem:[%s296 + $0x1720] sm:$0xff]
        %v1308 = vld [vmem:[%s296 + $0x1728] sm:$0xff]
        %v1309 = vld [vmem:[%s296 + $0x1730] sm:$0xff]
        %v1310 = vld [vmem:[%s296 + $0x1738] sm:$0xff]
        %v1311 = vld [vmem:[%s296 + $0x1740] sm:$0xff]
        %v1312 = vld [vmem:[%s296 + $0x1748] sm:$0xff]
        %v1313 = vld [vmem:[%s296 + $0x1750] sm:$0xff]
        %v1314 = vld [vmem:[%s296 + $0x1758] sm:$0xff]
        %v1315 = vld [vmem:[%s296 + $0x1760] sm:$0xff]
        %v1316 = vld [vmem:[%s296 + $0x1768] sm:$0xff]
        %v1317 = vld [vmem:[%s296 + $0x1770] sm:$0xff]
        %v1318 = vld [vmem:[%s296 + $0x1778] sm:$0xff]
        %v1319 = vld [vmem:[%s296 + $0x1780] sm:$0xff]
        %v1320 = vld [vmem:[%s296 + $0x1788] sm:$0xff]
        %v1321 = vld [vmem:[%s296 + $0x1790] sm:$0xff]
        %v1322 = vld [vmem:[%s296 + $0x1798] sm:$0xff]
        %v1323 = vld [vmem:[%s296 + $0x17a0] sm:$0xff]
        %v1324 = vld [vmem:[%s296 + $0x17a8] sm:$0xff]
        %v1325 = vld [vmem:[%s296 + $0x17b0] sm:$0xff]
        %v1326 = vld [vmem:[%s296 + $0x17b8] sm:$0xff]
        %v1327 = vld [vmem:[%s296 + $0x17c0] sm:$0xff]
        %v1328 = vld [vmem:[%s296 + $0x17c8] sm:$0xff]
        %v1329 = vld [vmem:[%s296 + $0x17d0] sm:$0xff]
        %v1330 = vld [vmem:[%s296 + $0x17d8] sm:$0xff]
        %v1331 = vld [vmem:[%s296 + $0x17e0] sm:$0xff]
        %v1332 = vld [vmem:[%s296 + $0x17e8] sm:$0xff]
        %v1333 = vld [vmem:[%s296 + $0x17f0] sm:$0xff]
        %v1334 = vld [vmem:[%s296 + $0x17f8] sm:$0xff]
        %v1335 = vld [vmem:[%s296 + $0x1800] sm:$0xff]
        %v1336 = vld [vmem:[%s296 + $0x1808] sm:$0xff]
        %v1337 = vld [vmem:[%s296 + $0x1810] sm:$0xff]
        %v1338 = vld [vmem:[%s296 + $0x1818] sm:$0xff]
        %v1339 = vld [vmem:[%s296 + $0x1820] sm:$0xff]
        %v1340 = vld [vmem:[%s296 + $0x1828] sm:$0xff]
        %v1341 = vld [vmem:[%s296 + $0x1830] sm:$0xff]
        %v1342 = vld [vmem:[%s296 + $0x1838] sm:$0xff]
        %v1343 = vld [vmem:[%s296 + $0x1840] sm:$0xff]
        %v1344 = vld [vmem:[%s296 + $0x1848] sm:$0xff]
        %v1345 = vld [vmem:[%s296 + $0x1850] sm:$0xff]
        %v1346 = vld [vmem:[%s296 + $0x1858] sm:$0xff]
        %v1347 = vld [vmem:[%s296 + $0x1860] sm:$0xff]
        %v1348 = vld [vmem:[%s296 + $0x1868] sm:$0xff]
        %v1349 = vld [vmem:[%s296 + $0x1870] sm:$0xff]
        %v1350 = vld [vmem:[%s296 + $0x1878] sm:$0xff]
        %v1351 = vld [vmem:[%s296 + $0x1880] sm:$0xff]
        %v1352 = vld [vmem:[%s296 + $0x1888] sm:$0xff]
        %v1353 = vld [vmem:[%s296 + $0x1890] sm:$0xff]
        %v1354 = vld [vmem:[%s296 + $0x1898] sm:$0xff]
        %v1355 = vld [vmem:[%s296 + $0x18a0] sm:$0xff]
        %v1356 = vld [vmem:[%s296 + $0x18a8] sm:$0xff]
        %v1357 = vld [vmem:[%s296 + $0x18b0] sm:$0xff]
        %v1358 = vld [vmem:[%s296 + $0x18b8] sm:$0xff]
        %v1359 = vld [vmem:[%s296 + $0x18c0] sm:$0xff]
        %v1360 = vld [vmem:[%s296 + $0x18c8] sm:$0xff]
        %v1361 = vld [vmem:[%s296 + $0x18d0] sm:$0xff]
        %v1362 = vld [vmem:[%s296 + $0x18d8] sm:$0xff]
        %v1363 = vld [vmem:[%s296 + $0x18e0] sm:$0xff]
        %v1364 = vld [vmem:[%s296 + $0x18e8] sm:$0xff]
        %v1365 = vld [vmem:[%s296 + $0x18f0] sm:$0xff]
        %v1366 = vld [vmem:[%s296 + $0x18f8] sm:$0xff]
        %v1367 = vld [vmem:[%s296 + $0x1900] sm:$0xff]
        %v1368 = vld [vmem:[%s296 + $0x1908] sm:$0xff]
        %v1369 = vld [vmem:[%s296 + $0x1910] sm:$0xff]
        %v1370 = vld [vmem:[%s296 + $0x1918] sm:$0xff]
        %v1371 = vld [vmem:[%s296 + $0x1920] sm:$0xff]
        %v1372 = vld [vmem:[%s296 + $0x1928] sm:$0xff]
        %v1373 = vld [vmem:[%s296 + $0x1930] sm:$0xff]
        %v1374 = vld [vmem:[%s296 + $0x1938] sm:$0xff]
        %v1375 = vld [vmem:[%s296 + $0x1940] sm:$0xff]
        %v1376 = vld [vmem:[%s296 + $0x1948] sm:$0xff]
        %v1377 = vld [vmem:[%s296 + $0x1950] sm:$0xff]
        %v1378 = vld [vmem:[%s296 + $0x1958] sm:$0xff]
        %v1379 = vld [vmem:[%s296 + $0x1960] sm:$0xff]
        %v1380 = vld [vmem:[%s296 + $0x1968] sm:$0xff]
        %v1381 = vld [vmem:[%s296 + $0x1970] sm:$0xff]
        %v1382 = vld [vmem:[%s296 + $0x1978] sm:$0xff]
        %v1383 = vld [vmem:[%s296 + $0x1980] sm:$0xff]
        %v1384 = vld [vmem:[%s296 + $0x1988] sm:$0xff]
        %v1385 = vld [vmem:[%s296 + $0x1990] sm:$0xff]
        %v1386 = vld [vmem:[%s296 + $0x1998] sm:$0xff]
        %v1387 = vld [vmem:[%s296 + $0x19a0] sm:$0xff]
        %v1388 = vld [vmem:[%s296 + $0x19a8] sm:$0xff]
        %v1389 = vld [vmem:[%s296 + $0x19b0] sm:$0xff]
        %v1390 = vld [vmem:[%s296 + $0x19b8] sm:$0xff]
        %v1391 = vld [vmem:[%s296 + $0x19c0] sm:$0xff]
        %v1392 = vld [vmem:[%s296 + $0x19c8] sm:$0xff]
        %v1393 = vld [vmem:[%s296 + $0x19d0] sm:$0xff]
        %v1394 = vld [vmem:[%s296 + $0x19d8] sm:$0xff]
        %v1395 = vld [vmem:[%s296 + $0x19e0] sm:$0xff]
        %v1396 = vld [vmem:[%s296 + $0x19e8] sm:$0xff]
        %v1397 = vld [vmem:[%s296 + $0x19f0] sm:$0xff]
        %v1398 = vld [vmem:[%s296 + $0x19f8] sm:$0xff]
        %v1399 = vld [vmem:[%s296 + $0x1a00] sm:$0xff]
        %v1400 = vld [vmem:[%s296 + $0x1a08] sm:$0xff]
        %v1401 = vld [vmem:[%s296 + $0x1a10] sm:$0xff]
        %v1402 = vld [vmem:[%s296 + $0x1a18] sm:$0xff]
        %v1403 = vld [vmem:[%s296 + $0x1a20] sm:$0xff]
        %v1404 = vld [vmem:[%s296 + $0x1a28] sm:$0xff]
        %v1405 = vld [vmem:[%s296 + $0x1a30] sm:$0xff]
        %v1406 = vld [vmem:[%s296 + $0x1a38] sm:$0xff]
        %v1407 = vld [vmem:[%s296 + $0x1a40] sm:$0xff]
        %v1408 = vld [vmem:[%s296 + $0x1a48] sm:$0xff]
        %v1409 = vld [vmem:[%s296 + $0x1a50] sm:$0xff]
        %v1410 = vld [vmem:[%s296 + $0x1a58] sm:$0xff]
        %v1411 = vld [vmem:[%s296 + $0x1a60] sm:$0xff]
        %v1412 = vld [vmem:[%s296 + $0x1a68] sm:$0xff]
        %v1413 = vld [vmem:[%s296 + $0x1a70] sm:$0xff]
        %v1414 = vld [vmem:[%s296 + $0x1a78] sm:$0xff]
        %v1415 = vld [vmem:[%s296 + $0x1a80] sm:$0xff]
        %v1416 = vld [vmem:[%s296 + $0x1a88] sm:$0xff]
        %v1417 = vld [vmem:[%s296 + $0x1a90] sm:$0xff]
        %v1418 = vld [vmem:[%s296 + $0x1a98] sm:$0xff]
        %v1419 = vld [vmem:[%s296 + $0x1aa0] sm:$0xff]
        %v1420 = vld [vmem:[%s296 + $0x1aa8] sm:$0xff]
        %v1421 = vld [vmem:[%s296 + $0x1ab0] sm:$0xff]
        %v1422 = vld [vmem:[%s296 + $0x1ab8] sm:$0xff]
        %v1423 = vld [vmem:[%s296 + $0x1ac0] sm:$0xff]
        %v1424 = vld [vmem:[%s296 + $0x1ac8] sm:$0xff]
        %v1425 = vld [vmem:[%s296 + $0x1ad0] sm:$0xff]
        %v1426 = vld [vmem:[%s296 + $0x1ad8] sm:$0xff]
        %v1427 = vld [vmem:[%s296 + $0x1ae0] sm:$0xff]
        %v1428 = vld [vmem:[%s296 + $0x1ae8] sm:$0xff]
        %v1429 = vld [vmem:[%s296 + $0x1af0] sm:$0xff]
        %v1430 = vld [vmem:[%s296 + $0x1af8] sm:$0xff]
        %v1431 = vld [vmem:[%s296 + $0x1b00] sm:$0xff]
        %v1432 = vld [vmem:[%s296 + $0x1b08] sm:$0xff]
        %v1433 = vld [vmem:[%s296 + $0x1b10] sm:$0xff]
        %v1434 = vld [vmem:[%s296 + $0x1b18] sm:$0xff]
        %v1435 = vld [vmem:[%s296 + $0x1b20] sm:$0xff]
        %v1436 = vld [vmem:[%s296 + $0x1b28] sm:$0xff]
        %v1437 = vld [vmem:[%s296 + $0x1b30] sm:$0xff]
        %v1438 = vld [vmem:[%s296 + $0x1b38] sm:$0xff]
        %v1439 = vld [vmem:[%s296 + $0x1b40] sm:$0xff]
        %v1440 = vld [vmem:[%s296 + $0x1b48] sm:$0xff]
        %v1441 = vld [vmem:[%s296 + $0x1b50] sm:$0xff]
        %v1442 = vld [vmem:[%s296 + $0x1b58] sm:$0xff]
        %v1443 = vld [vmem:[%s296 + $0x1b60] sm:$0xff]
        %v1444 = vld [vmem:[%s296 + $0x1b68] sm:$0xff]
        %v1445 = vld [vmem:[%s296 + $0x1b70] sm:$0xff]
        %v1446 = vld [vmem:[%s296 + $0x1b78] sm:$0xff]
        %v1447 = vld [vmem:[%s296 + $0x1b80] sm:$0xff]
        %v1448 = vld [vmem:[%s296 + $0x1b88] sm:$0xff]
        %v1449 = vld [vmem:[%s296 + $0x1b90] sm:$0xff]
        %v1450 = vld [vmem:[%s296 + $0x1b98] sm:$0xff]
        %v1451 = vld [vmem:[%s296 + $0x1ba0] sm:$0xff]
        %v1452 = vld [vmem:[%s296 + $0x1ba8] sm:$0xff]
        %v1453 = vld [vmem:[%s296 + $0x1bb0] sm:$0xff]
        %v1454 = vld [vmem:[%s296 + $0x1bb8] sm:$0xff]
        %v1455 = vld [vmem:[%s296 + $0x1bc0] sm:$0xff]
        %v1456 = vld [vmem:[%s296 + $0x1bc8] sm:$0xff]
        %v1457 = vld [vmem:[%s296 + $0x1bd0] sm:$0xff]
        %v1458 = vld [vmem:[%s296 + $0x1bd8] sm:$0xff]
        %v1459 = vld [vmem:[%s296 + $0x1be0] sm:$0xff]
        %v1460 = vld [vmem:[%s296 + $0x1be8] sm:$0xff]
        %v1461 = vld [vmem:[%s296 + $0x1bf0] sm:$0xff]
        %v1462 = vld [vmem:[%s296 + $0x1bf8] sm:$0xff]
        %v1463 = vld [vmem:[%s296 + $0x1c00] sm:$0xff]
        %v1464 = vld [vmem:[%s296 + $0x1c08] sm:$0xff]
        %v1465 = vld [vmem:[%s296 + $0x1c10] sm:$0xff]
        %v1466 = vld [vmem:[%s296 + $0x1c18] sm:$0xff]
        %v1467 = vld [vmem:[%s296 + $0x1c20] sm:$0xff]
        %v1468 = vld [vmem:[%s296 + $0x1c28] sm:$0xff]
        %v1469 = vld [vmem:[%s296 + $0x1c30] sm:$0xff]
        %v1470 = vld [vmem:[%s296 + $0x1c38] sm:$0xff]
        %v1471 = vld [vmem:[%s296 + $0x1c40] sm:$0xff]
        %v1472 = vld [vmem:[%s296 + $0x1c48] sm:$0xff]
        %v1473 = vld [vmem:[%s296 + $0x1c50] sm:$0xff]
        %v1474 = vld [vmem:[%s296 + $0x1c58] sm:$0xff]
        %v1475 = vld [vmem:[%s296 + $0x1c60] sm:$0xff]
        %v1476 = vld [vmem:[%s296 + $0x1c68] sm:$0xff]
        %v1477 = vld [vmem:[%s296 + $0x1c70] sm:$0xff]
        %v1478 = vld [vmem:[%s296 + $0x1c78] sm:$0xff]
        %v1479 = vld [vmem:[%s296 + $0x1c80] sm:$0xff]
        %v1480 = vld [vmem:[%s296 + $0x1c88] sm:$0xff]
        %v1481 = vld [vmem:[%s296 + $0x1c90] sm:$0xff]
        %v1482 = vld [vmem:[%s296 + $0x1c98] sm:$0xff]
        %v1483 = vld [vmem:[%s296 + $0x1ca0] sm:$0xff]
        %v1484 = vld [vmem:[%s296 + $0x1ca8] sm:$0xff]
        %v1485 = vld [vmem:[%s296 + $0x1cb0] sm:$0xff]
        %v1486 = vld [vmem:[%s296 + $0x1cb8] sm:$0xff]
        %v1487 = vld [vmem:[%s296 + $0x1cc0] sm:$0xff]
        %v1488 = vld [vmem:[%s296 + $0x1cc8] sm:$0xff]
        %v1489 = vld [vmem:[%s296 + $0x1cd0] sm:$0xff]
        %v1490 = vld [vmem:[%s296 + $0x1cd8] sm:$0xff]
        %v1491 = vld [vmem:[%s296 + $0x1ce0] sm:$0xff]
        %v1492 = vld [vmem:[%s296 + $0x1ce8] sm:$0xff]
        %v1493 = vld [vmem:[%s296 + $0x1cf0] sm:$0xff]
        %v1494 = vld [vmem:[%s296 + $0x1cf8] sm:$0xff]
        %v1495 = vld [vmem:[%s296 + $0x1d00] sm:$0xff]
        %v1496 = vld [vmem:[%s296 + $0x1d08] sm:$0xff]
        %v1497 = vld [vmem:[%s296 + $0x1d10] sm:$0xff]
        %v1498 = vld [vmem:[%s296 + $0x1d18] sm:$0xff]
        %v1499 = vld [vmem:[%s296 + $0x1d20] sm:$0xff]
        %v1500 = vld [vmem:[%s296 + $0x1d28] sm:$0xff]
        %v1501 = vld [vmem:[%s296 + $0x1d30] sm:$0xff]
        %v1502 = vld [vmem:[%s296 + $0x1d38] sm:$0xff]
        %v1503 = vld [vmem:[%s296 + $0x1d40] sm:$0xff]
        %v1504 = vld [vmem:[%s296 + $0x1d48] sm:$0xff]
        %v1505 = vld [vmem:[%s296 + $0x1d50] sm:$0xff]
        %v1506 = vld [vmem:[%s296 + $0x1d58] sm:$0xff]
        %v1507 = vld [vmem:[%s296 + $0x1d60] sm:$0xff]
        %v1508 = vld [vmem:[%s296 + $0x1d68] sm:$0xff]
        %v1509 = vld [vmem:[%s296 + $0x1d70] sm:$0xff]
        %v1510 = vld [vmem:[%s296 + $0x1d78] sm:$0xff]
        %v1511 = vld [vmem:[%s296 + $0x1d80] sm:$0xff]
        %v1512 = vld [vmem:[%s296 + $0x1d88] sm:$0xff]
        %v1513 = vld [vmem:[%s296 + $0x1d90] sm:$0xff]
        %v1514 = vld [vmem:[%s296 + $0x1d98] sm:$0xff]
        %v1515 = vld [vmem:[%s296 + $0x1da0] sm:$0xff]
        %v1516 = vld [vmem:[%s296 + $0x1da8] sm:$0xff]
        %v1517 = vld [vmem:[%s296 + $0x1db0] sm:$0xff]
        %v1518 = vld [vmem:[%s296 + $0x1db8] sm:$0xff]
        %v1519 = vld [vmem:[%s296 + $0x1dc0] sm:$0xff]
        %v1520 = vld [vmem:[%s296 + $0x1dc8] sm:$0xff]
        %v1521 = vld [vmem:[%s296 + $0x1dd0] sm:$0xff]
        %v1522 = vld [vmem:[%s296 + $0x1dd8] sm:$0xff]
        %v1523 = vld [vmem:[%s296 + $0x1de0] sm:$0xff]
        %v1524 = vld [vmem:[%s296 + $0x1de8] sm:$0xff]
        %v1525 = vld [vmem:[%s296 + $0x1df0] sm:$0xff]
        %v1526 = vld [vmem:[%s296 + $0x1df8] sm:$0xff]
        %v1527 = vld [vmem:[%s296 + $0x1e00] sm:$0xff]
        %v1528 = vld [vmem:[%s296 + $0x1e08] sm:$0xff]
        %v1529 = vld [vmem:[%s296 + $0x1e10] sm:$0xff]
        %v1530 = vld [vmem:[%s296 + $0x1e18] sm:$0xff]
        %v1531 = vld [vmem:[%s296 + $0x1e20] sm:$0xff]
        %v1532 = vld [vmem:[%s296 + $0x1e28] sm:$0xff]
        %v1533 = vld [vmem:[%s296 + $0x1e30] sm:$0xff]
        %v1534 = vld [vmem:[%s296 + $0x1e38] sm:$0xff]
        %v1535 = vld [vmem:[%s296 + $0x1e40] sm:$0xff]
        %v1536 = vld [vmem:[%s296 + $0x1e48] sm:$0xff]
        %v1537 = vld [vmem:[%s296 + $0x1e50] sm:$0xff]
        %v1538 = vld [vmem:[%s296 + $0x1e58] sm:$0xff]
        %v1539 = vld [vmem:[%s296 + $0x1e60] sm:$0xff]
        %v1540 = vld [vmem:[%s296 + $0x1e68] sm:$0xff]
        %v1541 = vld [vmem:[%s296 + $0x1e70] sm:$0xff]
        %v1542 = vld [vmem:[%s296 + $0x1e78] sm:$0xff]
        %v1543 = vld [vmem:[%s296 + $0x1e80] sm:$0xff]
        %v1544 = vld [vmem:[%s296 + $0x1e88] sm:$0xff]
        %v1545 = vld [vmem:[%s296 + $0x1e90] sm:$0xff]
        %v1546 = vld [vmem:[%s296 + $0x1e98] sm:$0xff]
        %v1547 = vld [vmem:[%s296 + $0x1ea0] sm:$0xff]
        %v1548 = vld [vmem:[%s296 + $0x1ea8] sm:$0xff]
        %v1549 = vld [vmem:[%s296 + $0x1eb0] sm:$0xff]
        %v1550 = vld [vmem:[%s296 + $0x1eb8] sm:$0xff]
        %v1551 = vld [vmem:[%s296 + $0x1ec0] sm:$0xff]
        %v1552 = vld [vmem:[%s296 + $0x1ec8] sm:$0xff]
        %v1553 = vld [vmem:[%s296 + $0x1ed0] sm:$0xff]
        %v1554 = vld [vmem:[%s296 + $0x1ed8] sm:$0xff]
        %v1555 = vld [vmem:[%s296 + $0x1ee0] sm:$0xff]
        %v1556 = vld [vmem:[%s296 + $0x1ee8] sm:$0xff]
        %v1557 = vld [vmem:[%s296 + $0x1ef0] sm:$0xff]
        %v1558 = vld [vmem:[%s296 + $0x1ef8] sm:$0xff]
        %v1559 = vld [vmem:[%s296 + $0x1f00] sm:$0xff]
        %v1560 = vld [vmem:[%s296 + $0x1f08] sm:$0xff]
        %v1561 = vld [vmem:[%s296 + $0x1f10] sm:$0xff]
        %v1562 = vld [vmem:[%s296 + $0x1f18] sm:$0xff]
        %v1563 = vld [vmem:[%s296 + $0x1f20] sm:$0xff]
        %v1564 = vld [vmem:[%s296 + $0x1f28] sm:$0xff]
        %v1565 = vld [vmem:[%s296 + $0x1f30] sm:$0xff]
        %v1566 = vld [vmem:[%s296 + $0x1f38] sm:$0xff]
        %v1567 = vld [vmem:[%s296 + $0x1f40] sm:$0xff]
        %v1568 = vld [vmem:[%s296 + $0x1f48] sm:$0xff]
        %v1569 = vld [vmem:[%s296 + $0x1f50] sm:$0xff]
        %v1570 = vld [vmem:[%s296 + $0x1f58] sm:$0xff]
        %v1571 = vld [vmem:[%s296 + $0x1f60] sm:$0xff]
        %v1572 = vld [vmem:[%s296 + $0x1f68] sm:$0xff]
        %v1573 = vld [vmem:[%s296 + $0x1f70] sm:$0xff]
        %v1574 = vld [vmem:[%s296 + $0x1f78] sm:$0xff]
        %v1575 = vld [vmem:[%s296 + $0x1f80] sm:$0xff]
        %v1576 = vld [vmem:[%s296 + $0x1f88] sm:$0xff]
        %v1577 = vld [vmem:[%s296 + $0x1f90] sm:$0xff]
        %v1578 = vld [vmem:[%s296 + $0x1f98] sm:$0xff]
        %v1579 = vld [vmem:[%s296 + $0x1fa0] sm:$0xff]
        %v1580 = vld [vmem:[%s296 + $0x1fa8] sm:$0xff]
        %v1581 = vld [vmem:[%s296 + $0x1fb0] sm:$0xff]
        %v1582 = vld [vmem:[%s296 + $0x1fb8] sm:$0xff]
        %v1583 = vld [vmem:[%s296 + $0x1fc0] sm:$0xff]
        %v1584 = vld [vmem:[%s296 + $0x1fc8] sm:$0xff]
        %v1585 = vld [vmem:[%s296 + $0x1fd0] sm:$0xff]
        %v1586 = vld [vmem:[%s296 + $0x1fd8] sm:$0xff]
        %v1587 = vld [vmem:[%s296 + $0x1fe0] sm:$0xff]
        %v1588 = vld [vmem:[%s296 + $0x1fe8] sm:$0xff]
        %v1589 = vld [vmem:[%s296 + $0x1ff0] sm:$0xff]
        %v1590 = vld [vmem:[%s296 + $0x1ff8] sm:$0xff]
        %v2615 = vunpack.c.l.b16 %v567
        %v2616 = vunpack.c.h.b16 %v567
        %v2617 = vunpack.c.l.b16 %v568
        %v2618 = vunpack.c.h.b16 %v568
        %v2619 = vunpack.c.l.b16 %v569
        %v2620 = vunpack.c.h.b16 %v569
        %v2621 = vunpack.c.l.b16 %v570
        %v2622 = vunpack.c.h.b16 %v570
        %v2623 = vunpack.c.l.b16 %v571
        %v2624 = vunpack.c.h.b16 %v571
        %v2625 = vunpack.c.l.b16 %v572
        %v2626 = vunpack.c.h.b16 %v572
        %v2627 = vunpack.c.l.b16 %v573
        %v2628 = vunpack.c.h.b16 %v573
        %v2629 = vunpack.c.l.b16 %v574
        %v2630 = vunpack.c.h.b16 %v574
        %v2631 = vunpack.c.l.b16 %v575
        %v2632 = vunpack.c.h.b16 %v575
        %v2633 = vunpack.c.l.b16 %v576
        %v2634 = vunpack.c.h.b16 %v576
        %v2635 = vunpack.c.l.b16 %v577
        %v2636 = vunpack.c.h.b16 %v577
        %v2637 = vunpack.c.l.b16 %v578
        %v2638 = vunpack.c.h.b16 %v578
        %v2639 = vunpack.c.l.b16 %v579
        %v2640 = vunpack.c.h.b16 %v579
        %v2641 = vunpack.c.l.b16 %v580
        %v2642 = vunpack.c.h.b16 %v580
        %v2643 = vunpack.c.l.b16 %v581
        %v2644 = vunpack.c.h.b16 %v581
        %v2645 = vunpack.c.l.b16 %v582
        %v2646 = vunpack.c.h.b16 %v582
        %v2647 = vunpack.c.l.b16 %v583
        %v2648 = vunpack.c.h.b16 %v583
        %v2649 = vunpack.c.l.b16 %v584
        %v2650 = vunpack.c.h.b16 %v584
        %v2651 = vunpack.c.l.b16 %v585
        %v2652 = vunpack.c.h.b16 %v585
        %v2653 = vunpack.c.l.b16 %v586
        %v2654 = vunpack.c.h.b16 %v586
        %v2655 = vunpack.c.l.b16 %v587
        %v2656 = vunpack.c.h.b16 %v587
        %v2657 = vunpack.c.l.b16 %v588
        %v2658 = vunpack.c.h.b16 %v588
        %v2659 = vunpack.c.l.b16 %v589
        %v2660 = vunpack.c.h.b16 %v589
        %v2661 = vunpack.c.l.b16 %v590
        %v2662 = vunpack.c.h.b16 %v590
        %v2663 = vunpack.c.l.b16 %v591
        %v2664 = vunpack.c.h.b16 %v591
        %v2665 = vunpack.c.l.b16 %v592
        %v2666 = vunpack.c.h.b16 %v592
        %v2667 = vunpack.c.l.b16 %v593
        %v2668 = vunpack.c.h.b16 %v593
        %v2669 = vunpack.c.l.b16 %v594
        %v2670 = vunpack.c.h.b16 %v594
        %v2671 = vunpack.c.l.b16 %v595
        %v2672 = vunpack.c.h.b16 %v595
        %v2673 = vunpack.c.l.b16 %v596
        %v2674 = vunpack.c.h.b16 %v596
        %v2675 = vunpack.c.l.b16 %v597
        %v2676 = vunpack.c.h.b16 %v597
        %v2677 = vunpack.c.l.b16 %v598
        %v2678 = vunpack.c.h.b16 %v598
        %v2679 = vunpack.c.l.b16 %v599
        %v2680 = vunpack.c.h.b16 %v599
        %v2681 = vunpack.c.l.b16 %v600
        %v2682 = vunpack.c.h.b16 %v600
        %v2683 = vunpack.c.l.b16 %v601
        %v2684 = vunpack.c.h.b16 %v601
        %v2685 = vunpack.c.l.b16 %v602
        %v2686 = vunpack.c.h.b16 %v602
        %v2687 = vunpack.c.l.b16 %v603
        %v2688 = vunpack.c.h.b16 %v603
        %v2689 = vunpack.c.l.b16 %v604
        %v2690 = vunpack.c.h.b16 %v604
        %v2691 = vunpack.c.l.b16 %v605
        %v2692 = vunpack.c.h.b16 %v605
        %v2693 = vunpack.c.l.b16 %v606
        %v2694 = vunpack.c.h.b16 %v606
        %v2695 = vunpack.c.l.b16 %v607
        %v2696 = vunpack.c.h.b16 %v607
        %v2697 = vunpack.c.l.b16 %v608
        %v2698 = vunpack.c.h.b16 %v608
        %v2699 = vunpack.c.l.b16 %v609
        %v2700 = vunpack.c.h.b16 %v609
        %v2701 = vunpack.c.l.b16 %v610
        %v2702 = vunpack.c.h.b16 %v610
        %v2703 = vunpack.c.l.b16 %v611
        %v2704 = vunpack.c.h.b16 %v611
        %v2705 = vunpack.c.l.b16 %v612
        %v2706 = vunpack.c.h.b16 %v612
        %v2707 = vunpack.c.l.b16 %v613
        %v2708 = vunpack.c.h.b16 %v613
        %v2709 = vunpack.c.l.b16 %v614
        %v2710 = vunpack.c.h.b16 %v614
        %v2711 = vunpack.c.l.b16 %v615
        %v2712 = vunpack.c.h.b16 %v615
        %v2713 = vunpack.c.l.b16 %v616
        %v2714 = vunpack.c.h.b16 %v616
        %v2715 = vunpack.c.l.b16 %v617
        %v2716 = vunpack.c.h.b16 %v617
        %v2717 = vunpack.c.l.b16 %v618
        %v2718 = vunpack.c.h.b16 %v618
        %v2719 = vunpack.c.l.b16 %v619
        %v2720 = vunpack.c.h.b16 %v619
        %v2721 = vunpack.c.l.b16 %v620
        %v2722 = vunpack.c.h.b16 %v620
        %v2723 = vunpack.c.l.b16 %v621
        %v2724 = vunpack.c.h.b16 %v621
        %v2725 = vunpack.c.l.b16 %v622
        %v2726 = vunpack.c.h.b16 %v622
        %v2727 = vunpack.c.l.b16 %v623
        %v2728 = vunpack.c.h.b16 %v623
        %v2729 = vunpack.c.l.b16 %v624
        %v2730 = vunpack.c.h.b16 %v624
        %v2731 = vunpack.c.l.b16 %v625
        %v2732 = vunpack.c.h.b16 %v625
        %v2733 = vunpack.c.l.b16 %v626
        %v2734 = vunpack.c.h.b16 %v626
        %v2735 = vunpack.c.l.b16 %v627
        %v2736 = vunpack.c.h.b16 %v627
        %v2737 = vunpack.c.l.b16 %v628
        %v2738 = vunpack.c.h.b16 %v628
        %v2739 = vunpack.c.l.b16 %v629
        %v2740 = vunpack.c.h.b16 %v629
        %v2741 = vunpack.c.l.b16 %v630
        %v2742 = vunpack.c.h.b16 %v630
        %v2743 = vunpack.c.l.b16 %v631
        %v2744 = vunpack.c.h.b16 %v631
        %v2745 = vunpack.c.l.b16 %v632
        %v2746 = vunpack.c.h.b16 %v632
        %v2747 = vunpack.c.l.b16 %v633
        %v2748 = vunpack.c.h.b16 %v633
        %v2749 = vunpack.c.l.b16 %v634
        %v2750 = vunpack.c.h.b16 %v634
        %v2751 = vunpack.c.l.b16 %v635
        %v2752 = vunpack.c.h.b16 %v635
        %v2753 = vunpack.c.l.b16 %v636
        %v2754 = vunpack.c.h.b16 %v636
        %v2755 = vunpack.c.l.b16 %v637
        %v2756 = vunpack.c.h.b16 %v637
        %v2757 = vunpack.c.l.b16 %v638
        %v2758 = vunpack.c.h.b16 %v638
        %v2759 = vunpack.c.l.b16 %v639
        %v2760 = vunpack.c.h.b16 %v639
        %v2761 = vunpack.c.l.b16 %v640
        %v2762 = vunpack.c.h.b16 %v640
        %v2763 = vunpack.c.l.b16 %v641
        %v2764 = vunpack.c.h.b16 %v641
        %v2765 = vunpack.c.l.b16 %v642
        %v2766 = vunpack.c.h.b16 %v642
        %v2767 = vunpack.c.l.b16 %v643
        %v2768 = vunpack.c.h.b16 %v643
        %v2769 = vunpack.c.l.b16 %v644
        %v2770 = vunpack.c.h.b16 %v644
        %v2771 = vunpack.c.l.b16 %v645
        %v2772 = vunpack.c.h.b16 %v645
        %v2773 = vunpack.c.l.b16 %v646
        %v2774 = vunpack.c.h.b16 %v646
        %v2775 = vunpack.c.l.b16 %v647
        %v2776 = vunpack.c.h.b16 %v647
        %v2777 = vunpack.c.l.b16 %v648
        %v2778 = vunpack.c.h.b16 %v648
        %v2779 = vunpack.c.l.b16 %v649
        %v2780 = vunpack.c.h.b16 %v649
        %v2781 = vunpack.c.l.b16 %v650
        %v2782 = vunpack.c.h.b16 %v650
        %v2783 = vunpack.c.l.b16 %v651
        %v2784 = vunpack.c.h.b16 %v651
        %v2785 = vunpack.c.l.b16 %v652
        %v2786 = vunpack.c.h.b16 %v652
        %v2787 = vunpack.c.l.b16 %v653
        %v2788 = vunpack.c.h.b16 %v653
        %v2789 = vunpack.c.l.b16 %v654
        %v2790 = vunpack.c.h.b16 %v654
        %v2791 = vunpack.c.l.b16 %v655
        %v2792 = vunpack.c.h.b16 %v655
        %v2793 = vunpack.c.l.b16 %v656
        %v2794 = vunpack.c.h.b16 %v656
        %v2795 = vunpack.c.l.b16 %v657
        %v2796 = vunpack.c.h.b16 %v657
        %v2797 = vunpack.c.l.b16 %v658
        %v2798 = vunpack.c.h.b16 %v658
        %v2799 = vunpack.c.l.b16 %v659
        %v2800 = vunpack.c.h.b16 %v659
        %v2801 = vunpack.c.l.b16 %v660
        %v2802 = vunpack.c.h.b16 %v660
        %v2803 = vunpack.c.l.b16 %v661
        %v2804 = vunpack.c.h.b16 %v661
        %v2805 = vunpack.c.l.b16 %v662
        %v2806 = vunpack.c.h.b16 %v662
        %v2807 = vunpack.c.l.b16 %v663
        %v2808 = vunpack.c.h.b16 %v663
        %v2809 = vunpack.c.l.b16 %v664
        %v2810 = vunpack.c.h.b16 %v664
        %v2811 = vunpack.c.l.b16 %v665
        %v2812 = vunpack.c.h.b16 %v665
        %v2813 = vunpack.c.l.b16 %v666
        %v2814 = vunpack.c.h.b16 %v666
        %v2815 = vunpack.c.l.b16 %v667
        %v2816 = vunpack.c.h.b16 %v667
        %v2817 = vunpack.c.l.b16 %v668
        %v2818 = vunpack.c.h.b16 %v668
        %v2819 = vunpack.c.l.b16 %v669
        %v2820 = vunpack.c.h.b16 %v669
        %v2821 = vunpack.c.l.b16 %v670
        %v2822 = vunpack.c.h.b16 %v670
        %v2823 = vunpack.c.l.b16 %v671
        %v2824 = vunpack.c.h.b16 %v671
        %v2825 = vunpack.c.l.b16 %v672
        %v2826 = vunpack.c.h.b16 %v672
        %v2827 = vunpack.c.l.b16 %v673
        %v2828 = vunpack.c.h.b16 %v673
        %v2829 = vunpack.c.l.b16 %v674
        %v2830 = vunpack.c.h.b16 %v674
        %v2831 = vunpack.c.l.b16 %v675
        %v2832 = vunpack.c.h.b16 %v675
        %v2833 = vunpack.c.l.b16 %v676
        %v2834 = vunpack.c.h.b16 %v676
        %v2835 = vunpack.c.l.b16 %v677
        %v2836 = vunpack.c.h.b16 %v677
        %v2837 = vunpack.c.l.b16 %v678
        %v2838 = vunpack.c.h.b16 %v678
        %v2839 = vunpack.c.l.b16 %v679
        %v2840 = vunpack.c.h.b16 %v679
        %v2841 = vunpack.c.l.b16 %v680
        %v2842 = vunpack.c.h.b16 %v680
        %v2843 = vunpack.c.l.b16 %v681
        %v2844 = vunpack.c.h.b16 %v681
        %v2845 = vunpack.c.l.b16 %v682
        %v2846 = vunpack.c.h.b16 %v682
        %v2847 = vunpack.c.l.b16 %v683
        %v2848 = vunpack.c.h.b16 %v683
        %v2849 = vunpack.c.l.b16 %v684
        %v2850 = vunpack.c.h.b16 %v684
        %v2851 = vunpack.c.l.b16 %v685
        %v2852 = vunpack.c.h.b16 %v685
        %v2853 = vunpack.c.l.b16 %v686
        %v2854 = vunpack.c.h.b16 %v686
        %v2855 = vunpack.c.l.b16 %v687
        %v2856 = vunpack.c.h.b16 %v687
        %v2857 = vunpack.c.l.b16 %v688
        %v2858 = vunpack.c.h.b16 %v688
        %v2859 = vunpack.c.l.b16 %v689
        %v2860 = vunpack.c.h.b16 %v689
        %v2861 = vunpack.c.l.b16 %v690
        %v2862 = vunpack.c.h.b16 %v690
        %v2863 = vunpack.c.l.b16 %v691
        %v2864 = vunpack.c.h.b16 %v691
        %v2865 = vunpack.c.l.b16 %v692
        %v2866 = vunpack.c.h.b16 %v692
        %v2867 = vunpack.c.l.b16 %v693
        %v2868 = vunpack.c.h.b16 %v693
        %v2869 = vunpack.c.l.b16 %v694
        %v2870 = vunpack.c.h.b16 %v694
        %v2871 = vunpack.c.l.b16 %v695
        %v2872 = vunpack.c.h.b16 %v695
        %v2873 = vunpack.c.l.b16 %v696
        %v2874 = vunpack.c.h.b16 %v696
        %v2875 = vunpack.c.l.b16 %v697
        %v2876 = vunpack.c.h.b16 %v697
        %v2877 = vunpack.c.l.b16 %v698
        %v2878 = vunpack.c.h.b16 %v698
        %v2879 = vunpack.c.l.b16 %v699
        %v2880 = vunpack.c.h.b16 %v699
        %v2881 = vunpack.c.l.b16 %v700
        %v2882 = vunpack.c.h.b16 %v700
        %v2883 = vunpack.c.l.b16 %v701
        %v2884 = vunpack.c.h.b16 %v701
        %v2885 = vunpack.c.l.b16 %v702
        %v2886 = vunpack.c.h.b16 %v702
        %v2887 = vunpack.c.l.b16 %v703
        %v2888 = vunpack.c.h.b16 %v703
        %v2889 = vunpack.c.l.b16 %v704
        %v2890 = vunpack.c.h.b16 %v704
        %v2891 = vunpack.c.l.b16 %v705
        %v2892 = vunpack.c.h.b16 %v705
        %v2893 = vunpack.c.l.b16 %v706
        %v2894 = vunpack.c.h.b16 %v706
        %v2895 = vunpack.c.l.b16 %v707
        %v2896 = vunpack.c.h.b16 %v707
        %v2897 = vunpack.c.l.b16 %v708
        %v2898 = vunpack.c.h.b16 %v708
        %v2899 = vunpack.c.l.b16 %v709
        %v2900 = vunpack.c.h.b16 %v709
        %v2901 = vunpack.c.l.b16 %v710
        %v2902 = vunpack.c.h.b16 %v710
        %v2903 = vunpack.c.l.b16 %v711
        %v2904 = vunpack.c.h.b16 %v711
        %v2905 = vunpack.c.l.b16 %v712
        %v2906 = vunpack.c.h.b16 %v712
        %v2907 = vunpack.c.l.b16 %v713
        %v2908 = vunpack.c.h.b16 %v713
        %v2909 = vunpack.c.l.b16 %v714
        %v2910 = vunpack.c.h.b16 %v714
        %v2911 = vunpack.c.l.b16 %v715
        %v2912 = vunpack.c.h.b16 %v715
        %v2913 = vunpack.c.l.b16 %v716
        %v2914 = vunpack.c.h.b16 %v716
        %v2915 = vunpack.c.l.b16 %v717
        %v2916 = vunpack.c.h.b16 %v717
        %v2917 = vunpack.c.l.b16 %v718
        %v2918 = vunpack.c.h.b16 %v718
        %v2919 = vunpack.c.l.b16 %v719
        %v2920 = vunpack.c.h.b16 %v719
        %v2921 = vunpack.c.l.b16 %v720
        %v2922 = vunpack.c.h.b16 %v720
        %v2923 = vunpack.c.l.b16 %v721
        %v2924 = vunpack.c.h.b16 %v721
        %v2925 = vunpack.c.l.b16 %v722
        %v2926 = vunpack.c.h.b16 %v722
        %v2927 = vunpack.c.l.b16 %v723
        %v2928 = vunpack.c.h.b16 %v723
        %v2929 = vunpack.c.l.b16 %v724
        %v2930 = vunpack.c.h.b16 %v724
        %v2931 = vunpack.c.l.b16 %v725
        %v2932 = vunpack.c.h.b16 %v725
        %v2933 = vunpack.c.l.b16 %v726
        %v2934 = vunpack.c.h.b16 %v726
        %v2935 = vunpack.c.l.b16 %v727
        %v2936 = vunpack.c.h.b16 %v727
        %v2937 = vunpack.c.l.b16 %v728
        %v2938 = vunpack.c.h.b16 %v728
        %v2939 = vunpack.c.l.b16 %v729
        %v2940 = vunpack.c.h.b16 %v729
        %v2941 = vunpack.c.l.b16 %v730
        %v2942 = vunpack.c.h.b16 %v730
        %v2943 = vunpack.c.l.b16 %v731
        %v2944 = vunpack.c.h.b16 %v731
        %v2945 = vunpack.c.l.b16 %v732
        %v2946 = vunpack.c.h.b16 %v732
        %v2947 = vunpack.c.l.b16 %v733
        %v2948 = vunpack.c.h.b16 %v733
        %v2949 = vunpack.c.l.b16 %v734
        %v2950 = vunpack.c.h.b16 %v734
        %v2951 = vunpack.c.l.b16 %v735
        %v2952 = vunpack.c.h.b16 %v735
        %v2953 = vunpack.c.l.b16 %v736
        %v2954 = vunpack.c.h.b16 %v736
        %v2955 = vunpack.c.l.b16 %v737
        %v2956 = vunpack.c.h.b16 %v737
        %v2957 = vunpack.c.l.b16 %v738
        %v2958 = vunpack.c.h.b16 %v738
        %v2959 = vunpack.c.l.b16 %v739
        %v2960 = vunpack.c.h.b16 %v739
        %v2961 = vunpack.c.l.b16 %v740
        %v2962 = vunpack.c.h.b16 %v740
        %v2963 = vunpack.c.l.b16 %v741
        %v2964 = vunpack.c.h.b16 %v741
        %v2965 = vunpack.c.l.b16 %v742
        %v2966 = vunpack.c.h.b16 %v742
        %v2967 = vunpack.c.l.b16 %v743
        %v2968 = vunpack.c.h.b16 %v743
        %v2969 = vunpack.c.l.b16 %v744
        %v2970 = vunpack.c.h.b16 %v744
        %v2971 = vunpack.c.l.b16 %v745
        %v2972 = vunpack.c.h.b16 %v745
        %v2973 = vunpack.c.l.b16 %v746
        %v2974 = vunpack.c.h.b16 %v746
        %v2975 = vunpack.c.l.b16 %v747
        %v2976 = vunpack.c.h.b16 %v747
        %v2977 = vunpack.c.l.b16 %v748
        %v2978 = vunpack.c.h.b16 %v748
        %v2979 = vunpack.c.l.b16 %v749
        %v2980 = vunpack.c.h.b16 %v749
        %v2981 = vunpack.c.l.b16 %v750
        %v2982 = vunpack.c.h.b16 %v750
        %v2983 = vunpack.c.l.b16 %v751
        %v2984 = vunpack.c.h.b16 %v751
        %v2985 = vunpack.c.l.b16 %v752
        %v2986 = vunpack.c.h.b16 %v752
        %v2987 = vunpack.c.l.b16 %v753
        %v2988 = vunpack.c.h.b16 %v753
        %v2989 = vunpack.c.l.b16 %v754
        %v2990 = vunpack.c.h.b16 %v754
        %v2991 = vunpack.c.l.b16 %v755
        %v2992 = vunpack.c.h.b16 %v755
        %v2993 = vunpack.c.l.b16 %v756
        %v2994 = vunpack.c.h.b16 %v756
        %v2995 = vunpack.c.l.b16 %v757
        %v2996 = vunpack.c.h.b16 %v757
        %v2997 = vunpack.c.l.b16 %v758
        %v2998 = vunpack.c.h.b16 %v758
        %v2999 = vunpack.c.l.b16 %v759
        %v3000 = vunpack.c.h.b16 %v759
        %v3001 = vunpack.c.l.b16 %v760
        %v3002 = vunpack.c.h.b16 %v760
        %v3003 = vunpack.c.l.b16 %v761
        %v3004 = vunpack.c.h.b16 %v761
        %v3005 = vunpack.c.l.b16 %v762
        %v3006 = vunpack.c.h.b16 %v762
        %v3007 = vunpack.c.l.b16 %v763
        %v3008 = vunpack.c.h.b16 %v763
        %v3009 = vunpack.c.l.b16 %v764
        %v3010 = vunpack.c.h.b16 %v764
        %v3011 = vunpack.c.l.b16 %v765
        %v3012 = vunpack.c.h.b16 %v765
        %v3013 = vunpack.c.l.b16 %v766
        %v3014 = vunpack.c.h.b16 %v766
        %v3015 = vunpack.c.l.b16 %v767
        %v3016 = vunpack.c.h.b16 %v767
        %v3017 = vunpack.c.l.b16 %v768
        %v3018 = vunpack.c.h.b16 %v768
        %v3019 = vunpack.c.l.b16 %v769
        %v3020 = vunpack.c.h.b16 %v769
        %v3021 = vunpack.c.l.b16 %v770
        %v3022 = vunpack.c.h.b16 %v770
        %v3023 = vunpack.c.l.b16 %v771
        %v3024 = vunpack.c.h.b16 %v771
        %v3025 = vunpack.c.l.b16 %v772
        %v3026 = vunpack.c.h.b16 %v772
        %v3027 = vunpack.c.l.b16 %v773
        %v3028 = vunpack.c.h.b16 %v773
        %v3029 = vunpack.c.l.b16 %v774
        %v3030 = vunpack.c.h.b16 %v774
        %v3031 = vunpack.c.l.b16 %v775
        %v3032 = vunpack.c.h.b16 %v775
        %v3033 = vunpack.c.l.b16 %v776
        %v3034 = vunpack.c.h.b16 %v776
        %v3035 = vunpack.c.l.b16 %v777
        %v3036 = vunpack.c.h.b16 %v777
        %v3037 = vunpack.c.l.b16 %v778
        %v3038 = vunpack.c.h.b16 %v778
        %v3039 = vunpack.c.l.b16 %v779
        %v3040 = vunpack.c.h.b16 %v779
        %v3041 = vunpack.c.l.b16 %v780
        %v3042 = vunpack.c.h.b16 %v780
        %v3043 = vunpack.c.l.b16 %v781
        %v3044 = vunpack.c.h.b16 %v781
        %v3045 = vunpack.c.l.b16 %v782
        %v3046 = vunpack.c.h.b16 %v782
        %v3047 = vunpack.c.l.b16 %v783
        %v3048 = vunpack.c.h.b16 %v783
        %v3049 = vunpack.c.l.b16 %v784
        %v3050 = vunpack.c.h.b16 %v784
        %v3051 = vunpack.c.l.b16 %v785
        %v3052 = vunpack.c.h.b16 %v785
        %v3053 = vunpack.c.l.b16 %v786
        %v3054 = vunpack.c.h.b16 %v786
        %v3055 = vunpack.c.l.b16 %v787
        %v3056 = vunpack.c.h.b16 %v787
        %v3057 = vunpack.c.l.b16 %v788
        %v3058 = vunpack.c.h.b16 %v788
        %v3059 = vunpack.c.l.b16 %v789
        %v3060 = vunpack.c.h.b16 %v789
        %v3061 = vunpack.c.l.b16 %v790
        %v3062 = vunpack.c.h.b16 %v790
        %v3063 = vunpack.c.l.b16 %v791
        %v3064 = vunpack.c.h.b16 %v791
        %v3065 = vunpack.c.l.b16 %v792
        %v3066 = vunpack.c.h.b16 %v792
        %v3067 = vunpack.c.l.b16 %v793
        %v3068 = vunpack.c.h.b16 %v793
        %v3069 = vunpack.c.l.b16 %v794
        %v3070 = vunpack.c.h.b16 %v794
        %v3071 = vunpack.c.l.b16 %v795
        %v3072 = vunpack.c.h.b16 %v795
        %v3073 = vunpack.c.l.b16 %v796
        %v3074 = vunpack.c.h.b16 %v796
        %v3075 = vunpack.c.l.b16 %v797
        %v3076 = vunpack.c.h.b16 %v797
        %v3077 = vunpack.c.l.b16 %v798
        %v3078 = vunpack.c.h.b16 %v798
        %v3079 = vunpack.c.l.b16 %v799
        %v3080 = vunpack.c.h.b16 %v799
        %v3081 = vunpack.c.l.b16 %v800
        %v3082 = vunpack.c.h.b16 %v800
        %v3083 = vunpack.c.l.b16 %v801
        %v3084 = vunpack.c.h.b16 %v801
        %v3085 = vunpack.c.l.b16 %v802
        %v3086 = vunpack.c.h.b16 %v802
        %v3087 = vunpack.c.l.b16 %v803
        %v3088 = vunpack.c.h.b16 %v803
        %v3089 = vunpack.c.l.b16 %v804
        %v3090 = vunpack.c.h.b16 %v804
        %v3091 = vunpack.c.l.b16 %v805
        %v3092 = vunpack.c.h.b16 %v805
        %v3093 = vunpack.c.l.b16 %v806
        %v3094 = vunpack.c.h.b16 %v806
        %v3095 = vunpack.c.l.b16 %v807
        %v3096 = vunpack.c.h.b16 %v807
        %v3097 = vunpack.c.l.b16 %v808
        %v3098 = vunpack.c.h.b16 %v808
        %v3099 = vunpack.c.l.b16 %v809
        %v3100 = vunpack.c.h.b16 %v809
        %v3101 = vunpack.c.l.b16 %v810
        %v3102 = vunpack.c.h.b16 %v810
        %v3103 = vunpack.c.l.b16 %v811
        %v3104 = vunpack.c.h.b16 %v811
        %v3105 = vunpack.c.l.b16 %v812
        %v3106 = vunpack.c.h.b16 %v812
        %v3107 = vunpack.c.l.b16 %v813
        %v3108 = vunpack.c.h.b16 %v813
        %v3109 = vunpack.c.l.b16 %v814
        %v3110 = vunpack.c.h.b16 %v814
        %v3111 = vunpack.c.l.b16 %v815
        %v3112 = vunpack.c.h.b16 %v815
        %v3113 = vunpack.c.l.b16 %v816
        %v3114 = vunpack.c.h.b16 %v816
        %v3115 = vunpack.c.l.b16 %v817
        %v3116 = vunpack.c.h.b16 %v817
        %v3117 = vunpack.c.l.b16 %v818
        %v3118 = vunpack.c.h.b16 %v818
        %v3119 = vunpack.c.l.b16 %v819
        %v3120 = vunpack.c.h.b16 %v819
        %v3121 = vunpack.c.l.b16 %v820
        %v3122 = vunpack.c.h.b16 %v820
        %v3123 = vunpack.c.l.b16 %v821
        %v3124 = vunpack.c.h.b16 %v821
        %v3125 = vunpack.c.l.b16 %v822
        %v3126 = vunpack.c.h.b16 %v822
        %v3127 = vunpack.c.l.b16 %v823
        %v3128 = vunpack.c.h.b16 %v823
        %v3129 = vunpack.c.l.b16 %v824
        %v3130 = vunpack.c.h.b16 %v824
        %v3131 = vunpack.c.l.b16 %v825
        %v3132 = vunpack.c.h.b16 %v825
        %v3133 = vunpack.c.l.b16 %v826
        %v3134 = vunpack.c.h.b16 %v826
        %v3135 = vunpack.c.l.b16 %v827
        %v3136 = vunpack.c.h.b16 %v827
        %v3137 = vunpack.c.l.b16 %v828
        %v3138 = vunpack.c.h.b16 %v828
        %v3139 = vunpack.c.l.b16 %v829
        %v3140 = vunpack.c.h.b16 %v829
        %v3141 = vunpack.c.l.b16 %v830
        %v3142 = vunpack.c.h.b16 %v830
        %v3143 = vunpack.c.l.b16 %v831
        %v3144 = vunpack.c.h.b16 %v831
        %v3145 = vunpack.c.l.b16 %v832
        %v3146 = vunpack.c.h.b16 %v832
        %v3147 = vunpack.c.l.b16 %v833
        %v3148 = vunpack.c.h.b16 %v833
        %v3149 = vunpack.c.l.b16 %v834
        %v3150 = vunpack.c.h.b16 %v834
        %v3151 = vunpack.c.l.b16 %v835
        %v3152 = vunpack.c.h.b16 %v835
        %v3153 = vunpack.c.l.b16 %v836
        %v3154 = vunpack.c.h.b16 %v836
        %v3155 = vunpack.c.l.b16 %v837
        %v3156 = vunpack.c.h.b16 %v837
        %v3157 = vunpack.c.l.b16 %v838
        %v3158 = vunpack.c.h.b16 %v838
        %v3159 = vunpack.c.l.b16 %v839
        %v3160 = vunpack.c.h.b16 %v839
        %v3161 = vunpack.c.l.b16 %v840
        %v3162 = vunpack.c.h.b16 %v840
        %v3163 = vunpack.c.l.b16 %v841
        %v3164 = vunpack.c.h.b16 %v841
        %v3165 = vunpack.c.l.b16 %v842
        %v3166 = vunpack.c.h.b16 %v842
        %v3167 = vunpack.c.l.b16 %v843
        %v3168 = vunpack.c.h.b16 %v843
        %v3169 = vunpack.c.l.b16 %v844
        %v3170 = vunpack.c.h.b16 %v844
        %v3171 = vunpack.c.l.b16 %v845
        %v3172 = vunpack.c.h.b16 %v845
        %v3173 = vunpack.c.l.b16 %v846
        %v3174 = vunpack.c.h.b16 %v846
        %v3175 = vunpack.c.l.b16 %v847
        %v3176 = vunpack.c.h.b16 %v847
        %v3177 = vunpack.c.l.b16 %v848
        %v3178 = vunpack.c.h.b16 %v848
        %v3179 = vunpack.c.l.b16 %v849
        %v3180 = vunpack.c.h.b16 %v849
        %v3181 = vunpack.c.l.b16 %v850
        %v3182 = vunpack.c.h.b16 %v850
        %v3183 = vunpack.c.l.b16 %v851
        %v3184 = vunpack.c.h.b16 %v851
        %v3185 = vunpack.c.l.b16 %v852
        %v3186 = vunpack.c.h.b16 %v852
        %v3187 = vunpack.c.l.b16 %v853
        %v3188 = vunpack.c.h.b16 %v853
        %v3189 = vunpack.c.l.b16 %v854
        %v3190 = vunpack.c.h.b16 %v854
        %v3191 = vunpack.c.l.b16 %v855
        %v3192 = vunpack.c.h.b16 %v855
        %v3193 = vunpack.c.l.b16 %v856
        %v3194 = vunpack.c.h.b16 %v856
        %v3195 = vunpack.c.l.b16 %v857
        %v3196 = vunpack.c.h.b16 %v857
        %v3197 = vunpack.c.l.b16 %v858
        %v3198 = vunpack.c.h.b16 %v858
        %v3199 = vunpack.c.l.b16 %v859
        %v3200 = vunpack.c.h.b16 %v859
        %v3201 = vunpack.c.l.b16 %v860
        %v3202 = vunpack.c.h.b16 %v860
        %v3203 = vunpack.c.l.b16 %v861
        %v3204 = vunpack.c.h.b16 %v861
        %v3205 = vunpack.c.l.b16 %v862
        %v3206 = vunpack.c.h.b16 %v862
        %v3207 = vunpack.c.l.b16 %v863
        %v3208 = vunpack.c.h.b16 %v863
        %v3209 = vunpack.c.l.b16 %v864
        %v3210 = vunpack.c.h.b16 %v864
        %v3211 = vunpack.c.l.b16 %v865
        %v3212 = vunpack.c.h.b16 %v865
        %v3213 = vunpack.c.l.b16 %v866
        %v3214 = vunpack.c.h.b16 %v866
        %v3215 = vunpack.c.l.b16 %v867
        %v3216 = vunpack.c.h.b16 %v867
        %v3217 = vunpack.c.l.b16 %v868
        %v3218 = vunpack.c.h.b16 %v868
        %v3219 = vunpack.c.l.b16 %v869
        %v3220 = vunpack.c.h.b16 %v869
        %v3221 = vunpack.c.l.b16 %v870
        %v3222 = vunpack.c.h.b16 %v870
        %v3223 = vunpack.c.l.b16 %v871
        %v3224 = vunpack.c.h.b16 %v871
        %v3225 = vunpack.c.l.b16 %v872
        %v3226 = vunpack.c.h.b16 %v872
        %v3227 = vunpack.c.l.b16 %v873
        %v3228 = vunpack.c.h.b16 %v873
        %v3229 = vunpack.c.l.b16 %v874
        %v3230 = vunpack.c.h.b16 %v874
        %v3231 = vunpack.c.l.b16 %v875
        %v3232 = vunpack.c.h.b16 %v875
        %v3233 = vunpack.c.l.b16 %v876
        %v3234 = vunpack.c.h.b16 %v876
        %v3235 = vunpack.c.l.b16 %v877
        %v3236 = vunpack.c.h.b16 %v877
        %v3237 = vunpack.c.l.b16 %v878
        %v3238 = vunpack.c.h.b16 %v878
        %v3239 = vunpack.c.l.b16 %v879
        %v3240 = vunpack.c.h.b16 %v879
        %v3241 = vunpack.c.l.b16 %v880
        %v3242 = vunpack.c.h.b16 %v880
        %v3243 = vunpack.c.l.b16 %v881
        %v3244 = vunpack.c.h.b16 %v881
        %v3245 = vunpack.c.l.b16 %v882
        %v3246 = vunpack.c.h.b16 %v882
        %v3247 = vunpack.c.l.b16 %v883
        %v3248 = vunpack.c.h.b16 %v883
        %v3249 = vunpack.c.l.b16 %v884
        %v3250 = vunpack.c.h.b16 %v884
        %v3251 = vunpack.c.l.b16 %v885
        %v3252 = vunpack.c.h.b16 %v885
        %v3253 = vunpack.c.l.b16 %v886
        %v3254 = vunpack.c.h.b16 %v886
        %v3255 = vunpack.c.l.b16 %v887
        %v3256 = vunpack.c.h.b16 %v887
        %v3257 = vunpack.c.l.b16 %v888
        %v3258 = vunpack.c.h.b16 %v888
        %v3259 = vunpack.c.l.b16 %v889
        %v3260 = vunpack.c.h.b16 %v889
        %v3261 = vunpack.c.l.b16 %v890
        %v3262 = vunpack.c.h.b16 %v890
        %v3263 = vunpack.c.l.b16 %v891
        %v3264 = vunpack.c.h.b16 %v891
        %v3265 = vunpack.c.l.b16 %v892
        %v3266 = vunpack.c.h.b16 %v892
        %v3267 = vunpack.c.l.b16 %v893
        %v3268 = vunpack.c.h.b16 %v893
        %v3269 = vunpack.c.l.b16 %v894
        %v3270 = vunpack.c.h.b16 %v894
        %v3271 = vunpack.c.l.b16 %v895
        %v3272 = vunpack.c.h.b16 %v895
        %v3273 = vunpack.c.l.b16 %v896
        %v3274 = vunpack.c.h.b16 %v896
        %v3275 = vunpack.c.l.b16 %v897
        %v3276 = vunpack.c.h.b16 %v897
        %v3277 = vunpack.c.l.b16 %v898
        %v3278 = vunpack.c.h.b16 %v898
        %v3279 = vunpack.c.l.b16 %v899
        %v3280 = vunpack.c.h.b16 %v899
        %v3281 = vunpack.c.l.b16 %v900
        %v3282 = vunpack.c.h.b16 %v900
        %v3283 = vunpack.c.l.b16 %v901
        %v3284 = vunpack.c.h.b16 %v901
        %v3285 = vunpack.c.l.b16 %v902
        %v3286 = vunpack.c.h.b16 %v902
        %v3287 = vunpack.c.l.b16 %v903
        %v3288 = vunpack.c.h.b16 %v903
        %v3289 = vunpack.c.l.b16 %v904
        %v3290 = vunpack.c.h.b16 %v904
        %v3291 = vunpack.c.l.b16 %v905
        %v3292 = vunpack.c.h.b16 %v905
        %v3293 = vunpack.c.l.b16 %v906
        %v3294 = vunpack.c.h.b16 %v906
        %v3295 = vunpack.c.l.b16 %v907
        %v3296 = vunpack.c.h.b16 %v907
        %v3297 = vunpack.c.l.b16 %v908
        %v3298 = vunpack.c.h.b16 %v908
        %v3299 = vunpack.c.l.b16 %v909
        %v3300 = vunpack.c.h.b16 %v909
        %v3301 = vunpack.c.l.b16 %v910
        %v3302 = vunpack.c.h.b16 %v910
        %v3303 = vunpack.c.l.b16 %v911
        %v3304 = vunpack.c.h.b16 %v911
        %v3305 = vunpack.c.l.b16 %v912
        %v3306 = vunpack.c.h.b16 %v912
        %v3307 = vunpack.c.l.b16 %v913
        %v3308 = vunpack.c.h.b16 %v913
        %v3309 = vunpack.c.l.b16 %v914
        %v3310 = vunpack.c.h.b16 %v914
        %v3311 = vunpack.c.l.b16 %v915
        %v3312 = vunpack.c.h.b16 %v915
        %v3313 = vunpack.c.l.b16 %v916
        %v3314 = vunpack.c.h.b16 %v916
        %v3315 = vunpack.c.l.b16 %v917
        %v3316 = vunpack.c.h.b16 %v917
        %v3317 = vunpack.c.l.b16 %v918
        %v3318 = vunpack.c.h.b16 %v918
        %v3319 = vunpack.c.l.b16 %v919
        %v3320 = vunpack.c.h.b16 %v919
        %v3321 = vunpack.c.l.b16 %v920
        %v3322 = vunpack.c.h.b16 %v920
        %v3323 = vunpack.c.l.b16 %v921
        %v3324 = vunpack.c.h.b16 %v921
        %v3325 = vunpack.c.l.b16 %v922
        %v3326 = vunpack.c.h.b16 %v922
        %v3327 = vunpack.c.l.b16 %v923
        %v3328 = vunpack.c.h.b16 %v923
        %v3329 = vunpack.c.l.b16 %v924
        %v3330 = vunpack.c.h.b16 %v924
        %v3331 = vunpack.c.l.b16 %v925
        %v3332 = vunpack.c.h.b16 %v925
        %v3333 = vunpack.c.l.b16 %v926
        %v3334 = vunpack.c.h.b16 %v926
        %v3335 = vunpack.c.l.b16 %v927
        %v3336 = vunpack.c.h.b16 %v927
        %v3337 = vunpack.c.l.b16 %v928
        %v3338 = vunpack.c.h.b16 %v928
        %v3339 = vunpack.c.l.b16 %v929
        %v3340 = vunpack.c.h.b16 %v929
        %v3341 = vunpack.c.l.b16 %v930
        %v3342 = vunpack.c.h.b16 %v930
        %v3343 = vunpack.c.l.b16 %v931
        %v3344 = vunpack.c.h.b16 %v931
        %v3345 = vunpack.c.l.b16 %v932
        %v3346 = vunpack.c.h.b16 %v932
        %v3347 = vunpack.c.l.b16 %v933
        %v3348 = vunpack.c.h.b16 %v933
        %v3349 = vunpack.c.l.b16 %v934
        %v3350 = vunpack.c.h.b16 %v934
        %v3351 = vunpack.c.l.b16 %v935
        %v3352 = vunpack.c.h.b16 %v935
        %v3353 = vunpack.c.l.b16 %v936
        %v3354 = vunpack.c.h.b16 %v936
        %v3355 = vunpack.c.l.b16 %v937
        %v3356 = vunpack.c.h.b16 %v937
        %v3357 = vunpack.c.l.b16 %v938
        %v3358 = vunpack.c.h.b16 %v938
        %v3359 = vunpack.c.l.b16 %v939
        %v3360 = vunpack.c.h.b16 %v939
        %v3361 = vunpack.c.l.b16 %v940
        %v3362 = vunpack.c.h.b16 %v940
        %v3363 = vunpack.c.l.b16 %v941
        %v3364 = vunpack.c.h.b16 %v941
        %v3365 = vunpack.c.l.b16 %v942
        %v3366 = vunpack.c.h.b16 %v942
        %v3367 = vunpack.c.l.b16 %v943
        %v3368 = vunpack.c.h.b16 %v943
        %v3369 = vunpack.c.l.b16 %v944
        %v3370 = vunpack.c.h.b16 %v944
        %v3371 = vunpack.c.l.b16 %v945
        %v3372 = vunpack.c.h.b16 %v945
        %v3373 = vunpack.c.l.b16 %v946
        %v3374 = vunpack.c.h.b16 %v946
        %v3375 = vunpack.c.l.b16 %v947
        %v3376 = vunpack.c.h.b16 %v947
        %v3377 = vunpack.c.l.b16 %v948
        %v3378 = vunpack.c.h.b16 %v948
        %v3379 = vunpack.c.l.b16 %v949
        %v3380 = vunpack.c.h.b16 %v949
        %v3381 = vunpack.c.l.b16 %v950
        %v3382 = vunpack.c.h.b16 %v950
        %v3383 = vunpack.c.l.b16 %v951
        %v3384 = vunpack.c.h.b16 %v951
        %v3385 = vunpack.c.l.b16 %v952
        %v3386 = vunpack.c.h.b16 %v952
        %v3387 = vunpack.c.l.b16 %v953
        %v3388 = vunpack.c.h.b16 %v953
        %v3389 = vunpack.c.l.b16 %v954
        %v3390 = vunpack.c.h.b16 %v954
        %v3391 = vunpack.c.l.b16 %v955
        %v3392 = vunpack.c.h.b16 %v955
        %v3393 = vunpack.c.l.b16 %v956
        %v3394 = vunpack.c.h.b16 %v956
        %v3395 = vunpack.c.l.b16 %v957
        %v3396 = vunpack.c.h.b16 %v957
        %v3397 = vunpack.c.l.b16 %v958
        %v3398 = vunpack.c.h.b16 %v958
        %v3399 = vunpack.c.l.b16 %v959
        %v3400 = vunpack.c.h.b16 %v959
        %v3401 = vunpack.c.l.b16 %v960
        %v3402 = vunpack.c.h.b16 %v960
        %v3403 = vunpack.c.l.b16 %v961
        %v3404 = vunpack.c.h.b16 %v961
        %v3405 = vunpack.c.l.b16 %v962
        %v3406 = vunpack.c.h.b16 %v962
        %v3407 = vunpack.c.l.b16 %v963
        %v3408 = vunpack.c.h.b16 %v963
        %v3409 = vunpack.c.l.b16 %v964
        %v3410 = vunpack.c.h.b16 %v964
        %v3411 = vunpack.c.l.b16 %v965
        %v3412 = vunpack.c.h.b16 %v965
        %v3413 = vunpack.c.l.b16 %v966
        %v3414 = vunpack.c.h.b16 %v966
        %v3415 = vunpack.c.l.b16 %v967
        %v3416 = vunpack.c.h.b16 %v967
        %v3417 = vunpack.c.l.b16 %v968
        %v3418 = vunpack.c.h.b16 %v968
        %v3419 = vunpack.c.l.b16 %v969
        %v3420 = vunpack.c.h.b16 %v969
        %v3421 = vunpack.c.l.b16 %v970
        %v3422 = vunpack.c.h.b16 %v970
        %v3423 = vunpack.c.l.b16 %v971
        %v3424 = vunpack.c.h.b16 %v971
        %v3425 = vunpack.c.l.b16 %v972
        %v3426 = vunpack.c.h.b16 %v972
        %v3427 = vunpack.c.l.b16 %v973
        %v3428 = vunpack.c.h.b16 %v973
        %v3429 = vunpack.c.l.b16 %v974
        %v3430 = vunpack.c.h.b16 %v974
        %v3431 = vunpack.c.l.b16 %v975
        %v3432 = vunpack.c.h.b16 %v975
        %v3433 = vunpack.c.l.b16 %v976
        %v3434 = vunpack.c.h.b16 %v976
        %v3435 = vunpack.c.l.b16 %v977
        %v3436 = vunpack.c.h.b16 %v977
        %v3437 = vunpack.c.l.b16 %v978
        %v3438 = vunpack.c.h.b16 %v978
        %v3439 = vunpack.c.l.b16 %v979
        %v3440 = vunpack.c.h.b16 %v979
        %v3441 = vunpack.c.l.b16 %v980
        %v3442 = vunpack.c.h.b16 %v980
        %v3443 = vunpack.c.l.b16 %v981
        %v3444 = vunpack.c.h.b16 %v981
        %v3445 = vunpack.c.l.b16 %v982
        %v3446 = vunpack.c.h.b16 %v982
        %v3447 = vunpack.c.l.b16 %v983
        %v3448 = vunpack.c.h.b16 %v983
        %v3449 = vunpack.c.l.b16 %v984
        %v3450 = vunpack.c.h.b16 %v984
        %v3451 = vunpack.c.l.b16 %v985
        %v3452 = vunpack.c.h.b16 %v985
        %v3453 = vunpack.c.l.b16 %v986
        %v3454 = vunpack.c.h.b16 %v986
        %v3455 = vunpack.c.l.b16 %v987
        %v3456 = vunpack.c.h.b16 %v987
        %v3457 = vunpack.c.l.b16 %v988
        %v3458 = vunpack.c.h.b16 %v988
        %v3459 = vunpack.c.l.b16 %v989
        %v3460 = vunpack.c.h.b16 %v989
        %v3461 = vunpack.c.l.b16 %v990
        %v3462 = vunpack.c.h.b16 %v990
        %v3463 = vunpack.c.l.b16 %v991
        %v3464 = vunpack.c.h.b16 %v991
        %v3465 = vunpack.c.l.b16 %v992
        %v3466 = vunpack.c.h.b16 %v992
        %v3467 = vunpack.c.l.b16 %v993
        %v3468 = vunpack.c.h.b16 %v993
        %v3469 = vunpack.c.l.b16 %v994
        %v3470 = vunpack.c.h.b16 %v994
        %v3471 = vunpack.c.l.b16 %v995
        %v3472 = vunpack.c.h.b16 %v995
        %v3473 = vunpack.c.l.b16 %v996
        %v3474 = vunpack.c.h.b16 %v996
        %v3475 = vunpack.c.l.b16 %v997
        %v3476 = vunpack.c.h.b16 %v997
        %v3477 = vunpack.c.l.b16 %v998
        %v3478 = vunpack.c.h.b16 %v998
        %v3479 = vunpack.c.l.b16 %v999
        %v3480 = vunpack.c.h.b16 %v999
        %v3481 = vunpack.c.l.b16 %v1000
        %v3482 = vunpack.c.h.b16 %v1000
        %v3483 = vunpack.c.l.b16 %v1001
        %v3484 = vunpack.c.h.b16 %v1001
        %v3485 = vunpack.c.l.b16 %v1002
        %v3486 = vunpack.c.h.b16 %v1002
        %v3487 = vunpack.c.l.b16 %v1003
        %v3488 = vunpack.c.h.b16 %v1003
        %v3489 = vunpack.c.l.b16 %v1004
        %v3490 = vunpack.c.h.b16 %v1004
        %v3491 = vunpack.c.l.b16 %v1005
        %v3492 = vunpack.c.h.b16 %v1005
        %v3493 = vunpack.c.l.b16 %v1006
        %v3494 = vunpack.c.h.b16 %v1006
        %v3495 = vunpack.c.l.b16 %v1007
        %v3496 = vunpack.c.h.b16 %v1007
        %v3497 = vunpack.c.l.b16 %v1008
        %v3498 = vunpack.c.h.b16 %v1008
        %v3499 = vunpack.c.l.b16 %v1009
        %v3500 = vunpack.c.h.b16 %v1009
        %v3501 = vunpack.c.l.b16 %v1010
        %v3502 = vunpack.c.h.b16 %v1010
        %v3503 = vunpack.c.l.b16 %v1011
        %v3504 = vunpack.c.h.b16 %v1011
        %v3505 = vunpack.c.l.b16 %v1012
        %v3506 = vunpack.c.h.b16 %v1012
        %v3507 = vunpack.c.l.b16 %v1013
        %v3508 = vunpack.c.h.b16 %v1013
        %v3509 = vunpack.c.l.b16 %v1014
        %v3510 = vunpack.c.h.b16 %v1014
        %v3511 = vunpack.c.l.b16 %v1015
        %v3512 = vunpack.c.h.b16 %v1015
        %v3513 = vunpack.c.l.b16 %v1016
        %v3514 = vunpack.c.h.b16 %v1016
        %v3515 = vunpack.c.l.b16 %v1017
        %v3516 = vunpack.c.h.b16 %v1017
        %v3517 = vunpack.c.l.b16 %v1018
        %v3518 = vunpack.c.h.b16 %v1018
        %v3519 = vunpack.c.l.b16 %v1019
        %v3520 = vunpack.c.h.b16 %v1019
        %v3521 = vunpack.c.l.b16 %v1020
        %v3522 = vunpack.c.h.b16 %v1020
        %v3523 = vunpack.c.l.b16 %v1021
        %v3524 = vunpack.c.h.b16 %v1021
        %v3525 = vunpack.c.l.b16 %v1022
        %v3526 = vunpack.c.h.b16 %v1022
        %v3527 = vunpack.c.l.b16 %v1023
        %v3528 = vunpack.c.h.b16 %v1023
        %v3529 = vunpack.c.l.b16 %v1024
        %v3530 = vunpack.c.h.b16 %v1024
        %v3531 = vunpack.c.l.b16 %v1025
        %v3532 = vunpack.c.h.b16 %v1025
        %v3533 = vunpack.c.l.b16 %v1026
        %v3534 = vunpack.c.h.b16 %v1026
        %v3535 = vunpack.c.l.b16 %v1027
        %v3536 = vunpack.c.h.b16 %v1027
        %v3537 = vunpack.c.l.b16 %v1028
        %v3538 = vunpack.c.h.b16 %v1028
        %v3539 = vunpack.c.l.b16 %v1029
        %v3540 = vunpack.c.h.b16 %v1029
        %v3541 = vunpack.c.l.b16 %v1030
        %v3542 = vunpack.c.h.b16 %v1030
        %v3543 = vunpack.c.l.b16 %v1031
        %v3544 = vunpack.c.h.b16 %v1031
        %v3545 = vunpack.c.l.b16 %v1032
        %v3546 = vunpack.c.h.b16 %v1032
        %v3547 = vunpack.c.l.b16 %v1033
        %v3548 = vunpack.c.h.b16 %v1033
        %v3549 = vunpack.c.l.b16 %v1034
        %v3550 = vunpack.c.h.b16 %v1034
        %v3551 = vunpack.c.l.b16 %v1035
        %v3552 = vunpack.c.h.b16 %v1035
        %v3553 = vunpack.c.l.b16 %v1036
        %v3554 = vunpack.c.h.b16 %v1036
        %v3555 = vunpack.c.l.b16 %v1037
        %v3556 = vunpack.c.h.b16 %v1037
        %v3557 = vunpack.c.l.b16 %v1038
        %v3558 = vunpack.c.h.b16 %v1038
        %v3559 = vunpack.c.l.b16 %v1039
        %v3560 = vunpack.c.h.b16 %v1039
        %v3561 = vunpack.c.l.b16 %v1040
        %v3562 = vunpack.c.h.b16 %v1040
        %v3563 = vunpack.c.l.b16 %v1041
        %v3564 = vunpack.c.h.b16 %v1041
        %v3565 = vunpack.c.l.b16 %v1042
        %v3566 = vunpack.c.h.b16 %v1042
        %v3567 = vunpack.c.l.b16 %v1043
        %v3568 = vunpack.c.h.b16 %v1043
        %v3569 = vunpack.c.l.b16 %v1044
        %v3570 = vunpack.c.h.b16 %v1044
        %v3571 = vunpack.c.l.b16 %v1045
        %v3572 = vunpack.c.h.b16 %v1045
        %v3573 = vunpack.c.l.b16 %v1046
        %v3574 = vunpack.c.h.b16 %v1046
        %v3575 = vunpack.c.l.b16 %v1047
        %v3576 = vunpack.c.h.b16 %v1047
        %v3577 = vunpack.c.l.b16 %v1048
        %v3578 = vunpack.c.h.b16 %v1048
        %v3579 = vunpack.c.l.b16 %v1049
        %v3580 = vunpack.c.h.b16 %v1049
        %v3581 = vunpack.c.l.b16 %v1050
        %v3582 = vunpack.c.h.b16 %v1050
        %v3583 = vunpack.c.l.b16 %v1051
        %v3584 = vunpack.c.h.b16 %v1051
        %v3585 = vunpack.c.l.b16 %v1052
        %v3586 = vunpack.c.h.b16 %v1052
        %v3587 = vunpack.c.l.b16 %v1053
        %v3588 = vunpack.c.h.b16 %v1053
        %v3589 = vunpack.c.l.b16 %v1054
        %v3590 = vunpack.c.h.b16 %v1054
        %v3591 = vunpack.c.l.b16 %v1055
        %v3592 = vunpack.c.h.b16 %v1055
        %v3593 = vunpack.c.l.b16 %v1056
        %v3594 = vunpack.c.h.b16 %v1056
        %v3595 = vunpack.c.l.b16 %v1057
        %v3596 = vunpack.c.h.b16 %v1057
        %v3597 = vunpack.c.l.b16 %v1058
        %v3598 = vunpack.c.h.b16 %v1058
        %v3599 = vunpack.c.l.b16 %v1059
        %v3600 = vunpack.c.h.b16 %v1059
        %v3601 = vunpack.c.l.b16 %v1060
        %v3602 = vunpack.c.h.b16 %v1060
        %v3603 = vunpack.c.l.b16 %v1061
        %v3604 = vunpack.c.h.b16 %v1061
        %v3605 = vunpack.c.l.b16 %v1062
        %v3606 = vunpack.c.h.b16 %v1062
        %v3607 = vunpack.c.l.b16 %v1063
        %v3608 = vunpack.c.h.b16 %v1063
        %v3609 = vunpack.c.l.b16 %v1064
        %v3610 = vunpack.c.h.b16 %v1064
        %v3611 = vunpack.c.l.b16 %v1065
        %v3612 = vunpack.c.h.b16 %v1065
        %v3613 = vunpack.c.l.b16 %v1066
        %v3614 = vunpack.c.h.b16 %v1066
        %v3615 = vunpack.c.l.b16 %v1067
        %v3616 = vunpack.c.h.b16 %v1067
        %v3617 = vunpack.c.l.b16 %v1068
        %v3618 = vunpack.c.h.b16 %v1068
        %v3619 = vunpack.c.l.b16 %v1069
        %v3620 = vunpack.c.h.b16 %v1069
        %v3621 = vunpack.c.l.b16 %v1070
        %v3622 = vunpack.c.h.b16 %v1070
        %v3623 = vunpack.c.l.b16 %v1071
        %v3624 = vunpack.c.h.b16 %v1071
        %v3625 = vunpack.c.l.b16 %v1072
        %v3626 = vunpack.c.h.b16 %v1072
        %v3627 = vunpack.c.l.b16 %v1073
        %v3628 = vunpack.c.h.b16 %v1073
        %v3629 = vunpack.c.l.b16 %v1074
        %v3630 = vunpack.c.h.b16 %v1074
        %v3631 = vunpack.c.l.b16 %v1075
        %v3632 = vunpack.c.h.b16 %v1075
        %v3633 = vunpack.c.l.b16 %v1076
        %v3634 = vunpack.c.h.b16 %v1076
        %v3635 = vunpack.c.l.b16 %v1077
        %v3636 = vunpack.c.h.b16 %v1077
        %v3637 = vunpack.c.l.b16 %v1078
        %v3638 = vunpack.c.h.b16 %v1078
        %v3639 = vunpack.c.l.b16 %v1079
        %v3640 = vunpack.c.h.b16 %v1079
        %v3641 = vunpack.c.l.b16 %v1080
        %v3642 = vunpack.c.h.b16 %v1080
        %v3643 = vunpack.c.l.b16 %v1081
        %v3644 = vunpack.c.h.b16 %v1081
        %v3645 = vunpack.c.l.b16 %v1082
        %v3646 = vunpack.c.h.b16 %v1082
        %v3647 = vunpack.c.l.b16 %v1083
        %v3648 = vunpack.c.h.b16 %v1083
        %v3649 = vunpack.c.l.b16 %v1084
        %v3650 = vunpack.c.h.b16 %v1084
        %v3651 = vunpack.c.l.b16 %v1085
        %v3652 = vunpack.c.h.b16 %v1085
        %v3653 = vunpack.c.l.b16 %v1086
        %v3654 = vunpack.c.h.b16 %v1086
        %v3655 = vunpack.c.l.b16 %v1087
        %v3656 = vunpack.c.h.b16 %v1087
        %v3657 = vunpack.c.l.b16 %v1088
        %v3658 = vunpack.c.h.b16 %v1088
        %v3659 = vunpack.c.l.b16 %v1089
        %v3660 = vunpack.c.h.b16 %v1089
        %v3661 = vunpack.c.l.b16 %v1090
        %v3662 = vunpack.c.h.b16 %v1090
        %v3663 = vunpack.c.l.b16 %v1091
        %v3664 = vunpack.c.h.b16 %v1091
        %v3665 = vunpack.c.l.b16 %v1092
        %v3666 = vunpack.c.h.b16 %v1092
        %v3667 = vunpack.c.l.b16 %v1093
        %v3668 = vunpack.c.h.b16 %v1093
        %v3669 = vunpack.c.l.b16 %v1094
        %v3670 = vunpack.c.h.b16 %v1094
        %v3671 = vunpack.c.l.b16 %v1095
        %v3672 = vunpack.c.h.b16 %v1095
        %v3673 = vunpack.c.l.b16 %v1096
        %v3674 = vunpack.c.h.b16 %v1096
        %v3675 = vunpack.c.l.b16 %v1097
        %v3676 = vunpack.c.h.b16 %v1097
        %v3677 = vunpack.c.l.b16 %v1098
        %v3678 = vunpack.c.h.b16 %v1098
        %v3679 = vunpack.c.l.b16 %v1099
        %v3680 = vunpack.c.h.b16 %v1099
        %v3681 = vunpack.c.l.b16 %v1100
        %v3682 = vunpack.c.h.b16 %v1100
        %v3683 = vunpack.c.l.b16 %v1101
        %v3684 = vunpack.c.h.b16 %v1101
        %v3685 = vunpack.c.l.b16 %v1102
        %v3686 = vunpack.c.h.b16 %v1102
        %v3687 = vunpack.c.l.b16 %v1103
        %v3688 = vunpack.c.h.b16 %v1103
        %v3689 = vunpack.c.l.b16 %v1104
        %v3690 = vunpack.c.h.b16 %v1104
        %v3691 = vunpack.c.l.b16 %v1105
        %v3692 = vunpack.c.h.b16 %v1105
        %v3693 = vunpack.c.l.b16 %v1106
        %v3694 = vunpack.c.h.b16 %v1106
        %v3695 = vunpack.c.l.b16 %v1107
        %v3696 = vunpack.c.h.b16 %v1107
        %v3697 = vunpack.c.l.b16 %v1108
        %v3698 = vunpack.c.h.b16 %v1108
        %v3699 = vunpack.c.l.b16 %v1109
        %v3700 = vunpack.c.h.b16 %v1109
        %v3701 = vunpack.c.l.b16 %v1110
        %v3702 = vunpack.c.h.b16 %v1110
        %v3703 = vunpack.c.l.b16 %v1111
        %v3704 = vunpack.c.h.b16 %v1111
        %v3705 = vunpack.c.l.b16 %v1112
        %v3706 = vunpack.c.h.b16 %v1112
        %v3707 = vunpack.c.l.b16 %v1113
        %v3708 = vunpack.c.h.b16 %v1113
        %v3709 = vunpack.c.l.b16 %v1114
        %v3710 = vunpack.c.h.b16 %v1114
        %v3711 = vunpack.c.l.b16 %v1115
        %v3712 = vunpack.c.h.b16 %v1115
        %v3713 = vunpack.c.l.b16 %v1116
        %v3714 = vunpack.c.h.b16 %v1116
        %v3715 = vunpack.c.l.b16 %v1117
        %v3716 = vunpack.c.h.b16 %v1117
        %v3717 = vunpack.c.l.b16 %v1118
        %v3718 = vunpack.c.h.b16 %v1118
        %v3719 = vunpack.c.l.b16 %v1119
        %v3720 = vunpack.c.h.b16 %v1119
        %v3721 = vunpack.c.l.b16 %v1120
        %v3722 = vunpack.c.h.b16 %v1120
        %v3723 = vunpack.c.l.b16 %v1121
        %v3724 = vunpack.c.h.b16 %v1121
        %v3725 = vunpack.c.l.b16 %v1122
        %v3726 = vunpack.c.h.b16 %v1122
        %v3727 = vunpack.c.l.b16 %v1123
        %v3728 = vunpack.c.h.b16 %v1123
        %v3729 = vunpack.c.l.b16 %v1124
        %v3730 = vunpack.c.h.b16 %v1124
        %v3731 = vunpack.c.l.b16 %v1125
        %v3732 = vunpack.c.h.b16 %v1125
        %v3733 = vunpack.c.l.b16 %v1126
        %v3734 = vunpack.c.h.b16 %v1126
        %v3735 = vunpack.c.l.b16 %v1127
        %v3736 = vunpack.c.h.b16 %v1127
        %v3737 = vunpack.c.l.b16 %v1128
        %v3738 = vunpack.c.h.b16 %v1128
        %v3739 = vunpack.c.l.b16 %v1129
        %v3740 = vunpack.c.h.b16 %v1129
        %v3741 = vunpack.c.l.b16 %v1130
        %v3742 = vunpack.c.h.b16 %v1130
        %v3743 = vunpack.c.l.b16 %v1131
        %v3744 = vunpack.c.h.b16 %v1131
        %v3745 = vunpack.c.l.b16 %v1132
        %v3746 = vunpack.c.h.b16 %v1132
        %v3747 = vunpack.c.l.b16 %v1133
        %v3748 = vunpack.c.h.b16 %v1133
        %v3749 = vunpack.c.l.b16 %v1134
        %v3750 = vunpack.c.h.b16 %v1134
        %v3751 = vunpack.c.l.b16 %v1135
        %v3752 = vunpack.c.h.b16 %v1135
        %v3753 = vunpack.c.l.b16 %v1136
        %v3754 = vunpack.c.h.b16 %v1136
        %v3755 = vunpack.c.l.b16 %v1137
        %v3756 = vunpack.c.h.b16 %v1137
        %v3757 = vunpack.c.l.b16 %v1138
        %v3758 = vunpack.c.h.b16 %v1138
        %v3759 = vunpack.c.l.b16 %v1139
        %v3760 = vunpack.c.h.b16 %v1139
        %v3761 = vunpack.c.l.b16 %v1140
        %v3762 = vunpack.c.h.b16 %v1140
        %v3763 = vunpack.c.l.b16 %v1141
        %v3764 = vunpack.c.h.b16 %v1141
        %v3765 = vunpack.c.l.b16 %v1142
        %v3766 = vunpack.c.h.b16 %v1142
        %v3767 = vunpack.c.l.b16 %v1143
        %v3768 = vunpack.c.h.b16 %v1143
        %v3769 = vunpack.c.l.b16 %v1144
        %v3770 = vunpack.c.h.b16 %v1144
        %v3771 = vunpack.c.l.b16 %v1145
        %v3772 = vunpack.c.h.b16 %v1145
        %v3773 = vunpack.c.l.b16 %v1146
        %v3774 = vunpack.c.h.b16 %v1146
        %v3775 = vunpack.c.l.b16 %v1147
        %v3776 = vunpack.c.h.b16 %v1147
        %v3777 = vunpack.c.l.b16 %v1148
        %v3778 = vunpack.c.h.b16 %v1148
        %v3779 = vunpack.c.l.b16 %v1149
        %v3780 = vunpack.c.h.b16 %v1149
        %v3781 = vunpack.c.l.b16 %v1150
        %v3782 = vunpack.c.h.b16 %v1150
        %v3783 = vunpack.c.l.b16 %v1151
        %v3784 = vunpack.c.h.b16 %v1151
        %v3785 = vunpack.c.l.b16 %v1152
        %v3786 = vunpack.c.h.b16 %v1152
        %v3787 = vunpack.c.l.b16 %v1153
        %v3788 = vunpack.c.h.b16 %v1153
        %v3789 = vunpack.c.l.b16 %v1154
        %v3790 = vunpack.c.h.b16 %v1154
        %v3791 = vunpack.c.l.b16 %v1155
        %v3792 = vunpack.c.h.b16 %v1155
        %v3793 = vunpack.c.l.b16 %v1156
        %v3794 = vunpack.c.h.b16 %v1156
        %v3795 = vunpack.c.l.b16 %v1157
        %v3796 = vunpack.c.h.b16 %v1157
        %v3797 = vunpack.c.l.b16 %v1158
        %v3798 = vunpack.c.h.b16 %v1158
        %v3799 = vunpack.c.l.b16 %v1159
        %v3800 = vunpack.c.h.b16 %v1159
        %v3801 = vunpack.c.l.b16 %v1160
        %v3802 = vunpack.c.h.b16 %v1160
        %v3803 = vunpack.c.l.b16 %v1161
        %v3804 = vunpack.c.h.b16 %v1161
        %v3805 = vunpack.c.l.b16 %v1162
        %v3806 = vunpack.c.h.b16 %v1162
        %v3807 = vunpack.c.l.b16 %v1163
        %v3808 = vunpack.c.h.b16 %v1163
        %v3809 = vunpack.c.l.b16 %v1164
        %v3810 = vunpack.c.h.b16 %v1164
        %v3811 = vunpack.c.l.b16 %v1165
        %v3812 = vunpack.c.h.b16 %v1165
        %v3813 = vunpack.c.l.b16 %v1166
        %v3814 = vunpack.c.h.b16 %v1166
        %v3815 = vunpack.c.l.b16 %v1167
        %v3816 = vunpack.c.h.b16 %v1167
        %v3817 = vunpack.c.l.b16 %v1168
        %v3818 = vunpack.c.h.b16 %v1168
        %v3819 = vunpack.c.l.b16 %v1169
        %v3820 = vunpack.c.h.b16 %v1169
        %v3821 = vunpack.c.l.b16 %v1170
        %v3822 = vunpack.c.h.b16 %v1170
        %v3823 = vunpack.c.l.b16 %v1171
        %v3824 = vunpack.c.h.b16 %v1171
        %v3825 = vunpack.c.l.b16 %v1172
        %v3826 = vunpack.c.h.b16 %v1172
        %v3827 = vunpack.c.l.b16 %v1173
        %v3828 = vunpack.c.h.b16 %v1173
        %v3829 = vunpack.c.l.b16 %v1174
        %v3830 = vunpack.c.h.b16 %v1174
        %v3831 = vunpack.c.l.b16 %v1175
        %v3832 = vunpack.c.h.b16 %v1175
        %v3833 = vunpack.c.l.b16 %v1176
        %v3834 = vunpack.c.h.b16 %v1176
        %v3835 = vunpack.c.l.b16 %v1177
        %v3836 = vunpack.c.h.b16 %v1177
        %v3837 = vunpack.c.l.b16 %v1178
        %v3838 = vunpack.c.h.b16 %v1178
        %v3839 = vunpack.c.l.b16 %v1179
        %v3840 = vunpack.c.h.b16 %v1179
        %v3841 = vunpack.c.l.b16 %v1180
        %v3842 = vunpack.c.h.b16 %v1180
        %v3843 = vunpack.c.l.b16 %v1181
        %v3844 = vunpack.c.h.b16 %v1181
        %v3845 = vunpack.c.l.b16 %v1182
        %v3846 = vunpack.c.h.b16 %v1182
        %v3847 = vunpack.c.l.b16 %v1183
        %v3848 = vunpack.c.h.b16 %v1183
        %v3849 = vunpack.c.l.b16 %v1184
        %v3850 = vunpack.c.h.b16 %v1184
        %v3851 = vunpack.c.l.b16 %v1185
        %v3852 = vunpack.c.h.b16 %v1185
        %v3853 = vunpack.c.l.b16 %v1186
        %v3854 = vunpack.c.h.b16 %v1186
        %v3855 = vunpack.c.l.b16 %v1187
        %v3856 = vunpack.c.h.b16 %v1187
        %v3857 = vunpack.c.l.b16 %v1188
        %v3858 = vunpack.c.h.b16 %v1188
        %v3859 = vunpack.c.l.b16 %v1189
        %v3860 = vunpack.c.h.b16 %v1189
        %v3861 = vunpack.c.l.b16 %v1190
        %v3862 = vunpack.c.h.b16 %v1190
        %v3863 = vunpack.c.l.b16 %v1191
        %v3864 = vunpack.c.h.b16 %v1191
        %v3865 = vunpack.c.l.b16 %v1192
        %v3866 = vunpack.c.h.b16 %v1192
        %v3867 = vunpack.c.l.b16 %v1193
        %v3868 = vunpack.c.h.b16 %v1193
        %v3869 = vunpack.c.l.b16 %v1194
        %v3870 = vunpack.c.h.b16 %v1194
        %v3871 = vunpack.c.l.b16 %v1195
        %v3872 = vunpack.c.h.b16 %v1195
        %v3873 = vunpack.c.l.b16 %v1196
        %v3874 = vunpack.c.h.b16 %v1196
        %v3875 = vunpack.c.l.b16 %v1197
        %v3876 = vunpack.c.h.b16 %v1197
        %v3877 = vunpack.c.l.b16 %v1198
        %v3878 = vunpack.c.h.b16 %v1198
        %v3879 = vunpack.c.l.b16 %v1199
        %v3880 = vunpack.c.h.b16 %v1199
        %v3881 = vunpack.c.l.b16 %v1200
        %v3882 = vunpack.c.h.b16 %v1200
        %v3883 = vunpack.c.l.b16 %v1201
        %v3884 = vunpack.c.h.b16 %v1201
        %v3885 = vunpack.c.l.b16 %v1202
        %v3886 = vunpack.c.h.b16 %v1202
        %v3887 = vunpack.c.l.b16 %v1203
        %v3888 = vunpack.c.h.b16 %v1203
        %v3889 = vunpack.c.l.b16 %v1204
        %v3890 = vunpack.c.h.b16 %v1204
        %v3891 = vunpack.c.l.b16 %v1205
        %v3892 = vunpack.c.h.b16 %v1205
        %v3893 = vunpack.c.l.b16 %v1206
        %v3894 = vunpack.c.h.b16 %v1206
        %v3895 = vunpack.c.l.b16 %v1207
        %v3896 = vunpack.c.h.b16 %v1207
        %v3897 = vunpack.c.l.b16 %v1208
        %v3898 = vunpack.c.h.b16 %v1208
        %v3899 = vunpack.c.l.b16 %v1209
        %v3900 = vunpack.c.h.b16 %v1209
        %v3901 = vunpack.c.l.b16 %v1210
        %v3902 = vunpack.c.h.b16 %v1210
        %v3903 = vunpack.c.l.b16 %v1211
        %v3904 = vunpack.c.h.b16 %v1211
        %v3905 = vunpack.c.l.b16 %v1212
        %v3906 = vunpack.c.h.b16 %v1212
        %v3907 = vunpack.c.l.b16 %v1213
        %v3908 = vunpack.c.h.b16 %v1213
        %v3909 = vunpack.c.l.b16 %v1214
        %v3910 = vunpack.c.h.b16 %v1214
        %v3911 = vunpack.c.l.b16 %v1215
        %v3912 = vunpack.c.h.b16 %v1215
        %v3913 = vunpack.c.l.b16 %v1216
        %v3914 = vunpack.c.h.b16 %v1216
        %v3915 = vunpack.c.l.b16 %v1217
        %v3916 = vunpack.c.h.b16 %v1217
        %v3917 = vunpack.c.l.b16 %v1218
        %v3918 = vunpack.c.h.b16 %v1218
        %v3919 = vunpack.c.l.b16 %v1219
        %v3920 = vunpack.c.h.b16 %v1219
        %v3921 = vunpack.c.l.b16 %v1220
        %v3922 = vunpack.c.h.b16 %v1220
        %v3923 = vunpack.c.l.b16 %v1221
        %v3924 = vunpack.c.h.b16 %v1221
        %v3925 = vunpack.c.l.b16 %v1222
        %v3926 = vunpack.c.h.b16 %v1222
        %v3927 = vunpack.c.l.b16 %v1223
        %v3928 = vunpack.c.h.b16 %v1223
        %v3929 = vunpack.c.l.b16 %v1224
        %v3930 = vunpack.c.h.b16 %v1224
        %v3931 = vunpack.c.l.b16 %v1225
        %v3932 = vunpack.c.h.b16 %v1225
        %v3933 = vunpack.c.l.b16 %v1226
        %v3934 = vunpack.c.h.b16 %v1226
        %v3935 = vunpack.c.l.b16 %v1227
        %v3936 = vunpack.c.h.b16 %v1227
        %v3937 = vunpack.c.l.b16 %v1228
        %v3938 = vunpack.c.h.b16 %v1228
        %v3939 = vunpack.c.l.b16 %v1229
        %v3940 = vunpack.c.h.b16 %v1229
        %v3941 = vunpack.c.l.b16 %v1230
        %v3942 = vunpack.c.h.b16 %v1230
        %v3943 = vunpack.c.l.b16 %v1231
        %v3944 = vunpack.c.h.b16 %v1231
        %v3945 = vunpack.c.l.b16 %v1232
        %v3946 = vunpack.c.h.b16 %v1232
        %v3947 = vunpack.c.l.b16 %v1233
        %v3948 = vunpack.c.h.b16 %v1233
        %v3949 = vunpack.c.l.b16 %v1234
        %v3950 = vunpack.c.h.b16 %v1234
        %v3951 = vunpack.c.l.b16 %v1235
        %v3952 = vunpack.c.h.b16 %v1235
        %v3953 = vunpack.c.l.b16 %v1236
        %v3954 = vunpack.c.h.b16 %v1236
        %v3955 = vunpack.c.l.b16 %v1237
        %v3956 = vunpack.c.h.b16 %v1237
        %v3957 = vunpack.c.l.b16 %v1238
        %v3958 = vunpack.c.h.b16 %v1238
        %v3959 = vunpack.c.l.b16 %v1239
        %v3960 = vunpack.c.h.b16 %v1239
        %v3961 = vunpack.c.l.b16 %v1240
        %v3962 = vunpack.c.h.b16 %v1240
        %v3963 = vunpack.c.l.b16 %v1241
        %v3964 = vunpack.c.h.b16 %v1241
        %v3965 = vunpack.c.l.b16 %v1242
        %v3966 = vunpack.c.h.b16 %v1242
        %v3967 = vunpack.c.l.b16 %v1243
        %v3968 = vunpack.c.h.b16 %v1243
        %v3969 = vunpack.c.l.b16 %v1244
        %v3970 = vunpack.c.h.b16 %v1244
        %v3971 = vunpack.c.l.b16 %v1245
        %v3972 = vunpack.c.h.b16 %v1245
        %v3973 = vunpack.c.l.b16 %v1246
        %v3974 = vunpack.c.h.b16 %v1246
        %v3975 = vunpack.c.l.b16 %v1247
        %v3976 = vunpack.c.h.b16 %v1247
        %v3977 = vunpack.c.l.b16 %v1248
        %v3978 = vunpack.c.h.b16 %v1248
        %v3979 = vunpack.c.l.b16 %v1249
        %v3980 = vunpack.c.h.b16 %v1249
        %v3981 = vunpack.c.l.b16 %v1250
        %v3982 = vunpack.c.h.b16 %v1250
        %v3983 = vunpack.c.l.b16 %v1251
        %v3984 = vunpack.c.h.b16 %v1251
        %v3985 = vunpack.c.l.b16 %v1252
        %v3986 = vunpack.c.h.b16 %v1252
        %v3987 = vunpack.c.l.b16 %v1253
        %v3988 = vunpack.c.h.b16 %v1253
        %v3989 = vunpack.c.l.b16 %v1254
        %v3990 = vunpack.c.h.b16 %v1254
        %v3991 = vunpack.c.l.b16 %v1255
        %v3992 = vunpack.c.h.b16 %v1255
        %v3993 = vunpack.c.l.b16 %v1256
        %v3994 = vunpack.c.h.b16 %v1256
        %v3995 = vunpack.c.l.b16 %v1257
        %v3996 = vunpack.c.h.b16 %v1257
        %v3997 = vunpack.c.l.b16 %v1258
        %v3998 = vunpack.c.h.b16 %v1258
        %v3999 = vunpack.c.l.b16 %v1259
        %v4000 = vunpack.c.h.b16 %v1259
        %v4001 = vunpack.c.l.b16 %v1260
        %v4002 = vunpack.c.h.b16 %v1260
        %v4003 = vunpack.c.l.b16 %v1261
        %v4004 = vunpack.c.h.b16 %v1261
        %v4005 = vunpack.c.l.b16 %v1262
        %v4006 = vunpack.c.h.b16 %v1262
        %v4007 = vunpack.c.l.b16 %v1263
        %v4008 = vunpack.c.h.b16 %v1263
        %v4009 = vunpack.c.l.b16 %v1264
        %v4010 = vunpack.c.h.b16 %v1264
        %v4011 = vunpack.c.l.b16 %v1265
        %v4012 = vunpack.c.h.b16 %v1265
        %v4013 = vunpack.c.l.b16 %v1266
        %v4014 = vunpack.c.h.b16 %v1266
        %v4015 = vunpack.c.l.b16 %v1267
        %v4016 = vunpack.c.h.b16 %v1267
        %v4017 = vunpack.c.l.b16 %v1268
        %v4018 = vunpack.c.h.b16 %v1268
        %v4019 = vunpack.c.l.b16 %v1269
        %v4020 = vunpack.c.h.b16 %v1269
        %v4021 = vunpack.c.l.b16 %v1270
        %v4022 = vunpack.c.h.b16 %v1270
        %v4023 = vunpack.c.l.b16 %v1271
        %v4024 = vunpack.c.h.b16 %v1271
        %v4025 = vunpack.c.l.b16 %v1272
        %v4026 = vunpack.c.h.b16 %v1272
        %v4027 = vunpack.c.l.b16 %v1273
        %v4028 = vunpack.c.h.b16 %v1273
        %v4029 = vunpack.c.l.b16 %v1274
        %v4030 = vunpack.c.h.b16 %v1274
        %v4031 = vunpack.c.l.b16 %v1275
        %v4032 = vunpack.c.h.b16 %v1275
        %v4033 = vunpack.c.l.b16 %v1276
        %v4034 = vunpack.c.h.b16 %v1276
        %v4035 = vunpack.c.l.b16 %v1277
        %v4036 = vunpack.c.h.b16 %v1277
        %v4037 = vunpack.c.l.b16 %v1278
        %v4038 = vunpack.c.h.b16 %v1278
        %v4039 = vunpack.c.l.b16 %v1279
        %v4040 = vunpack.c.h.b16 %v1279
        %v4041 = vunpack.c.l.b16 %v1280
        %v4042 = vunpack.c.h.b16 %v1280
        %v4043 = vunpack.c.l.b16 %v1281
        %v4044 = vunpack.c.h.b16 %v1281
        %v4045 = vunpack.c.l.b16 %v1282
        %v4046 = vunpack.c.h.b16 %v1282
        %v4047 = vunpack.c.l.b16 %v1283
        %v4048 = vunpack.c.h.b16 %v1283
        %v4049 = vunpack.c.l.b16 %v1284
        %v4050 = vunpack.c.h.b16 %v1284
        %v4051 = vunpack.c.l.b16 %v1285
        %v4052 = vunpack.c.h.b16 %v1285
        %v4053 = vunpack.c.l.b16 %v1286
        %v4054 = vunpack.c.h.b16 %v1286
        %v4055 = vunpack.c.l.b16 %v1287
        %v4056 = vunpack.c.h.b16 %v1287
        %v4057 = vunpack.c.l.b16 %v1288
        %v4058 = vunpack.c.h.b16 %v1288
        %v4059 = vunpack.c.l.b16 %v1289
        %v4060 = vunpack.c.h.b16 %v1289
        %v4061 = vunpack.c.l.b16 %v1290
        %v4062 = vunpack.c.h.b16 %v1290
        %v4063 = vunpack.c.l.b16 %v1291
        %v4064 = vunpack.c.h.b16 %v1291
        %v4065 = vunpack.c.l.b16 %v1292
        %v4066 = vunpack.c.h.b16 %v1292
        %v4067 = vunpack.c.l.b16 %v1293
        %v4068 = vunpack.c.h.b16 %v1293
        %v4069 = vunpack.c.l.b16 %v1294
        %v4070 = vunpack.c.h.b16 %v1294
        %v4071 = vunpack.c.l.b16 %v1295
        %v4072 = vunpack.c.h.b16 %v1295
        %v4073 = vunpack.c.l.b16 %v1296
        %v4074 = vunpack.c.h.b16 %v1296
        %v4075 = vunpack.c.l.b16 %v1297
        %v4076 = vunpack.c.h.b16 %v1297
        %v4077 = vunpack.c.l.b16 %v1298
        %v4078 = vunpack.c.h.b16 %v1298
        %v4079 = vunpack.c.l.b16 %v1299
        %v4080 = vunpack.c.h.b16 %v1299
        %v4081 = vunpack.c.l.b16 %v1300
        %v4082 = vunpack.c.h.b16 %v1300
        %v4083 = vunpack.c.l.b16 %v1301
        %v4084 = vunpack.c.h.b16 %v1301
        %v4085 = vunpack.c.l.b16 %v1302
        %v4086 = vunpack.c.h.b16 %v1302
        %v4087 = vunpack.c.l.b16 %v1303
        %v4088 = vunpack.c.h.b16 %v1303
        %v4089 = vunpack.c.l.b16 %v1304
        %v4090 = vunpack.c.h.b16 %v1304
        %v4091 = vunpack.c.l.b16 %v1305
        %v4092 = vunpack.c.h.b16 %v1305
        %v4093 = vunpack.c.l.b16 %v1306
        %v4094 = vunpack.c.h.b16 %v1306
        %v4095 = vunpack.c.l.b16 %v1307
        %v4096 = vunpack.c.h.b16 %v1307
        %v4097 = vunpack.c.l.b16 %v1308
        %v4098 = vunpack.c.h.b16 %v1308
        %v4099 = vunpack.c.l.b16 %v1309
        %v4100 = vunpack.c.h.b16 %v1309
        %v4101 = vunpack.c.l.b16 %v1310
        %v4102 = vunpack.c.h.b16 %v1310
        %v4103 = vunpack.c.l.b16 %v1311
        %v4104 = vunpack.c.h.b16 %v1311
        %v4105 = vunpack.c.l.b16 %v1312
        %v4106 = vunpack.c.h.b16 %v1312
        %v4107 = vunpack.c.l.b16 %v1313
        %v4108 = vunpack.c.h.b16 %v1313
        %v4109 = vunpack.c.l.b16 %v1314
        %v4110 = vunpack.c.h.b16 %v1314
        %v4111 = vunpack.c.l.b16 %v1315
        %v4112 = vunpack.c.h.b16 %v1315
        %v4113 = vunpack.c.l.b16 %v1316
        %v4114 = vunpack.c.h.b16 %v1316
        %v4115 = vunpack.c.l.b16 %v1317
        %v4116 = vunpack.c.h.b16 %v1317
        %v4117 = vunpack.c.l.b16 %v1318
        %v4118 = vunpack.c.h.b16 %v1318
        %v4119 = vunpack.c.l.b16 %v1319
        %v4120 = vunpack.c.h.b16 %v1319
        %v4121 = vunpack.c.l.b16 %v1320
        %v4122 = vunpack.c.h.b16 %v1320
        %v4123 = vunpack.c.l.b16 %v1321
        %v4124 = vunpack.c.h.b16 %v1321
        %v4125 = vunpack.c.l.b16 %v1322
        %v4126 = vunpack.c.h.b16 %v1322
        %v4127 = vunpack.c.l.b16 %v1323
        %v4128 = vunpack.c.h.b16 %v1323
        %v4129 = vunpack.c.l.b16 %v1324
        %v4130 = vunpack.c.h.b16 %v1324
        %v4131 = vunpack.c.l.b16 %v1325
        %v4132 = vunpack.c.h.b16 %v1325
        %v4133 = vunpack.c.l.b16 %v1326
        %v4134 = vunpack.c.h.b16 %v1326
        %v4135 = vunpack.c.l.b16 %v1327
        %v4136 = vunpack.c.h.b16 %v1327
        %v4137 = vunpack.c.l.b16 %v1328
        %v4138 = vunpack.c.h.b16 %v1328
        %v4139 = vunpack.c.l.b16 %v1329
        %v4140 = vunpack.c.h.b16 %v1329
        %v4141 = vunpack.c.l.b16 %v1330
        %v4142 = vunpack.c.h.b16 %v1330
        %v4143 = vunpack.c.l.b16 %v1331
        %v4144 = vunpack.c.h.b16 %v1331
        %v4145 = vunpack.c.l.b16 %v1332
        %v4146 = vunpack.c.h.b16 %v1332
        %v4147 = vunpack.c.l.b16 %v1333
        %v4148 = vunpack.c.h.b16 %v1333
        %v4149 = vunpack.c.l.b16 %v1334
        %v4150 = vunpack.c.h.b16 %v1334
        %v4151 = vunpack.c.l.b16 %v1335
        %v4152 = vunpack.c.h.b16 %v1335
        %v4153 = vunpack.c.l.b16 %v1336
        %v4154 = vunpack.c.h.b16 %v1336
        %v4155 = vunpack.c.l.b16 %v1337
        %v4156 = vunpack.c.h.b16 %v1337
        %v4157 = vunpack.c.l.b16 %v1338
        %v4158 = vunpack.c.h.b16 %v1338
        %v4159 = vunpack.c.l.b16 %v1339
        %v4160 = vunpack.c.h.b16 %v1339
        %v4161 = vunpack.c.l.b16 %v1340
        %v4162 = vunpack.c.h.b16 %v1340
        %v4163 = vunpack.c.l.b16 %v1341
        %v4164 = vunpack.c.h.b16 %v1341
        %v4165 = vunpack.c.l.b16 %v1342
        %v4166 = vunpack.c.h.b16 %v1342
        %v4167 = vunpack.c.l.b16 %v1343
        %v4168 = vunpack.c.h.b16 %v1343
        %v4169 = vunpack.c.l.b16 %v1344
        %v4170 = vunpack.c.h.b16 %v1344
        %v4171 = vunpack.c.l.b16 %v1345
        %v4172 = vunpack.c.h.b16 %v1345
        %v4173 = vunpack.c.l.b16 %v1346
        %v4174 = vunpack.c.h.b16 %v1346
        %v4175 = vunpack.c.l.b16 %v1347
        %v4176 = vunpack.c.h.b16 %v1347
        %v4177 = vunpack.c.l.b16 %v1348
        %v4178 = vunpack.c.h.b16 %v1348
        %v4179 = vunpack.c.l.b16 %v1349
        %v4180 = vunpack.c.h.b16 %v1349
        %v4181 = vunpack.c.l.b16 %v1350
        %v4182 = vunpack.c.h.b16 %v1350
        %v4183 = vunpack.c.l.b16 %v1351
        %v4184 = vunpack.c.h.b16 %v1351
        %v4185 = vunpack.c.l.b16 %v1352
        %v4186 = vunpack.c.h.b16 %v1352
        %v4187 = vunpack.c.l.b16 %v1353
        %v4188 = vunpack.c.h.b16 %v1353
        %v4189 = vunpack.c.l.b16 %v1354
        %v4190 = vunpack.c.h.b16 %v1354
        %v4191 = vunpack.c.l.b16 %v1355
        %v4192 = vunpack.c.h.b16 %v1355
        %v4193 = vunpack.c.l.b16 %v1356
        %v4194 = vunpack.c.h.b16 %v1356
        %v4195 = vunpack.c.l.b16 %v1357
        %v4196 = vunpack.c.h.b16 %v1357
        %v4197 = vunpack.c.l.b16 %v1358
        %v4198 = vunpack.c.h.b16 %v1358
        %v4199 = vunpack.c.l.b16 %v1359
        %v4200 = vunpack.c.h.b16 %v1359
        %v4201 = vunpack.c.l.b16 %v1360
        %v4202 = vunpack.c.h.b16 %v1360
        %v4203 = vunpack.c.l.b16 %v1361
        %v4204 = vunpack.c.h.b16 %v1361
        %v4205 = vunpack.c.l.b16 %v1362
        %v4206 = vunpack.c.h.b16 %v1362
        %v4207 = vunpack.c.l.b16 %v1363
        %v4208 = vunpack.c.h.b16 %v1363
        %v4209 = vunpack.c.l.b16 %v1364
        %v4210 = vunpack.c.h.b16 %v1364
        %v4211 = vunpack.c.l.b16 %v1365
        %v4212 = vunpack.c.h.b16 %v1365
        %v4213 = vunpack.c.l.b16 %v1366
        %v4214 = vunpack.c.h.b16 %v1366
        %v4215 = vunpack.c.l.b16 %v1367
        %v4216 = vunpack.c.h.b16 %v1367
        %v4217 = vunpack.c.l.b16 %v1368
        %v4218 = vunpack.c.h.b16 %v1368
        %v4219 = vunpack.c.l.b16 %v1369
        %v4220 = vunpack.c.h.b16 %v1369
        %v4221 = vunpack.c.l.b16 %v1370
        %v4222 = vunpack.c.h.b16 %v1370
        %v4223 = vunpack.c.l.b16 %v1371
        %v4224 = vunpack.c.h.b16 %v1371
        %v4225 = vunpack.c.l.b16 %v1372
        %v4226 = vunpack.c.h.b16 %v1372
        %v4227 = vunpack.c.l.b16 %v1373
        %v4228 = vunpack.c.h.b16 %v1373
        %v4229 = vunpack.c.l.b16 %v1374
        %v4230 = vunpack.c.h.b16 %v1374
        %v4231 = vunpack.c.l.b16 %v1375
        %v4232 = vunpack.c.h.b16 %v1375
        %v4233 = vunpack.c.l.b16 %v1376
        %v4234 = vunpack.c.h.b16 %v1376
        %v4235 = vunpack.c.l.b16 %v1377
        %v4236 = vunpack.c.h.b16 %v1377
        %v4237 = vunpack.c.l.b16 %v1378
        %v4238 = vunpack.c.h.b16 %v1378
        %v4239 = vunpack.c.l.b16 %v1379
        %v4240 = vunpack.c.h.b16 %v1379
        %v4241 = vunpack.c.l.b16 %v1380
        %v4242 = vunpack.c.h.b16 %v1380
        %v4243 = vunpack.c.l.b16 %v1381
        %v4244 = vunpack.c.h.b16 %v1381
        %v4245 = vunpack.c.l.b16 %v1382
        %v4246 = vunpack.c.h.b16 %v1382
        %v4247 = vunpack.c.l.b16 %v1383
        %v4248 = vunpack.c.h.b16 %v1383
        %v4249 = vunpack.c.l.b16 %v1384
        %v4250 = vunpack.c.h.b16 %v1384
        %v4251 = vunpack.c.l.b16 %v1385
        %v4252 = vunpack.c.h.b16 %v1385
        %v4253 = vunpack.c.l.b16 %v1386
        %v4254 = vunpack.c.h.b16 %v1386
        %v4255 = vunpack.c.l.b16 %v1387
        %v4256 = vunpack.c.h.b16 %v1387
        %v4257 = vunpack.c.l.b16 %v1388
        %v4258 = vunpack.c.h.b16 %v1388
        %v4259 = vunpack.c.l.b16 %v1389
        %v4260 = vunpack.c.h.b16 %v1389
        %v4261 = vunpack.c.l.b16 %v1390
        %v4262 = vunpack.c.h.b16 %v1390
        %v4263 = vunpack.c.l.b16 %v1391
        %v4264 = vunpack.c.h.b16 %v1391
        %v4265 = vunpack.c.l.b16 %v1392
        %v4266 = vunpack.c.h.b16 %v1392
        %v4267 = vunpack.c.l.b16 %v1393
        %v4268 = vunpack.c.h.b16 %v1393
        %v4269 = vunpack.c.l.b16 %v1394
        %v4270 = vunpack.c.h.b16 %v1394
        %v4271 = vunpack.c.l.b16 %v1395
        %v4272 = vunpack.c.h.b16 %v1395
        %v4273 = vunpack.c.l.b16 %v1396
        %v4274 = vunpack.c.h.b16 %v1396
        %v4275 = vunpack.c.l.b16 %v1397
        %v4276 = vunpack.c.h.b16 %v1397
        %v4277 = vunpack.c.l.b16 %v1398
        %v4278 = vunpack.c.h.b16 %v1398
        %v4279 = vunpack.c.l.b16 %v1399
        %v4280 = vunpack.c.h.b16 %v1399
        %v4281 = vunpack.c.l.b16 %v1400
        %v4282 = vunpack.c.h.b16 %v1400
        %v4283 = vunpack.c.l.b16 %v1401
        %v4284 = vunpack.c.h.b16 %v1401
        %v4285 = vunpack.c.l.b16 %v1402
        %v4286 = vunpack.c.h.b16 %v1402
        %v4287 = vunpack.c.l.b16 %v1403
        %v4288 = vunpack.c.h.b16 %v1403
        %v4289 = vunpack.c.l.b16 %v1404
        %v4290 = vunpack.c.h.b16 %v1404
        %v4291 = vunpack.c.l.b16 %v1405
        %v4292 = vunpack.c.h.b16 %v1405
        %v4293 = vunpack.c.l.b16 %v1406
        %v4294 = vunpack.c.h.b16 %v1406
        %v4295 = vunpack.c.l.b16 %v1407
        %v4296 = vunpack.c.h.b16 %v1407
        %v4297 = vunpack.c.l.b16 %v1408
        %v4298 = vunpack.c.h.b16 %v1408
        %v4299 = vunpack.c.l.b16 %v1409
        %v4300 = vunpack.c.h.b16 %v1409
        %v4301 = vunpack.c.l.b16 %v1410
        %v4302 = vunpack.c.h.b16 %v1410
        %v4303 = vunpack.c.l.b16 %v1411
        %v4304 = vunpack.c.h.b16 %v1411
        %v4305 = vunpack.c.l.b16 %v1412
        %v4306 = vunpack.c.h.b16 %v1412
        %v4307 = vunpack.c.l.b16 %v1413
        %v4308 = vunpack.c.h.b16 %v1413
        %v4309 = vunpack.c.l.b16 %v1414
        %v4310 = vunpack.c.h.b16 %v1414
        %v4311 = vunpack.c.l.b16 %v1415
        %v4312 = vunpack.c.h.b16 %v1415
        %v4313 = vunpack.c.l.b16 %v1416
        %v4314 = vunpack.c.h.b16 %v1416
        %v4315 = vunpack.c.l.b16 %v1417
        %v4316 = vunpack.c.h.b16 %v1417
        %v4317 = vunpack.c.l.b16 %v1418
        %v4318 = vunpack.c.h.b16 %v1418
        %v4319 = vunpack.c.l.b16 %v1419
        %v4320 = vunpack.c.h.b16 %v1419
        %v4321 = vunpack.c.l.b16 %v1420
        %v4322 = vunpack.c.h.b16 %v1420
        %v4323 = vunpack.c.l.b16 %v1421
        %v4324 = vunpack.c.h.b16 %v1421
        %v4325 = vunpack.c.l.b16 %v1422
        %v4326 = vunpack.c.h.b16 %v1422
        %v4327 = vunpack.c.l.b16 %v1423
        %v4328 = vunpack.c.h.b16 %v1423
        %v4329 = vunpack.c.l.b16 %v1424
        %v4330 = vunpack.c.h.b16 %v1424
        %v4331 = vunpack.c.l.b16 %v1425
        %v4332 = vunpack.c.h.b16 %v1425
        %v4333 = vunpack.c.l.b16 %v1426
        %v4334 = vunpack.c.h.b16 %v1426
        %v4335 = vunpack.c.l.b16 %v1427
        %v4336 = vunpack.c.h.b16 %v1427
        %v4337 = vunpack.c.l.b16 %v1428
        %v4338 = vunpack.c.h.b16 %v1428
        %v4339 = vunpack.c.l.b16 %v1429
        %v4340 = vunpack.c.h.b16 %v1429
        %v4341 = vunpack.c.l.b16 %v1430
        %v4342 = vunpack.c.h.b16 %v1430
        %v4343 = vunpack.c.l.b16 %v1431
        %v4344 = vunpack.c.h.b16 %v1431
        %v4345 = vunpack.c.l.b16 %v1432
        %v4346 = vunpack.c.h.b16 %v1432
        %v4347 = vunpack.c.l.b16 %v1433
        %v4348 = vunpack.c.h.b16 %v1433
        %v4349 = vunpack.c.l.b16 %v1434
        %v4350 = vunpack.c.h.b16 %v1434
        %v4351 = vunpack.c.l.b16 %v1435
        %v4352 = vunpack.c.h.b16 %v1435
        %v4353 = vunpack.c.l.b16 %v1436
        %v4354 = vunpack.c.h.b16 %v1436
        %v4355 = vunpack.c.l.b16 %v1437
        %v4356 = vunpack.c.h.b16 %v1437
        %v4357 = vunpack.c.l.b16 %v1438
        %v4358 = vunpack.c.h.b16 %v1438
        %v4359 = vunpack.c.l.b16 %v1439
        %v4360 = vunpack.c.h.b16 %v1439
        %v4361 = vunpack.c.l.b16 %v1440
        %v4362 = vunpack.c.h.b16 %v1440
        %v4363 = vunpack.c.l.b16 %v1441
        %v4364 = vunpack.c.h.b16 %v1441
        %v4365 = vunpack.c.l.b16 %v1442
        %v4366 = vunpack.c.h.b16 %v1442
        %v4367 = vunpack.c.l.b16 %v1443
        %v4368 = vunpack.c.h.b16 %v1443
        %v4369 = vunpack.c.l.b16 %v1444
        %v4370 = vunpack.c.h.b16 %v1444
        %v4371 = vunpack.c.l.b16 %v1445
        %v4372 = vunpack.c.h.b16 %v1445
        %v4373 = vunpack.c.l.b16 %v1446
        %v4374 = vunpack.c.h.b16 %v1446
        %v4375 = vunpack.c.l.b16 %v1447
        %v4376 = vunpack.c.h.b16 %v1447
        %v4377 = vunpack.c.l.b16 %v1448
        %v4378 = vunpack.c.h.b16 %v1448
        %v4379 = vunpack.c.l.b16 %v1449
        %v4380 = vunpack.c.h.b16 %v1449
        %v4381 = vunpack.c.l.b16 %v1450
        %v4382 = vunpack.c.h.b16 %v1450
        %v4383 = vunpack.c.l.b16 %v1451
        %v4384 = vunpack.c.h.b16 %v1451
        %v4385 = vunpack.c.l.b16 %v1452
        %v4386 = vunpack.c.h.b16 %v1452
        %v4387 = vunpack.c.l.b16 %v1453
        %v4388 = vunpack.c.h.b16 %v1453
        %v4389 = vunpack.c.l.b16 %v1454
        %v4390 = vunpack.c.h.b16 %v1454
        %v4391 = vunpack.c.l.b16 %v1455
        %v4392 = vunpack.c.h.b16 %v1455
        %v4393 = vunpack.c.l.b16 %v1456
        %v4394 = vunpack.c.h.b16 %v1456
        %v4395 = vunpack.c.l.b16 %v1457
        %v4396 = vunpack.c.h.b16 %v1457
        %v4397 = vunpack.c.l.b16 %v1458
        %v4398 = vunpack.c.h.b16 %v1458
        %v4399 = vunpack.c.l.b16 %v1459
        %v4400 = vunpack.c.h.b16 %v1459
        %v4401 = vunpack.c.l.b16 %v1460
        %v4402 = vunpack.c.h.b16 %v1460
        %v4403 = vunpack.c.l.b16 %v1461
        %v4404 = vunpack.c.h.b16 %v1461
        %v4405 = vunpack.c.l.b16 %v1462
        %v4406 = vunpack.c.h.b16 %v1462
        %v4407 = vunpack.c.l.b16 %v1463
        %v4408 = vunpack.c.h.b16 %v1463
        %v4409 = vunpack.c.l.b16 %v1464
        %v4410 = vunpack.c.h.b16 %v1464
        %v4411 = vunpack.c.l.b16 %v1465
        %v4412 = vunpack.c.h.b16 %v1465
        %v4413 = vunpack.c.l.b16 %v1466
        %v4414 = vunpack.c.h.b16 %v1466
        %v4415 = vunpack.c.l.b16 %v1467
        %v4416 = vunpack.c.h.b16 %v1467
        %v4417 = vunpack.c.l.b16 %v1468
        %v4418 = vunpack.c.h.b16 %v1468
        %v4419 = vunpack.c.l.b16 %v1469
        %v4420 = vunpack.c.h.b16 %v1469
        %v4421 = vunpack.c.l.b16 %v1470
        %v4422 = vunpack.c.h.b16 %v1470
        %v4423 = vunpack.c.l.b16 %v1471
        %v4424 = vunpack.c.h.b16 %v1471
        %v4425 = vunpack.c.l.b16 %v1472
        %v4426 = vunpack.c.h.b16 %v1472
        %v4427 = vunpack.c.l.b16 %v1473
        %v4428 = vunpack.c.h.b16 %v1473
        %v4429 = vunpack.c.l.b16 %v1474
        %v4430 = vunpack.c.h.b16 %v1474
        %v4431 = vunpack.c.l.b16 %v1475
        %v4432 = vunpack.c.h.b16 %v1475
        %v4433 = vunpack.c.l.b16 %v1476
        %v4434 = vunpack.c.h.b16 %v1476
        %v4435 = vunpack.c.l.b16 %v1477
        %v4436 = vunpack.c.h.b16 %v1477
        %v4437 = vunpack.c.l.b16 %v1478
        %v4438 = vunpack.c.h.b16 %v1478
        %v4439 = vunpack.c.l.b16 %v1479
        %v4440 = vunpack.c.h.b16 %v1479
        %v4441 = vunpack.c.l.b16 %v1480
        %v4442 = vunpack.c.h.b16 %v1480
        %v4443 = vunpack.c.l.b16 %v1481
        %v4444 = vunpack.c.h.b16 %v1481
        %v4445 = vunpack.c.l.b16 %v1482
        %v4446 = vunpack.c.h.b16 %v1482
        %v4447 = vunpack.c.l.b16 %v1483
        %v4448 = vunpack.c.h.b16 %v1483
        %v4449 = vunpack.c.l.b16 %v1484
        %v4450 = vunpack.c.h.b16 %v1484
        %v4451 = vunpack.c.l.b16 %v1485
        %v4452 = vunpack.c.h.b16 %v1485
        %v4453 = vunpack.c.l.b16 %v1486
        %v4454 = vunpack.c.h.b16 %v1486
        %v4455 = vunpack.c.l.b16 %v1487
        %v4456 = vunpack.c.h.b16 %v1487
        %v4457 = vunpack.c.l.b16 %v1488
        %v4458 = vunpack.c.h.b16 %v1488
        %v4459 = vunpack.c.l.b16 %v1489
        %v4460 = vunpack.c.h.b16 %v1489
        %v4461 = vunpack.c.l.b16 %v1490
        %v4462 = vunpack.c.h.b16 %v1490
        %v4463 = vunpack.c.l.b16 %v1491
        %v4464 = vunpack.c.h.b16 %v1491
        %v4465 = vunpack.c.l.b16 %v1492
        %v4466 = vunpack.c.h.b16 %v1492
        %v4467 = vunpack.c.l.b16 %v1493
        %v4468 = vunpack.c.h.b16 %v1493
        %v4469 = vunpack.c.l.b16 %v1494
        %v4470 = vunpack.c.h.b16 %v1494
        %v4471 = vunpack.c.l.b16 %v1495
        %v4472 = vunpack.c.h.b16 %v1495
        %v4473 = vunpack.c.l.b16 %v1496
        %v4474 = vunpack.c.h.b16 %v1496
        %v4475 = vunpack.c.l.b16 %v1497
        %v4476 = vunpack.c.h.b16 %v1497
        %v4477 = vunpack.c.l.b16 %v1498
        %v4478 = vunpack.c.h.b16 %v1498
        %v4479 = vunpack.c.l.b16 %v1499
        %v4480 = vunpack.c.h.b16 %v1499
        %v4481 = vunpack.c.l.b16 %v1500
        %v4482 = vunpack.c.h.b16 %v1500
        %v4483 = vunpack.c.l.b16 %v1501
        %v4484 = vunpack.c.h.b16 %v1501
        %v4485 = vunpack.c.l.b16 %v1502
        %v4486 = vunpack.c.h.b16 %v1502
        %v4487 = vunpack.c.l.b16 %v1503
        %v4488 = vunpack.c.h.b16 %v1503
        %v4489 = vunpack.c.l.b16 %v1504
        %v4490 = vunpack.c.h.b16 %v1504
        %v4491 = vunpack.c.l.b16 %v1505
        %v4492 = vunpack.c.h.b16 %v1505
        %v4493 = vunpack.c.l.b16 %v1506
        %v4494 = vunpack.c.h.b16 %v1506
        %v4495 = vunpack.c.l.b16 %v1507
        %v4496 = vunpack.c.h.b16 %v1507
        %v4497 = vunpack.c.l.b16 %v1508
        %v4498 = vunpack.c.h.b16 %v1508
        %v4499 = vunpack.c.l.b16 %v1509
        %v4500 = vunpack.c.h.b16 %v1509
        %v4501 = vunpack.c.l.b16 %v1510
        %v4502 = vunpack.c.h.b16 %v1510
        %v4503 = vunpack.c.l.b16 %v1511
        %v4504 = vunpack.c.h.b16 %v1511
        %v4505 = vunpack.c.l.b16 %v1512
        %v4506 = vunpack.c.h.b16 %v1512
        %v4507 = vunpack.c.l.b16 %v1513
        %v4508 = vunpack.c.h.b16 %v1513
        %v4509 = vunpack.c.l.b16 %v1514
        %v4510 = vunpack.c.h.b16 %v1514
        %v4511 = vunpack.c.l.b16 %v1515
        %v4512 = vunpack.c.h.b16 %v1515
        %v4513 = vunpack.c.l.b16 %v1516
        %v4514 = vunpack.c.h.b16 %v1516
        %v4515 = vunpack.c.l.b16 %v1517
        %v4516 = vunpack.c.h.b16 %v1517
        %v4517 = vunpack.c.l.b16 %v1518
        %v4518 = vunpack.c.h.b16 %v1518
        %v4519 = vunpack.c.l.b16 %v1519
        %v4520 = vunpack.c.h.b16 %v1519
        %v4521 = vunpack.c.l.b16 %v1520
        %v4522 = vunpack.c.h.b16 %v1520
        %v4523 = vunpack.c.l.b16 %v1521
        %v4524 = vunpack.c.h.b16 %v1521
        %v4525 = vunpack.c.l.b16 %v1522
        %v4526 = vunpack.c.h.b16 %v1522
        %v4527 = vunpack.c.l.b16 %v1523
        %v4528 = vunpack.c.h.b16 %v1523
        %v4529 = vunpack.c.l.b16 %v1524
        %v4530 = vunpack.c.h.b16 %v1524
        %v4531 = vunpack.c.l.b16 %v1525
        %v4532 = vunpack.c.h.b16 %v1525
        %v4533 = vunpack.c.l.b16 %v1526
        %v4534 = vunpack.c.h.b16 %v1526
        %v4535 = vunpack.c.l.b16 %v1527
        %v4536 = vunpack.c.h.b16 %v1527
        %v4537 = vunpack.c.l.b16 %v1528
        %v4538 = vunpack.c.h.b16 %v1528
        %v4539 = vunpack.c.l.b16 %v1529
        %v4540 = vunpack.c.h.b16 %v1529
        %v4541 = vunpack.c.l.b16 %v1530
        %v4542 = vunpack.c.h.b16 %v1530
        %v4543 = vunpack.c.l.b16 %v1531
        %v4544 = vunpack.c.h.b16 %v1531
        %v4545 = vunpack.c.l.b16 %v1532
        %v4546 = vunpack.c.h.b16 %v1532
        %v4547 = vunpack.c.l.b16 %v1533
        %v4548 = vunpack.c.h.b16 %v1533
        %v4549 = vunpack.c.l.b16 %v1534
        %v4550 = vunpack.c.h.b16 %v1534
        %v4551 = vunpack.c.l.b16 %v1535
        %v4552 = vunpack.c.h.b16 %v1535
        %v4553 = vunpack.c.l.b16 %v1536
        %v4554 = vunpack.c.h.b16 %v1536
        %v4555 = vunpack.c.l.b16 %v1537
        %v4556 = vunpack.c.h.b16 %v1537
        %v4557 = vunpack.c.l.b16 %v1538
        %v4558 = vunpack.c.h.b16 %v1538
        %v4559 = vunpack.c.l.b16 %v1539
        %v4560 = vunpack.c.h.b16 %v1539
        %v4561 = vunpack.c.l.b16 %v1540
        %v4562 = vunpack.c.h.b16 %v1540
        %v4563 = vunpack.c.l.b16 %v1541
        %v4564 = vunpack.c.h.b16 %v1541
        %v4565 = vunpack.c.l.b16 %v1542
        %v4566 = vunpack.c.h.b16 %v1542
        %v4567 = vunpack.c.l.b16 %v1543
        %v4568 = vunpack.c.h.b16 %v1543
        %v4569 = vunpack.c.l.b16 %v1544
        %v4570 = vunpack.c.h.b16 %v1544
        %v4571 = vunpack.c.l.b16 %v1545
        %v4572 = vunpack.c.h.b16 %v1545
        %v4573 = vunpack.c.l.b16 %v1546
        %v4574 = vunpack.c.h.b16 %v1546
        %v4575 = vunpack.c.l.b16 %v1547
        %v4576 = vunpack.c.h.b16 %v1547
        %v4577 = vunpack.c.l.b16 %v1548
        %v4578 = vunpack.c.h.b16 %v1548
        %v4579 = vunpack.c.l.b16 %v1549
        %v4580 = vunpack.c.h.b16 %v1549
        %v4581 = vunpack.c.l.b16 %v1550
        %v4582 = vunpack.c.h.b16 %v1550
        %v4583 = vunpack.c.l.b16 %v1551
        %v4584 = vunpack.c.h.b16 %v1551
        %v4585 = vunpack.c.l.b16 %v1552
        %v4586 = vunpack.c.h.b16 %v1552
        %v4587 = vunpack.c.l.b16 %v1553
        %v4588 = vunpack.c.h.b16 %v1553
        %v4589 = vunpack.c.l.b16 %v1554
        %v4590 = vunpack.c.h.b16 %v1554
        %v4591 = vunpack.c.l.b16 %v1555
        %v4592 = vunpack.c.h.b16 %v1555
        %v4593 = vunpack.c.l.b16 %v1556
        %v4594 = vunpack.c.h.b16 %v1556
        %v4595 = vunpack.c.l.b16 %v1557
        %v4596 = vunpack.c.h.b16 %v1557
        %v4597 = vunpack.c.l.b16 %v1558
        %v4598 = vunpack.c.h.b16 %v1558
        %v4599 = vunpack.c.l.b16 %v1559
        %v4600 = vunpack.c.h.b16 %v1559
        %v4601 = vunpack.c.l.b16 %v1560
        %v4602 = vunpack.c.h.b16 %v1560
        %v4603 = vunpack.c.l.b16 %v1561
        %v4604 = vunpack.c.h.b16 %v1561
        %v4605 = vunpack.c.l.b16 %v1562
        %v4606 = vunpack.c.h.b16 %v1562
        %v4607 = vunpack.c.l.b16 %v1563
        %v4608 = vunpack.c.h.b16 %v1563
        %v4609 = vunpack.c.l.b16 %v1564
        %v4610 = vunpack.c.h.b16 %v1564
        %v4611 = vunpack.c.l.b16 %v1565
        %v4612 = vunpack.c.h.b16 %v1565
        %v4613 = vunpack.c.l.b16 %v1566
        %v4614 = vunpack.c.h.b16 %v1566
        %v4615 = vunpack.c.l.b16 %v1567
        %v4616 = vunpack.c.h.b16 %v1567
        %v4617 = vunpack.c.l.b16 %v1568
        %v4618 = vunpack.c.h.b16 %v1568
        %v4619 = vunpack.c.l.b16 %v1569
        %v4620 = vunpack.c.h.b16 %v1569
        %v4621 = vunpack.c.l.b16 %v1570
        %v4622 = vunpack.c.h.b16 %v1570
        %v4623 = vunpack.c.l.b16 %v1571
        %v4624 = vunpack.c.h.b16 %v1571
        %v4625 = vunpack.c.l.b16 %v1572
        %v4626 = vunpack.c.h.b16 %v1572
        %v4627 = vunpack.c.l.b16 %v1573
        %v4628 = vunpack.c.h.b16 %v1573
        %v4629 = vunpack.c.l.b16 %v1574
        %v4630 = vunpack.c.h.b16 %v1574
        %v4631 = vunpack.c.l.b16 %v1575
        %v4632 = vunpack.c.h.b16 %v1575
        %v4633 = vunpack.c.l.b16 %v1576
        %v4634 = vunpack.c.h.b16 %v1576
        %v4635 = vunpack.c.l.b16 %v1577
        %v4636 = vunpack.c.h.b16 %v1577
        %v4637 = vunpack.c.l.b16 %v1578
        %v4638 = vunpack.c.h.b16 %v1578
        %v4639 = vunpack.c.l.b16 %v1579
        %v4640 = vunpack.c.h.b16 %v1579
        %v4641 = vunpack.c.l.b16 %v1580
        %v4642 = vunpack.c.h.b16 %v1580
        %v4643 = vunpack.c.l.b16 %v1581
        %v4644 = vunpack.c.h.b16 %v1581
        %v4645 = vunpack.c.l.b16 %v1582
        %v4646 = vunpack.c.h.b16 %v1582
        %v4647 = vunpack.c.l.b16 %v1583
        %v4648 = vunpack.c.h.b16 %v1583
        %v4649 = vunpack.c.l.b16 %v1584
        %v4650 = vunpack.c.h.b16 %v1584
        %v4651 = vunpack.c.l.b16 %v1585
        %v4652 = vunpack.c.h.b16 %v1585
        %v4653 = vunpack.c.l.b16 %v1586
        %v4654 = vunpack.c.h.b16 %v1586
        %v4655 = vunpack.c.l.b16 %v1587
        %v4656 = vunpack.c.h.b16 %v1587
        %v4657 = vunpack.c.l.b16 %v1588
        %v4658 = vunpack.c.h.b16 %v1588
        %v4659 = vunpack.c.l.b16 %v1589
        %v4660 = vunpack.c.h.b16 %v1589
        %v4661 = vunpack.c.l.b16 %v1590
        %v4662 = vunpack.c.h.b16 %v1590
        %v4663 = vpack.c.b16 %v2619, %v2615
        %v4664 = vpack.c.b16 %v2620, %v2616
        %v4665 = vpack.c.b16 %v2621, %v2617
        %v4666 = vpack.c.b16 %v2622, %v2618
        %v4667 = vpack.c.b16 %v2627, %v2623
        %v4668 = vpack.c.b16 %v2628, %v2624
        %v4669 = vpack.c.b16 %v2629, %v2625
        %v4670 = vpack.c.b16 %v2630, %v2626
        %v4671 = vpack.c.b16 %v2635, %v2631
        %v4672 = vpack.c.b16 %v2636, %v2632
        %v4673 = vpack.c.b16 %v2637, %v2633
        %v4674 = vpack.c.b16 %v2638, %v2634
        %v4675 = vpack.c.b16 %v2643, %v2639
        %v4676 = vpack.c.b16 %v2644, %v2640
        %v4677 = vpack.c.b16 %v2645, %v2641
        %v4678 = vpack.c.b16 %v2646, %v2642
        %v4679 = vpack.c.b16 %v2651, %v2647
        %v4680 = vpack.c.b16 %v2652, %v2648
        %v4681 = vpack.c.b16 %v2653, %v2649
        %v4682 = vpack.c.b16 %v2654, %v2650
        %v4683 = vpack.c.b16 %v2659, %v2655
        %v4684 = vpack.c.b16 %v2660, %v2656
        %v4685 = vpack.c.b16 %v2661, %v2657
        %v4686 = vpack.c.b16 %v2662, %v2658
        %v4687 = vpack.c.b16 %v2667, %v2663
        %v4688 = vpack.c.b16 %v2668, %v2664
        %v4689 = vpack.c.b16 %v2669, %v2665
        %v4690 = vpack.c.b16 %v2670, %v2666
        %v4691 = vpack.c.b16 %v2675, %v2671
        %v4692 = vpack.c.b16 %v2676, %v2672
        %v4693 = vpack.c.b16 %v2677, %v2673
        %v4694 = vpack.c.b16 %v2678, %v2674
        %v4695 = vpack.c.b16 %v2683, %v2679
        %v4696 = vpack.c.b16 %v2684, %v2680
        %v4697 = vpack.c.b16 %v2685, %v2681
        %v4698 = vpack.c.b16 %v2686, %v2682
        %v4699 = vpack.c.b16 %v2691, %v2687
        %v4700 = vpack.c.b16 %v2692, %v2688
        %v4701 = vpack.c.b16 %v2693, %v2689
        %v4702 = vpack.c.b16 %v2694, %v2690
        %v4703 = vpack.c.b16 %v2699, %v2695
        %v4704 = vpack.c.b16 %v2700, %v2696
        %v4705 = vpack.c.b16 %v2701, %v2697
        %v4706 = vpack.c.b16 %v2702, %v2698
        %v4707 = vpack.c.b16 %v2707, %v2703
        %v4708 = vpack.c.b16 %v2708, %v2704
        %v4709 = vpack.c.b16 %v2709, %v2705
        %v4710 = vpack.c.b16 %v2710, %v2706
        %v4711 = vpack.c.b16 %v2715, %v2711
        %v4712 = vpack.c.b16 %v2716, %v2712
        %v4713 = vpack.c.b16 %v2717, %v2713
        %v4714 = vpack.c.b16 %v2718, %v2714
        %v4715 = vpack.c.b16 %v2723, %v2719
        %v4716 = vpack.c.b16 %v2724, %v2720
        %v4717 = vpack.c.b16 %v2725, %v2721
        %v4718 = vpack.c.b16 %v2726, %v2722
        %v4719 = vpack.c.b16 %v2731, %v2727
        %v4720 = vpack.c.b16 %v2732, %v2728
        %v4721 = vpack.c.b16 %v2733, %v2729
        %v4722 = vpack.c.b16 %v2734, %v2730
        %v4723 = vpack.c.b16 %v2739, %v2735
        %v4724 = vpack.c.b16 %v2740, %v2736
        %v4725 = vpack.c.b16 %v2741, %v2737
        %v4726 = vpack.c.b16 %v2742, %v2738
        %v4727 = vpack.c.b16 %v2747, %v2743
        %v4728 = vpack.c.b16 %v2748, %v2744
        %v4729 = vpack.c.b16 %v2749, %v2745
        %v4730 = vpack.c.b16 %v2750, %v2746
        %v4731 = vpack.c.b16 %v2755, %v2751
        %v4732 = vpack.c.b16 %v2756, %v2752
        %v4733 = vpack.c.b16 %v2757, %v2753
        %v4734 = vpack.c.b16 %v2758, %v2754
        %v4735 = vpack.c.b16 %v2763, %v2759
        %v4736 = vpack.c.b16 %v2764, %v2760
        %v4737 = vpack.c.b16 %v2765, %v2761
        %v4738 = vpack.c.b16 %v2766, %v2762
        %v4739 = vpack.c.b16 %v2771, %v2767
        %v4740 = vpack.c.b16 %v2772, %v2768
        %v4741 = vpack.c.b16 %v2773, %v2769
        %v4742 = vpack.c.b16 %v2774, %v2770
        %v4743 = vpack.c.b16 %v2779, %v2775
        %v4744 = vpack.c.b16 %v2780, %v2776
        %v4745 = vpack.c.b16 %v2781, %v2777
        %v4746 = vpack.c.b16 %v2782, %v2778
        %v4747 = vpack.c.b16 %v2787, %v2783
        %v4748 = vpack.c.b16 %v2788, %v2784
        %v4749 = vpack.c.b16 %v2789, %v2785
        %v4750 = vpack.c.b16 %v2790, %v2786
        %v4751 = vpack.c.b16 %v2795, %v2791
        %v4752 = vpack.c.b16 %v2796, %v2792
        %v4753 = vpack.c.b16 %v2797, %v2793
        %v4754 = vpack.c.b16 %v2798, %v2794
        %v4755 = vpack.c.b16 %v2803, %v2799
        %v4756 = vpack.c.b16 %v2804, %v2800
        %v4757 = vpack.c.b16 %v2805, %v2801
        %v4758 = vpack.c.b16 %v2806, %v2802
        %v4759 = vpack.c.b16 %v2811, %v2807
        %v4760 = vpack.c.b16 %v2812, %v2808
        %v4761 = vpack.c.b16 %v2813, %v2809
        %v4762 = vpack.c.b16 %v2814, %v2810
        %v4763 = vpack.c.b16 %v2819, %v2815
        %v4764 = vpack.c.b16 %v2820, %v2816
        %v4765 = vpack.c.b16 %v2821, %v2817
        %v4766 = vpack.c.b16 %v2822, %v2818
        %v4767 = vpack.c.b16 %v2827, %v2823
        %v4768 = vpack.c.b16 %v2828, %v2824
        %v4769 = vpack.c.b16 %v2829, %v2825
        %v4770 = vpack.c.b16 %v2830, %v2826
        %v4771 = vpack.c.b16 %v2835, %v2831
        %v4772 = vpack.c.b16 %v2836, %v2832
        %v4773 = vpack.c.b16 %v2837, %v2833
        %v4774 = vpack.c.b16 %v2838, %v2834
        %v4775 = vpack.c.b16 %v2843, %v2839
        %v4776 = vpack.c.b16 %v2844, %v2840
        %v4777 = vpack.c.b16 %v2845, %v2841
        %v4778 = vpack.c.b16 %v2846, %v2842
        %v4779 = vpack.c.b16 %v2851, %v2847
        %v4780 = vpack.c.b16 %v2852, %v2848
        %v4781 = vpack.c.b16 %v2853, %v2849
        %v4782 = vpack.c.b16 %v2854, %v2850
        %v4783 = vpack.c.b16 %v2859, %v2855
        %v4784 = vpack.c.b16 %v2860, %v2856
        %v4785 = vpack.c.b16 %v2861, %v2857
        %v4786 = vpack.c.b16 %v2862, %v2858
        %v4787 = vpack.c.b16 %v2867, %v2863
        %v4788 = vpack.c.b16 %v2868, %v2864
        %v4789 = vpack.c.b16 %v2869, %v2865
        %v4790 = vpack.c.b16 %v2870, %v2866
        %v4791 = vpack.c.b16 %v2875, %v2871
        %v4792 = vpack.c.b16 %v2876, %v2872
        %v4793 = vpack.c.b16 %v2877, %v2873
        %v4794 = vpack.c.b16 %v2878, %v2874
        %v4795 = vpack.c.b16 %v2883, %v2879
        %v4796 = vpack.c.b16 %v2884, %v2880
        %v4797 = vpack.c.b16 %v2885, %v2881
        %v4798 = vpack.c.b16 %v2886, %v2882
        %v4799 = vpack.c.b16 %v2891, %v2887
        %v4800 = vpack.c.b16 %v2892, %v2888
        %v4801 = vpack.c.b16 %v2893, %v2889
        %v4802 = vpack.c.b16 %v2894, %v2890
        %v4803 = vpack.c.b16 %v2899, %v2895
        %v4804 = vpack.c.b16 %v2900, %v2896
        %v4805 = vpack.c.b16 %v2901, %v2897
        %v4806 = vpack.c.b16 %v2902, %v2898
        %v4807 = vpack.c.b16 %v2907, %v2903
        %v4808 = vpack.c.b16 %v2908, %v2904
        %v4809 = vpack.c.b16 %v2909, %v2905
        %v4810 = vpack.c.b16 %v2910, %v2906
        %v4811 = vpack.c.b16 %v2915, %v2911
        %v4812 = vpack.c.b16 %v2916, %v2912
        %v4813 = vpack.c.b16 %v2917, %v2913
        %v4814 = vpack.c.b16 %v2918, %v2914
        %v4815 = vpack.c.b16 %v2923, %v2919
        %v4816 = vpack.c.b16 %v2924, %v2920
        %v4817 = vpack.c.b16 %v2925, %v2921
        %v4818 = vpack.c.b16 %v2926, %v2922
        %v4819 = vpack.c.b16 %v2931, %v2927
        %v4820 = vpack.c.b16 %v2932, %v2928
        %v4821 = vpack.c.b16 %v2933, %v2929
        %v4822 = vpack.c.b16 %v2934, %v2930
        %v4823 = vpack.c.b16 %v2939, %v2935
        %v4824 = vpack.c.b16 %v2940, %v2936
        %v4825 = vpack.c.b16 %v2941, %v2937
        %v4826 = vpack.c.b16 %v2942, %v2938
        %v4827 = vpack.c.b16 %v2947, %v2943
        %v4828 = vpack.c.b16 %v2948, %v2944
        %v4829 = vpack.c.b16 %v2949, %v2945
        %v4830 = vpack.c.b16 %v2950, %v2946
        %v4831 = vpack.c.b16 %v2955, %v2951
        %v4832 = vpack.c.b16 %v2956, %v2952
        %v4833 = vpack.c.b16 %v2957, %v2953
        %v4834 = vpack.c.b16 %v2958, %v2954
        %v4835 = vpack.c.b16 %v2963, %v2959
        %v4836 = vpack.c.b16 %v2964, %v2960
        %v4837 = vpack.c.b16 %v2965, %v2961
        %v4838 = vpack.c.b16 %v2966, %v2962
        %v4839 = vpack.c.b16 %v2971, %v2967
        %v4840 = vpack.c.b16 %v2972, %v2968
        %v4841 = vpack.c.b16 %v2973, %v2969
        %v4842 = vpack.c.b16 %v2974, %v2970
        %v4843 = vpack.c.b16 %v2979, %v2975
        %v4844 = vpack.c.b16 %v2980, %v2976
        %v4845 = vpack.c.b16 %v2981, %v2977
        %v4846 = vpack.c.b16 %v2982, %v2978
        %v4847 = vpack.c.b16 %v2987, %v2983
        %v4848 = vpack.c.b16 %v2988, %v2984
        %v4849 = vpack.c.b16 %v2989, %v2985
        %v4850 = vpack.c.b16 %v2990, %v2986
        %v4851 = vpack.c.b16 %v2995, %v2991
        %v4852 = vpack.c.b16 %v2996, %v2992
        %v4853 = vpack.c.b16 %v2997, %v2993
        %v4854 = vpack.c.b16 %v2998, %v2994
        %v4855 = vpack.c.b16 %v3003, %v2999
        %v4856 = vpack.c.b16 %v3004, %v3000
        %v4857 = vpack.c.b16 %v3005, %v3001
        %v4858 = vpack.c.b16 %v3006, %v3002
        %v4859 = vpack.c.b16 %v3011, %v3007
        %v4860 = vpack.c.b16 %v3012, %v3008
        %v4861 = vpack.c.b16 %v3013, %v3009
        %v4862 = vpack.c.b16 %v3014, %v3010
        %v4863 = vpack.c.b16 %v3019, %v3015
        %v4864 = vpack.c.b16 %v3020, %v3016
        %v4865 = vpack.c.b16 %v3021, %v3017
        %v4866 = vpack.c.b16 %v3022, %v3018
        %v4867 = vpack.c.b16 %v3027, %v3023
        %v4868 = vpack.c.b16 %v3028, %v3024
        %v4869 = vpack.c.b16 %v3029, %v3025
        %v4870 = vpack.c.b16 %v3030, %v3026
        %v4871 = vpack.c.b16 %v3035, %v3031
        %v4872 = vpack.c.b16 %v3036, %v3032
        %v4873 = vpack.c.b16 %v3037, %v3033
        %v4874 = vpack.c.b16 %v3038, %v3034
        %v4875 = vpack.c.b16 %v3043, %v3039
        %v4876 = vpack.c.b16 %v3044, %v3040
        %v4877 = vpack.c.b16 %v3045, %v3041
        %v4878 = vpack.c.b16 %v3046, %v3042
        %v4879 = vpack.c.b16 %v3051, %v3047
        %v4880 = vpack.c.b16 %v3052, %v3048
        %v4881 = vpack.c.b16 %v3053, %v3049
        %v4882 = vpack.c.b16 %v3054, %v3050
        %v4883 = vpack.c.b16 %v3059, %v3055
        %v4884 = vpack.c.b16 %v3060, %v3056
        %v4885 = vpack.c.b16 %v3061, %v3057
        %v4886 = vpack.c.b16 %v3062, %v3058
        %v4887 = vpack.c.b16 %v3067, %v3063
        %v4888 = vpack.c.b16 %v3068, %v3064
        %v4889 = vpack.c.b16 %v3069, %v3065
        %v4890 = vpack.c.b16 %v3070, %v3066
        %v4891 = vpack.c.b16 %v3075, %v3071
        %v4892 = vpack.c.b16 %v3076, %v3072
        %v4893 = vpack.c.b16 %v3077, %v3073
        %v4894 = vpack.c.b16 %v3078, %v3074
        %v4895 = vpack.c.b16 %v3083, %v3079
        %v4896 = vpack.c.b16 %v3084, %v3080
        %v4897 = vpack.c.b16 %v3085, %v3081
        %v4898 = vpack.c.b16 %v3086, %v3082
        %v4899 = vpack.c.b16 %v3091, %v3087
        %v4900 = vpack.c.b16 %v3092, %v3088
        %v4901 = vpack.c.b16 %v3093, %v3089
        %v4902 = vpack.c.b16 %v3094, %v3090
        %v4903 = vpack.c.b16 %v3099, %v3095
        %v4904 = vpack.c.b16 %v3100, %v3096
        %v4905 = vpack.c.b16 %v3101, %v3097
        %v4906 = vpack.c.b16 %v3102, %v3098
        %v4907 = vpack.c.b16 %v3107, %v3103
        %v4908 = vpack.c.b16 %v3108, %v3104
        %v4909 = vpack.c.b16 %v3109, %v3105
        %v4910 = vpack.c.b16 %v3110, %v3106
        %v4911 = vpack.c.b16 %v3115, %v3111
        %v4912 = vpack.c.b16 %v3116, %v3112
        %v4913 = vpack.c.b16 %v3117, %v3113
        %v4914 = vpack.c.b16 %v3118, %v3114
        %v4915 = vpack.c.b16 %v3123, %v3119
        %v4916 = vpack.c.b16 %v3124, %v3120
        %v4917 = vpack.c.b16 %v3125, %v3121
        %v4918 = vpack.c.b16 %v3126, %v3122
        %v4919 = vpack.c.b16 %v3131, %v3127
        %v4920 = vpack.c.b16 %v3132, %v3128
        %v4921 = vpack.c.b16 %v3133, %v3129
        %v4922 = vpack.c.b16 %v3134, %v3130
        %v4923 = vpack.c.b16 %v3139, %v3135
        %v4924 = vpack.c.b16 %v3140, %v3136
        %v4925 = vpack.c.b16 %v3141, %v3137
        %v4926 = vpack.c.b16 %v3142, %v3138
        %v4927 = vpack.c.b16 %v3147, %v3143
        %v4928 = vpack.c.b16 %v3148, %v3144
        %v4929 = vpack.c.b16 %v3149, %v3145
        %v4930 = vpack.c.b16 %v3150, %v3146
        %v4931 = vpack.c.b16 %v3155, %v3151
        %v4932 = vpack.c.b16 %v3156, %v3152
        %v4933 = vpack.c.b16 %v3157, %v3153
        %v4934 = vpack.c.b16 %v3158, %v3154
        %v4935 = vpack.c.b16 %v3163, %v3159
        %v4936 = vpack.c.b16 %v3164, %v3160
        %v4937 = vpack.c.b16 %v3165, %v3161
        %v4938 = vpack.c.b16 %v3166, %v3162
        %v4939 = vpack.c.b16 %v3171, %v3167
        %v4940 = vpack.c.b16 %v3172, %v3168
        %v4941 = vpack.c.b16 %v3173, %v3169
        %v4942 = vpack.c.b16 %v3174, %v3170
        %v4943 = vpack.c.b16 %v3179, %v3175
        %v4944 = vpack.c.b16 %v3180, %v3176
        %v4945 = vpack.c.b16 %v3181, %v3177
        %v4946 = vpack.c.b16 %v3182, %v3178
        %v4947 = vpack.c.b16 %v3187, %v3183
        %v4948 = vpack.c.b16 %v3188, %v3184
        %v4949 = vpack.c.b16 %v3189, %v3185
        %v4950 = vpack.c.b16 %v3190, %v3186
        %v4951 = vpack.c.b16 %v3195, %v3191
        %v4952 = vpack.c.b16 %v3196, %v3192
        %v4953 = vpack.c.b16 %v3197, %v3193
        %v4954 = vpack.c.b16 %v3198, %v3194
        %v4955 = vpack.c.b16 %v3203, %v3199
        %v4956 = vpack.c.b16 %v3204, %v3200
        %v4957 = vpack.c.b16 %v3205, %v3201
        %v4958 = vpack.c.b16 %v3206, %v3202
        %v4959 = vpack.c.b16 %v3211, %v3207
        %v4960 = vpack.c.b16 %v3212, %v3208
        %v4961 = vpack.c.b16 %v3213, %v3209
        %v4962 = vpack.c.b16 %v3214, %v3210
        %v4963 = vpack.c.b16 %v3219, %v3215
        %v4964 = vpack.c.b16 %v3220, %v3216
        %v4965 = vpack.c.b16 %v3221, %v3217
        %v4966 = vpack.c.b16 %v3222, %v3218
        %v4967 = vpack.c.b16 %v3227, %v3223
        %v4968 = vpack.c.b16 %v3228, %v3224
        %v4969 = vpack.c.b16 %v3229, %v3225
        %v4970 = vpack.c.b16 %v3230, %v3226
        %v4971 = vpack.c.b16 %v3235, %v3231
        %v4972 = vpack.c.b16 %v3236, %v3232
        %v4973 = vpack.c.b16 %v3237, %v3233
        %v4974 = vpack.c.b16 %v3238, %v3234
        %v4975 = vpack.c.b16 %v3243, %v3239
        %v4976 = vpack.c.b16 %v3244, %v3240
        %v4977 = vpack.c.b16 %v3245, %v3241
        %v4978 = vpack.c.b16 %v3246, %v3242
        %v4979 = vpack.c.b16 %v3251, %v3247
        %v4980 = vpack.c.b16 %v3252, %v3248
        %v4981 = vpack.c.b16 %v3253, %v3249
        %v4982 = vpack.c.b16 %v3254, %v3250
        %v4983 = vpack.c.b16 %v3259, %v3255
        %v4984 = vpack.c.b16 %v3260, %v3256
        %v4985 = vpack.c.b16 %v3261, %v3257
        %v4986 = vpack.c.b16 %v3262, %v3258
        %v4987 = vpack.c.b16 %v3267, %v3263
        %v4988 = vpack.c.b16 %v3268, %v3264
        %v4989 = vpack.c.b16 %v3269, %v3265
        %v4990 = vpack.c.b16 %v3270, %v3266
        %v4991 = vpack.c.b16 %v3275, %v3271
        %v4992 = vpack.c.b16 %v3276, %v3272
        %v4993 = vpack.c.b16 %v3277, %v3273
        %v4994 = vpack.c.b16 %v3278, %v3274
        %v4995 = vpack.c.b16 %v3283, %v3279
        %v4996 = vpack.c.b16 %v3284, %v3280
        %v4997 = vpack.c.b16 %v3285, %v3281
        %v4998 = vpack.c.b16 %v3286, %v3282
        %v4999 = vpack.c.b16 %v3291, %v3287
        %v5000 = vpack.c.b16 %v3292, %v3288
        %v5001 = vpack.c.b16 %v3293, %v3289
        %v5002 = vpack.c.b16 %v3294, %v3290
        %v5003 = vpack.c.b16 %v3299, %v3295
        %v5004 = vpack.c.b16 %v3300, %v3296
        %v5005 = vpack.c.b16 %v3301, %v3297
        %v5006 = vpack.c.b16 %v3302, %v3298
        %v5007 = vpack.c.b16 %v3307, %v3303
        %v5008 = vpack.c.b16 %v3308, %v3304
        %v5009 = vpack.c.b16 %v3309, %v3305
        %v5010 = vpack.c.b16 %v3310, %v3306
        %v5011 = vpack.c.b16 %v3315, %v3311
        %v5012 = vpack.c.b16 %v3316, %v3312
        %v5013 = vpack.c.b16 %v3317, %v3313
        %v5014 = vpack.c.b16 %v3318, %v3314
        %v5015 = vpack.c.b16 %v3323, %v3319
        %v5016 = vpack.c.b16 %v3324, %v3320
        %v5017 = vpack.c.b16 %v3325, %v3321
        %v5018 = vpack.c.b16 %v3326, %v3322
        %v5019 = vpack.c.b16 %v3331, %v3327
        %v5020 = vpack.c.b16 %v3332, %v3328
        %v5021 = vpack.c.b16 %v3333, %v3329
        %v5022 = vpack.c.b16 %v3334, %v3330
        %v5023 = vpack.c.b16 %v3339, %v3335
        %v5024 = vpack.c.b16 %v3340, %v3336
        %v5025 = vpack.c.b16 %v3341, %v3337
        %v5026 = vpack.c.b16 %v3342, %v3338
        %v5027 = vpack.c.b16 %v3347, %v3343
        %v5028 = vpack.c.b16 %v3348, %v3344
        %v5029 = vpack.c.b16 %v3349, %v3345
        %v5030 = vpack.c.b16 %v3350, %v3346
        %v5031 = vpack.c.b16 %v3355, %v3351
        %v5032 = vpack.c.b16 %v3356, %v3352
        %v5033 = vpack.c.b16 %v3357, %v3353
        %v5034 = vpack.c.b16 %v3358, %v3354
        %v5035 = vpack.c.b16 %v3363, %v3359
        %v5036 = vpack.c.b16 %v3364, %v3360
        %v5037 = vpack.c.b16 %v3365, %v3361
        %v5038 = vpack.c.b16 %v3366, %v3362
        %v5039 = vpack.c.b16 %v3371, %v3367
        %v5040 = vpack.c.b16 %v3372, %v3368
        %v5041 = vpack.c.b16 %v3373, %v3369
        %v5042 = vpack.c.b16 %v3374, %v3370
        %v5043 = vpack.c.b16 %v3379, %v3375
        %v5044 = vpack.c.b16 %v3380, %v3376
        %v5045 = vpack.c.b16 %v3381, %v3377
        %v5046 = vpack.c.b16 %v3382, %v3378
        %v5047 = vpack.c.b16 %v3387, %v3383
        %v5048 = vpack.c.b16 %v3388, %v3384
        %v5049 = vpack.c.b16 %v3389, %v3385
        %v5050 = vpack.c.b16 %v3390, %v3386
        %v5051 = vpack.c.b16 %v3395, %v3391
        %v5052 = vpack.c.b16 %v3396, %v3392
        %v5053 = vpack.c.b16 %v3397, %v3393
        %v5054 = vpack.c.b16 %v3398, %v3394
        %v5055 = vpack.c.b16 %v3403, %v3399
        %v5056 = vpack.c.b16 %v3404, %v3400
        %v5057 = vpack.c.b16 %v3405, %v3401
        %v5058 = vpack.c.b16 %v3406, %v3402
        %v5059 = vpack.c.b16 %v3411, %v3407
        %v5060 = vpack.c.b16 %v3412, %v3408
        %v5061 = vpack.c.b16 %v3413, %v3409
        %v5062 = vpack.c.b16 %v3414, %v3410
        %v5063 = vpack.c.b16 %v3419, %v3415
        %v5064 = vpack.c.b16 %v3420, %v3416
        %v5065 = vpack.c.b16 %v3421, %v3417
        %v5066 = vpack.c.b16 %v3422, %v3418
        %v5067 = vpack.c.b16 %v3427, %v3423
        %v5068 = vpack.c.b16 %v3428, %v3424
        %v5069 = vpack.c.b16 %v3429, %v3425
        %v5070 = vpack.c.b16 %v3430, %v3426
        %v5071 = vpack.c.b16 %v3435, %v3431
        %v5072 = vpack.c.b16 %v3436, %v3432
        %v5073 = vpack.c.b16 %v3437, %v3433
        %v5074 = vpack.c.b16 %v3438, %v3434
        %v5075 = vpack.c.b16 %v3443, %v3439
        %v5076 = vpack.c.b16 %v3444, %v3440
        %v5077 = vpack.c.b16 %v3445, %v3441
        %v5078 = vpack.c.b16 %v3446, %v3442
        %v5079 = vpack.c.b16 %v3451, %v3447
        %v5080 = vpack.c.b16 %v3452, %v3448
        %v5081 = vpack.c.b16 %v3453, %v3449
        %v5082 = vpack.c.b16 %v3454, %v3450
        %v5083 = vpack.c.b16 %v3459, %v3455
        %v5084 = vpack.c.b16 %v3460, %v3456
        %v5085 = vpack.c.b16 %v3461, %v3457
        %v5086 = vpack.c.b16 %v3462, %v3458
        %v5087 = vpack.c.b16 %v3467, %v3463
        %v5088 = vpack.c.b16 %v3468, %v3464
        %v5089 = vpack.c.b16 %v3469, %v3465
        %v5090 = vpack.c.b16 %v3470, %v3466
        %v5091 = vpack.c.b16 %v3475, %v3471
        %v5092 = vpack.c.b16 %v3476, %v3472
        %v5093 = vpack.c.b16 %v3477, %v3473
        %v5094 = vpack.c.b16 %v3478, %v3474
        %v5095 = vpack.c.b16 %v3483, %v3479
        %v5096 = vpack.c.b16 %v3484, %v3480
        %v5097 = vpack.c.b16 %v3485, %v3481
        %v5098 = vpack.c.b16 %v3486, %v3482
        %v5099 = vpack.c.b16 %v3491, %v3487
        %v5100 = vpack.c.b16 %v3492, %v3488
        %v5101 = vpack.c.b16 %v3493, %v3489
        %v5102 = vpack.c.b16 %v3494, %v3490
        %v5103 = vpack.c.b16 %v3499, %v3495
        %v5104 = vpack.c.b16 %v3500, %v3496
        %v5105 = vpack.c.b16 %v3501, %v3497
        %v5106 = vpack.c.b16 %v3502, %v3498
        %v5107 = vpack.c.b16 %v3507, %v3503
        %v5108 = vpack.c.b16 %v3508, %v3504
        %v5109 = vpack.c.b16 %v3509, %v3505
        %v5110 = vpack.c.b16 %v3510, %v3506
        %v5111 = vpack.c.b16 %v3515, %v3511
        %v5112 = vpack.c.b16 %v3516, %v3512
        %v5113 = vpack.c.b16 %v3517, %v3513
        %v5114 = vpack.c.b16 %v3518, %v3514
        %v5115 = vpack.c.b16 %v3523, %v3519
        %v5116 = vpack.c.b16 %v3524, %v3520
        %v5117 = vpack.c.b16 %v3525, %v3521
        %v5118 = vpack.c.b16 %v3526, %v3522
        %v5119 = vpack.c.b16 %v3531, %v3527
        %v5120 = vpack.c.b16 %v3532, %v3528
        %v5121 = vpack.c.b16 %v3533, %v3529
        %v5122 = vpack.c.b16 %v3534, %v3530
        %v5123 = vpack.c.b16 %v3539, %v3535
        %v5124 = vpack.c.b16 %v3540, %v3536
        %v5125 = vpack.c.b16 %v3541, %v3537
        %v5126 = vpack.c.b16 %v3542, %v3538
        %v5127 = vpack.c.b16 %v3547, %v3543
        %v5128 = vpack.c.b16 %v3548, %v3544
        %v5129 = vpack.c.b16 %v3549, %v3545
        %v5130 = vpack.c.b16 %v3550, %v3546
        %v5131 = vpack.c.b16 %v3555, %v3551
        %v5132 = vpack.c.b16 %v3556, %v3552
        %v5133 = vpack.c.b16 %v3557, %v3553
        %v5134 = vpack.c.b16 %v3558, %v3554
        %v5135 = vpack.c.b16 %v3563, %v3559
        %v5136 = vpack.c.b16 %v3564, %v3560
        %v5137 = vpack.c.b16 %v3565, %v3561
        %v5138 = vpack.c.b16 %v3566, %v3562
        %v5139 = vpack.c.b16 %v3571, %v3567
        %v5140 = vpack.c.b16 %v3572, %v3568
        %v5141 = vpack.c.b16 %v3573, %v3569
        %v5142 = vpack.c.b16 %v3574, %v3570
        %v5143 = vpack.c.b16 %v3579, %v3575
        %v5144 = vpack.c.b16 %v3580, %v3576
        %v5145 = vpack.c.b16 %v3581, %v3577
        %v5146 = vpack.c.b16 %v3582, %v3578
        %v5147 = vpack.c.b16 %v3587, %v3583
        %v5148 = vpack.c.b16 %v3588, %v3584
        %v5149 = vpack.c.b16 %v3589, %v3585
        %v5150 = vpack.c.b16 %v3590, %v3586
        %v5151 = vpack.c.b16 %v3595, %v3591
        %v5152 = vpack.c.b16 %v3596, %v3592
        %v5153 = vpack.c.b16 %v3597, %v3593
        %v5154 = vpack.c.b16 %v3598, %v3594
        %v5155 = vpack.c.b16 %v3603, %v3599
        %v5156 = vpack.c.b16 %v3604, %v3600
        %v5157 = vpack.c.b16 %v3605, %v3601
        %v5158 = vpack.c.b16 %v3606, %v3602
        %v5159 = vpack.c.b16 %v3611, %v3607
        %v5160 = vpack.c.b16 %v3612, %v3608
        %v5161 = vpack.c.b16 %v3613, %v3609
        %v5162 = vpack.c.b16 %v3614, %v3610
        %v5163 = vpack.c.b16 %v3619, %v3615
        %v5164 = vpack.c.b16 %v3620, %v3616
        %v5165 = vpack.c.b16 %v3621, %v3617
        %v5166 = vpack.c.b16 %v3622, %v3618
        %v5167 = vpack.c.b16 %v3627, %v3623
        %v5168 = vpack.c.b16 %v3628, %v3624
        %v5169 = vpack.c.b16 %v3629, %v3625
        %v5170 = vpack.c.b16 %v3630, %v3626
        %v5171 = vpack.c.b16 %v3635, %v3631
        %v5172 = vpack.c.b16 %v3636, %v3632
        %v5173 = vpack.c.b16 %v3637, %v3633
        %v5174 = vpack.c.b16 %v3638, %v3634
        %v5175 = vpack.c.b16 %v3643, %v3639
        %v5176 = vpack.c.b16 %v3644, %v3640
        %v5177 = vpack.c.b16 %v3645, %v3641
        %v5178 = vpack.c.b16 %v3646, %v3642
        %v5179 = vpack.c.b16 %v3651, %v3647
        %v5180 = vpack.c.b16 %v3652, %v3648
        %v5181 = vpack.c.b16 %v3653, %v3649
        %v5182 = vpack.c.b16 %v3654, %v3650
        %v5183 = vpack.c.b16 %v3659, %v3655
        %v5184 = vpack.c.b16 %v3660, %v3656
        %v5185 = vpack.c.b16 %v3661, %v3657
        %v5186 = vpack.c.b16 %v3662, %v3658
        %v5187 = vpack.c.b16 %v3667, %v3663
        %v5188 = vpack.c.b16 %v3668, %v3664
        %v5189 = vpack.c.b16 %v3669, %v3665
        %v5190 = vpack.c.b16 %v3670, %v3666
        %v5191 = vpack.c.b16 %v3675, %v3671
        %v5192 = vpack.c.b16 %v3676, %v3672
        %v5193 = vpack.c.b16 %v3677, %v3673
        %v5194 = vpack.c.b16 %v3678, %v3674
        %v5195 = vpack.c.b16 %v3683, %v3679
        %v5196 = vpack.c.b16 %v3684, %v3680
        %v5197 = vpack.c.b16 %v3685, %v3681
        %v5198 = vpack.c.b16 %v3686, %v3682
        %v5199 = vpack.c.b16 %v3691, %v3687
        %v5200 = vpack.c.b16 %v3692, %v3688
        %v5201 = vpack.c.b16 %v3693, %v3689
        %v5202 = vpack.c.b16 %v3694, %v3690
        %v5203 = vpack.c.b16 %v3699, %v3695
        %v5204 = vpack.c.b16 %v3700, %v3696
        %v5205 = vpack.c.b16 %v3701, %v3697
        %v5206 = vpack.c.b16 %v3702, %v3698
        %v5207 = vpack.c.b16 %v3707, %v3703
        %v5208 = vpack.c.b16 %v3708, %v3704
        %v5209 = vpack.c.b16 %v3709, %v3705
        %v5210 = vpack.c.b16 %v3710, %v3706
        %v5211 = vpack.c.b16 %v3715, %v3711
        %v5212 = vpack.c.b16 %v3716, %v3712
        %v5213 = vpack.c.b16 %v3717, %v3713
        %v5214 = vpack.c.b16 %v3718, %v3714
        %v5215 = vpack.c.b16 %v3723, %v3719
        %v5216 = vpack.c.b16 %v3724, %v3720
        %v5217 = vpack.c.b16 %v3725, %v3721
        %v5218 = vpack.c.b16 %v3726, %v3722
        %v5219 = vpack.c.b16 %v3731, %v3727
        %v5220 = vpack.c.b16 %v3732, %v3728
        %v5221 = vpack.c.b16 %v3733, %v3729
        %v5222 = vpack.c.b16 %v3734, %v3730
        %v5223 = vpack.c.b16 %v3739, %v3735
        %v5224 = vpack.c.b16 %v3740, %v3736
        %v5225 = vpack.c.b16 %v3741, %v3737
        %v5226 = vpack.c.b16 %v3742, %v3738
        %v5227 = vpack.c.b16 %v3747, %v3743
        %v5228 = vpack.c.b16 %v3748, %v3744
        %v5229 = vpack.c.b16 %v3749, %v3745
        %v5230 = vpack.c.b16 %v3750, %v3746
        %v5231 = vpack.c.b16 %v3755, %v3751
        %v5232 = vpack.c.b16 %v3756, %v3752
        %v5233 = vpack.c.b16 %v3757, %v3753
        %v5234 = vpack.c.b16 %v3758, %v3754
        %v5235 = vpack.c.b16 %v3763, %v3759
        %v5236 = vpack.c.b16 %v3764, %v3760
        %v5237 = vpack.c.b16 %v3765, %v3761
        %v5238 = vpack.c.b16 %v3766, %v3762
        %v5239 = vpack.c.b16 %v3771, %v3767
        %v5240 = vpack.c.b16 %v3772, %v3768
        %v5241 = vpack.c.b16 %v3773, %v3769
        %v5242 = vpack.c.b16 %v3774, %v3770
        %v5243 = vpack.c.b16 %v3779, %v3775
        %v5244 = vpack.c.b16 %v3780, %v3776
        %v5245 = vpack.c.b16 %v3781, %v3777
        %v5246 = vpack.c.b16 %v3782, %v3778
        %v5247 = vpack.c.b16 %v3787, %v3783
        %v5248 = vpack.c.b16 %v3788, %v3784
        %v5249 = vpack.c.b16 %v3789, %v3785
        %v5250 = vpack.c.b16 %v3790, %v3786
        %v5251 = vpack.c.b16 %v3795, %v3791
        %v5252 = vpack.c.b16 %v3796, %v3792
        %v5253 = vpack.c.b16 %v3797, %v3793
        %v5254 = vpack.c.b16 %v3798, %v3794
        %v5255 = vpack.c.b16 %v3803, %v3799
        %v5256 = vpack.c.b16 %v3804, %v3800
        %v5257 = vpack.c.b16 %v3805, %v3801
        %v5258 = vpack.c.b16 %v3806, %v3802
        %v5259 = vpack.c.b16 %v3811, %v3807
        %v5260 = vpack.c.b16 %v3812, %v3808
        %v5261 = vpack.c.b16 %v3813, %v3809
        %v5262 = vpack.c.b16 %v3814, %v3810
        %v5263 = vpack.c.b16 %v3819, %v3815
        %v5264 = vpack.c.b16 %v3820, %v3816
        %v5265 = vpack.c.b16 %v3821, %v3817
        %v5266 = vpack.c.b16 %v3822, %v3818
        %v5267 = vpack.c.b16 %v3827, %v3823
        %v5268 = vpack.c.b16 %v3828, %v3824
        %v5269 = vpack.c.b16 %v3829, %v3825
        %v5270 = vpack.c.b16 %v3830, %v3826
        %v5271 = vpack.c.b16 %v3835, %v3831
        %v5272 = vpack.c.b16 %v3836, %v3832
        %v5273 = vpack.c.b16 %v3837, %v3833
        %v5274 = vpack.c.b16 %v3838, %v3834
        %v5275 = vpack.c.b16 %v3843, %v3839
        %v5276 = vpack.c.b16 %v3844, %v3840
        %v5277 = vpack.c.b16 %v3845, %v3841
        %v5278 = vpack.c.b16 %v3846, %v3842
        %v5279 = vpack.c.b16 %v3851, %v3847
        %v5280 = vpack.c.b16 %v3852, %v3848
        %v5281 = vpack.c.b16 %v3853, %v3849
        %v5282 = vpack.c.b16 %v3854, %v3850
        %v5283 = vpack.c.b16 %v3859, %v3855
        %v5284 = vpack.c.b16 %v3860, %v3856
        %v5285 = vpack.c.b16 %v3861, %v3857
        %v5286 = vpack.c.b16 %v3862, %v3858
        %v5287 = vpack.c.b16 %v3867, %v3863
        %v5288 = vpack.c.b16 %v3868, %v3864
        %v5289 = vpack.c.b16 %v3869, %v3865
        %v5290 = vpack.c.b16 %v3870, %v3866
        %v5291 = vpack.c.b16 %v3875, %v3871
        %v5292 = vpack.c.b16 %v3876, %v3872
        %v5293 = vpack.c.b16 %v3877, %v3873
        %v5294 = vpack.c.b16 %v3878, %v3874
        %v5295 = vpack.c.b16 %v3883, %v3879
        %v5296 = vpack.c.b16 %v3884, %v3880
        %v5297 = vpack.c.b16 %v3885, %v3881
        %v5298 = vpack.c.b16 %v3886, %v3882
        %v5299 = vpack.c.b16 %v3891, %v3887
        %v5300 = vpack.c.b16 %v3892, %v3888
        %v5301 = vpack.c.b16 %v3893, %v3889
        %v5302 = vpack.c.b16 %v3894, %v3890
        %v5303 = vpack.c.b16 %v3899, %v3895
        %v5304 = vpack.c.b16 %v3900, %v3896
        %v5305 = vpack.c.b16 %v3901, %v3897
        %v5306 = vpack.c.b16 %v3902, %v3898
        %v5307 = vpack.c.b16 %v3907, %v3903
        %v5308 = vpack.c.b16 %v3908, %v3904
        %v5309 = vpack.c.b16 %v3909, %v3905
        %v5310 = vpack.c.b16 %v3910, %v3906
        %v5311 = vpack.c.b16 %v3915, %v3911
        %v5312 = vpack.c.b16 %v3916, %v3912
        %v5313 = vpack.c.b16 %v3917, %v3913
        %v5314 = vpack.c.b16 %v3918, %v3914
        %v5315 = vpack.c.b16 %v3923, %v3919
        %v5316 = vpack.c.b16 %v3924, %v3920
        %v5317 = vpack.c.b16 %v3925, %v3921
        %v5318 = vpack.c.b16 %v3926, %v3922
        %v5319 = vpack.c.b16 %v3931, %v3927
        %v5320 = vpack.c.b16 %v3932, %v3928
        %v5321 = vpack.c.b16 %v3933, %v3929
        %v5322 = vpack.c.b16 %v3934, %v3930
        %v5323 = vpack.c.b16 %v3939, %v3935
        %v5324 = vpack.c.b16 %v3940, %v3936
        %v5325 = vpack.c.b16 %v3941, %v3937
        %v5326 = vpack.c.b16 %v3942, %v3938
        %v5327 = vpack.c.b16 %v3947, %v3943
        %v5328 = vpack.c.b16 %v3948, %v3944
        %v5329 = vpack.c.b16 %v3949, %v3945
        %v5330 = vpack.c.b16 %v3950, %v3946
        %v5331 = vpack.c.b16 %v3955, %v3951
        %v5332 = vpack.c.b16 %v3956, %v3952
        %v5333 = vpack.c.b16 %v3957, %v3953
        %v5334 = vpack.c.b16 %v3958, %v3954
        %v5335 = vpack.c.b16 %v3963, %v3959
        %v5336 = vpack.c.b16 %v3964, %v3960
        %v5337 = vpack.c.b16 %v3965, %v3961
        %v5338 = vpack.c.b16 %v3966, %v3962
        %v5339 = vpack.c.b16 %v3971, %v3967
        %v5340 = vpack.c.b16 %v3972, %v3968
        %v5341 = vpack.c.b16 %v3973, %v3969
        %v5342 = vpack.c.b16 %v3974, %v3970
        %v5343 = vpack.c.b16 %v3979, %v3975
        %v5344 = vpack.c.b16 %v3980, %v3976
        %v5345 = vpack.c.b16 %v3981, %v3977
        %v5346 = vpack.c.b16 %v3982, %v3978
        %v5347 = vpack.c.b16 %v3987, %v3983
        %v5348 = vpack.c.b16 %v3988, %v3984
        %v5349 = vpack.c.b16 %v3989, %v3985
        %v5350 = vpack.c.b16 %v3990, %v3986
        %v5351 = vpack.c.b16 %v3995, %v3991
        %v5352 = vpack.c.b16 %v3996, %v3992
        %v5353 = vpack.c.b16 %v3997, %v3993
        %v5354 = vpack.c.b16 %v3998, %v3994
        %v5355 = vpack.c.b16 %v4003, %v3999
        %v5356 = vpack.c.b16 %v4004, %v4000
        %v5357 = vpack.c.b16 %v4005, %v4001
        %v5358 = vpack.c.b16 %v4006, %v4002
        %v5359 = vpack.c.b16 %v4011, %v4007
        %v5360 = vpack.c.b16 %v4012, %v4008
        %v5361 = vpack.c.b16 %v4013, %v4009
        %v5362 = vpack.c.b16 %v4014, %v4010
        %v5363 = vpack.c.b16 %v4019, %v4015
        %v5364 = vpack.c.b16 %v4020, %v4016
        %v5365 = vpack.c.b16 %v4021, %v4017
        %v5366 = vpack.c.b16 %v4022, %v4018
        %v5367 = vpack.c.b16 %v4027, %v4023
        %v5368 = vpack.c.b16 %v4028, %v4024
        %v5369 = vpack.c.b16 %v4029, %v4025
        %v5370 = vpack.c.b16 %v4030, %v4026
        %v5371 = vpack.c.b16 %v4035, %v4031
        %v5372 = vpack.c.b16 %v4036, %v4032
        %v5373 = vpack.c.b16 %v4037, %v4033
        %v5374 = vpack.c.b16 %v4038, %v4034
        %v5375 = vpack.c.b16 %v4043, %v4039
        %v5376 = vpack.c.b16 %v4044, %v4040
        %v5377 = vpack.c.b16 %v4045, %v4041
        %v5378 = vpack.c.b16 %v4046, %v4042
        %v5379 = vpack.c.b16 %v4051, %v4047
        %v5380 = vpack.c.b16 %v4052, %v4048
        %v5381 = vpack.c.b16 %v4053, %v4049
        %v5382 = vpack.c.b16 %v4054, %v4050
        %v5383 = vpack.c.b16 %v4059, %v4055
        %v5384 = vpack.c.b16 %v4060, %v4056
        %v5385 = vpack.c.b16 %v4061, %v4057
        %v5386 = vpack.c.b16 %v4062, %v4058
        %v5387 = vpack.c.b16 %v4067, %v4063
        %v5388 = vpack.c.b16 %v4068, %v4064
        %v5389 = vpack.c.b16 %v4069, %v4065
        %v5390 = vpack.c.b16 %v4070, %v4066
        %v5391 = vpack.c.b16 %v4075, %v4071
        %v5392 = vpack.c.b16 %v4076, %v4072
        %v5393 = vpack.c.b16 %v4077, %v4073
        %v5394 = vpack.c.b16 %v4078, %v4074
        %v5395 = vpack.c.b16 %v4083, %v4079
        %v5396 = vpack.c.b16 %v4084, %v4080
        %v5397 = vpack.c.b16 %v4085, %v4081
        %v5398 = vpack.c.b16 %v4086, %v4082
        %v5399 = vpack.c.b16 %v4091, %v4087
        %v5400 = vpack.c.b16 %v4092, %v4088
        %v5401 = vpack.c.b16 %v4093, %v4089
        %v5402 = vpack.c.b16 %v4094, %v4090
        %v5403 = vpack.c.b16 %v4099, %v4095
        %v5404 = vpack.c.b16 %v4100, %v4096
        %v5405 = vpack.c.b16 %v4101, %v4097
        %v5406 = vpack.c.b16 %v4102, %v4098
        %v5407 = vpack.c.b16 %v4107, %v4103
        %v5408 = vpack.c.b16 %v4108, %v4104
        %v5409 = vpack.c.b16 %v4109, %v4105
        %v5410 = vpack.c.b16 %v4110, %v4106
        %v5411 = vpack.c.b16 %v4115, %v4111
        %v5412 = vpack.c.b16 %v4116, %v4112
        %v5413 = vpack.c.b16 %v4117, %v4113
        %v5414 = vpack.c.b16 %v4118, %v4114
        %v5415 = vpack.c.b16 %v4123, %v4119
        %v5416 = vpack.c.b16 %v4124, %v4120
        %v5417 = vpack.c.b16 %v4125, %v4121
        %v5418 = vpack.c.b16 %v4126, %v4122
        %v5419 = vpack.c.b16 %v4131, %v4127
        %v5420 = vpack.c.b16 %v4132, %v4128
        %v5421 = vpack.c.b16 %v4133, %v4129
        %v5422 = vpack.c.b16 %v4134, %v4130
        %v5423 = vpack.c.b16 %v4139, %v4135
        %v5424 = vpack.c.b16 %v4140, %v4136
        %v5425 = vpack.c.b16 %v4141, %v4137
        %v5426 = vpack.c.b16 %v4142, %v4138
        %v5427 = vpack.c.b16 %v4147, %v4143
        %v5428 = vpack.c.b16 %v4148, %v4144
        %v5429 = vpack.c.b16 %v4149, %v4145
        %v5430 = vpack.c.b16 %v4150, %v4146
        %v5431 = vpack.c.b16 %v4155, %v4151
        %v5432 = vpack.c.b16 %v4156, %v4152
        %v5433 = vpack.c.b16 %v4157, %v4153
        %v5434 = vpack.c.b16 %v4158, %v4154
        %v5435 = vpack.c.b16 %v4163, %v4159
        %v5436 = vpack.c.b16 %v4164, %v4160
        %v5437 = vpack.c.b16 %v4165, %v4161
        %v5438 = vpack.c.b16 %v4166, %v4162
        %v5439 = vpack.c.b16 %v4171, %v4167
        %v5440 = vpack.c.b16 %v4172, %v4168
        %v5441 = vpack.c.b16 %v4173, %v4169
        %v5442 = vpack.c.b16 %v4174, %v4170
        %v5443 = vpack.c.b16 %v4179, %v4175
        %v5444 = vpack.c.b16 %v4180, %v4176
        %v5445 = vpack.c.b16 %v4181, %v4177
        %v5446 = vpack.c.b16 %v4182, %v4178
        %v5447 = vpack.c.b16 %v4187, %v4183
        %v5448 = vpack.c.b16 %v4188, %v4184
        %v5449 = vpack.c.b16 %v4189, %v4185
        %v5450 = vpack.c.b16 %v4190, %v4186
        %v5451 = vpack.c.b16 %v4195, %v4191
        %v5452 = vpack.c.b16 %v4196, %v4192
        %v5453 = vpack.c.b16 %v4197, %v4193
        %v5454 = vpack.c.b16 %v4198, %v4194
        %v5455 = vpack.c.b16 %v4203, %v4199
        %v5456 = vpack.c.b16 %v4204, %v4200
        %v5457 = vpack.c.b16 %v4205, %v4201
        %v5458 = vpack.c.b16 %v4206, %v4202
        %v5459 = vpack.c.b16 %v4211, %v4207
        %v5460 = vpack.c.b16 %v4212, %v4208
        %v5461 = vpack.c.b16 %v4213, %v4209
        %v5462 = vpack.c.b16 %v4214, %v4210
        %v5463 = vpack.c.b16 %v4219, %v4215
        %v5464 = vpack.c.b16 %v4220, %v4216
        %v5465 = vpack.c.b16 %v4221, %v4217
        %v5466 = vpack.c.b16 %v4222, %v4218
        %v5467 = vpack.c.b16 %v4227, %v4223
        %v5468 = vpack.c.b16 %v4228, %v4224
        %v5469 = vpack.c.b16 %v4229, %v4225
        %v5470 = vpack.c.b16 %v4230, %v4226
        %v5471 = vpack.c.b16 %v4235, %v4231
        %v5472 = vpack.c.b16 %v4236, %v4232
        %v5473 = vpack.c.b16 %v4237, %v4233
        %v5474 = vpack.c.b16 %v4238, %v4234
        %v5475 = vpack.c.b16 %v4243, %v4239
        %v5476 = vpack.c.b16 %v4244, %v4240
        %v5477 = vpack.c.b16 %v4245, %v4241
        %v5478 = vpack.c.b16 %v4246, %v4242
        %v5479 = vpack.c.b16 %v4251, %v4247
        %v5480 = vpack.c.b16 %v4252, %v4248
        %v5481 = vpack.c.b16 %v4253, %v4249
        %v5482 = vpack.c.b16 %v4254, %v4250
        %v5483 = vpack.c.b16 %v4259, %v4255
        %v5484 = vpack.c.b16 %v4260, %v4256
        %v5485 = vpack.c.b16 %v4261, %v4257
        %v5486 = vpack.c.b16 %v4262, %v4258
        %v5487 = vpack.c.b16 %v4267, %v4263
        %v5488 = vpack.c.b16 %v4268, %v4264
        %v5489 = vpack.c.b16 %v4269, %v4265
        %v5490 = vpack.c.b16 %v4270, %v4266
        %v5491 = vpack.c.b16 %v4275, %v4271
        %v5492 = vpack.c.b16 %v4276, %v4272
        %v5493 = vpack.c.b16 %v4277, %v4273
        %v5494 = vpack.c.b16 %v4278, %v4274
        %v5495 = vpack.c.b16 %v4283, %v4279
        %v5496 = vpack.c.b16 %v4284, %v4280
        %v5497 = vpack.c.b16 %v4285, %v4281
        %v5498 = vpack.c.b16 %v4286, %v4282
        %v5499 = vpack.c.b16 %v4291, %v4287
        %v5500 = vpack.c.b16 %v4292, %v4288
        %v5501 = vpack.c.b16 %v4293, %v4289
        %v5502 = vpack.c.b16 %v4294, %v4290
        %v5503 = vpack.c.b16 %v4299, %v4295
        %v5504 = vpack.c.b16 %v4300, %v4296
        %v5505 = vpack.c.b16 %v4301, %v4297
        %v5506 = vpack.c.b16 %v4302, %v4298
        %v5507 = vpack.c.b16 %v4307, %v4303
        %v5508 = vpack.c.b16 %v4308, %v4304
        %v5509 = vpack.c.b16 %v4309, %v4305
        %v5510 = vpack.c.b16 %v4310, %v4306
        %v5511 = vpack.c.b16 %v4315, %v4311
        %v5512 = vpack.c.b16 %v4316, %v4312
        %v5513 = vpack.c.b16 %v4317, %v4313
        %v5514 = vpack.c.b16 %v4318, %v4314
        %v5515 = vpack.c.b16 %v4323, %v4319
        %v5516 = vpack.c.b16 %v4324, %v4320
        %v5517 = vpack.c.b16 %v4325, %v4321
        %v5518 = vpack.c.b16 %v4326, %v4322
        %v5519 = vpack.c.b16 %v4331, %v4327
        %v5520 = vpack.c.b16 %v4332, %v4328
        %v5521 = vpack.c.b16 %v4333, %v4329
        %v5522 = vpack.c.b16 %v4334, %v4330
        %v5523 = vpack.c.b16 %v4339, %v4335
        %v5524 = vpack.c.b16 %v4340, %v4336
        %v5525 = vpack.c.b16 %v4341, %v4337
        %v5526 = vpack.c.b16 %v4342, %v4338
        %v5527 = vpack.c.b16 %v4347, %v4343
        %v5528 = vpack.c.b16 %v4348, %v4344
        %v5529 = vpack.c.b16 %v4349, %v4345
        %v5530 = vpack.c.b16 %v4350, %v4346
        %v5531 = vpack.c.b16 %v4355, %v4351
        %v5532 = vpack.c.b16 %v4356, %v4352
        %v5533 = vpack.c.b16 %v4357, %v4353
        %v5534 = vpack.c.b16 %v4358, %v4354
        %v5535 = vpack.c.b16 %v4363, %v4359
        %v5536 = vpack.c.b16 %v4364, %v4360
        %v5537 = vpack.c.b16 %v4365, %v4361
        %v5538 = vpack.c.b16 %v4366, %v4362
        %v5539 = vpack.c.b16 %v4371, %v4367
        %v5540 = vpack.c.b16 %v4372, %v4368
        %v5541 = vpack.c.b16 %v4373, %v4369
        %v5542 = vpack.c.b16 %v4374, %v4370
        %v5543 = vpack.c.b16 %v4379, %v4375
        %v5544 = vpack.c.b16 %v4380, %v4376
        %v5545 = vpack.c.b16 %v4381, %v4377
        %v5546 = vpack.c.b16 %v4382, %v4378
        %v5547 = vpack.c.b16 %v4387, %v4383
        %v5548 = vpack.c.b16 %v4388, %v4384
        %v5549 = vpack.c.b16 %v4389, %v4385
        %v5550 = vpack.c.b16 %v4390, %v4386
        %v5551 = vpack.c.b16 %v4395, %v4391
        %v5552 = vpack.c.b16 %v4396, %v4392
        %v5553 = vpack.c.b16 %v4397, %v4393
        %v5554 = vpack.c.b16 %v4398, %v4394
        %v5555 = vpack.c.b16 %v4403, %v4399
        %v5556 = vpack.c.b16 %v4404, %v4400
        %v5557 = vpack.c.b16 %v4405, %v4401
        %v5558 = vpack.c.b16 %v4406, %v4402
        %v5559 = vpack.c.b16 %v4411, %v4407
        %v5560 = vpack.c.b16 %v4412, %v4408
        %v5561 = vpack.c.b16 %v4413, %v4409
        %v5562 = vpack.c.b16 %v4414, %v4410
        %v5563 = vpack.c.b16 %v4419, %v4415
        %v5564 = vpack.c.b16 %v4420, %v4416
        %v5565 = vpack.c.b16 %v4421, %v4417
        %v5566 = vpack.c.b16 %v4422, %v4418
        %v5567 = vpack.c.b16 %v4427, %v4423
        %v5568 = vpack.c.b16 %v4428, %v4424
        %v5569 = vpack.c.b16 %v4429, %v4425
        %v5570 = vpack.c.b16 %v4430, %v4426
        %v5571 = vpack.c.b16 %v4435, %v4431
        %v5572 = vpack.c.b16 %v4436, %v4432
        %v5573 = vpack.c.b16 %v4437, %v4433
        %v5574 = vpack.c.b16 %v4438, %v4434
        %v5575 = vpack.c.b16 %v4443, %v4439
        %v5576 = vpack.c.b16 %v4444, %v4440
        %v5577 = vpack.c.b16 %v4445, %v4441
        %v5578 = vpack.c.b16 %v4446, %v4442
        %v5579 = vpack.c.b16 %v4451, %v4447
        %v5580 = vpack.c.b16 %v4452, %v4448
        %v5581 = vpack.c.b16 %v4453, %v4449
        %v5582 = vpack.c.b16 %v4454, %v4450
        %v5583 = vpack.c.b16 %v4459, %v4455
        %v5584 = vpack.c.b16 %v4460, %v4456
        %v5585 = vpack.c.b16 %v4461, %v4457
        %v5586 = vpack.c.b16 %v4462, %v4458
        %v5587 = vpack.c.b16 %v4467, %v4463
        %v5588 = vpack.c.b16 %v4468, %v4464
        %v5589 = vpack.c.b16 %v4469, %v4465
        %v5590 = vpack.c.b16 %v4470, %v4466
        %v5591 = vpack.c.b16 %v4475, %v4471
        %v5592 = vpack.c.b16 %v4476, %v4472
        %v5593 = vpack.c.b16 %v4477, %v4473
        %v5594 = vpack.c.b16 %v4478, %v4474
        %v5595 = vpack.c.b16 %v4483, %v4479
        %v5596 = vpack.c.b16 %v4484, %v4480
        %v5597 = vpack.c.b16 %v4485, %v4481
        %v5598 = vpack.c.b16 %v4486, %v4482
        %v5599 = vpack.c.b16 %v4491, %v4487
        %v5600 = vpack.c.b16 %v4492, %v4488
        %v5601 = vpack.c.b16 %v4493, %v4489
        %v5602 = vpack.c.b16 %v4494, %v4490
        %v5603 = vpack.c.b16 %v4499, %v4495
        %v5604 = vpack.c.b16 %v4500, %v4496
        %v5605 = vpack.c.b16 %v4501, %v4497
        %v5606 = vpack.c.b16 %v4502, %v4498
        %v5607 = vpack.c.b16 %v4507, %v4503
        %v5608 = vpack.c.b16 %v4508, %v4504
        %v5609 = vpack.c.b16 %v4509, %v4505
        %v5610 = vpack.c.b16 %v4510, %v4506
        %v5611 = vpack.c.b16 %v4515, %v4511
        %v5612 = vpack.c.b16 %v4516, %v4512
        %v5613 = vpack.c.b16 %v4517, %v4513
        %v5614 = vpack.c.b16 %v4518, %v4514
        %v5615 = vpack.c.b16 %v4523, %v4519
        %v5616 = vpack.c.b16 %v4524, %v4520
        %v5617 = vpack.c.b16 %v4525, %v4521
        %v5618 = vpack.c.b16 %v4526, %v4522
        %v5619 = vpack.c.b16 %v4531, %v4527
        %v5620 = vpack.c.b16 %v4532, %v4528
        %v5621 = vpack.c.b16 %v4533, %v4529
        %v5622 = vpack.c.b16 %v4534, %v4530
        %v5623 = vpack.c.b16 %v4539, %v4535
        %v5624 = vpack.c.b16 %v4540, %v4536
        %v5625 = vpack.c.b16 %v4541, %v4537
        %v5626 = vpack.c.b16 %v4542, %v4538
        %v5627 = vpack.c.b16 %v4547, %v4543
        %v5628 = vpack.c.b16 %v4548, %v4544
        %v5629 = vpack.c.b16 %v4549, %v4545
        %v5630 = vpack.c.b16 %v4550, %v4546
        %v5631 = vpack.c.b16 %v4555, %v4551
        %v5632 = vpack.c.b16 %v4556, %v4552
        %v5633 = vpack.c.b16 %v4557, %v4553
        %v5634 = vpack.c.b16 %v4558, %v4554
        %v5635 = vpack.c.b16 %v4563, %v4559
        %v5636 = vpack.c.b16 %v4564, %v4560
        %v5637 = vpack.c.b16 %v4565, %v4561
        %v5638 = vpack.c.b16 %v4566, %v4562
        %v5639 = vpack.c.b16 %v4571, %v4567
        %v5640 = vpack.c.b16 %v4572, %v4568
        %v5641 = vpack.c.b16 %v4573, %v4569
        %v5642 = vpack.c.b16 %v4574, %v4570
        %v5643 = vpack.c.b16 %v4579, %v4575
        %v5644 = vpack.c.b16 %v4580, %v4576
        %v5645 = vpack.c.b16 %v4581, %v4577
        %v5646 = vpack.c.b16 %v4582, %v4578
        %v5647 = vpack.c.b16 %v4587, %v4583
        %v5648 = vpack.c.b16 %v4588, %v4584
        %v5649 = vpack.c.b16 %v4589, %v4585
        %v5650 = vpack.c.b16 %v4590, %v4586
        %v5651 = vpack.c.b16 %v4595, %v4591
        %v5652 = vpack.c.b16 %v4596, %v4592
        %v5653 = vpack.c.b16 %v4597, %v4593
        %v5654 = vpack.c.b16 %v4598, %v4594
        %v5655 = vpack.c.b16 %v4603, %v4599
        %v5656 = vpack.c.b16 %v4604, %v4600
        %v5657 = vpack.c.b16 %v4605, %v4601
        %v5658 = vpack.c.b16 %v4606, %v4602
        %v5659 = vpack.c.b16 %v4611, %v4607
        %v5660 = vpack.c.b16 %v4612, %v4608
        %v5661 = vpack.c.b16 %v4613, %v4609
        %v5662 = vpack.c.b16 %v4614, %v4610
        %v5663 = vpack.c.b16 %v4619, %v4615
        %v5664 = vpack.c.b16 %v4620, %v4616
        %v5665 = vpack.c.b16 %v4621, %v4617
        %v5666 = vpack.c.b16 %v4622, %v4618
        %v5667 = vpack.c.b16 %v4627, %v4623
        %v5668 = vpack.c.b16 %v4628, %v4624
        %v5669 = vpack.c.b16 %v4629, %v4625
        %v5670 = vpack.c.b16 %v4630, %v4626
        %v5671 = vpack.c.b16 %v4635, %v4631
        %v5672 = vpack.c.b16 %v4636, %v4632
        %v5673 = vpack.c.b16 %v4637, %v4633
        %v5674 = vpack.c.b16 %v4638, %v4634
        %v5675 = vpack.c.b16 %v4643, %v4639
        %v5676 = vpack.c.b16 %v4644, %v4640
        %v5677 = vpack.c.b16 %v4645, %v4641
        %v5678 = vpack.c.b16 %v4646, %v4642
        %v5679 = vpack.c.b16 %v4651, %v4647
        %v5680 = vpack.c.b16 %v4652, %v4648
        %v5681 = vpack.c.b16 %v4653, %v4649
        %v5682 = vpack.c.b16 %v4654, %v4650
        %v5683 = vpack.c.b16 %v4659, %v4655
        %v5684 = vpack.c.b16 %v4660, %v4656
        %v5685 = vpack.c.b16 %v4661, %v4657
        %v5686 = vpack.c.b16 %v4662, %v4658
        %6711 = vmatprep.subr.bf16.mxu0 %v4664
        %6712 = vmatpush1.bf16.msra.mxu0 %v4663
        %6713 = vmatprep.subr.bf16.mxu0 %v4668
        %6714 = vmatpush1.bf16.msra.mxu0 %v4667
        %6715 = vmatprep.subr.bf16.mxu0 %v4672
        %6716 = vmatpush1.bf16.msra.mxu0 %v4671
        %6717 = vmatprep.subr.bf16.mxu0 %v4676
        %6718 = vmatpush1.bf16.msra.mxu0 %v4675
        %6719 = vmatprep.subr.bf16.mxu0 %v4680
        %6720 = vmatpush1.bf16.msra.mxu0 %v4679
        %6721 = vmatprep.subr.bf16.mxu0 %v4684
        %6722 = vmatpush1.bf16.msra.mxu0 %v4683
        %6723 = vmatprep.subr.bf16.mxu0 %v4688
        %6724 = vmatpush1.bf16.msra.mxu0 %v4687
        %6725 = vmatprep.subr.bf16.mxu0 %v4692
        %6726 = vmatpush1.bf16.msra.mxu0 %v4691
        %6727 = vmatprep.subr.bf16.mxu0 %v4696
        %6728 = vmatpush1.bf16.msra.mxu0 %v4695
        %6729 = vmatprep.subr.bf16.mxu0 %v4700
        %6730 = vmatpush1.bf16.msra.mxu0 %v4699
        %6731 = vmatprep.subr.bf16.mxu0 %v4704
        %6732 = vmatpush1.bf16.msra.mxu0 %v4703
        %6733 = vmatprep.subr.bf16.mxu0 %v4708
        %6734 = vmatpush1.bf16.msra.mxu0 %v4707
        %6735 = vmatprep.subr.bf16.mxu0 %v4712
        %6736 = vmatpush1.bf16.msra.mxu0 %v4711
        %6737 = vmatprep.subr.bf16.mxu0 %v4716
        %6738 = vmatpush1.bf16.msra.mxu0 %v4715
        %6739 = vmatprep.subr.bf16.mxu0 %v4720
        %6740 = vmatpush1.bf16.msra.mxu0 %v4719
        %6741 = vmatprep.subr.bf16.mxu0 %v4724
        %6742 = vmatpush1.bf16.msra.mxu0 %v4723
        %6743 = vmatprep.mubr.bf16.mxu0 %v536
        %6744 = vmatmul.mubr.bf16.gmra.mrb[0].mxu0 %v535
        %v6745 = vpop.f32.mrb[0].mxu0
        %v6746 = vadd.f32 0.0, %v6745
        %v6747 = vpop.f32.mrb[0].mxu0
        %v6748 = vadd.f32 0.0, %v6747
        %v6749 = vpop.f32.mrb[0].mxu0
        %v6750 = vpop.f32.mrb[0].mxu0
        %6751 = vdwg.mxu0
        %6752 = vmatprep.subr.bf16.mxu0 %v4728
        %6753 = vmatpush1.bf16.msra.mxu0 %v4727
        %6754 = vmatprep.subr.bf16.mxu0 %v4732
        %6755 = vmatpush1.bf16.msra.mxu0 %v4731
        %6756 = vmatprep.subr.bf16.mxu0 %v4736
        %6757 = vmatpush1.bf16.msra.mxu0 %v4735
        %6758 = vmatprep.subr.bf16.mxu0 %v4740
        %6759 = vmatpush1.bf16.msra.mxu0 %v4739
        %6760 = vmatprep.subr.bf16.mxu0 %v4744
        %6761 = vmatpush1.bf16.msra.mxu0 %v4743
        %6762 = vmatprep.subr.bf16.mxu0 %v4748
        %6763 = vmatpush1.bf16.msra.mxu0 %v4747
        %6764 = vmatprep.subr.bf16.mxu0 %v4752
        %6765 = vmatpush1.bf16.msra.mxu0 %v4751
        %6766 = vmatprep.subr.bf16.mxu0 %v4756
        %6767 = vmatpush1.bf16.msra.mxu0 %v4755
        %6768 = vmatprep.subr.bf16.mxu0 %v4760
        %6769 = vmatpush1.bf16.msra.mxu0 %v4759
        %6770 = vmatprep.subr.bf16.mxu0 %v4764
        %6771 = vmatpush1.bf16.msra.mxu0 %v4763
        %6772 = vmatprep.subr.bf16.mxu0 %v4768
        %6773 = vmatpush1.bf16.msra.mxu0 %v4767
        %6774 = vmatprep.subr.bf16.mxu0 %v4772
        %6775 = vmatpush1.bf16.msra.mxu0 %v4771
        %6776 = vmatprep.subr.bf16.mxu0 %v4776
        %6777 = vmatpush1.bf16.msra.mxu0 %v4775
        %6778 = vmatprep.subr.bf16.mxu0 %v4780
        %6779 = vmatpush1.bf16.msra.mxu0 %v4779
        %6780 = vmatprep.subr.bf16.mxu0 %v4784
        %6781 = vmatpush1.bf16.msra.mxu0 %v4783
        %6782 = vmatprep.subr.bf16.mxu0 %v4788
        %6783 = vmatpush1.bf16.msra.mxu0 %v4787
        %6784 = vmatprep.mubr.bf16.mxu0 %v538
        %6785 = vmatmul.mubr.bf16.gmra.mrb[0].mxu0 %v537
        %v6786 = vpop.f32.mrb[0].mxu0
        %v6787 = vadd.f32 %v6746, %v6786
        %v6788 = vpop.f32.mrb[0].mxu0
        %v6789 = vadd.f32 %v6748, %v6788
        %v6790 = vpop.f32.mrb[0].mxu0
        %v6791 = vpop.f32.mrb[0].mxu0
        %6792 = vdwg.mxu0
        %6793 = vmatprep.subr.bf16.mxu0 %v4792
        %6794 = vmatpush1.bf16.msra.mxu0 %v4791
        %6795 = vmatprep.subr.bf16.mxu0 %v4796
        %6796 = vmatpush1.bf16.msra.mxu0 %v4795
        %6797 = vmatprep.subr.bf16.mxu0 %v4800
        %6798 = vmatpush1.bf16.msra.mxu0 %v4799
        %6799 = vmatprep.subr.bf16.mxu0 %v4804
        %6800 = vmatpush1.bf16.msra.mxu0 %v4803
        %6801 = vmatprep.subr.bf16.mxu0 %v4808
        %6802 = vmatpush1.bf16.msra.mxu0 %v4807
        %6803 = vmatprep.subr.bf16.mxu0 %v4812
        %6804 = vmatpush1.bf16.msra.mxu0 %v4811
        %6805 = vmatprep.subr.bf16.mxu0 %v4816
        %6806 = vmatpush1.bf16.msra.mxu0 %v4815
        %6807 = vmatprep.subr.bf16.mxu0 %v4820
        %6808 = vmatpush1.bf16.msra.mxu0 %v4819
        %6809 = vmatprep.subr.bf16.mxu0 %v4824
        %6810 = vmatpush1.bf16.msra.mxu0 %v4823
        %6811 = vmatprep.subr.bf16.mxu0 %v4828
        %6812 = vmatpush1.bf16.msra.mxu0 %v4827
        %6813 = vmatprep.subr.bf16.mxu0 %v4832
        %6814 = vmatpush1.bf16.msra.mxu0 %v4831
        %6815 = vmatprep.subr.bf16.mxu0 %v4836
        %6816 = vmatpush1.bf16.msra.mxu0 %v4835
        %6817 = vmatprep.subr.bf16.mxu0 %v4840
        %6818 = vmatpush1.bf16.msra.mxu0 %v4839
        %6819 = vmatprep.subr.bf16.mxu0 %v4844
        %6820 = vmatpush1.bf16.msra.mxu0 %v4843
        %6821 = vmatprep.subr.bf16.mxu0 %v4848
        %6822 = vmatpush1.bf16.msra.mxu0 %v4847
        %6823 = vmatprep.subr.bf16.mxu0 %v4852
        %6824 = vmatpush1.bf16.msra.mxu0 %v4851
        %6825 = vmatprep.mubr.bf16.mxu0 %v540
        %6826 = vmatmul.mubr.bf16.gmra.mrb[0].mxu0 %v539
        %v6827 = vpop.f32.mrb[0].mxu0
        %v6828 = vadd.f32 %v6787, %v6827
        %v6829 = vpop.f32.mrb[0].mxu0
        %v6830 = vadd.f32 %v6789, %v6829
        %v6831 = vpop.f32.mrb[0].mxu0
        %v6832 = vpop.f32.mrb[0].mxu0
        %6833 = vdwg.mxu0
        %6834 = vmatprep.subr.bf16.mxu0 %v4856
        %6835 = vmatpush1.bf16.msra.mxu0 %v4855
        %6836 = vmatprep.subr.bf16.mxu0 %v4860
        %6837 = vmatpush1.bf16.msra.mxu0 %v4859
        %6838 = vmatprep.subr.bf16.mxu0 %v4864
        %6839 = vmatpush1.bf16.msra.mxu0 %v4863
        %6840 = vmatprep.subr.bf16.mxu0 %v4868
        %6841 = vmatpush1.bf16.msra.mxu0 %v4867
        %6842 = vmatprep.subr.bf16.mxu0 %v4872
        %6843 = vmatpush1.bf16.msra.mxu0 %v4871
        %6844 = vmatprep.subr.bf16.mxu0 %v4876
        %6845 = vmatpush1.bf16.msra.mxu0 %v4875
        %6846 = vmatprep.subr.bf16.mxu0 %v4880
        %6847 = vmatpush1.bf16.msra.mxu0 %v4879
        %6848 = vmatprep.subr.bf16.mxu0 %v4884
        %6849 = vmatpush1.bf16.msra.mxu0 %v4883
        %6850 = vmatprep.subr.bf16.mxu0 %v4888
        %6851 = vmatpush1.bf16.msra.mxu0 %v4887
        %6852 = vmatprep.subr.bf16.mxu0 %v4892
        %6853 = vmatpush1.bf16.msra.mxu0 %v4891
        %6854 = vmatprep.subr.bf16.mxu0 %v4896
        %6855 = vmatpush1.bf16.msra.mxu0 %v4895
        %6856 = vmatprep.subr.bf16.mxu0 %v4900
        %6857 = vmatpush1.bf16.msra.mxu0 %v4899
        %6858 = vmatprep.subr.bf16.mxu0 %v4904
        %6859 = vmatpush1.bf16.msra.mxu0 %v4903
        %6860 = vmatprep.subr.bf16.mxu0 %v4908
        %6861 = vmatpush1.bf16.msra.mxu0 %v4907
        %6862 = vmatprep.subr.bf16.mxu0 %v4912
        %6863 = vmatpush1.bf16.msra.mxu0 %v4911
        %6864 = vmatprep.subr.bf16.mxu0 %v4916
        %6865 = vmatpush1.bf16.msra.mxu0 %v4915
        %6866 = vmatprep.mubr.bf16.mxu0 %v542
        %6867 = vmatmul.mubr.bf16.gmra.mrb[0].mxu0 %v541
        %v6868 = vpop.f32.mrb[0].mxu0
        %v6869 = vadd.f32 %v6828, %v6868
        %v6870 = vpop.f32.mrb[0].mxu0
        %v6871 = vadd.f32 %v6830, %v6870
        %v6872 = vpop.f32.mrb[0].mxu0
        %v6873 = vpop.f32.mrb[0].mxu0
        %6874 = vdwg.mxu0
        %6875 = vmatprep.subr.bf16.mxu0 %v4920
        %6876 = vmatpush1.bf16.msra.mxu0 %v4919
        %6877 = vmatprep.subr.bf16.mxu0 %v4924
        %6878 = vmatpush1.bf16.msra.mxu0 %v4923
        %6879 = vmatprep.subr.bf16.mxu0 %v4928
        %6880 = vmatpush1.bf16.msra.mxu0 %v4927
        %6881 = vmatprep.subr.bf16.mxu0 %v4932
        %6882 = vmatpush1.bf16.msra.mxu0 %v4931
        %6883 = vmatprep.subr.bf16.mxu0 %v4936
        %6884 = vmatpush1.bf16.msra.mxu0 %v4935
        %6885 = vmatprep.subr.bf16.mxu0 %v4940
        %6886 = vmatpush1.bf16.msra.mxu0 %v4939
        %6887 = vmatprep.subr.bf16.mxu0 %v4944
        %6888 = vmatpush1.bf16.msra.mxu0 %v4943
        %6889 = vmatprep.subr.bf16.mxu0 %v4948
        %6890 = vmatpush1.bf16.msra.mxu0 %v4947
        %6891 = vmatprep.subr.bf16.mxu0 %v4952
        %6892 = vmatpush1.bf16.msra.mxu0 %v4951
        %6893 = vmatprep.subr.bf16.mxu0 %v4956
        %6894 = vmatpush1.bf16.msra.mxu0 %v4955
        %6895 = vmatprep.subr.bf16.mxu0 %v4960
        %6896 = vmatpush1.bf16.msra.mxu0 %v4959
        %6897 = vmatprep.subr.bf16.mxu0 %v4964
        %6898 = vmatpush1.bf16.msra.mxu0 %v4963
        %6899 = vmatprep.subr.bf16.mxu0 %v4968
        %6900 = vmatpush1.bf16.msra.mxu0 %v4967
        %6901 = vmatprep.subr.bf16.mxu0 %v4972
        %6902 = vmatpush1.bf16.msra.mxu0 %v4971
        %6903 = vmatprep.subr.bf16.mxu0 %v4976
        %6904 = vmatpush1.bf16.msra.mxu0 %v4975
        %6905 = vmatprep.subr.bf16.mxu0 %v4980
        %6906 = vmatpush1.bf16.msra.mxu0 %v4979
        %6907 = vmatprep.mubr.bf16.mxu0 %v544
        %6908 = vmatmul.mubr.bf16.gmra.mrb[0].mxu0 %v543
        %v6909 = vpop.f32.mrb[0].mxu0
        %v6910 = vadd.f32 %v6869, %v6909
        %v6911 = vpop.f32.mrb[0].mxu0
        %v6912 = vadd.f32 %v6871, %v6911
        %v6913 = vpop.f32.mrb[0].mxu0
        %v6914 = vpop.f32.mrb[0].mxu0
        %6915 = vdwg.mxu0
        %6916 = vmatprep.subr.bf16.mxu0 %v4984
        %6917 = vmatpush1.bf16.msra.mxu0 %v4983
        %6918 = vmatprep.subr.bf16.mxu0 %v4988
        %6919 = vmatpush1.bf16.msra.mxu0 %v4987
        %6920 = vmatprep.subr.bf16.mxu0 %v4992
        %6921 = vmatpush1.bf16.msra.mxu0 %v4991
        %6922 = vmatprep.subr.bf16.mxu0 %v4996
        %6923 = vmatpush1.bf16.msra.mxu0 %v4995
        %6924 = vmatprep.subr.bf16.mxu0 %v5000
        %6925 = vmatpush1.bf16.msra.mxu0 %v4999
        %6926 = vmatprep.subr.bf16.mxu0 %v5004
        %6927 = vmatpush1.bf16.msra.mxu0 %v5003
        %6928 = vmatprep.subr.bf16.mxu0 %v5008
        %6929 = vmatpush1.bf16.msra.mxu0 %v5007
        %6930 = vmatprep.subr.bf16.mxu0 %v5012
        %6931 = vmatpush1.bf16.msra.mxu0 %v5011
        %6932 = vmatprep.subr.bf16.mxu0 %v5016
        %6933 = vmatpush1.bf16.msra.mxu0 %v5015
        %6934 = vmatprep.subr.bf16.mxu0 %v5020
        %6935 = vmatpush1.bf16.msra.mxu0 %v5019
        %6936 = vmatprep.subr.bf16.mxu0 %v5024
        %6937 = vmatpush1.bf16.msra.mxu0 %v5023
        %6938 = vmatprep.subr.bf16.mxu0 %v5028
        %6939 = vmatpush1.bf16.msra.mxu0 %v5027
        %6940 = vmatprep.subr.bf16.mxu0 %v5032
        %6941 = vmatpush1.bf16.msra.mxu0 %v5031
        %6942 = vmatprep.subr.bf16.mxu0 %v5036
        %6943 = vmatpush1.bf16.msra.mxu0 %v5035
        %6944 = vmatprep.subr.bf16.mxu0 %v5040
        %6945 = vmatpush1.bf16.msra.mxu0 %v5039
        %6946 = vmatprep.subr.bf16.mxu0 %v5044
        %6947 = vmatpush1.bf16.msra.mxu0 %v5043
        %6948 = vmatprep.mubr.bf16.mxu0 %v546
        %6949 = vmatmul.mubr.bf16.gmra.mrb[0].mxu0 %v545
        %v6950 = vpop.f32.mrb[0].mxu0
        %v6951 = vadd.f32 %v6910, %v6950
        %v6952 = vpop.f32.mrb[0].mxu0
        %v6953 = vadd.f32 %v6912, %v6952
        %v6954 = vpop.f32.mrb[0].mxu0
        %v6955 = vpop.f32.mrb[0].mxu0
        %6956 = vdwg.mxu0
        %6957 = vmatprep.subr.bf16.mxu0 %v5048
        %6958 = vmatpush1.bf16.msra.mxu0 %v5047
        %6959 = vmatprep.subr.bf16.mxu0 %v5052
        %6960 = vmatpush1.bf16.msra.mxu0 %v5051
        %6961 = vmatprep.subr.bf16.mxu0 %v5056
        %6962 = vmatpush1.bf16.msra.mxu0 %v5055
        %6963 = vmatprep.subr.bf16.mxu0 %v5060
        %6964 = vmatpush1.bf16.msra.mxu0 %v5059
        %6965 = vmatprep.subr.bf16.mxu0 %v5064
        %6966 = vmatpush1.bf16.msra.mxu0 %v5063
        %6967 = vmatprep.subr.bf16.mxu0 %v5068
        %6968 = vmatpush1.bf16.msra.mxu0 %v5067
        %6969 = vmatprep.subr.bf16.mxu0 %v5072
        %6970 = vmatpush1.bf16.msra.mxu0 %v5071
        %6971 = vmatprep.subr.bf16.mxu0 %v5076
        %6972 = vmatpush1.bf16.msra.mxu0 %v5075
        %6973 = vmatprep.subr.bf16.mxu0 %v5080
        %6974 = vmatpush1.bf16.msra.mxu0 %v5079
        %6975 = vmatprep.subr.bf16.mxu0 %v5084
        %6976 = vmatpush1.bf16.msra.mxu0 %v5083
        %6977 = vmatprep.subr.bf16.mxu0 %v5088
        %6978 = vmatpush1.bf16.msra.mxu0 %v5087
        %6979 = vmatprep.subr.bf16.mxu0 %v5092
        %6980 = vmatpush1.bf16.msra.mxu0 %v5091
        %6981 = vmatprep.subr.bf16.mxu0 %v5096
        %6982 = vmatpush1.bf16.msra.mxu0 %v5095
        %6983 = vmatprep.subr.bf16.mxu0 %v5100
        %6984 = vmatpush1.bf16.msra.mxu0 %v5099
        %6985 = vmatprep.subr.bf16.mxu0 %v5104
        %6986 = vmatpush1.bf16.msra.mxu0 %v5103
        %6987 = vmatprep.subr.bf16.mxu0 %v5108
        %6988 = vmatpush1.bf16.msra.mxu0 %v5107
        %6989 = vmatprep.mubr.bf16.mxu0 %v548
        %6990 = vmatmul.mubr.bf16.gmra.mrb[0].mxu0 %v547
        %v6991 = vpop.f32.mrb[0].mxu0
        %v6992 = vadd.f32 %v6951, %v6991
        %v6993 = vpop.f32.mrb[0].mxu0
        %v6994 = vadd.f32 %v6953, %v6993
        %v6995 = vpop.f32.mrb[0].mxu0
        %v6996 = vpop.f32.mrb[0].mxu0
        %6997 = vdwg.mxu0
        %6998 = vmatprep.subr.bf16.mxu0 %v5112
        %6999 = vmatpush1.bf16.msra.mxu0 %v5111
        %7000 = vmatprep.subr.bf16.mxu0 %v5116
        %7001 = vmatpush1.bf16.msra.mxu0 %v5115
        %7002 = vmatprep.subr.bf16.mxu0 %v5120
        %7003 = vmatpush1.bf16.msra.mxu0 %v5119
        %7004 = vmatprep.subr.bf16.mxu0 %v5124
        %7005 = vmatpush1.bf16.msra.mxu0 %v5123
        %7006 = vmatprep.subr.bf16.mxu0 %v5128
        %7007 = vmatpush1.bf16.msra.mxu0 %v5127
        %7008 = vmatprep.subr.bf16.mxu0 %v5132
        %7009 = vmatpush1.bf16.msra.mxu0 %v5131
        %7010 = vmatprep.subr.bf16.mxu0 %v5136
        %7011 = vmatpush1.bf16.msra.mxu0 %v5135
        %7012 = vmatprep.subr.bf16.mxu0 %v5140
        %7013 = vmatpush1.bf16.msra.mxu0 %v5139
        %7014 = vmatprep.subr.bf16.mxu0 %v5144
        %7015 = vmatpush1.bf16.msra.mxu0 %v5143
        %7016 = vmatprep.subr.bf16.mxu0 %v5148
        %7017 = vmatpush1.bf16.msra.mxu0 %v5147
        %7018 = vmatprep.subr.bf16.mxu0 %v5152
        %7019 = vmatpush1.bf16.msra.mxu0 %v5151
        %7020 = vmatprep.subr.bf16.mxu0 %v5156
        %7021 = vmatpush1.bf16.msra.mxu0 %v5155
        %7022 = vmatprep.subr.bf16.mxu0 %v5160
        %7023 = vmatpush1.bf16.msra.mxu0 %v5159
        %7024 = vmatprep.subr.bf16.mxu0 %v5164
        %7025 = vmatpush1.bf16.msra.mxu0 %v5163
        %7026 = vmatprep.subr.bf16.mxu0 %v5168
        %7027 = vmatpush1.bf16.msra.mxu0 %v5167
        %7028 = vmatprep.subr.bf16.mxu0 %v5172
        %7029 = vmatpush1.bf16.msra.mxu0 %v5171
        %7030 = vmatprep.mubr.bf16.mxu0 %v550
        %7031 = vmatmul.mubr.bf16.gmra.mrb[0].mxu0 %v549
        %v7032 = vpop.f32.mrb[0].mxu0
        %v7033 = vadd.f32 %v6992, %v7032
        %v7034 = vpop.f32.mrb[0].mxu0
        %v7035 = vadd.f32 %v6994, %v7034
        %v7036 = vpop.f32.mrb[0].mxu0
        %v7037 = vpop.f32.mrb[0].mxu0
        %7038 = vdwg.mxu0
        %7039 = vmatprep.subr.bf16.mxu0 %v5176
        %7040 = vmatpush1.bf16.msra.mxu0 %v5175
        %7041 = vmatprep.subr.bf16.mxu0 %v5180
        %7042 = vmatpush1.bf16.msra.mxu0 %v5179
        %7043 = vmatprep.subr.bf16.mxu0 %v5184
        %7044 = vmatpush1.bf16.msra.mxu0 %v5183
        %7045 = vmatprep.subr.bf16.mxu0 %v5188
        %7046 = vmatpush1.bf16.msra.mxu0 %v5187
        %7047 = vmatprep.subr.bf16.mxu0 %v5192
        %7048 = vmatpush1.bf16.msra.mxu0 %v5191
        %7049 = vmatprep.subr.bf16.mxu0 %v5196
        %7050 = vmatpush1.bf16.msra.mxu0 %v5195
        %7051 = vmatprep.subr.bf16.mxu0 %v5200
        %7052 = vmatpush1.bf16.msra.mxu0 %v5199
        %7053 = vmatprep.subr.bf16.mxu0 %v5204
        %7054 = vmatpush1.bf16.msra.mxu0 %v5203
        %7055 = vmatprep.subr.bf16.mxu0 %v5208
        %7056 = vmatpush1.bf16.msra.mxu0 %v5207
        %7057 = vmatprep.subr.bf16.mxu0 %v5212
        %7058 = vmatpush1.bf16.msra.mxu0 %v5211
        %7059 = vmatprep.subr.bf16.mxu0 %v5216
        %7060 = vmatpush1.bf16.msra.mxu0 %v5215
        %7061 = vmatprep.subr.bf16.mxu0 %v5220
        %7062 = vmatpush1.bf16.msra.mxu0 %v5219
        %7063 = vmatprep.subr.bf16.mxu0 %v5224
        %7064 = vmatpush1.bf16.msra.mxu0 %v5223
        %7065 = vmatprep.subr.bf16.mxu0 %v5228
        %7066 = vmatpush1.bf16.msra.mxu0 %v5227
        %7067 = vmatprep.subr.bf16.mxu0 %v5232
        %7068 = vmatpush1.bf16.msra.mxu0 %v5231
        %7069 = vmatprep.subr.bf16.mxu0 %v5236
        %7070 = vmatpush1.bf16.msra.mxu0 %v5235
        %7071 = vmatprep.mubr.bf16.mxu0 %v552
        %7072 = vmatmul.mubr.bf16.gmra.mrb[0].mxu0 %v551
        %v7073 = vpop.f32.mrb[0].mxu0
        %v7074 = vadd.f32 %v7033, %v7073
        %v7075 = vpop.f32.mrb[0].mxu0
        %v7076 = vadd.f32 %v7035, %v7075
        %v7077 = vpop.f32.mrb[0].mxu0
        %v7078 = vpop.f32.mrb[0].mxu0
        %7079 = vdwg.mxu0
        %7080 = vmatprep.subr.bf16.mxu0 %v5240
        %7081 = vmatpush1.bf16.msra.mxu0 %v5239
        %7082 = vmatprep.subr.bf16.mxu0 %v5244
        %7083 = vmatpush1.bf16.msra.mxu0 %v5243
        %7084 = vmatprep.subr.bf16.mxu0 %v5248
        %7085 = vmatpush1.bf16.msra.mxu0 %v5247
        %7086 = vmatprep.subr.bf16.mxu0 %v5252
        %7087 = vmatpush1.bf16.msra.mxu0 %v5251
        %7088 = vmatprep.subr.bf16.mxu0 %v5256
        %7089 = vmatpush1.bf16.msra.mxu0 %v5255
        %7090 = vmatprep.subr.bf16.mxu0 %v5260
        %7091 = vmatpush1.bf16.msra.mxu0 %v5259
        %7092 = vmatprep.subr.bf16.mxu0 %v5264
        %7093 = vmatpush1.bf16.msra.mxu0 %v5263
        %7094 = vmatprep.subr.bf16.mxu0 %v5268
        %7095 = vmatpush1.bf16.msra.mxu0 %v5267
        %7096 = vmatprep.subr.bf16.mxu0 %v5272
        %7097 = vmatpush1.bf16.msra.mxu0 %v5271
        %7098 = vmatprep.subr.bf16.mxu0 %v5276
        %7099 = vmatpush1.bf16.msra.mxu0 %v5275
        %7100 = vmatprep.subr.bf16.mxu0 %v5280
        %7101 = vmatpush1.bf16.msra.mxu0 %v5279
        %7102 = vmatprep.subr.bf16.mxu0 %v5284
        %7103 = vmatpush1.bf16.msra.mxu0 %v5283
        %7104 = vmatprep.subr.bf16.mxu0 %v5288
        %7105 = vmatpush1.bf16.msra.mxu0 %v5287
        %7106 = vmatprep.subr.bf16.mxu0 %v5292
        %7107 = vmatpush1.bf16.msra.mxu0 %v5291
        %7108 = vmatprep.subr.bf16.mxu0 %v5296
        %7109 = vmatpush1.bf16.msra.mxu0 %v5295
        %7110 = vmatprep.subr.bf16.mxu0 %v5300
        %7111 = vmatpush1.bf16.msra.mxu0 %v5299
        %7112 = vmatprep.mubr.bf16.mxu0 %v554
        %7113 = vmatmul.mubr.bf16.gmra.mrb[0].mxu0 %v553
        %v7114 = vpop.f32.mrb[0].mxu0
        %v7115 = vadd.f32 %v7074, %v7114
        %v7116 = vpop.f32.mrb[0].mxu0
        %v7117 = vadd.f32 %v7076, %v7116
        %v7118 = vpop.f32.mrb[0].mxu0
        %v7119 = vpop.f32.mrb[0].mxu0
        %7120 = vdwg.mxu0
        %7121 = vmatprep.subr.bf16.mxu0 %v5304
        %7122 = vmatpush1.bf16.msra.mxu0 %v5303
        %7123 = vmatprep.subr.bf16.mxu0 %v5308
        %7124 = vmatpush1.bf16.msra.mxu0 %v5307
        %7125 = vmatprep.subr.bf16.mxu0 %v5312
        %7126 = vmatpush1.bf16.msra.mxu0 %v5311
        %7127 = vmatprep.subr.bf16.mxu0 %v5316
        %7128 = vmatpush1.bf16.msra.mxu0 %v5315
        %7129 = vmatprep.subr.bf16.mxu0 %v5320
        %7130 = vmatpush1.bf16.msra.mxu0 %v5319
        %7131 = vmatprep.subr.bf16.mxu0 %v5324
        %7132 = vmatpush1.bf16.msra.mxu0 %v5323
        %7133 = vmatprep.subr.bf16.mxu0 %v5328
        %7134 = vmatpush1.bf16.msra.mxu0 %v5327
        %7135 = vmatprep.subr.bf16.mxu0 %v5332
        %7136 = vmatpush1.bf16.msra.mxu0 %v5331
        %7137 = vmatprep.subr.bf16.mxu0 %v5336
        %7138 = vmatpush1.bf16.msra.mxu0 %v5335
        %7139 = vmatprep.subr.bf16.mxu0 %v5340
        %7140 = vmatpush1.bf16.msra.mxu0 %v5339
        %7141 = vmatprep.subr.bf16.mxu0 %v5344
        %7142 = vmatpush1.bf16.msra.mxu0 %v5343
        %7143 = vmatprep.subr.bf16.mxu0 %v5348
        %7144 = vmatpush1.bf16.msra.mxu0 %v5347
        %7145 = vmatprep.subr.bf16.mxu0 %v5352
        %7146 = vmatpush1.bf16.msra.mxu0 %v5351
        %7147 = vmatprep.subr.bf16.mxu0 %v5356
        %7148 = vmatpush1.bf16.msra.mxu0 %v5355
        %7149 = vmatprep.subr.bf16.mxu0 %v5360
        %7150 = vmatpush1.bf16.msra.mxu0 %v5359
        %7151 = vmatprep.subr.bf16.mxu0 %v5364
        %7152 = vmatpush1.bf16.msra.mxu0 %v5363
        %7153 = vmatprep.mubr.bf16.mxu0 %v556
        %7154 = vmatmul.mubr.bf16.gmra.mrb[0].mxu0 %v555
        %v7155 = vpop.f32.mrb[0].mxu0
        %v7156 = vadd.f32 %v7115, %v7155
        %v7157 = vpop.f32.mrb[0].mxu0
        %v7158 = vadd.f32 %v7117, %v7157
        %v7159 = vpop.f32.mrb[0].mxu0
        %v7160 = vpop.f32.mrb[0].mxu0
        %7161 = vdwg.mxu0
        %7162 = vmatprep.subr.bf16.mxu0 %v5368
        %7163 = vmatpush1.bf16.msra.mxu0 %v5367
        %7164 = vmatprep.subr.bf16.mxu0 %v5372
        %7165 = vmatpush1.bf16.msra.mxu0 %v5371
        %7166 = vmatprep.subr.bf16.mxu0 %v5376
        %7167 = vmatpush1.bf16.msra.mxu0 %v5375
        %7168 = vmatprep.subr.bf16.mxu0 %v5380
        %7169 = vmatpush1.bf16.msra.mxu0 %v5379
        %7170 = vmatprep.subr.bf16.mxu0 %v5384
        %7171 = vmatpush1.bf16.msra.mxu0 %v5383
        %7172 = vmatprep.subr.bf16.mxu0 %v5388
        %7173 = vmatpush1.bf16.msra.mxu0 %v5387
        %7174 = vmatprep.subr.bf16.mxu0 %v5392
        %7175 = vmatpush1.bf16.msra.mxu0 %v5391
        %7176 = vmatprep.subr.bf16.mxu0 %v5396
        %7177 = vmatpush1.bf16.msra.mxu0 %v5395
        %7178 = vmatprep.subr.bf16.mxu0 %v5400
        %7179 = vmatpush1.bf16.msra.mxu0 %v5399
        %7180 = vmatprep.subr.bf16.mxu0 %v5404
        %7181 = vmatpush1.bf16.msra.mxu0 %v5403
        %7182 = vmatprep.subr.bf16.mxu0 %v5408
        %7183 = vmatpush1.bf16.msra.mxu0 %v5407
        %7184 = vmatprep.subr.bf16.mxu0 %v5412
        %7185 = vmatpush1.bf16.msra.mxu0 %v5411
        %7186 = vmatprep.subr.bf16.mxu0 %v5416
        %7187 = vmatpush1.bf16.msra.mxu0 %v5415
        %7188 = vmatprep.subr.bf16.mxu0 %v5420
        %7189 = vmatpush1.bf16.msra.mxu0 %v5419
        %7190 = vmatprep.subr.bf16.mxu0 %v5424
        %7191 = vmatpush1.bf16.msra.mxu0 %v5423
        %7192 = vmatprep.subr.bf16.mxu0 %v5428
        %7193 = vmatpush1.bf16.msra.mxu0 %v5427
        %7194 = vmatprep.mubr.bf16.mxu0 %v558
        %7195 = vmatmul.mubr.bf16.gmra.mrb[0].mxu0 %v557
        %v7196 = vpop.f32.mrb[0].mxu0
        %v7197 = vadd.f32 %v7156, %v7196
        %v7198 = vpop.f32.mrb[0].mxu0
        %v7199 = vadd.f32 %v7158, %v7198
        %v7200 = vpop.f32.mrb[0].mxu0
        %v7201 = vpop.f32.mrb[0].mxu0
        %7202 = vdwg.mxu0
        %7203 = vmatprep.subr.bf16.mxu0 %v5432
        %7204 = vmatpush1.bf16.msra.mxu0 %v5431
        %7205 = vmatprep.subr.bf16.mxu0 %v5436
        %7206 = vmatpush1.bf16.msra.mxu0 %v5435
        %7207 = vmatprep.subr.bf16.mxu0 %v5440
        %7208 = vmatpush1.bf16.msra.mxu0 %v5439
        %7209 = vmatprep.subr.bf16.mxu0 %v5444
        %7210 = vmatpush1.bf16.msra.mxu0 %v5443
        %7211 = vmatprep.subr.bf16.mxu0 %v5448
        %7212 = vmatpush1.bf16.msra.mxu0 %v5447
        %7213 = vmatprep.subr.bf16.mxu0 %v5452
        %7214 = vmatpush1.bf16.msra.mxu0 %v5451
        %7215 = vmatprep.subr.bf16.mxu0 %v5456
        %7216 = vmatpush1.bf16.msra.mxu0 %v5455
        %7217 = vmatprep.subr.bf16.mxu0 %v5460
        %7218 = vmatpush1.bf16.msra.mxu0 %v5459
        %7219 = vmatprep.subr.bf16.mxu0 %v5464
        %7220 = vmatpush1.bf16.msra.mxu0 %v5463
        %7221 = vmatprep.subr.bf16.mxu0 %v5468
        %7222 = vmatpush1.bf16.msra.mxu0 %v5467
        %7223 = vmatprep.subr.bf16.mxu0 %v5472
        %7224 = vmatpush1.bf16.msra.mxu0 %v5471
        %7225 = vmatprep.subr.bf16.mxu0 %v5476
        %7226 = vmatpush1.bf16.msra.mxu0 %v5475
        %7227 = vmatprep.subr.bf16.mxu0 %v5480
        %7228 = vmatpush1.bf16.msra.mxu0 %v5479
        %7229 = vmatprep.subr.bf16.mxu0 %v5484
        %7230 = vmatpush1.bf16.msra.mxu0 %v5483
        %7231 = vmatprep.subr.bf16.mxu0 %v5488
        %7232 = vmatpush1.bf16.msra.mxu0 %v5487
        %7233 = vmatprep.subr.bf16.mxu0 %v5492
        %7234 = vmatpush1.bf16.msra.mxu0 %v5491
        %7235 = vmatprep.mubr.bf16.mxu0 %v560
        %7236 = vmatmul.mubr.bf16.gmra.mrb[0].mxu0 %v559
        %v7237 = vpop.f32.mrb[0].mxu0
        %v7238 = vadd.f32 %v7197, %v7237
        %v7239 = vpop.f32.mrb[0].mxu0
        %v7240 = vadd.f32 %v7199, %v7239
        %v7241 = vpop.f32.mrb[0].mxu0
        %v7242 = vpop.f32.mrb[0].mxu0
        %7243 = vdwg.mxu0
        %7244 = vmatprep.subr.bf16.mxu0 %v5496
        %7245 = vmatpush1.bf16.msra.mxu0 %v5495
        %7246 = vmatprep.subr.bf16.mxu0 %v5500
        %7247 = vmatpush1.bf16.msra.mxu0 %v5499
        %7248 = vmatprep.subr.bf16.mxu0 %v5504
        %7249 = vmatpush1.bf16.msra.mxu0 %v5503
        %7250 = vmatprep.subr.bf16.mxu0 %v5508
        %7251 = vmatpush1.bf16.msra.mxu0 %v5507
        %7252 = vmatprep.subr.bf16.mxu0 %v5512
        %7253 = vmatpush1.bf16.msra.mxu0 %v5511
        %7254 = vmatprep.subr.bf16.mxu0 %v5516
        %7255 = vmatpush1.bf16.msra.mxu0 %v5515
        %7256 = vmatprep.subr.bf16.mxu0 %v5520
        %7257 = vmatpush1.bf16.msra.mxu0 %v5519
        %7258 = vmatprep.subr.bf16.mxu0 %v5524
        %7259 = vmatpush1.bf16.msra.mxu0 %v5523
        %7260 = vmatprep.subr.bf16.mxu0 %v5528
        %7261 = vmatpush1.bf16.msra.mxu0 %v5527
        %7262 = vmatprep.subr.bf16.mxu0 %v5532
        %7263 = vmatpush1.bf16.msra.mxu0 %v5531
        %7264 = vmatprep.subr.bf16.mxu0 %v5536
        %7265 = vmatpush1.bf16.msra.mxu0 %v5535
        %7266 = vmatprep.subr.bf16.mxu0 %v5540
        %7267 = vmatpush1.bf16.msra.mxu0 %v5539
        %7268 = vmatprep.subr.bf16.mxu0 %v5544
        %7269 = vmatpush1.bf16.msra.mxu0 %v5543
        %7270 = vmatprep.subr.bf16.mxu0 %v5548
        %7271 = vmatpush1.bf16.msra.mxu0 %v5547
        %7272 = vmatprep.subr.bf16.mxu0 %v5552
        %7273 = vmatpush1.bf16.msra.mxu0 %v5551
        %7274 = vmatprep.subr.bf16.mxu0 %v5556
        %7275 = vmatpush1.bf16.msra.mxu0 %v5555
        %7276 = vmatprep.mubr.bf16.mxu0 %v562
        %7277 = vmatmul.mubr.bf16.gmra.mrb[0].mxu0 %v561
        %v7278 = vpop.f32.mrb[0].mxu0
        %v7279 = vadd.f32 %v7238, %v7278
        %v7280 = vpop.f32.mrb[0].mxu0
        %v7281 = vadd.f32 %v7240, %v7280
        %v7282 = vpop.f32.mrb[0].mxu0
        %v7283 = vpop.f32.mrb[0].mxu0
        %7284 = vdwg.mxu0
        %7285 = vmatprep.subr.bf16.mxu0 %v5560
        %7286 = vmatpush1.bf16.msra.mxu0 %v5559
        %7287 = vmatprep.subr.bf16.mxu0 %v5564
        %7288 = vmatpush1.bf16.msra.mxu0 %v5563
        %7289 = vmatprep.subr.bf16.mxu0 %v5568
        %7290 = vmatpush1.bf16.msra.mxu0 %v5567
        %7291 = vmatprep.subr.bf16.mxu0 %v5572
        %7292 = vmatpush1.bf16.msra.mxu0 %v5571
        %7293 = vmatprep.subr.bf16.mxu0 %v5576
        %7294 = vmatpush1.bf16.msra.mxu0 %v5575
        %7295 = vmatprep.subr.bf16.mxu0 %v5580
        %7296 = vmatpush1.bf16.msra.mxu0 %v5579
        %7297 = vmatprep.subr.bf16.mxu0 %v5584
        %7298 = vmatpush1.bf16.msra.mxu0 %v5583
        %7299 = vmatprep.subr.bf16.mxu0 %v5588
        %7300 = vmatpush1.bf16.msra.mxu0 %v5587
        %7301 = vmatprep.subr.bf16.mxu0 %v5592
        %7302 = vmatpush1.bf16.msra.mxu0 %v5591
        %7303 = vmatprep.subr.bf16.mxu0 %v5596
        %7304 = vmatpush1.bf16.msra.mxu0 %v5595
        %7305 = vmatprep.subr.bf16.mxu0 %v5600
        %7306 = vmatpush1.bf16.msra.mxu0 %v5599
        %7307 = vmatprep.subr.bf16.mxu0 %v5604
        %7308 = vmatpush1.bf16.msra.mxu0 %v5603
        %7309 = vmatprep.subr.bf16.mxu0 %v5608
        %7310 = vmatpush1.bf16.msra.mxu0 %v5607
        %7311 = vmatprep.subr.bf16.mxu0 %v5612
        %7312 = vmatpush1.bf16.msra.mxu0 %v5611
        %7313 = vmatprep.subr.bf16.mxu0 %v5616
        %7314 = vmatpush1.bf16.msra.mxu0 %v5615
        %7315 = vmatprep.subr.bf16.mxu0 %v5620
        %7316 = vmatpush1.bf16.msra.mxu0 %v5619
        %7317 = vmatprep.mubr.bf16.mxu0 %v564
        %7318 = vmatmul.mubr.bf16.gmra.mrb[0].mxu0 %v563
        %v7319 = vpop.f32.mrb[0].mxu0
        %v7320 = vadd.f32 %v7279, %v7319
        %v7321 = vpop.f32.mrb[0].mxu0
        %v7322 = vadd.f32 %v7281, %v7321
        %v7323 = vpop.f32.mrb[0].mxu0
        %v7324 = vpop.f32.mrb[0].mxu0
        %7325 = vdwg.mxu0
        %7326 = vmatprep.subr.bf16.mxu0 %v5624
        %7327 = vmatpush1.bf16.msra.mxu0 %v5623
        %7328 = vmatprep.subr.bf16.mxu0 %v5628
        %7329 = vmatpush1.bf16.msra.mxu0 %v5627
        %7330 = vmatprep.subr.bf16.mxu0 %v5632
        %7331 = vmatpush1.bf16.msra.mxu0 %v5631
        %7332 = vmatprep.subr.bf16.mxu0 %v5636
        %7333 = vmatpush1.bf16.msra.mxu0 %v5635
        %7334 = vmatprep.subr.bf16.mxu0 %v5640
        %7335 = vmatpush1.bf16.msra.mxu0 %v5639
        %7336 = vmatprep.subr.bf16.mxu0 %v5644
        %7337 = vmatpush1.bf16.msra.mxu0 %v5643
        %7338 = vmatprep.subr.bf16.mxu0 %v5648
        %7339 = vmatpush1.bf16.msra.mxu0 %v5647
        %7340 = vmatprep.subr.bf16.mxu0 %v5652
        %7341 = vmatpush1.bf16.msra.mxu0 %v5651
        %7342 = vmatprep.subr.bf16.mxu0 %v5656
        %7343 = vmatpush1.bf16.msra.mxu0 %v5655
        %7344 = vmatprep.subr.bf16.mxu0 %v5660
        %7345 = vmatpush1.bf16.msra.mxu0 %v5659
        %7346 = vmatprep.subr.bf16.mxu0 %v5664
        %7347 = vmatpush1.bf16.msra.mxu0 %v5663
        %7348 = vmatprep.subr.bf16.mxu0 %v5668
        %7349 = vmatpush1.bf16.msra.mxu0 %v5667
        %7350 = vmatprep.subr.bf16.mxu0 %v5672
        %7351 = vmatpush1.bf16.msra.mxu0 %v5671
        %7352 = vmatprep.subr.bf16.mxu0 %v5676
        %7353 = vmatpush1.bf16.msra.mxu0 %v5675
        %7354 = vmatprep.subr.bf16.mxu0 %v5680
        %7355 = vmatpush1.bf16.msra.mxu0 %v5679
        %7356 = vmatprep.subr.bf16.mxu0 %v5684
        %7357 = vmatpush1.bf16.msra.mxu0 %v5683
        %7358 = vmatprep.mubr.bf16.mxu0 %v566
        %7359 = vmatmul.mubr.bf16.gmra.mrb[0].mxu0 %v565
        %v7360 = vpop.f32.mrb[0].mxu0
        %v7361 = vadd.f32 %v7320, %v7360
        %v7362 = vpop.f32.mrb[0].mxu0
        %v7363 = vadd.f32 %v7322, %v7362
        %v7364 = vpop.f32.mrb[0].mxu0
        %v7365 = vpop.f32.mrb[0].mxu0
        %7366 = vdwg.mxu0
        %7367 = vmatprep.subr.bf16.mxu0 %v4666
        %7368 = vmatpush1.bf16.msra.mxu0 %v4665
        %7369 = vmatprep.subr.bf16.mxu0 %v4670
        %7370 = vmatpush1.bf16.msra.mxu0 %v4669
        %7371 = vmatprep.subr.bf16.mxu0 %v4674
        %7372 = vmatpush1.bf16.msra.mxu0 %v4673
        %7373 = vmatprep.subr.bf16.mxu0 %v4678
        %7374 = vmatpush1.bf16.msra.mxu0 %v4677
        %7375 = vmatprep.subr.bf16.mxu0 %v4682
        %7376 = vmatpush1.bf16.msra.mxu0 %v4681
        %7377 = vmatprep.subr.bf16.mxu0 %v4686
        %7378 = vmatpush1.bf16.msra.mxu0 %v4685
        %7379 = vmatprep.subr.bf16.mxu0 %v4690
        %7380 = vmatpush1.bf16.msra.mxu0 %v4689
        %7381 = vmatprep.subr.bf16.mxu0 %v4694
        %7382 = vmatpush1.bf16.msra.mxu0 %v4693
        %7383 = vmatprep.subr.bf16.mxu0 %v4698
        %7384 = vmatpush1.bf16.msra.mxu0 %v4697
        %7385 = vmatprep.subr.bf16.mxu0 %v4702
        %7386 = vmatpush1.bf16.msra.mxu0 %v4701
        %7387 = vmatprep.subr.bf16.mxu0 %v4706
        %7388 = vmatpush1.bf16.msra.mxu0 %v4705
        %7389 = vmatprep.subr.bf16.mxu0 %v4710
        %7390 = vmatpush1.bf16.msra.mxu0 %v4709
        %7391 = vmatprep.subr.bf16.mxu0 %v4714
        %7392 = vmatpush1.bf16.msra.mxu0 %v4713
        %7393 = vmatprep.subr.bf16.mxu0 %v4718
        %7394 = vmatpush1.bf16.msra.mxu0 %v4717
        %7395 = vmatprep.subr.bf16.mxu0 %v4722
        %7396 = vmatpush1.bf16.msra.mxu0 %v4721
        %7397 = vmatprep.subr.bf16.mxu0 %v4726
        %7398 = vmatpush1.bf16.msra.mxu0 %v4725
        %7399 = vmatprep.mubr.bf16.mxu0 %v536
        %7400 = vmatmul.mubr.bf16.gmra.mrb[0].mxu0 %v535
        %v7401 = vpop.f32.mrb[0].mxu0
        %v7402 = vadd.f32 0.0, %v7401
        %v7403 = vpop.f32.mrb[0].mxu0
        %v7404 = vadd.f32 0.0, %v7403
        %v7405 = vpop.f32.mrb[0].mxu0
        %v7406 = vpop.f32.mrb[0].mxu0
        %7407 = vdwg.mxu0
        %7408 = vmatprep.subr.bf16.mxu0 %v4730
        %7409 = vmatpush1.bf16.msra.mxu0 %v4729
        %7410 = vmatprep.subr.bf16.mxu0 %v4734
        %7411 = vmatpush1.bf16.msra.mxu0 %v4733
        %7412 = vmatprep.subr.bf16.mxu0 %v4738
        %7413 = vmatpush1.bf16.msra.mxu0 %v4737
        %7414 = vmatprep.subr.bf16.mxu0 %v4742
        %7415 = vmatpush1.bf16.msra.mxu0 %v4741
        %7416 = vmatprep.subr.bf16.mxu0 %v4746
        %7417 = vmatpush1.bf16.msra.mxu0 %v4745
        %7418 = vmatprep.subr.bf16.mxu0 %v4750
        %7419 = vmatpush1.bf16.msra.mxu0 %v4749
        %7420 = vmatprep.subr.bf16.mxu0 %v4754
        %7421 = vmatpush1.bf16.msra.mxu0 %v4753
        %7422 = vmatprep.subr.bf16.mxu0 %v4758
        %7423 = vmatpush1.bf16.msra.mxu0 %v4757
        %7424 = vmatprep.subr.bf16.mxu0 %v4762
        %7425 = vmatpush1.bf16.msra.mxu0 %v4761
        %7426 = vmatprep.subr.bf16.mxu0 %v4766
        %7427 = vmatpush1.bf16.msra.mxu0 %v4765
        %7428 = vmatprep.subr.bf16.mxu0 %v4770
        %7429 = vmatpush1.bf16.msra.mxu0 %v4769
        %7430 = vmatprep.subr.bf16.mxu0 %v4774
        %7431 = vmatpush1.bf16.msra.mxu0 %v4773
        %7432 = vmatprep.subr.bf16.mxu0 %v4778
        %7433 = vmatpush1.bf16.msra.mxu0 %v4777
        %7434 = vmatprep.subr.bf16.mxu0 %v4782
        %7435 = vmatpush1.bf16.msra.mxu0 %v4781
        %7436 = vmatprep.subr.bf16.mxu0 %v4786
        %7437 = vmatpush1.bf16.msra.mxu0 %v4785
        %7438 = vmatprep.subr.bf16.mxu0 %v4790
        %7439 = vmatpush1.bf16.msra.mxu0 %v4789
        %7440 = vmatprep.mubr.bf16.mxu0 %v538
        %7441 = vmatmul.mubr.bf16.gmra.mrb[0].mxu0 %v537
        %v7442 = vpop.f32.mrb[0].mxu0
        %v7443 = vadd.f32 %v7402, %v7442
        %v7444 = vpop.f32.mrb[0].mxu0
        %v7445 = vadd.f32 %v7404, %v7444
        %v7446 = vpop.f32.mrb[0].mxu0
        %v7447 = vpop.f32.mrb[0].mxu0
        %7448 = vdwg.mxu0
        %7449 = vmatprep.subr.bf16.mxu0 %v4794
        %7450 = vmatpush1.bf16.msra.mxu0 %v4793
        %7451 = vmatprep.subr.bf16.mxu0 %v4798
        %7452 = vmatpush1.bf16.msra.mxu0 %v4797
        %7453 = vmatprep.subr.bf16.mxu0 %v4802
        %7454 = vmatpush1.bf16.msra.mxu0 %v4801
        %7455 = vmatprep.subr.bf16.mxu0 %v4806
        %7456 = vmatpush1.bf16.msra.mxu0 %v4805
        %7457 = vmatprep.subr.bf16.mxu0 %v4810
        %7458 = vmatpush1.bf16.msra.mxu0 %v4809
        %7459 = vmatprep.subr.bf16.mxu0 %v4814
        %7460 = vmatpush1.bf16.msra.mxu0 %v4813
        %7461 = vmatprep.subr.bf16.mxu0 %v4818
        %7462 = vmatpush1.bf16.msra.mxu0 %v4817
        %7463 = vmatprep.subr.bf16.mxu0 %v4822
        %7464 = vmatpush1.bf16.msra.mxu0 %v4821
        %7465 = vmatprep.subr.bf16.mxu0 %v4826
        %7466 = vmatpush1.bf16.msra.mxu0 %v4825
        %7467 = vmatprep.subr.bf16.mxu0 %v4830
        %7468 = vmatpush1.bf16.msra.mxu0 %v4829
        %7469 = vmatprep.subr.bf16.mxu0 %v4834
        %7470 = vmatpush1.bf16.msra.mxu0 %v4833
        %7471 = vmatprep.subr.bf16.mxu0 %v4838
        %7472 = vmatpush1.bf16.msra.mxu0 %v4837
        %7473 = vmatprep.subr.bf16.mxu0 %v4842
        %7474 = vmatpush1.bf16.msra.mxu0 %v4841
        %7475 = vmatprep.subr.bf16.mxu0 %v4846
        %7476 = vmatpush1.bf16.msra.mxu0 %v4845
        %7477 = vmatprep.subr.bf16.mxu0 %v4850
        %7478 = vmatpush1.bf16.msra.mxu0 %v4849
        %7479 = vmatprep.subr.bf16.mxu0 %v4854
        %7480 = vmatpush1.bf16.msra.mxu0 %v4853
        %7481 = vmatprep.mubr.bf16.mxu0 %v540
        %7482 = vmatmul.mubr.bf16.gmra.mrb[0].mxu0 %v539
        %v7483 = vpop.f32.mrb[0].mxu0
        %v7484 = vadd.f32 %v7443, %v7483
        %v7485 = vpop.f32.mrb[0].mxu0
        %v7486 = vadd.f32 %v7445, %v7485
        %v7487 = vpop.f32.mrb[0].mxu0
        %v7488 = vpop.f32.mrb[0].mxu0
        %7489 = vdwg.mxu0
        %7490 = vmatprep.subr.bf16.mxu0 %v4858
        %7491 = vmatpush1.bf16.msra.mxu0 %v4857
        %7492 = vmatprep.subr.bf16.mxu0 %v4862
        %7493 = vmatpush1.bf16.msra.mxu0 %v4861
        %7494 = vmatprep.subr.bf16.mxu0 %v4866
        %7495 = vmatpush1.bf16.msra.mxu0 %v4865
        %7496 = vmatprep.subr.bf16.mxu0 %v4870
        %7497 = vmatpush1.bf16.msra.mxu0 %v4869
        %7498 = vmatprep.subr.bf16.mxu0 %v4874
        %7499 = vmatpush1.bf16.msra.mxu0 %v4873
        %7500 = vmatprep.subr.bf16.mxu0 %v4878
        %7501 = vmatpush1.bf16.msra.mxu0 %v4877
        %7502 = vmatprep.subr.bf16.mxu0 %v4882
        %7503 = vmatpush1.bf16.msra.mxu0 %v4881
        %7504 = vmatprep.subr.bf16.mxu0 %v4886
        %7505 = vmatpush1.bf16.msra.mxu0 %v4885
        %7506 = vmatprep.subr.bf16.mxu0 %v4890
        %7507 = vmatpush1.bf16.msra.mxu0 %v4889
        %7508 = vmatprep.subr.bf16.mxu0 %v4894
        %7509 = vmatpush1.bf16.msra.mxu0 %v4893
        %7510 = vmatprep.subr.bf16.mxu0 %v4898
        %7511 = vmatpush1.bf16.msra.mxu0 %v4897
        %7512 = vmatprep.subr.bf16.mxu0 %v4902
        %7513 = vmatpush1.bf16.msra.mxu0 %v4901
        %7514 = vmatprep.subr.bf16.mxu0 %v4906
        %7515 = vmatpush1.bf16.msra.mxu0 %v4905
        %7516 = vmatprep.subr.bf16.mxu0 %v4910
        %7517 = vmatpush1.bf16.msra.mxu0 %v4909
        %7518 = vmatprep.subr.bf16.mxu0 %v4914
        %7519 = vmatpush1.bf16.msra.mxu0 %v4913
        %7520 = vmatprep.subr.bf16.mxu0 %v4918
        %7521 = vmatpush1.bf16.msra.mxu0 %v4917
        %7522 = vmatprep.mubr.bf16.mxu0 %v542
        %7523 = vmatmul.mubr.bf16.gmra.mrb[0].mxu0 %v541
        %v7524 = vpop.f32.mrb[0].mxu0
        %v7525 = vadd.f32 %v7484, %v7524
        %v7526 = vpop.f32.mrb[0].mxu0
        %v7527 = vadd.f32 %v7486, %v7526
        %v7528 = vpop.f32.mrb[0].mxu0
        %v7529 = vpop.f32.mrb[0].mxu0
        %7530 = vdwg.mxu0
        %7531 = vmatprep.subr.bf16.mxu0 %v4922
        %7532 = vmatpush1.bf16.msra.mxu0 %v4921
        %7533 = vmatprep.subr.bf16.mxu0 %v4926
        %7534 = vmatpush1.bf16.msra.mxu0 %v4925
        %7535 = vmatprep.subr.bf16.mxu0 %v4930
        %7536 = vmatpush1.bf16.msra.mxu0 %v4929
        %7537 = vmatprep.subr.bf16.mxu0 %v4934
        %7538 = vmatpush1.bf16.msra.mxu0 %v4933
        %7539 = vmatprep.subr.bf16.mxu0 %v4938
        %7540 = vmatpush1.bf16.msra.mxu0 %v4937
        %7541 = vmatprep.subr.bf16.mxu0 %v4942
        %7542 = vmatpush1.bf16.msra.mxu0 %v4941
        %7543 = vmatprep.subr.bf16.mxu0 %v4946
        %7544 = vmatpush1.bf16.msra.mxu0 %v4945
        %7545 = vmatprep.subr.bf16.mxu0 %v4950
        %7546 = vmatpush1.bf16.msra.mxu0 %v4949
        %7547 = vmatprep.subr.bf16.mxu0 %v4954
        %7548 = vmatpush1.bf16.msra.mxu0 %v4953
        %7549 = vmatprep.subr.bf16.mxu0 %v4958
        %7550 = vmatpush1.bf16.msra.mxu0 %v4957
        %7551 = vmatprep.subr.bf16.mxu0 %v4962
        %7552 = vmatpush1.bf16.msra.mxu0 %v4961
        %7553 = vmatprep.subr.bf16.mxu0 %v4966
        %7554 = vmatpush1.bf16.msra.mxu0 %v4965
        %7555 = vmatprep.subr.bf16.mxu0 %v4970
        %7556 = vmatpush1.bf16.msra.mxu0 %v4969
        %7557 = vmatprep.subr.bf16.mxu0 %v4974
        %7558 = vmatpush1.bf16.msra.mxu0 %v4973
        %7559 = vmatprep.subr.bf16.mxu0 %v4978
        %7560 = vmatpush1.bf16.msra.mxu0 %v4977
        %7561 = vmatprep.subr.bf16.mxu0 %v4982
        %7562 = vmatpush1.bf16.msra.mxu0 %v4981
        %7563 = vmatprep.mubr.bf16.mxu0 %v544
        %7564 = vmatmul.mubr.bf16.gmra.mrb[0].mxu0 %v543
        %v7565 = vpop.f32.mrb[0].mxu0
        %v7566 = vadd.f32 %v7525, %v7565
        %v7567 = vpop.f32.mrb[0].mxu0
        %v7568 = vadd.f32 %v7527, %v7567
        %v7569 = vpop.f32.mrb[0].mxu0
        %v7570 = vpop.f32.mrb[0].mxu0
        %7571 = vdwg.mxu0
        %7572 = vmatprep.subr.bf16.mxu0 %v4986
        %7573 = vmatpush1.bf16.msra.mxu0 %v4985
        %7574 = vmatprep.subr.bf16.mxu0 %v4990
        %7575 = vmatpush1.bf16.msra.mxu0 %v4989
        %7576 = vmatprep.subr.bf16.mxu0 %v4994
        %7577 = vmatpush1.bf16.msra.mxu0 %v4993
        %7578 = vmatprep.subr.bf16.mxu0 %v4998
        %7579 = vmatpush1.bf16.msra.mxu0 %v4997
        %7580 = vmatprep.subr.bf16.mxu0 %v5002
        %7581 = vmatpush1.bf16.msra.mxu0 %v5001
        %7582 = vmatprep.subr.bf16.mxu0 %v5006
        %7583 = vmatpush1.bf16.msra.mxu0 %v5005
        %7584 = vmatprep.subr.bf16.mxu0 %v5010
        %7585 = vmatpush1.bf16.msra.mxu0 %v5009
        %7586 = vmatprep.subr.bf16.mxu0 %v5014
        %7587 = vmatpush1.bf16.msra.mxu0 %v5013
        %7588 = vmatprep.subr.bf16.mxu0 %v5018
        %7589 = vmatpush1.bf16.msra.mxu0 %v5017
        %7590 = vmatprep.subr.bf16.mxu0 %v5022
        %7591 = vmatpush1.bf16.msra.mxu0 %v5021
        %7592 = vmatprep.subr.bf16.mxu0 %v5026
        %7593 = vmatpush1.bf16.msra.mxu0 %v5025
        %7594 = vmatprep.subr.bf16.mxu0 %v5030
        %7595 = vmatpush1.bf16.msra.mxu0 %v5029
        %7596 = vmatprep.subr.bf16.mxu0 %v5034
        %7597 = vmatpush1.bf16.msra.mxu0 %v5033
        %7598 = vmatprep.subr.bf16.mxu0 %v5038
        %7599 = vmatpush1.bf16.msra.mxu0 %v5037
        %7600 = vmatprep.subr.bf16.mxu0 %v5042
        %7601 = vmatpush1.bf16.msra.mxu0 %v5041
        %7602 = vmatprep.subr.bf16.mxu0 %v5046
        %7603 = vmatpush1.bf16.msra.mxu0 %v5045
        %7604 = vmatprep.mubr.bf16.mxu0 %v546
        %7605 = vmatmul.mubr.bf16.gmra.mrb[0].mxu0 %v545
        %v7606 = vpop.f32.mrb[0].mxu0
        %v7607 = vadd.f32 %v7566, %v7606
        %v7608 = vpop.f32.mrb[0].mxu0
        %v7609 = vadd.f32 %v7568, %v7608
        %v7610 = vpop.f32.mrb[0].mxu0
        %v7611 = vpop.f32.mrb[0].mxu0
        %7612 = vdwg.mxu0
        %7613 = vmatprep.subr.bf16.mxu0 %v5050
        %7614 = vmatpush1.bf16.msra.mxu0 %v5049
        %7615 = vmatprep.subr.bf16.mxu0 %v5054
        %7616 = vmatpush1.bf16.msra.mxu0 %v5053
        %7617 = vmatprep.subr.bf16.mxu0 %v5058
        %7618 = vmatpush1.bf16.msra.mxu0 %v5057
        %7619 = vmatprep.subr.bf16.mxu0 %v5062
        %7620 = vmatpush1.bf16.msra.mxu0 %v5061
        %7621 = vmatprep.subr.bf16.mxu0 %v5066
        %7622 = vmatpush1.bf16.msra.mxu0 %v5065
        %7623 = vmatprep.subr.bf16.mxu0 %v5070
        %7624 = vmatpush1.bf16.msra.mxu0 %v5069
        %7625 = vmatprep.subr.bf16.mxu0 %v5074
        %7626 = vmatpush1.bf16.msra.mxu0 %v5073
        %7627 = vmatprep.subr.bf16.mxu0 %v5078
        %7628 = vmatpush1.bf16.msra.mxu0 %v5077
        %7629 = vmatprep.subr.bf16.mxu0 %v5082
        %7630 = vmatpush1.bf16.msra.mxu0 %v5081
        %7631 = vmatprep.subr.bf16.mxu0 %v5086
        %7632 = vmatpush1.bf16.msra.mxu0 %v5085
        %7633 = vmatprep.subr.bf16.mxu0 %v5090
        %7634 = vmatpush1.bf16.msra.mxu0 %v5089
        %7635 = vmatprep.subr.bf16.mxu0 %v5094
        %7636 = vmatpush1.bf16.msra.mxu0 %v5093
        %7637 = vmatprep.subr.bf16.mxu0 %v5098
        %7638 = vmatpush1.bf16.msra.mxu0 %v5097
        %7639 = vmatprep.subr.bf16.mxu0 %v5102
        %7640 = vmatpush1.bf16.msra.mxu0 %v5101
        %7641 = vmatprep.subr.bf16.mxu0 %v5106
        %7642 = vmatpush1.bf16.msra.mxu0 %v5105
        %7643 = vmatprep.subr.bf16.mxu0 %v5110
        %7644 = vmatpush1.bf16.msra.mxu0 %v5109
        %7645 = vmatprep.mubr.bf16.mxu0 %v548
        %7646 = vmatmul.mubr.bf16.gmra.mrb[0].mxu0 %v547
        %v7647 = vpop.f32.mrb[0].mxu0
        %v7648 = vadd.f32 %v7607, %v7647
        %v7649 = vpop.f32.mrb[0].mxu0
        %v7650 = vadd.f32 %v7609, %v7649
        %v7651 = vpop.f32.mrb[0].mxu0
        %v7652 = vpop.f32.mrb[0].mxu0
        %7653 = vdwg.mxu0
        %7654 = vmatprep.subr.bf16.mxu0 %v5114
        %7655 = vmatpush1.bf16.msra.mxu0 %v5113
        %7656 = vmatprep.subr.bf16.mxu0 %v5118
        %7657 = vmatpush1.bf16.msra.mxu0 %v5117
        %7658 = vmatprep.subr.bf16.mxu0 %v5122
        %7659 = vmatpush1.bf16.msra.mxu0 %v5121
        %7660 = vmatprep.subr.bf16.mxu0 %v5126
        %7661 = vmatpush1.bf16.msra.mxu0 %v5125
        %7662 = vmatprep.subr.bf16.mxu0 %v5130
        %7663 = vmatpush1.bf16.msra.mxu0 %v5129
        %7664 = vmatprep.subr.bf16.mxu0 %v5134
        %7665 = vmatpush1.bf16.msra.mxu0 %v5133
        %7666 = vmatprep.subr.bf16.mxu0 %v5138
        %7667 = vmatpush1.bf16.msra.mxu0 %v5137
        %7668 = vmatprep.subr.bf16.mxu0 %v5142
        %7669 = vmatpush1.bf16.msra.mxu0 %v5141
        %7670 = vmatprep.subr.bf16.mxu0 %v5146
        %7671 = vmatpush1.bf16.msra.mxu0 %v5145
        %7672 = vmatprep.subr.bf16.mxu0 %v5150
        %7673 = vmatpush1.bf16.msra.mxu0 %v5149
        %7674 = vmatprep.subr.bf16.mxu0 %v5154
        %7675 = vmatpush1.bf16.msra.mxu0 %v5153
        %7676 = vmatprep.subr.bf16.mxu0 %v5158
        %7677 = vmatpush1.bf16.msra.mxu0 %v5157
        %7678 = vmatprep.subr.bf16.mxu0 %v5162
        %7679 = vmatpush1.bf16.msra.mxu0 %v5161
        %7680 = vmatprep.subr.bf16.mxu0 %v5166
        %7681 = vmatpush1.bf16.msra.mxu0 %v5165
        %7682 = vmatprep.subr.bf16.mxu0 %v5170
        %7683 = vmatpush1.bf16.msra.mxu0 %v5169
        %7684 = vmatprep.subr.bf16.mxu0 %v5174
        %7685 = vmatpush1.bf16.msra.mxu0 %v5173
        %7686 = vmatprep.mubr.bf16.mxu0 %v550
        %7687 = vmatmul.mubr.bf16.gmra.mrb[0].mxu0 %v549
        %v7688 = vpop.f32.mrb[0].mxu0
        %v7689 = vadd.f32 %v7648, %v7688
        %v7690 = vpop.f32.mrb[0].mxu0
        %v7691 = vadd.f32 %v7650, %v7690
        %v7692 = vpop.f32.mrb[0].mxu0
        %v7693 = vpop.f32.mrb[0].mxu0
        %7694 = vdwg.mxu0
        %7695 = vmatprep.subr.bf16.mxu0 %v5178
        %7696 = vmatpush1.bf16.msra.mxu0 %v5177
        %7697 = vmatprep.subr.bf16.mxu0 %v5182
        %7698 = vmatpush1.bf16.msra.mxu0 %v5181
        %7699 = vmatprep.subr.bf16.mxu0 %v5186
        %7700 = vmatpush1.bf16.msra.mxu0 %v5185
        %7701 = vmatprep.subr.bf16.mxu0 %v5190
        %7702 = vmatpush1.bf16.msra.mxu0 %v5189
        %7703 = vmatprep.subr.bf16.mxu0 %v5194
        %7704 = vmatpush1.bf16.msra.mxu0 %v5193
        %7705 = vmatprep.subr.bf16.mxu0 %v5198
        %7706 = vmatpush1.bf16.msra.mxu0 %v5197
        %7707 = vmatprep.subr.bf16.mxu0 %v5202
        %7708 = vmatpush1.bf16.msra.mxu0 %v5201
        %7709 = vmatprep.subr.bf16.mxu0 %v5206
        %7710 = vmatpush1.bf16.msra.mxu0 %v5205
        %7711 = vmatprep.subr.bf16.mxu0 %v5210
        %7712 = vmatpush1.bf16.msra.mxu0 %v5209
        %7713 = vmatprep.subr.bf16.mxu0 %v5214
        %7714 = vmatpush1.bf16.msra.mxu0 %v5213
        %7715 = vmatprep.subr.bf16.mxu0 %v5218
        %7716 = vmatpush1.bf16.msra.mxu0 %v5217
        %7717 = vmatprep.subr.bf16.mxu0 %v5222
        %7718 = vmatpush1.bf16.msra.mxu0 %v5221
        %7719 = vmatprep.subr.bf16.mxu0 %v5226
        %7720 = vmatpush1.bf16.msra.mxu0 %v5225
        %7721 = vmatprep.subr.bf16.mxu0 %v5230
        %7722 = vmatpush1.bf16.msra.mxu0 %v5229
        %7723 = vmatprep.subr.bf16.mxu0 %v5234
        %7724 = vmatpush1.bf16.msra.mxu0 %v5233
        %7725 = vmatprep.subr.bf16.mxu0 %v5238
        %7726 = vmatpush1.bf16.msra.mxu0 %v5237
        %7727 = vmatprep.mubr.bf16.mxu0 %v552
        %7728 = vmatmul.mubr.bf16.gmra.mrb[0].mxu0 %v551
        %v7729 = vpop.f32.mrb[0].mxu0
        %v7730 = vadd.f32 %v7689, %v7729
        %v7731 = vpop.f32.mrb[0].mxu0
        %v7732 = vadd.f32 %v7691, %v7731
        %v7733 = vpop.f32.mrb[0].mxu0
        %v7734 = vpop.f32.mrb[0].mxu0
        %7735 = vdwg.mxu0
        %7736 = vmatprep.subr.bf16.mxu0 %v5242
        %7737 = vmatpush1.bf16.msra.mxu0 %v5241
        %7738 = vmatprep.subr.bf16.mxu0 %v5246
        %7739 = vmatpush1.bf16.msra.mxu0 %v5245
        %7740 = vmatprep.subr.bf16.mxu0 %v5250
        %7741 = vmatpush1.bf16.msra.mxu0 %v5249
        %7742 = vmatprep.subr.bf16.mxu0 %v5254
        %7743 = vmatpush1.bf16.msra.mxu0 %v5253
        %7744 = vmatprep.subr.bf16.mxu0 %v5258
        %7745 = vmatpush1.bf16.msra.mxu0 %v5257
        %7746 = vmatprep.subr.bf16.mxu0 %v5262
        %7747 = vmatpush1.bf16.msra.mxu0 %v5261
        %7748 = vmatprep.subr.bf16.mxu0 %v5266
        %7749 = vmatpush1.bf16.msra.mxu0 %v5265
        %7750 = vmatprep.subr.bf16.mxu0 %v5270
        %7751 = vmatpush1.bf16.msra.mxu0 %v5269
        %7752 = vmatprep.subr.bf16.mxu0 %v5274
        %7753 = vmatpush1.bf16.msra.mxu0 %v5273
        %7754 = vmatprep.subr.bf16.mxu0 %v5278
        %7755 = vmatpush1.bf16.msra.mxu0 %v5277
        %7756 = vmatprep.subr.bf16.mxu0 %v5282
        %7757 = vmatpush1.bf16.msra.mxu0 %v5281
        %7758 = vmatprep.subr.bf16.mxu0 %v5286
        %7759 = vmatpush1.bf16.msra.mxu0 %v5285
        %7760 = vmatprep.subr.bf16.mxu0 %v5290
        %7761 = vmatpush1.bf16.msra.mxu0 %v5289
        %7762 = vmatprep.subr.bf16.mxu0 %v5294
        %7763 = vmatpush1.bf16.msra.mxu0 %v5293
        %7764 = vmatprep.subr.bf16.mxu0 %v5298
        %7765 = vmatpush1.bf16.msra.mxu0 %v5297
        %7766 = vmatprep.subr.bf16.mxu0 %v5302
        %7767 = vmatpush1.bf16.msra.mxu0 %v5301
        %7768 = vmatprep.mubr.bf16.mxu0 %v554
        %7769 = vmatmul.mubr.bf16.gmra.mrb[0].mxu0 %v553
        %v7770 = vpop.f32.mrb[0].mxu0
        %v7771 = vadd.f32 %v7730, %v7770
        %v7772 = vpop.f32.mrb[0].mxu0
        %v7773 = vadd.f32 %v7732, %v7772
        %v7774 = vpop.f32.mrb[0].mxu0
        %v7775 = vpop.f32.mrb[0].mxu0
        %7776 = vdwg.mxu0
        %7777 = vmatprep.subr.bf16.mxu0 %v5306
        %7778 = vmatpush1.bf16.msra.mxu0 %v5305
        %7779 = vmatprep.subr.bf16.mxu0 %v5310
        %7780 = vmatpush1.bf16.msra.mxu0 %v5309
        %7781 = vmatprep.subr.bf16.mxu0 %v5314
        %7782 = vmatpush1.bf16.msra.mxu0 %v5313
        %7783 = vmatprep.subr.bf16.mxu0 %v5318
        %7784 = vmatpush1.bf16.msra.mxu0 %v5317
        %7785 = vmatprep.subr.bf16.mxu0 %v5322
        %7786 = vmatpush1.bf16.msra.mxu0 %v5321
        %7787 = vmatprep.subr.bf16.mxu0 %v5326
        %7788 = vmatpush1.bf16.msra.mxu0 %v5325
        %7789 = vmatprep.subr.bf16.mxu0 %v5330
        %7790 = vmatpush1.bf16.msra.mxu0 %v5329
        %7791 = vmatprep.subr.bf16.mxu0 %v5334
        %7792 = vmatpush1.bf16.msra.mxu0 %v5333
        %7793 = vmatprep.subr.bf16.mxu0 %v5338
        %7794 = vmatpush1.bf16.msra.mxu0 %v5337
        %7795 = vmatprep.subr.bf16.mxu0 %v5342
        %7796 = vmatpush1.bf16.msra.mxu0 %v5341
        %7797 = vmatprep.subr.bf16.mxu0 %v5346
        %7798 = vmatpush1.bf16.msra.mxu0 %v5345
        %7799 = vmatprep.subr.bf16.mxu0 %v5350
        %7800 = vmatpush1.bf16.msra.mxu0 %v5349
        %7801 = vmatprep.subr.bf16.mxu0 %v5354
        %7802 = vmatpush1.bf16.msra.mxu0 %v5353
        %7803 = vmatprep.subr.bf16.mxu0 %v5358
        %7804 = vmatpush1.bf16.msra.mxu0 %v5357
        %7805 = vmatprep.subr.bf16.mxu0 %v5362
        %7806 = vmatpush1.bf16.msra.mxu0 %v5361
        %7807 = vmatprep.subr.bf16.mxu0 %v5366
        %7808 = vmatpush1.bf16.msra.mxu0 %v5365
        %7809 = vmatprep.mubr.bf16.mxu0 %v556
        %7810 = vmatmul.mubr.bf16.gmra.mrb[0].mxu0 %v555
        %v7811 = vpop.f32.mrb[0].mxu0
        %v7812 = vadd.f32 %v7771, %v7811
        %v7813 = vpop.f32.mrb[0].mxu0
        %v7814 = vadd.f32 %v7773, %v7813
        %v7815 = vpop.f32.mrb[0].mxu0
        %v7816 = vpop.f32.mrb[0].mxu0
        %7817 = vdwg.mxu0
        %7818 = vmatprep.subr.bf16.mxu0 %v5370
        %7819 = vmatpush1.bf16.msra.mxu0 %v5369
        %7820 = vmatprep.subr.bf16.mxu0 %v5374
        %7821 = vmatpush1.bf16.msra.mxu0 %v5373
        %7822 = vmatprep.subr.bf16.mxu0 %v5378
        %7823 = vmatpush1.bf16.msra.mxu0 %v5377
        %7824 = vmatprep.subr.bf16.mxu0 %v5382
        %7825 = vmatpush1.bf16.msra.mxu0 %v5381
        %7826 = vmatprep.subr.bf16.mxu0 %v5386
        %7827 = vmatpush1.bf16.msra.mxu0 %v5385
        %7828 = vmatprep.subr.bf16.mxu0 %v5390
        %7829 = vmatpush1.bf16.msra.mxu0 %v5389
        %7830 = vmatprep.subr.bf16.mxu0 %v5394
        %7831 = vmatpush1.bf16.msra.mxu0 %v5393
        %7832 = vmatprep.subr.bf16.mxu0 %v5398
        %7833 = vmatpush1.bf16.msra.mxu0 %v5397
        %7834 = vmatprep.subr.bf16.mxu0 %v5402
        %7835 = vmatpush1.bf16.msra.mxu0 %v5401
        %7836 = vmatprep.subr.bf16.mxu0 %v5406
        %7837 = vmatpush1.bf16.msra.mxu0 %v5405
        %7838 = vmatprep.subr.bf16.mxu0 %v5410
        %7839 = vmatpush1.bf16.msra.mxu0 %v5409
        %7840 = vmatprep.subr.bf16.mxu0 %v5414
        %7841 = vmatpush1.bf16.msra.mxu0 %v5413
        %7842 = vmatprep.subr.bf16.mxu0 %v5418
        %7843 = vmatpush1.bf16.msra.mxu0 %v5417
        %7844 = vmatprep.subr.bf16.mxu0 %v5422
        %7845 = vmatpush1.bf16.msra.mxu0 %v5421
        %7846 = vmatprep.subr.bf16.mxu0 %v5426
        %7847 = vmatpush1.bf16.msra.mxu0 %v5425
        %7848 = vmatprep.subr.bf16.mxu0 %v5430
        %7849 = vmatpush1.bf16.msra.mxu0 %v5429
        %7850 = vmatprep.mubr.bf16.mxu0 %v558
        %7851 = vmatmul.mubr.bf16.gmra.mrb[0].mxu0 %v557
        %v7852 = vpop.f32.mrb[0].mxu0
        %v7853 = vadd.f32 %v7812, %v7852
        %v7854 = vpop.f32.mrb[0].mxu0
        %v7855 = vadd.f32 %v7814, %v7854
        %v7856 = vpop.f32.mrb[0].mxu0
        %v7857 = vpop.f32.mrb[0].mxu0
        %7858 = vdwg.mxu0
        %7859 = vmatprep.subr.bf16.mxu0 %v5434
        %7860 = vmatpush1.bf16.msra.mxu0 %v5433
        %7861 = vmatprep.subr.bf16.mxu0 %v5438
        %7862 = vmatpush1.bf16.msra.mxu0 %v5437
        %7863 = vmatprep.subr.bf16.mxu0 %v5442
        %7864 = vmatpush1.bf16.msra.mxu0 %v5441
        %7865 = vmatprep.subr.bf16.mxu0 %v5446
        %7866 = vmatpush1.bf16.msra.mxu0 %v5445
        %7867 = vmatprep.subr.bf16.mxu0 %v5450
        %7868 = vmatpush1.bf16.msra.mxu0 %v5449
        %7869 = vmatprep.subr.bf16.mxu0 %v5454
        %7870 = vmatpush1.bf16.msra.mxu0 %v5453
        %7871 = vmatprep.subr.bf16.mxu0 %v5458
        %7872 = vmatpush1.bf16.msra.mxu0 %v5457
        %7873 = vmatprep.subr.bf16.mxu0 %v5462
        %7874 = vmatpush1.bf16.msra.mxu0 %v5461
        %7875 = vmatprep.subr.bf16.mxu0 %v5466
        %7876 = vmatpush1.bf16.msra.mxu0 %v5465
        %7877 = vmatprep.subr.bf16.mxu0 %v5470
        %7878 = vmatpush1.bf16.msra.mxu0 %v5469
        %7879 = vmatprep.subr.bf16.mxu0 %v5474
        %7880 = vmatpush1.bf16.msra.mxu0 %v5473
        %7881 = vmatprep.subr.bf16.mxu0 %v5478
        %7882 = vmatpush1.bf16.msra.mxu0 %v5477
        %7883 = vmatprep.subr.bf16.mxu0 %v5482
        %7884 = vmatpush1.bf16.msra.mxu0 %v5481
        %7885 = vmatprep.subr.bf16.mxu0 %v5486
        %7886 = vmatpush1.bf16.msra.mxu0 %v5485
        %7887 = vmatprep.subr.bf16.mxu0 %v5490
        %7888 = vmatpush1.bf16.msra.mxu0 %v5489
        %7889 = vmatprep.subr.bf16.mxu0 %v5494
        %7890 = vmatpush1.bf16.msra.mxu0 %v5493
        %7891 = vmatprep.mubr.bf16.mxu0 %v560
        %7892 = vmatmul.mubr.bf16.gmra.mrb[0].mxu0 %v559
        %v7893 = vpop.f32.mrb[0].mxu0
        %v7894 = vadd.f32 %v7853, %v7893
        %v7895 = vpop.f32.mrb[0].mxu0
        %v7896 = vadd.f32 %v7855, %v7895
        %v7897 = vpop.f32.mrb[0].mxu0
        %v7898 = vpop.f32.mrb[0].mxu0
        %7899 = vdwg.mxu0
        %7900 = vmatprep.subr.bf16.mxu0 %v5498
        %7901 = vmatpush1.bf16.msra.mxu0 %v5497
        %7902 = vmatprep.subr.bf16.mxu0 %v5502
        %7903 = vmatpush1.bf16.msra.mxu0 %v5501
        %7904 = vmatprep.subr.bf16.mxu0 %v5506
        %7905 = vmatpush1.bf16.msra.mxu0 %v5505
        %7906 = vmatprep.subr.bf16.mxu0 %v5510
        %7907 = vmatpush1.bf16.msra.mxu0 %v5509
        %7908 = vmatprep.subr.bf16.mxu0 %v5514
        %7909 = vmatpush1.bf16.msra.mxu0 %v5513
        %7910 = vmatprep.subr.bf16.mxu0 %v5518
        %7911 = vmatpush1.bf16.msra.mxu0 %v5517
        %7912 = vmatprep.subr.bf16.mxu0 %v5522
        %7913 = vmatpush1.bf16.msra.mxu0 %v5521
        %7914 = vmatprep.subr.bf16.mxu0 %v5526
        %7915 = vmatpush1.bf16.msra.mxu0 %v5525
        %7916 = vmatprep.subr.bf16.mxu0 %v5530
        %7917 = vmatpush1.bf16.msra.mxu0 %v5529
        %7918 = vmatprep.subr.bf16.mxu0 %v5534
        %7919 = vmatpush1.bf16.msra.mxu0 %v5533
        %7920 = vmatprep.subr.bf16.mxu0 %v5538
        %7921 = vmatpush1.bf16.msra.mxu0 %v5537
        %7922 = vmatprep.subr.bf16.mxu0 %v5542
        %7923 = vmatpush1.bf16.msra.mxu0 %v5541
        %7924 = vmatprep.subr.bf16.mxu0 %v5546
        %7925 = vmatpush1.bf16.msra.mxu0 %v5545
        %7926 = vmatprep.subr.bf16.mxu0 %v5550
        %7927 = vmatpush1.bf16.msra.mxu0 %v5549
        %7928 = vmatprep.subr.bf16.mxu0 %v5554
        %7929 = vmatpush1.bf16.msra.mxu0 %v5553
        %7930 = vmatprep.subr.bf16.mxu0 %v5558
        %7931 = vmatpush1.bf16.msra.mxu0 %v5557
        %7932 = vmatprep.mubr.bf16.mxu0 %v562
        %7933 = vmatmul.mubr.bf16.gmra.mrb[0].mxu0 %v561
        %v7934 = vpop.f32.mrb[0].mxu0
        %v7935 = vadd.f32 %v7894, %v7934
        %v7936 = vpop.f32.mrb[0].mxu0
        %v7937 = vadd.f32 %v7896, %v7936
        %v7938 = vpop.f32.mrb[0].mxu0
        %v7939 = vpop.f32.mrb[0].mxu0
        %7940 = vdwg.mxu0
        %7941 = vmatprep.subr.bf16.mxu0 %v5562
        %7942 = vmatpush1.bf16.msra.mxu0 %v5561
        %7943 = vmatprep.subr.bf16.mxu0 %v5566
        %7944 = vmatpush1.bf16.msra.mxu0 %v5565
        %7945 = vmatprep.subr.bf16.mxu0 %v5570
        %7946 = vmatpush1.bf16.msra.mxu0 %v5569
        %7947 = vmatprep.subr.bf16.mxu0 %v5574
        %7948 = vmatpush1.bf16.msra.mxu0 %v5573
        %7949 = vmatprep.subr.bf16.mxu0 %v5578
        %7950 = vmatpush1.bf16.msra.mxu0 %v5577
        %7951 = vmatprep.subr.bf16.mxu0 %v5582
        %7952 = vmatpush1.bf16.msra.mxu0 %v5581
        %7953 = vmatprep.subr.bf16.mxu0 %v5586
        %7954 = vmatpush1.bf16.msra.mxu0 %v5585
        %7955 = vmatprep.subr.bf16.mxu0 %v5590
        %7956 = vmatpush1.bf16.msra.mxu0 %v5589
        %7957 = vmatprep.subr.bf16.mxu0 %v5594
        %7958 = vmatpush1.bf16.msra.mxu0 %v5593
        %7959 = vmatprep.subr.bf16.mxu0 %v5598
        %7960 = vmatpush1.bf16.msra.mxu0 %v5597
        %7961 = vmatprep.subr.bf16.mxu0 %v5602
        %7962 = vmatpush1.bf16.msra.mxu0 %v5601
        %7963 = vmatprep.subr.bf16.mxu0 %v5606
        %7964 = vmatpush1.bf16.msra.mxu0 %v5605
        %7965 = vmatprep.subr.bf16.mxu0 %v5610
        %7966 = vmatpush1.bf16.msra.mxu0 %v5609
        %7967 = vmatprep.subr.bf16.mxu0 %v5614
        %7968 = vmatpush1.bf16.msra.mxu0 %v5613
        %7969 = vmatprep.subr.bf16.mxu0 %v5618
        %7970 = vmatpush1.bf16.msra.mxu0 %v5617
        %7971 = vmatprep.subr.bf16.mxu0 %v5622
        %7972 = vmatpush1.bf16.msra.mxu0 %v5621
        %7973 = vmatprep.mubr.bf16.mxu0 %v564
        %7974 = vmatmul.mubr.bf16.gmra.mrb[0].mxu0 %v563
        %v7975 = vpop.f32.mrb[0].mxu0
        %v7976 = vadd.f32 %v7935, %v7975
        %v7977 = vpop.f32.mrb[0].mxu0
        %v7978 = vadd.f32 %v7937, %v7977
        %v7979 = vpop.f32.mrb[0].mxu0
        %v7980 = vpop.f32.mrb[0].mxu0
        %7981 = vdwg.mxu0
        %7982 = vmatprep.subr.bf16.mxu0 %v5626
        %7983 = vmatpush1.bf16.msra.mxu0 %v5625
        %7984 = vmatprep.subr.bf16.mxu0 %v5630
        %7985 = vmatpush1.bf16.msra.mxu0 %v5629
        %7986 = vmatprep.subr.bf16.mxu0 %v5634
        %7987 = vmatpush1.bf16.msra.mxu0 %v5633
        %7988 = vmatprep.subr.bf16.mxu0 %v5638
        %7989 = vmatpush1.bf16.msra.mxu0 %v5637
        %7990 = vmatprep.subr.bf16.mxu0 %v5642
        %7991 = vmatpush1.bf16.msra.mxu0 %v5641
        %7992 = vmatprep.subr.bf16.mxu0 %v5646
        %7993 = vmatpush1.bf16.msra.mxu0 %v5645
        %7994 = vmatprep.subr.bf16.mxu0 %v5650
        %7995 = vmatpush1.bf16.msra.mxu0 %v5649
        %7996 = vmatprep.subr.bf16.mxu0 %v5654
        %7997 = vmatpush1.bf16.msra.mxu0 %v5653
        %7998 = vmatprep.subr.bf16.mxu0 %v5658
        %7999 = vmatpush1.bf16.msra.mxu0 %v5657
        %8000 = vmatprep.subr.bf16.mxu0 %v5662
        %8001 = vmatpush1.bf16.msra.mxu0 %v5661
        %8002 = vmatprep.subr.bf16.mxu0 %v5666
        %8003 = vmatpush1.bf16.msra.mxu0 %v5665
        %8004 = vmatprep.subr.bf16.mxu0 %v5670
        %8005 = vmatpush1.bf16.msra.mxu0 %v5669
        %8006 = vmatprep.subr.bf16.mxu0 %v5674
        %8007 = vmatpush1.bf16.msra.mxu0 %v5673
        %8008 = vmatprep.subr.bf16.mxu0 %v5678
        %8009 = vmatpush1.bf16.msra.mxu0 %v5677
        %8010 = vmatprep.subr.bf16.mxu0 %v5682
        %8011 = vmatpush1.bf16.msra.mxu0 %v5681
        %8012 = vmatprep.subr.bf16.mxu0 %v5686
        %8013 = vmatpush1.bf16.msra.mxu0 %v5685
        %8014 = vmatprep.mubr.bf16.mxu0 %v566
        %8015 = vmatmul.mubr.bf16.gmra.mrb[0].mxu0 %v565
        %v8016 = vpop.f32.mrb[0].mxu0
        %v8017 = vadd.f32 %v7976, %v8016
        %v8018 = vpop.f32.mrb[0].mxu0
        %v8019 = vadd.f32 %v7978, %v8018
        %v8020 = vpop.f32.mrb[0].mxu0
        %v8021 = vpop.f32.mrb[0].mxu0
        %8022 = vdwg.mxu0
        %v8027 = vcombine.low %v7361, %v7363
        %v8028 = vcombine.low %v8017, %v8019
        %v8030 = vunpack.c.l.s4 1983009808
        %v8031 = vunpack.c.0.s8 %v8030
        %v8032 = vlaneseq
        %v8033 = vshrl.u32 %v8032, 7
        %v8034 = vsub.s32 %v8031, %v8033
        %v8035 = vrot.slane %v8027, %v8034
        %v8037 = vunpack.c.l.s4 1983009808
        %v8038 = vunpack.c.0.s8 %v8037
        %v8039 = vlaneseq
        %v8040 = vshrl.u32 %v8039, 7
        %v8041 = vsub.s32 %v8038, %v8040
        %v8042 = vrot.slane %v8028, %v8041
        %v8043 = vcombine.low %v8035, %v8042
        %v8045 = vadd.f32 %v350, %v8043
        %8046 = vst [vmem:[#allocation2] sm:$0xff] %v8045
        %p8047 = scmp.eq.s32.totalorder %s24, 3
        // Predicated region
        $region61: #{finetune_state_forward.1} parent=39 // pred_check
          %p8048 = pneg %p8047
        $region62: #{finetune_state_forward.1} parent=39 // pred_check_branch
          %8050 = sbr.rel (%p8048) target = $region64
        $region63: #{finetune_state_forward.1} parent=39 // pred_region
          %v8051 = vld [vmem:[#allocation2] sm:$0xff]
          %v8052 = vld [vmem:[#allocation8] sm:$0xf]
          %v8054 = vlaneseq
          %v8055 = vshrl.u32 %v8054, 7
          %v8056 = vsub.s32 0, %v8055
          %v8057 = vrot.slane %v8052, %v8056
          %v8058 = vlaneseq
          %v8059 = vshrl.u32 %v8058, 7
          %v8060 = vsub.s32 1, %v8059
          %v8061 = vrot.slane %v8052, %v8060
          %v8062 = vlaneseq
          %v8063 = vshrl.u32 %v8062, 7
          %v8064 = vsub.s32 2, %v8063
          %v8065 = vrot.slane %v8052, %v8064
          %v8066 = vlaneseq
          %v8067 = vshrl.u32 %v8066, 7
          %v8068 = vsub.s32 3, %v8067
          %v8069 = vrot.slane %v8052, %v8068
          %v8070 = vcombine.low %v8057, %v8061
          %v8071 = vcombine.low %v8065, %v8069
          %v8073 = vunpack.c.l.s4 1983009808
          %v8074 = vunpack.c.0.s8 %v8073
          %v8075 = vlaneseq
          %v8076 = vshrl.u32 %v8075, 7
          %v8077 = vsub.s32 %v8074, %v8076
          %v8078 = vrot.slane %v8070, %v8077
          %v8080 = vunpack.c.l.s4 1983009808
          %v8081 = vunpack.c.0.s8 %v8080
          %v8082 = vlaneseq
          %v8083 = vshrl.u32 %v8082, 7
          %v8084 = vsub.s32 %v8081, %v8083
          %v8085 = vrot.slane %v8071, %v8084
          %v8086 = vcombine.low %v8078, %v8085
          %v8088 = vadd.f32 %v8051, %v8086
          %v8089 = vmax.f32 %v8088, 0.0
          %v8090 = vld [vmem:[%s3] sm:$0xff]
          %v8091 = vld [vmem:[%s3 + $0x8] sm:$0xff]
          %v8092 = vld [vmem:[%s3 + $0x10] sm:$0xff]
          %v8093 = vld [vmem:[%s3 + $0x18] sm:$0xff]
          %v8094 = vld [vmem:[%s3 + $0x20] sm:$0xff]
          %v8095 = vld [vmem:[%s3 + $0x28] sm:$0xff]
          %v8096 = vld [vmem:[%s3 + $0x30] sm:$0xff]
          %v8097 = vld [vmem:[%s3 + $0x38] sm:$0xff]
          %v8098 = vld [vmem:[%s3 + $0x40] sm:$0xff]
          %v8099 = vld [vmem:[%s3 + $0x48] sm:$0xff]
          %v8100 = vld [vmem:[%s3 + $0x50] sm:$0xff]
          %v8101 = vld [vmem:[%s3 + $0x58] sm:$0xff]
          %v8102 = vld [vmem:[%s3 + $0x60] sm:$0xff]
          %v8103 = vld [vmem:[%s3 + $0x68] sm:$0xff]
          %v8104 = vld [vmem:[%s3 + $0x70] sm:$0xff]
          %v8105 = vld [vmem:[%s3 + $0x78] sm:$0xff]
          %v8106 = vld [vmem:[%s3 + $0x80] sm:$0xff]
          %v8107 = vld [vmem:[%s3 + $0x88] sm:$0xff]
          %v8108 = vld [vmem:[%s3 + $0x90] sm:$0xff]
          %v8109 = vld [vmem:[%s3 + $0x98] sm:$0xff]
          %v8110 = vld [vmem:[%s3 + $0xa0] sm:$0xff]
          %v8111 = vld [vmem:[%s3 + $0xa8] sm:$0xff]
          %v8112 = vld [vmem:[%s3 + $0xb0] sm:$0xff]
          %v8113 = vld [vmem:[%s3 + $0xb8] sm:$0xff]
          %v8114 = vld [vmem:[%s3 + $0xc0] sm:$0xff]
          %v8115 = vld [vmem:[%s3 + $0xc8] sm:$0xff]
          %v8116 = vld [vmem:[%s3 + $0xd0] sm:$0xff]
          %v8117 = vld [vmem:[%s3 + $0xd8] sm:$0xff]
          %v8118 = vld [vmem:[%s3 + $0xe0] sm:$0xff]
          %v8119 = vld [vmem:[%s3 + $0xe8] sm:$0xff]
          %v8120 = vld [vmem:[%s3 + $0xf0] sm:$0xff]
          %v8121 = vld [vmem:[%s3 + $0xf8] sm:$0xff]
          %v8122 = vld [vmem:[%s3 + $0x100] sm:$0xff]
          %v8123 = vld [vmem:[%s3 + $0x108] sm:$0xff]
          %v8124 = vld [vmem:[%s3 + $0x110] sm:$0xff]
          %v8125 = vld [vmem:[%s3 + $0x118] sm:$0xff]
          %v8126 = vld [vmem:[%s3 + $0x120] sm:$0xff]
          %v8127 = vld [vmem:[%s3 + $0x128] sm:$0xff]
          %v8128 = vld [vmem:[%s3 + $0x130] sm:$0xff]
          %v8129 = vld [vmem:[%s3 + $0x138] sm:$0xff]
          %v8130 = vld [vmem:[%s3 + $0x140] sm:$0xff]
          %v8131 = vld [vmem:[%s3 + $0x148] sm:$0xff]
          %v8132 = vld [vmem:[%s3 + $0x150] sm:$0xff]
          %v8133 = vld [vmem:[%s3 + $0x158] sm:$0xff]
          %v8134 = vld [vmem:[%s3 + $0x160] sm:$0xff]
          %v8135 = vld [vmem:[%s3 + $0x168] sm:$0xff]
          %v8136 = vld [vmem:[%s3 + $0x170] sm:$0xff]
          %v8137 = vld [vmem:[%s3 + $0x178] sm:$0xff]
          %v8138 = vld [vmem:[%s3 + $0x180] sm:$0xff]
          %v8139 = vld [vmem:[%s3 + $0x188] sm:$0xff]
          %v8140 = vld [vmem:[%s3 + $0x190] sm:$0xff]
          %v8141 = vld [vmem:[%s3 + $0x198] sm:$0xff]
          %v8142 = vld [vmem:[%s3 + $0x1a0] sm:$0xff]
          %v8143 = vld [vmem:[%s3 + $0x1a8] sm:$0xff]
          %v8144 = vld [vmem:[%s3 + $0x1b0] sm:$0xff]
          %v8145 = vld [vmem:[%s3 + $0x1b8] sm:$0xff]
          %v8146 = vld [vmem:[%s3 + $0x1c0] sm:$0xff]
          %v8147 = vld [vmem:[%s3 + $0x1c8] sm:$0xff]
          %v8148 = vld [vmem:[%s3 + $0x1d0] sm:$0xff]
          %v8149 = vld [vmem:[%s3 + $0x1d8] sm:$0xff]
          %v8150 = vld [vmem:[%s3 + $0x1e0] sm:$0xff]
          %v8151 = vld [vmem:[%s3 + $0x1e8] sm:$0xff]
          %v8152 = vld [vmem:[%s3 + $0x1f0] sm:$0xff]
          %v8153 = vld [vmem:[%s3 + $0x1f8] sm:$0xff]
          %v8154 = vld [vmem:[#allocation9] sm:$0x1]
          %v8156 = vlaneseq
          %v8157 = vshrl.u32 %v8156, 7
          %v8158 = vsub.s32 0, %v8157
          %v8159 = vrot.slane %v8154, %v8158
          %v8162 = vcombine.high %v8089, %v8089
          %v8164 = vunpack.c.l.s4 1983009808
          %v8165 = vunpack.c.0.s8 %v8164
          %v8166 = vlaneseq
          %v8167 = vshrl.u32 %v8166, 7
          %v8168 = vsub.s32 %v8165, %v8167
          %v8169 = vrot.slane %v8089, %v8168
          %v8171 = vunpack.c.l.s4 1983009808
          %v8172 = vunpack.c.0.s8 %v8171
          %v8173 = vlaneseq
          %v8174 = vshrl.u32 %v8173, 7
          %v8175 = vsub.s32 %v8172, %v8174
          %v8176 = vrot.slane %v8162, %v8175
          %v8177 = vcombine.high %v8169, %v8169
          %v8178 = vcombine.high %v8176, %v8176
          %8183 = vmatprep.subr.mxu0 0.0
          %8184 = vmatpush1.msra.mxu0 %v8090
          %8185 = vmatprep.subr.mxu0 0.0
          %8186 = vmatpush1.msra.mxu0 %v8091
          %8187 = vmatprep.subr.mxu0 0.0
          %8188 = vmatpush1.msra.mxu0 %v8092
          %8189 = vmatprep.subr.mxu0 0.0
          %8190 = vmatpush1.msra.mxu0 %v8093
          %8191 = vmatprep.subr.mxu0 0.0
          %8192 = vmatpush1.msra.mxu0 %v8094
          %8193 = vmatprep.subr.mxu0 0.0
          %8194 = vmatpush1.msra.mxu0 %v8095
          %8195 = vmatprep.subr.mxu0 0.0
          %8196 = vmatpush1.msra.mxu0 %v8096
          %8197 = vmatprep.subr.mxu0 0.0
          %8198 = vmatpush1.msra.mxu0 %v8097
          %8199 = vmatprep.subr.mxu0 0.0
          %8200 = vmatpush1.msra.mxu0 %v8098
          %8201 = vmatprep.subr.mxu0 0.0
          %8202 = vmatpush1.msra.mxu0 %v8099
          %8203 = vmatprep.subr.mxu0 0.0
          %8204 = vmatpush1.msra.mxu0 %v8100
          %8205 = vmatprep.subr.mxu0 0.0
          %8206 = vmatpush1.msra.mxu0 %v8101
          %8207 = vmatprep.subr.mxu0 0.0
          %8208 = vmatpush1.msra.mxu0 %v8102
          %8209 = vmatprep.subr.mxu0 0.0
          %8210 = vmatpush1.msra.mxu0 %v8103
          %8211 = vmatprep.subr.mxu0 0.0
          %8212 = vmatpush1.msra.mxu0 %v8104
          %8213 = vmatprep.subr.mxu0 0.0
          %8214 = vmatpush1.msra.mxu0 %v8105
          %8215 = vmatprep.subr.mxu0 0.0
          %8216 = vmatpush1.msra.mxu0 %v8106
          %8217 = vmatprep.subr.mxu0 0.0
          %8218 = vmatpush1.msra.mxu0 %v8107
          %8219 = vmatprep.subr.mxu0 0.0
          %8220 = vmatpush1.msra.mxu0 %v8108
          %8221 = vmatprep.subr.mxu0 0.0
          %8222 = vmatpush1.msra.mxu0 %v8109
          %8223 = vmatprep.subr.mxu0 0.0
          %8224 = vmatpush1.msra.mxu0 %v8110
          %8225 = vmatprep.subr.mxu0 0.0
          %8226 = vmatpush1.msra.mxu0 %v8111
          %8227 = vmatprep.subr.mxu0 0.0
          %8228 = vmatpush1.msra.mxu0 %v8112
          %8229 = vmatprep.subr.mxu0 0.0
          %8230 = vmatpush1.msra.mxu0 %v8113
          %8231 = vmatprep.subr.mxu0 0.0
          %8232 = vmatpush1.msra.mxu0 %v8114
          %8233 = vmatprep.subr.mxu0 0.0
          %8234 = vmatpush1.msra.mxu0 %v8115
          %8235 = vmatprep.subr.mxu0 0.0
          %8236 = vmatpush1.msra.mxu0 %v8116
          %8237 = vmatprep.subr.mxu0 0.0
          %8238 = vmatpush1.msra.mxu0 %v8117
          %8239 = vmatprep.subr.mxu0 0.0
          %8240 = vmatpush1.msra.mxu0 %v8118
          %8241 = vmatprep.subr.mxu0 0.0
          %8242 = vmatpush1.msra.mxu0 %v8119
          %8243 = vmatprep.subr.mxu0 0.0
          %8244 = vmatpush1.msra.mxu0 %v8120
          %8245 = vmatprep.subr.mxu0 0.0
          %8246 = vmatpush1.msra.mxu0 %v8121
          %8247 = vmatprep.mubr.f32.mxu0 %v8177
          %8248 = vmatmul.mubr.f32.gmra.mrb[0].mxu0 %v8169
          %v8249 = vpop.f32.mrb[0].mxu0
          %v8250 = vadd.f32 %v8159, %v8249
          %v8251 = vpop.f32.mrb[0].mxu0
          %8252 = vdwg.mxu0
          %8253 = vmatprep.subr.mxu0 0.0
          %8254 = vmatpush1.msra.mxu0 %v8122
          %8255 = vmatprep.subr.mxu0 0.0
          %8256 = vmatpush1.msra.mxu0 %v8123
          %8257 = vmatprep.subr.mxu0 0.0
          %8258 = vmatpush1.msra.mxu0 %v8124
          %8259 = vmatprep.subr.mxu0 0.0
          %8260 = vmatpush1.msra.mxu0 %v8125
          %8261 = vmatprep.subr.mxu0 0.0
          %8262 = vmatpush1.msra.mxu0 %v8126
          %8263 = vmatprep.subr.mxu0 0.0
          %8264 = vmatpush1.msra.mxu0 %v8127
          %8265 = vmatprep.subr.mxu0 0.0
          %8266 = vmatpush1.msra.mxu0 %v8128
          %8267 = vmatprep.subr.mxu0 0.0
          %8268 = vmatpush1.msra.mxu0 %v8129
          %8269 = vmatprep.subr.mxu0 0.0
          %8270 = vmatpush1.msra.mxu0 %v8130
          %8271 = vmatprep.subr.mxu0 0.0
          %8272 = vmatpush1.msra.mxu0 %v8131
          %8273 = vmatprep.subr.mxu0 0.0
          %8274 = vmatpush1.msra.mxu0 %v8132
          %8275 = vmatprep.subr.mxu0 0.0
          %8276 = vmatpush1.msra.mxu0 %v8133
          %8277 = vmatprep.subr.mxu0 0.0
          %8278 = vmatpush1.msra.mxu0 %v8134
          %8279 = vmatprep.subr.mxu0 0.0
          %8280 = vmatpush1.msra.mxu0 %v8135
          %8281 = vmatprep.subr.mxu0 0.0
          %8282 = vmatpush1.msra.mxu0 %v8136
          %8283 = vmatprep.subr.mxu0 0.0
          %8284 = vmatpush1.msra.mxu0 %v8137
          %8285 = vmatprep.subr.mxu0 0.0
          %8286 = vmatpush1.msra.mxu0 %v8138
          %8287 = vmatprep.subr.mxu0 0.0
          %8288 = vmatpush1.msra.mxu0 %v8139
          %8289 = vmatprep.subr.mxu0 0.0
          %8290 = vmatpush1.msra.mxu0 %v8140
          %8291 = vmatprep.subr.mxu0 0.0
          %8292 = vmatpush1.msra.mxu0 %v8141
          %8293 = vmatprep.subr.mxu0 0.0
          %8294 = vmatpush1.msra.mxu0 %v8142
          %8295 = vmatprep.subr.mxu0 0.0
          %8296 = vmatpush1.msra.mxu0 %v8143
          %8297 = vmatprep.subr.mxu0 0.0
          %8298 = vmatpush1.msra.mxu0 %v8144
          %8299 = vmatprep.subr.mxu0 0.0
          %8300 = vmatpush1.msra.mxu0 %v8145
          %8301 = vmatprep.subr.mxu0 0.0
          %8302 = vmatpush1.msra.mxu0 %v8146
          %8303 = vmatprep.subr.mxu0 0.0
          %8304 = vmatpush1.msra.mxu0 %v8147
          %8305 = vmatprep.subr.mxu0 0.0
          %8306 = vmatpush1.msra.mxu0 %v8148
          %8307 = vmatprep.subr.mxu0 0.0
          %8308 = vmatpush1.msra.mxu0 %v8149
          %8309 = vmatprep.subr.mxu0 0.0
          %8310 = vmatpush1.msra.mxu0 %v8150
          %8311 = vmatprep.subr.mxu0 0.0
          %8312 = vmatpush1.msra.mxu0 %v8151
          %8313 = vmatprep.subr.mxu0 0.0
          %8314 = vmatpush1.msra.mxu0 %v8152
          %8315 = vmatprep.subr.mxu0 0.0
          %8316 = vmatpush1.msra.mxu0 %v8153
          %8317 = vmatprep.mubr.f32.mxu0 %v8178
          %8318 = vmatmul.mubr.f32.gmra.mrb[0].mxu0 %v8176
          %v8319 = vpop.f32.mrb[0].mxu0
          %v8320 = vadd.f32 %v8250, %v8319
          %v8321 = vpop.f32.mrb[0].mxu0
          %8322 = vdwg.mxu0
          %vm8323 = vcmask 9216
          %8324 = vst.msk [vmem:[#allocation11] sm:$0x3] %vm8323, %v8320
        $region64: #{finetune_state_forward.1} parent=39 // pred_fallthru
          _
        // Predicated region
        $region65: #{finetune_state_forward.1} parent=39 // pred_check
          %p8325 = pneg %p176
        $region66: #{finetune_state_forward.1} parent=39 // pred_check_branch
          %8327 = sbr.rel (%p8325) target = $region68
        $region67: #{finetune_state_forward.1} parent=39 // pred_region
          %s8329 = ssub.s32 32, 32
          %8330 = vsyncadd [#allocation5], %s8329
          %s8332 = sshll.u32 [#allocation11], 4
          %s8333 = int_to_ptr.vmem [resolvable:$true] %s8332
          %8335 = dma.vmem_to_hbm [thread:$0]  %s8333, 32, %s5, [#allocation5]
        $region68: #{finetune_state_forward.1} parent=39 // pred_fallthru
          _
        // Predicated region
        $region69: #{finetune_state_forward.1} parent=39 // pred_check
          %p8336 = pneg %p176
        $region70: #{finetune_state_forward.1} parent=39 // pred_check_branch
          %8338 = sbr.rel (%p8336) target = $region72
        $region71: #{finetune_state_forward.1} parent=39 // pred_region
          %8339 = dma.done [#allocation5], 32
        $region72: #{finetune_state_forward.1} parent=39 // pred_fallthru
          _
      $region40: #{finetune_state_forward.1} parent=5 // pred_fallthru
        _
      %p8340 = scmp.le.s32.totalorder 2, %s19
      // Predicated region
      $region73: #{finetune_state_forward.1} parent=5 // pred_check
        %p8341 = pneg %p8340
      $region74: #{finetune_state_forward.1} parent=5 // pred_check_branch
        %8343 = sbr.rel (%p8341) target = $region76
      $region75: #{finetune_state_forward.1} parent=5 // pred_region
        %s8344 = ssub.s32 %s19, 2
      $region76: #{finetune_state_forward.1} parent=5 // pred_fallthru
        _
    $region6: #{finetune_state_forward.1} parent=1 // loop_footer
      %s23 = sadd.s32 1, %s19
    $region7: #{finetune_state_forward.1} parent=1 // loop_footer_branch
      %18 = sbr.rel target = $region3
    $region8: #{finetune_state_forward.1} parent=1 // loop_exit
      _
    %8345 = vsyncpa [#allocation4], 1
    %s8346 = scalar_lea.sflag [#allocation4], 1
    %8347 = vsyncpa %s8346, 1
    %8348 = vsyncpa [#allocation7], 1
    %s8349 = scalar_lea.sflag [#allocation7], 1
    %8350 = vsyncpa %s8349, 1
    %8351 = vsyncpa [#allocation10], 1
    %8352 = vsyncpa [#allocation5], 1
    %s8353 = scalar_lea.sflag [#allocation5], 1
    %8354 = vsyncpa %s8353, 1

</llo_original>
